<compile_context>
chip_gen: v6e
topology: v6e:2x2x1
jax: 0.10.0
libtpu: 0.0.40
codegen_flags: <defaults>
</compile_context>

<pallas_src>
import jax
import jax.numpy as jnp
from jax.experimental import pallas as pl
from jax.experimental.pallas import tpu as pltpu

# ----------------------- model hyper-parameters (small) -----------------------
IMG = 16
PATCH = 4
IN_CHANS = 3
EMBED = 32
DEPTH = 2
NUM_HEADS = 4
HEAD_DIM = EMBED // NUM_HEADS            # 8
MLP_RATIO = 4.0
HIDDEN = int(EMBED * MLP_RATIO)          # 128
BOTTLENECK = 16                          # config.ffn_num
ADAPTER_SCALE = 0.1                      # config.ffn_adapter_scalar = '0.1'
LN_EPS = 1e-6

HP = WP = IMG // PATCH                   # 4
N_PATCH = HP * WP                        # 16
N_TOKENS = N_PATCH + 1                   # 17 (cls + patches)
N_PAD = 24                               # sublane-padded token count (multiple of 8)
CPP = IN_CHANS * PATCH * PATCH           # 48


# ------------------------------ fused kernel ------------------------------

def _vit_kernel(
    patches_ref, init_ref, w_pe_ref,
    ln1_g_ref, ln1_b_ref,
    wq_ref, bq_ref, wk_ref, bk_ref, wv_ref, bv_ref,
    wo_ref, bo_ref,
    ln2_g_ref, ln2_b_ref,
    w1_ref, b1_ref, w2_ref, b2_ref,
    wd_ref, bd_ref, wu_ref, bu_ref,
    norm_g_ref, norm_b_ref,
    o_ref,
):
    f32 = jnp.float32

    def layer_norm(v, g, b):
        # nn.LayerNorm (biased variance), eps=1e-6
        mean = jnp.mean(v, axis=-1, keepdims=True)
        c = v - mean
        var = jnp.mean(c * c, axis=-1, keepdims=True)
        return c * jax.lax.rsqrt(var + LN_EPS) * g + b

    def gelu_exact(v):
        # nn.GELU (exact erf) via Abramowitz&Stegun 7.1.26 polynomial, |err| <= 1.5e-7.
        # TODO(synk): switch to jax.lax.erf if its Mosaic lowering is guaranteed.
        z = v * 0.7071067811865476
        az = jnp.abs(z)
        t = 1.0 / (1.0 + 0.3275911 * az)
        poly = ((((1.061405429 * t - 1.453152027) * t + 1.421413741) * t
                 - 0.284496736) * t + 0.254829592) * t
        e = 1.0 - poly * jnp.exp(-az * az)
        erf_z = jnp.where(z >= 0.0, e, -e)
        return 0.5 * v * (1.0 + erf_z)

    # ---- patch embed + cls + pos (cls/pos/patch-bias pre-folded into init_ref) ----
    x = jnp.dot(patches_ref[0], w_pe_ref[...], preferred_element_type=f32) + init_ref[...]

    # additive key mask: pad tokens (columns >= N_TOKENS) get -1e30 before softmax
    col = jax.lax.broadcasted_iota(jnp.int32, (1, N_PAD), 1)
    key_bias = jnp.where(col < N_TOKENS, 0.0, -1e30).astype(f32)

    scale = HEAD_DIM ** -0.5

    for d in range(DEPTH):                      # unrolled (DEPTH = 2)
        # ---- x = x + Attn(LN1(x)) ----
        h = layer_norm(x, ln1_g_ref[d], ln1_b_ref[d])
        ao = bo_ref[d]                          # (1, E) proj bias, broadcasts on first add
        for hh in range(NUM_HEADS):             # unrolled per-head attention
            qh = jnp.dot(h, wq_ref[d, hh], preferred_element_type=f32) + bq_ref[d, hh]
            kh = jnp.dot(h, wk_ref[d, hh], preferred_element_type=f32) + bk_ref[d, hh]
            vh = jnp.dot(h, wv_ref[d, hh], preferred_element_type=f32) + bv_ref[d, hh]
            # s = q @ k^T * scale  (contract last dims, no explicit transpose)
            s = jax.lax.dot_general(qh, kh, (((1,), (1,)), ((), ())),
                                    preferred_element_type=f32) * scale
            s = s + key_bias                    # mask padded key columns
            s = s - jnp.max(s, axis=-1, keepdims=True)
            p = jnp.exp(s)
            p = p / jnp.sum(p, axis=-1, keepdims=True)
            oh = jnp.dot(p, vh, preferred_element_type=f32)              # (N_PAD, D)
            # accumulate the output projection per head: concat(o_h) @ Wo == sum_h o_h @ Wo_h
            ao = ao + jnp.dot(oh, wo_ref[d, hh], preferred_element_type=f32)
        x = x + ao

        # ---- parallel adapter (layernorm_option='none', ReLU, scale=0.1, eval dropout) ----
        down = jnp.maximum(
            jnp.dot(x, wd_ref[d], preferred_element_type=f32) + bd_ref[d], 0.0)
        adapt = (jnp.dot(down, wu_ref[d], preferred_element_type=f32)
                 + bu_ref[d]) * ADAPTER_SCALE

        # ---- x = x + FC2(GELU(FC1(LN2(x)))) + adapt   (ffn_option='parallel') ----
        h2 = layer_norm(x, ln2_g_ref[d], ln2_b_ref[d])
        h2 = jnp.dot(h2, w1_ref[d], preferred_element_type=f32) + b1_ref[d]
        h2 = gelu_exact(h2)
        mlp = jnp.dot(h2, w2_ref[d], preferred_element_type=f32) + b2_ref[d]
        x = x + mlp + adapt

    # ---- final LayerNorm on the CLS row only (global_pool=False) ----
    cls = layer_norm(x[0:1, :], norm_g_ref[...], norm_b_ref[...])        # (1, E)
    o_ref[...] = cls.reshape(1, 1, EMBED).astype(o_ref.dtype)


# ------------------------------ model forward ------------------------------

def vit_forward(x, params):
    """forward(x, test=False): NCHW (B, C, H, W) -> (B, EMBED) CLS embedding."""
    B = x.shape[0]

    # Patch unfold == Conv2d(k=PATCH, s=PATCH); kept as tiny host-side glue on the image.
    # TODO(synk): could be folded into the kernel with strided reads if it ever matters.
    patches = x.reshape(B, IN_CHANS, HP, PATCH, WP, PATCH).transpose(0, 2, 4, 1, 3, 5)
    patches = patches.reshape(B, N_PATCH, CPP)
    patches_pad = jnp.concatenate([
        jnp.zeros((B, 1, CPP), x.dtype),                  # CLS row (comes from tok_init)
        patches,
        jnp.zeros((B, N_PAD - N_TOKENS, CPP), x.dtype),   # sublane pad rows
    ], axis=1)                                            # (B, N_PAD, CPP)

    def const_spec(arr):
        nd = arr.ndim
        return pl.BlockSpec(arr.shape, lambda b, nd=nd: (0,) * nd)

    weight_names = ["w_pe", "ln1_g", "ln1_b", "wq", "bq", "wk", "bk", "wv", "bv",
                    "wo", "bo", "ln2_g", "ln2_b", "w1", "b1", "w2", "b2",
                    "wd", "bd", "wu", "bu", "norm_g", "norm_b"]
    weights = [params[n] for n in weight_names]

    out = pl.pallas_call(
        _vit_kernel,
        out_shape=jax.ShapeDtypeStruct((B, 1, EMBED), jnp.float32),
        grid=(B,),
        in_specs=[pl.BlockSpec((1, N_PAD, CPP), lambda b: (b, 0, 0)),
                  const_spec(params["tok_init"])]
                 + [const_spec(w) for w in weights],
        out_specs=pl.BlockSpec((1, 1, EMBED), lambda b: (b, 0, 0)),
        compiler_params=pltpu.CompilerParams(
            dimension_semantics=("parallel",)),   # lets v7x split batch over its 2 TCs
    )(patches_pad, params["tok_init"], *weights)

    return out[:, 0, :]                           # (B, EMBED)


# ----------------------------- parameter setup -----------------------------

def init_params(key):
    E, P, C, H, D = EMBED, PATCH, IN_CHANS, NUM_HEADS, HEAD_DIM
    HID, BN = HIDDEN, BOTTLENECK
    keys = iter(jax.random.split(key, 64))

    def nrm(shape, std=0.02):
        return std * jax.random.normal(next(keys), shape, jnp.float32)

    def stack(make):
        return jnp.stack([make() for _ in range(DEPTH)], axis=0)

    w_pe = nrm((CPP, E))           # Conv2d weight (E, C, P, P) flattened+transposed
    b_pe = nrm((E,))
    cls_token = nrm((E,))
    pos_embed = nrm((N_TOKENS, E))

    # tok_init folds cls_token, pos_embed and the patch-embed bias into one (N_PAD, E) slab:
    #   row 0       : cls_token + pos_embed[0]
    #   rows 1..16  : pos_embed[i] + b_pe      (patch rows; patches@W_pe is added in-kernel)
    #   rows 17..23 : 0                        (sublane padding, masked out in attention)
    tok_init = jnp.concatenate([
        (cls_token + pos_embed[0])[None, :],
        pos_embed[1:] + b_pe[None, :],
        jnp.zeros((N_PAD - N_TOKENS, E), jnp.float32),
    ], axis=0)

    ones = lambda s: jnp.ones(s, jnp.float32)
    zeros = lambda s: jnp.zeros(s, jnp.float32)

    params = {
        "w_pe": w_pe,
        "tok_init": tok_init,
        "ln1_g": ones((DEPTH, 1, E)), "ln1_b": zeros((DEPTH, 1, E)),
        "ln2_g": ones((DEPTH, 1, E)), "ln2_b": zeros((DEPTH, 1, E)),
        # q/k/v Linear(E,E): weight stored transposed (E_in, E_out), split per head -> (H, E_in, D)
        "wq": stack(lambda: nrm((E, E)).reshape(E, H, D).transpose(1, 0, 2)),
        "bq": stack(lambda: nrm((E,)).reshape(H, 1, D)),
        "wk": stack(lambda: nrm((E, E)).reshape(E, H, D).transpose(1, 0, 2)),
        "bk": stack(lambda: nrm((E,)).reshape(H, 1, D)),
        "wv": stack(lambda: nrm((E, E)).reshape(E, H, D).transpose(1, 0, 2)),
        "bv": stack(lambda: nrm((E,)).reshape(H, 1, D)),
        # output proj Linear(E,E): transposed weight with input rows split per head -> (H, D, E)
        "wo": stack(lambda: nrm((E, E)).reshape(H, D, E)),
        "bo": stack(lambda: nrm((E,)).reshape(1, E)),
        # MLP
        "w1": stack(lambda: nrm((E, HID))), "b1": stack(lambda: nrm((HID,)).reshape(1, HID)),
        "w2": stack(lambda: nrm((HID, E))), "b2": stack(lambda: nrm((E,)).reshape(1, E)),
        # Adapter(ffn_num=16, scalar='0.1', layernorm_option='none'); lora init zeroes the
        # up-proj -> use small random weights so the branch is numerically exercised.
        "wd": stack(lambda: nrm((E, BN))), "bd": stack(lambda: nrm((BN,)).reshape(1, BN)),
        "wu": stack(lambda: nrm((BN, E))), "bu": stack(lambda: nrm((E,)).reshape(1, E)),
        "norm_g": ones((1, E)), "norm_b": zeros((1, E)),
    }
    return params


# ---------------------------------- main ----------------------------------

if __name__ == "__main__":
    key = jax.random.PRNGKey(0)
    pkey, xkey = jax.random.split(key)
    params = init_params(pkey)

    x = jax.random.normal(xkey, (2, IN_CHANS, IMG, IMG), jnp.float32)   # NCHW like PyTorch

    out = jax.jit(vit_forward)(x, params)
    out = jax.block_until_ready(out)

    assert out.shape == (2, EMBED), out.shape
    assert bool(jnp.all(jnp.isfinite(out)))
    print("KERNEL_OK")
</pallas_src>

<mosaic_0001>
module attributes {stable_mosaic.version = 11 : i64} {
  func.func @_vit_kernel(%arg0: i32, %arg1: memref<1x24x48xf32, #tpu.memory_space<vmem>>, %arg2: memref<24x32xf32, #tpu.memory_space<vmem>>, %arg3: memref<48x32xf32, #tpu.memory_space<vmem>>, %arg4: memref<2x1x32xf32, #tpu.memory_space<vmem>>, %arg5: memref<2x1x32xf32, #tpu.memory_space<vmem>>, %arg6: memref<2x4x32x8xf32, #tpu.memory_space<vmem>>, %arg7: memref<2x4x1x8xf32, #tpu.memory_space<vmem>>, %arg8: memref<2x4x32x8xf32, #tpu.memory_space<vmem>>, %arg9: memref<2x4x1x8xf32, #tpu.memory_space<vmem>>, %arg10: memref<2x4x32x8xf32, #tpu.memory_space<vmem>>, %arg11: memref<2x4x1x8xf32, #tpu.memory_space<vmem>>, %arg12: memref<2x4x8x32xf32, #tpu.memory_space<vmem>>, %arg13: memref<2x1x32xf32, #tpu.memory_space<vmem>>, %arg14: memref<2x1x32xf32, #tpu.memory_space<vmem>>, %arg15: memref<2x1x32xf32, #tpu.memory_space<vmem>>, %arg16: memref<2x32x128xf32, #tpu.memory_space<vmem>>, %arg17: memref<2x1x128xf32, #tpu.memory_space<vmem>>, %arg18: memref<2x128x32xf32, #tpu.memory_space<vmem>>, %arg19: memref<2x1x32xf32, #tpu.memory_space<vmem>>, %arg20: memref<2x32x16xf32, #tpu.memory_space<vmem>>, %arg21: memref<2x1x16xf32, #tpu.memory_space<vmem>>, %arg22: memref<2x16x32xf32, #tpu.memory_space<vmem>>, %arg23: memref<2x1x32xf32, #tpu.memory_space<vmem>>, %arg24: memref<1x32xf32, #tpu.memory_space<vmem>>, %arg25: memref<1x32xf32, #tpu.memory_space<vmem>>, %arg26: memref<1x1x32xf32, #tpu.memory_space<vmem>>) attributes {dimension_semantics = [#tpu.dimension_semantics<parallel>], iteration_bounds = array<i64: 2>, scalar_prefetch = 0 : i64, scratch_operands = 0 : i64, tpu.core_type = #tpu.core_type<tc>, window_params = [{transform_indices = @transform_0, window_bounds = array<i64: 1, 24, 48>}, {pipeline_mode = #tpu.pipeline_mode<synchronous>, transform_indices = @transform_1, window_bounds = array<i64: 24, 32>}, {pipeline_mode = #tpu.pipeline_mode<synchronous>, transform_indices = @transform_2, window_bounds = array<i64: 48, 32>}, {pipeline_mode = #tpu.pipeline_mode<synchronous>, transform_indices = @transform_3, window_bounds = array<i64: 2, 1, 32>}, {pipeline_mode = #tpu.pipeline_mode<synchronous>, transform_indices = @transform_4, window_bounds = array<i64: 2, 1, 32>}, {pipeline_mode = #tpu.pipeline_mode<synchronous>, transform_indices = @transform_5, window_bounds = array<i64: 2, 4, 32, 8>}, {pipeline_mode = #tpu.pipeline_mode<synchronous>, transform_indices = @transform_6, window_bounds = array<i64: 2, 4, 1, 8>}, {pipeline_mode = #tpu.pipeline_mode<synchronous>, transform_indices = @transform_7, window_bounds = array<i64: 2, 4, 32, 8>}, {pipeline_mode = #tpu.pipeline_mode<synchronous>, transform_indices = @transform_8, window_bounds = array<i64: 2, 4, 1, 8>}, {pipeline_mode = #tpu.pipeline_mode<synchronous>, transform_indices = @transform_9, window_bounds = array<i64: 2, 4, 32, 8>}, {pipeline_mode = #tpu.pipeline_mode<synchronous>, transform_indices = @transform_10, window_bounds = array<i64: 2, 4, 1, 8>}, {pipeline_mode = #tpu.pipeline_mode<synchronous>, transform_indices = @transform_11, window_bounds = array<i64: 2, 4, 8, 32>}, {pipeline_mode = #tpu.pipeline_mode<synchronous>, transform_indices = @transform_12, window_bounds = array<i64: 2, 1, 32>}, {pipeline_mode = #tpu.pipeline_mode<synchronous>, transform_indices = @transform_13, window_bounds = array<i64: 2, 1, 32>}, {pipeline_mode = #tpu.pipeline_mode<synchronous>, transform_indices = @transform_14, window_bounds = array<i64: 2, 1, 32>}, {pipeline_mode = #tpu.pipeline_mode<synchronous>, transform_indices = @transform_15, window_bounds = array<i64: 2, 32, 128>}, {pipeline_mode = #tpu.pipeline_mode<synchronous>, transform_indices = @transform_16, window_bounds = array<i64: 2, 1, 128>}, {pipeline_mode = #tpu.pipeline_mode<synchronous>, transform_indices = @transform_17, window_bounds = array<i64: 2, 128, 32>}, {pipeline_mode = #tpu.pipeline_mode<synchronous>, transform_indices = @transform_18, window_bounds = array<i64: 2, 1, 32>}, {pipeline_mode = #tpu.pipeline_mode<synchronous>, transform_indices = @transform_19, window_bounds = array<i64: 2, 32, 16>}, {pipeline_mode = #tpu.pipeline_mode<synchronous>, transform_indices = @transform_20, window_bounds = array<i64: 2, 1, 16>}, {pipeline_mode = #tpu.pipeline_mode<synchronous>, transform_indices = @transform_21, window_bounds = array<i64: 2, 16, 32>}, {pipeline_mode = #tpu.pipeline_mode<synchronous>, transform_indices = @transform_22, window_bounds = array<i64: 2, 1, 32>}, {pipeline_mode = #tpu.pipeline_mode<synchronous>, transform_indices = @transform_23, window_bounds = array<i64: 1, 32>}, {pipeline_mode = #tpu.pipeline_mode<synchronous>, transform_indices = @transform_24, window_bounds = array<i64: 1, 32>}, {transform_indices = @transform_25, window_bounds = array<i64: 1, 1, 32>}]} {
    %c0 = arith.constant 0 : index
    %c0_0 = arith.constant 0 : index
    %c0_1 = arith.constant 0 : index
    %0 = vector.load %arg1[%c0, %c0_0, %c0_1] : memref<1x24x48xf32, #tpu.memory_space<vmem>>, vector<1x24x48xf32>
    %1 = vector.shape_cast %0 : vector<1x24x48xf32> to vector<24x48xf32>
    %c0_2 = arith.constant 0 : index
    %c0_3 = arith.constant 0 : index
    %2 = vector.load %arg3[%c0_2, %c0_3] : memref<48x32xf32, #tpu.memory_space<vmem>>, vector<48x32xf32>
    %cst = arith.constant dense<0.000000e+00> : vector<24x32xf32>
    %3 = tpu.matmul %1, %2, %cst {dimension_numbers = #tpu.dot_dimension_numbers<[1], [0], [0], [1], [0, 0, 1, 1], [], []>} : vector<24x48xf32>, vector<48x32xf32>, vector<24x32xf32> -> vector<24x32xf32>
    %c0_4 = arith.constant 0 : index
    %c0_5 = arith.constant 0 : index
    %4 = vector.load %arg2[%c0_4, %c0_5] : memref<24x32xf32, #tpu.memory_space<vmem>>, vector<24x32xf32>
    %5 = arith.addf %3, %4 : vector<24x32xf32>
    %6 = tpu.iota {dimensions = array<i32: 1>} : vector<1x24xi32>
    %c17_i32 = arith.constant 17 : i32
    %7 = vector.broadcast %c17_i32 : i32 to vector<1x24xi32>
    %8 = arith.cmpi slt, %6, %7 : vector<1x24xi32>
    %cst_6 = arith.constant 0.000000e+00 : f32
    %cst_7 = arith.constant -1.000000e+30 : f32
    %9 = vector.broadcast %cst_6 : f32 to vector<1x24xf32>
    %10 = vector.broadcast %cst_7 : f32 to vector<1x24xf32>
    %11 = arith.select %8, %9, %10 : vector<1x24xi1>, vector<1x24xf32>
    %c0_8 = arith.constant 0 : index
    %c0_9 = arith.constant 0 : index
    %c0_10 = arith.constant 0 : index
    %12 = vector.load %arg4[%c0_8, %c0_9, %c0_10] : memref<2x1x32xf32, #tpu.memory_space<vmem>>, vector<1x1x32xf32>
    %13 = vector.shape_cast %12 : vector<1x1x32xf32> to vector<1x32xf32>
    %c0_11 = arith.constant 0 : index
    %c0_12 = arith.constant 0 : index
    %c0_13 = arith.constant 0 : index
    %14 = vector.load %arg5[%c0_11, %c0_12, %c0_13] : memref<2x1x32xf32, #tpu.memory_space<vmem>>, vector<1x1x32xf32>
    %15 = vector.shape_cast %14 : vector<1x1x32xf32> to vector<1x32xf32>
    %cst_14 = arith.constant dense<0.000000e+00> : vector<24xf32>
    %16 = vector.multi_reduction <add>, %5, %cst_14 [1] : vector<24x32xf32> to vector<24xf32>
    %17 = vector.shape_cast %16 : vector<24xf32> to vector<24x1xf32>
    %cst_15 = arith.constant 3.200000e+01 : f32
    %18 = vector.broadcast %cst_15 : f32 to vector<24x1xf32>
    %19 = arith.divf %17, %18 : vector<24x1xf32>
    %20 = vector.broadcast %19 : vector<24x1xf32> to vector<24x32xf32>
    %21 = arith.subf %5, %20 : vector<24x32xf32>
    %22 = arith.mulf %21, %21 : vector<24x32xf32>
    %cst_16 = arith.constant dense<0.000000e+00> : vector<24xf32>
    %23 = vector.multi_reduction <add>, %22, %cst_16 [1] : vector<24x32xf32> to vector<24xf32>
    %24 = vector.shape_cast %23 : vector<24xf32> to vector<24x1xf32>
    %cst_17 = arith.constant 3.200000e+01 : f32
    %25 = vector.broadcast %cst_17 : f32 to vector<24x1xf32>
    %26 = arith.divf %24, %25 : vector<24x1xf32>
    %cst_18 = arith.constant 9.99999997E-7 : f32
    %27 = vector.broadcast %cst_18 : f32 to vector<24x1xf32>
    %28 = arith.addf %26, %27 : vector<24x1xf32>
    %29 = math.rsqrt %28 : vector<24x1xf32>
    %30 = vector.broadcast %29 : vector<24x1xf32> to vector<24x32xf32>
    %31 = arith.mulf %21, %30 : vector<24x32xf32>
    %32 = vector.broadcast %13 : vector<1x32xf32> to vector<24x32xf32>
    %33 = arith.mulf %31, %32 : vector<24x32xf32>
    %34 = vector.broadcast %15 : vector<1x32xf32> to vector<24x32xf32>
    %35 = arith.addf %33, %34 : vector<24x32xf32>
    %c0_19 = arith.constant 0 : index
    %c0_20 = arith.constant 0 : index
    %c0_21 = arith.constant 0 : index
    %36 = vector.load %arg13[%c0_19, %c0_20, %c0_21] : memref<2x1x32xf32, #tpu.memory_space<vmem>>, vector<1x1x32xf32>
    %37 = vector.shape_cast %36 : vector<1x1x32xf32> to vector<1x32xf32>
    %c0_22 = arith.constant 0 : index
    %c0_23 = arith.constant 0 : index
    %c0_24 = arith.constant 0 : index
    %c0_25 = arith.constant 0 : index
    %38 = vector.load %arg6[%c0_22, %c0_23, %c0_24, %c0_25] : memref<2x4x32x8xf32, #tpu.memory_space<vmem>>, vector<1x1x32x8xf32>
    %39 = vector.shape_cast %38 : vector<1x1x32x8xf32> to vector<32x8xf32>
    %cst_26 = arith.constant dense<0.000000e+00> : vector<24x8xf32>
    %40 = tpu.matmul %35, %39, %cst_26 {dimension_numbers = #tpu.dot_dimension_numbers<[1], [0], [0], [1], [0, 0, 1, 1], [], []>} : vector<24x32xf32>, vector<32x8xf32>, vector<24x8xf32> -> vector<24x8xf32>
    %c0_27 = arith.constant 0 : index
    %c0_28 = arith.constant 0 : index
    %c0_29 = arith.constant 0 : index
    %c0_30 = arith.constant 0 : index
    %41 = vector.load %arg7[%c0_27, %c0_28, %c0_29, %c0_30] : memref<2x4x1x8xf32, #tpu.memory_space<vmem>>, vector<1x1x1x8xf32>
    %42 = vector.shape_cast %41 : vector<1x1x1x8xf32> to vector<1x8xf32>
    %43 = vector.broadcast %42 : vector<1x8xf32> to vector<24x8xf32>
    %44 = arith.addf %40, %43 : vector<24x8xf32>
    %c0_31 = arith.constant 0 : index
    %c0_32 = arith.constant 0 : index
    %c0_33 = arith.constant 0 : index
    %c0_34 = arith.constant 0 : index
    %45 = vector.load %arg8[%c0_31, %c0_32, %c0_33, %c0_34] : memref<2x4x32x8xf32, #tpu.memory_space<vmem>>, vector<1x1x32x8xf32>
    %46 = vector.shape_cast %45 : vector<1x1x32x8xf32> to vector<32x8xf32>
    %cst_35 = arith.constant dense<0.000000e+00> : vector<24x8xf32>
    %47 = tpu.matmul %35, %46, %cst_35 {dimension_numbers = #tpu.dot_dimension_numbers<[1], [0], [0], [1], [0, 0, 1, 1], [], []>} : vector<24x32xf32>, vector<32x8xf32>, vector<24x8xf32> -> vector<24x8xf32>
    %c0_36 = arith.constant 0 : index
    %c0_37 = arith.constant 0 : index
    %c0_38 = arith.constant 0 : index
    %c0_39 = arith.constant 0 : index
    %48 = vector.load %arg9[%c0_36, %c0_37, %c0_38, %c0_39] : memref<2x4x1x8xf32, #tpu.memory_space<vmem>>, vector<1x1x1x8xf32>
    %49 = vector.shape_cast %48 : vector<1x1x1x8xf32> to vector<1x8xf32>
    %50 = vector.broadcast %49 : vector<1x8xf32> to vector<24x8xf32>
    %51 = arith.addf %47, %50 : vector<24x8xf32>
    %c0_40 = arith.constant 0 : index
    %c0_41 = arith.constant 0 : index
    %c0_42 = arith.constant 0 : index
    %c0_43 = arith.constant 0 : index
    %52 = vector.load %arg10[%c0_40, %c0_41, %c0_42, %c0_43] : memref<2x4x32x8xf32, #tpu.memory_space<vmem>>, vector<1x1x32x8xf32>
    %53 = vector.shape_cast %52 : vector<1x1x32x8xf32> to vector<32x8xf32>
    %cst_44 = arith.constant dense<0.000000e+00> : vector<24x8xf32>
    %54 = tpu.matmul %35, %53, %cst_44 {dimension_numbers = #tpu.dot_dimension_numbers<[1], [0], [0], [1], [0, 0, 1, 1], [], []>} : vector<24x32xf32>, vector<32x8xf32>, vector<24x8xf32> -> vector<24x8xf32>
    %c0_45 = arith.constant 0 : index
    %c0_46 = arith.constant 0 : index
    %c0_47 = arith.constant 0 : index
    %c0_48 = arith.constant 0 : index
    %55 = vector.load %arg11[%c0_45, %c0_46, %c0_47, %c0_48] : memref<2x4x1x8xf32, #tpu.memory_space<vmem>>, vector<1x1x1x8xf32>
    %56 = vector.shape_cast %55 : vector<1x1x1x8xf32> to vector<1x8xf32>
    %57 = vector.broadcast %56 : vector<1x8xf32> to vector<24x8xf32>
    %58 = arith.addf %54, %57 : vector<24x8xf32>
    %cst_49 = arith.constant dense<0.000000e+00> : vector<24x24xf32>
    %59 = tpu.matmul %44, %51, %cst_49 {dimension_numbers = #tpu.dot_dimension_numbers<[1], [1], [0], [0], [0, 0, 1, 0], [], []>} : vector<24x8xf32>, vector<24x8xf32>, vector<24x24xf32> -> vector<24x24xf32>
    %cst_50 = arith.constant 0.353553385 : f32
    %60 = vector.broadcast %cst_50 : f32 to vector<24x24xf32>
    %61 = arith.mulf %59, %60 : vector<24x24xf32>
    %62 = vector.broadcast %11 : vector<1x24xf32> to vector<24x24xf32>
    %63 = arith.addf %61, %62 : vector<24x24xf32>
    %cst_51 = arith.constant dense<0xFF800000> : vector<24xf32>
    %64 = vector.multi_reduction <maximumf>, %63, %cst_51 [1] : vector<24x24xf32> to vector<24xf32>
    %65 = vector.shape_cast %64 : vector<24xf32> to vector<24x1xf32>
    %66 = vector.broadcast %65 : vector<24x1xf32> to vector<24x24xf32>
    %67 = arith.subf %63, %66 : vector<24x24xf32>
    %68 = math.exp %67 : vector<24x24xf32>
    %cst_52 = arith.constant dense<0.000000e+00> : vector<24xf32>
    %69 = vector.multi_reduction <add>, %68, %cst_52 [1] : vector<24x24xf32> to vector<24xf32>
    %70 = vector.shape_cast %69 : vector<24xf32> to vector<24x1xf32>
    %71 = vector.broadcast %70 : vector<24x1xf32> to vector<24x24xf32>
    %72 = arith.divf %68, %71 : vector<24x24xf32>
    %cst_53 = arith.constant dense<0.000000e+00> : vector<24x8xf32>
    %73 = tpu.matmul %72, %58, %cst_53 {dimension_numbers = #tpu.dot_dimension_numbers<[1], [0], [0], [1], [0, 0, 1, 1], [], []>} : vector<24x24xf32>, vector<24x8xf32>, vector<24x8xf32> -> vector<24x8xf32>
    %c0_54 = arith.constant 0 : index
    %c0_55 = arith.constant 0 : index
    %c0_56 = arith.constant 0 : index
    %c0_57 = arith.constant 0 : index
    %74 = vector.load %arg12[%c0_54, %c0_55, %c0_56, %c0_57] : memref<2x4x8x32xf32, #tpu.memory_space<vmem>>, vector<1x1x8x32xf32>
    %75 = vector.shape_cast %74 : vector<1x1x8x32xf32> to vector<8x32xf32>
    %cst_58 = arith.constant dense<0.000000e+00> : vector<24x32xf32>
    %76 = tpu.matmul %73, %75, %cst_58 {dimension_numbers = #tpu.dot_dimension_numbers<[1], [0], [0], [1], [0, 0, 1, 1], [], []>} : vector<24x8xf32>, vector<8x32xf32>, vector<24x32xf32> -> vector<24x32xf32>
    %77 = vector.broadcast %37 : vector<1x32xf32> to vector<24x32xf32>
    %78 = arith.addf %77, %76 : vector<24x32xf32>
    %c0_59 = arith.constant 0 : index
    %c1 = arith.constant 1 : index
    %c0_60 = arith.constant 0 : index
    %c0_61 = arith.constant 0 : index
    %79 = vector.load %arg6[%c0_59, %c1, %c0_60, %c0_61] : memref<2x4x32x8xf32, #tpu.memory_space<vmem>>, vector<1x1x32x8xf32>
    %80 = vector.shape_cast %79 : vector<1x1x32x8xf32> to vector<32x8xf32>
    %cst_62 = arith.constant dense<0.000000e+00> : vector<24x8xf32>
    %81 = tpu.matmul %35, %80, %cst_62 {dimension_numbers = #tpu.dot_dimension_numbers<[1], [0], [0], [1], [0, 0, 1, 1], [], []>} : vector<24x32xf32>, vector<32x8xf32>, vector<24x8xf32> -> vector<24x8xf32>
    %c0_63 = arith.constant 0 : index
    %c1_64 = arith.constant 1 : index
    %c0_65 = arith.constant 0 : index
    %c0_66 = arith.constant 0 : index
    %82 = vector.load %arg7[%c0_63, %c1_64, %c0_65, %c0_66] : memref<2x4x1x8xf32, #tpu.memory_space<vmem>>, vector<1x1x1x8xf32>
    %83 = vector.shape_cast %82 : vector<1x1x1x8xf32> to vector<1x8xf32>
    %84 = vector.broadcast %83 : vector<1x8xf32> to vector<24x8xf32>
    %85 = arith.addf %81, %84 : vector<24x8xf32>
    %c0_67 = arith.constant 0 : index
    %c1_68 = arith.constant 1 : index
    %c0_69 = arith.constant 0 : index
    %c0_70 = arith.constant 0 : index
    %86 = vector.load %arg8[%c0_67, %c1_68, %c0_69, %c0_70] : memref<2x4x32x8xf32, #tpu.memory_space<vmem>>, vector<1x1x32x8xf32>
    %87 = vector.shape_cast %86 : vector<1x1x32x8xf32> to vector<32x8xf32>
    %cst_71 = arith.constant dense<0.000000e+00> : vector<24x8xf32>
    %88 = tpu.matmul %35, %87, %cst_71 {dimension_numbers = #tpu.dot_dimension_numbers<[1], [0], [0], [1], [0, 0, 1, 1], [], []>} : vector<24x32xf32>, vector<32x8xf32>, vector<24x8xf32> -> vector<24x8xf32>
    %c0_72 = arith.constant 0 : index
    %c1_73 = arith.constant 1 : index
    %c0_74 = arith.constant 0 : index
    %c0_75 = arith.constant 0 : index
    %89 = vector.load %arg9[%c0_72, %c1_73, %c0_74, %c0_75] : memref<2x4x1x8xf32, #tpu.memory_space<vmem>>, vector<1x1x1x8xf32>
    %90 = vector.shape_cast %89 : vector<1x1x1x8xf32> to vector<1x8xf32>
    %91 = vector.broadcast %90 : vector<1x8xf32> to vector<24x8xf32>
    %92 = arith.addf %88, %91 : vector<24x8xf32>
    %c0_76 = arith.constant 0 : index
    %c1_77 = arith.constant 1 : index
    %c0_78 = arith.constant 0 : index
    %c0_79 = arith.constant 0 : index
    %93 = vector.load %arg10[%c0_76, %c1_77, %c0_78, %c0_79] : memref<2x4x32x8xf32, #tpu.memory_space<vmem>>, vector<1x1x32x8xf32>
    %94 = vector.shape_cast %93 : vector<1x1x32x8xf32> to vector<32x8xf32>
    %cst_80 = arith.constant dense<0.000000e+00> : vector<24x8xf32>
    %95 = tpu.matmul %35, %94, %cst_80 {dimension_numbers = #tpu.dot_dimension_numbers<[1], [0], [0], [1], [0, 0, 1, 1], [], []>} : vector<24x32xf32>, vector<32x8xf32>, vector<24x8xf32> -> vector<24x8xf32>
    %c0_81 = arith.constant 0 : index
    %c1_82 = arith.constant 1 : index
    %c0_83 = arith.constant 0 : index
    %c0_84 = arith.constant 0 : index
    %96 = vector.load %arg11[%c0_81, %c1_82, %c0_83, %c0_84] : memref<2x4x1x8xf32, #tpu.memory_space<vmem>>, vector<1x1x1x8xf32>
    %97 = vector.shape_cast %96 : vector<1x1x1x8xf32> to vector<1x8xf32>
    %98 = vector.broadcast %97 : vector<1x8xf32> to vector<24x8xf32>
    %99 = arith.addf %95, %98 : vector<24x8xf32>
    %cst_85 = arith.constant dense<0.000000e+00> : vector<24x24xf32>
    %100 = tpu.matmul %85, %92, %cst_85 {dimension_numbers = #tpu.dot_dimension_numbers<[1], [1], [0], [0], [0, 0, 1, 0], [], []>} : vector<24x8xf32>, vector<24x8xf32>, vector<24x24xf32> -> vector<24x24xf32>
    %cst_86 = arith.constant 0.353553385 : f32
    %101 = vector.broadcast %cst_86 : f32 to vector<24x24xf32>
    %102 = arith.mulf %100, %101 : vector<24x24xf32>
    %103 = vector.broadcast %11 : vector<1x24xf32> to vector<24x24xf32>
    %104 = arith.addf %102, %103 : vector<24x24xf32>
    %cst_87 = arith.constant dense<0xFF800000> : vector<24xf32>
    %105 = vector.multi_reduction <maximumf>, %104, %cst_87 [1] : vector<24x24xf32> to vector<24xf32>
    %106 = vector.shape_cast %105 : vector<24xf32> to vector<24x1xf32>
    %107 = vector.broadcast %106 : vector<24x1xf32> to vector<24x24xf32>
    %108 = arith.subf %104, %107 : vector<24x24xf32>
    %109 = math.exp %108 : vector<24x24xf32>
    %cst_88 = arith.constant dense<0.000000e+00> : vector<24xf32>
    %110 = vector.multi_reduction <add>, %109, %cst_88 [1] : vector<24x24xf32> to vector<24xf32>
    %111 = vector.shape_cast %110 : vector<24xf32> to vector<24x1xf32>
    %112 = vector.broadcast %111 : vector<24x1xf32> to vector<24x24xf32>
    %113 = arith.divf %109, %112 : vector<24x24xf32>
    %cst_89 = arith.constant dense<0.000000e+00> : vector<24x8xf32>
    %114 = tpu.matmul %113, %99, %cst_89 {dimension_numbers = #tpu.dot_dimension_numbers<[1], [0], [0], [1], [0, 0, 1, 1], [], []>} : vector<24x24xf32>, vector<24x8xf32>, vector<24x8xf32> -> vector<24x8xf32>
    %c0_90 = arith.constant 0 : index
    %c1_91 = arith.constant 1 : index
    %c0_92 = arith.constant 0 : index
    %c0_93 = arith.constant 0 : index
    %115 = vector.load %arg12[%c0_90, %c1_91, %c0_92, %c0_93] : memref<2x4x8x32xf32, #tpu.memory_space<vmem>>, vector<1x1x8x32xf32>
    %116 = vector.shape_cast %115 : vector<1x1x8x32xf32> to vector<8x32xf32>
    %cst_94 = arith.constant dense<0.000000e+00> : vector<24x32xf32>
    %117 = tpu.matmul %114, %116, %cst_94 {dimension_numbers = #tpu.dot_dimension_numbers<[1], [0], [0], [1], [0, 0, 1, 1], [], []>} : vector<24x8xf32>, vector<8x32xf32>, vector<24x32xf32> -> vector<24x32xf32>
    %118 = arith.addf %78, %117 : vector<24x32xf32>
    %c0_95 = arith.constant 0 : index
    %c2 = arith.constant 2 : index
    %c0_96 = arith.constant 0 : index
    %c0_97 = arith.constant 0 : index
    %119 = vector.load %arg6[%c0_95, %c2, %c0_96, %c0_97] : memref<2x4x32x8xf32, #tpu.memory_space<vmem>>, vector<1x1x32x8xf32>
    %120 = vector.shape_cast %119 : vector<1x1x32x8xf32> to vector<32x8xf32>
    %cst_98 = arith.constant dense<0.000000e+00> : vector<24x8xf32>
    %121 = tpu.matmul %35, %120, %cst_98 {dimension_numbers = #tpu.dot_dimension_numbers<[1], [0], [0], [1], [0, 0, 1, 1], [], []>} : vector<24x32xf32>, vector<32x8xf32>, vector<24x8xf32> -> vector<24x8xf32>
    %c0_99 = arith.constant 0 : index
    %c2_100 = arith.constant 2 : index
    %c0_101 = arith.constant 0 : index
    %c0_102 = arith.constant 0 : index
    %122 = vector.load %arg7[%c0_99, %c2_100, %c0_101, %c0_102] : memref<2x4x1x8xf32, #tpu.memory_space<vmem>>, vector<1x1x1x8xf32>
    %123 = vector.shape_cast %122 : vector<1x1x1x8xf32> to vector<1x8xf32>
    %124 = vector.broadcast %123 : vector<1x8xf32> to vector<24x8xf32>
    %125 = arith.addf %121, %124 : vector<24x8xf32>
    %c0_103 = arith.constant 0 : index
    %c2_104 = arith.constant 2 : index
    %c0_105 = arith.constant 0 : index
    %c0_106 = arith.constant 0 : index
    %126 = vector.load %arg8[%c0_103, %c2_104, %c0_105, %c0_106] : memref<2x4x32x8xf32, #tpu.memory_space<vmem>>, vector<1x1x32x8xf32>
    %127 = vector.shape_cast %126 : vector<1x1x32x8xf32> to vector<32x8xf32>
    %cst_107 = arith.constant dense<0.000000e+00> : vector<24x8xf32>
    %128 = tpu.matmul %35, %127, %cst_107 {dimension_numbers = #tpu.dot_dimension_numbers<[1], [0], [0], [1], [0, 0, 1, 1], [], []>} : vector<24x32xf32>, vector<32x8xf32>, vector<24x8xf32> -> vector<24x8xf32>
    %c0_108 = arith.constant 0 : index
    %c2_109 = arith.constant 2 : index
    %c0_110 = arith.constant 0 : index
    %c0_111 = arith.constant 0 : index
    %129 = vector.load %arg9[%c0_108, %c2_109, %c0_110, %c0_111] : memref<2x4x1x8xf32, #tpu.memory_space<vmem>>, vector<1x1x1x8xf32>
    %130 = vector.shape_cast %129 : vector<1x1x1x8xf32> to vector<1x8xf32>
    %131 = vector.broadcast %130 : vector<1x8xf32> to vector<24x8xf32>
    %132 = arith.addf %128, %131 : vector<24x8xf32>
    %c0_112 = arith.constant 0 : index
    %c2_113 = arith.constant 2 : index
    %c0_114 = arith.constant 0 : index
    %c0_115 = arith.constant 0 : index
    %133 = vector.load %arg10[%c0_112, %c2_113, %c0_114, %c0_115] : memref<2x4x32x8xf32, #tpu.memory_space<vmem>>, vector<1x1x32x8xf32>
    %134 = vector.shape_cast %133 : vector<1x1x32x8xf32> to vector<32x8xf32>
    %cst_116 = arith.constant dense<0.000000e+00> : vector<24x8xf32>
    %135 = tpu.matmul %35, %134, %cst_116 {dimension_numbers = #tpu.dot_dimension_numbers<[1], [0], [0], [1], [0, 0, 1, 1], [], []>} : vector<24x32xf32>, vector<32x8xf32>, vector<24x8xf32> -> vector<24x8xf32>
    %c0_117 = arith.constant 0 : index
    %c2_118 = arith.constant 2 : index
    %c0_119 = arith.constant 0 : index
    %c0_120 = arith.constant 0 : index
    %136 = vector.load %arg11[%c0_117, %c2_118, %c0_119, %c0_120] : memref<2x4x1x8xf32, #tpu.memory_space<vmem>>, vector<1x1x1x8xf32>
    %137 = vector.shape_cast %136 : vector<1x1x1x8xf32> to vector<1x8xf32>
    %138 = vector.broadcast %137 : vector<1x8xf32> to vector<24x8xf32>
    %139 = arith.addf %135, %138 : vector<24x8xf32>
    %cst_121 = arith.constant dense<0.000000e+00> : vector<24x24xf32>
    %140 = tpu.matmul %125, %132, %cst_121 {dimension_numbers = #tpu.dot_dimension_numbers<[1], [1], [0], [0], [0, 0, 1, 0], [], []>} : vector<24x8xf32>, vector<24x8xf32>, vector<24x24xf32> -> vector<24x24xf32>
    %cst_122 = arith.constant 0.353553385 : f32
    %141 = vector.broadcast %cst_122 : f32 to vector<24x24xf32>
    %142 = arith.mulf %140, %141 : vector<24x24xf32>
    %143 = vector.broadcast %11 : vector<1x24xf32> to vector<24x24xf32>
    %144 = arith.addf %142, %143 : vector<24x24xf32>
    %cst_123 = arith.constant dense<0xFF800000> : vector<24xf32>
    %145 = vector.multi_reduction <maximumf>, %144, %cst_123 [1] : vector<24x24xf32> to vector<24xf32>
    %146 = vector.shape_cast %145 : vector<24xf32> to vector<24x1xf32>
    %147 = vector.broadcast %146 : vector<24x1xf32> to vector<24x24xf32>
    %148 = arith.subf %144, %147 : vector<24x24xf32>
    %149 = math.exp %148 : vector<24x24xf32>
    %cst_124 = arith.constant dense<0.000000e+00> : vector<24xf32>
    %150 = vector.multi_reduction <add>, %149, %cst_124 [1] : vector<24x24xf32> to vector<24xf32>
    %151 = vector.shape_cast %150 : vector<24xf32> to vector<24x1xf32>
    %152 = vector.broadcast %151 : vector<24x1xf32> to vector<24x24xf32>
    %153 = arith.divf %149, %152 : vector<24x24xf32>
    %cst_125 = arith.constant dense<0.000000e+00> : vector<24x8xf32>
    %154 = tpu.matmul %153, %139, %cst_125 {dimension_numbers = #tpu.dot_dimension_numbers<[1], [0], [0], [1], [0, 0, 1, 1], [], []>} : vector<24x24xf32>, vector<24x8xf32>, vector<24x8xf32> -> vector<24x8xf32>
    %c0_126 = arith.constant 0 : index
    %c2_127 = arith.constant 2 : index
    %c0_128 = arith.constant 0 : index
    %c0_129 = arith.constant 0 : index
    %155 = vector.load %arg12[%c0_126, %c2_127, %c0_128, %c0_129] : memref<2x4x8x32xf32, #tpu.memory_space<vmem>>, vector<1x1x8x32xf32>
    %156 = vector.shape_cast %155 : vector<1x1x8x32xf32> to vector<8x32xf32>
    %cst_130 = arith.constant dense<0.000000e+00> : vector<24x32xf32>
    %157 = tpu.matmul %154, %156, %cst_130 {dimension_numbers = #tpu.dot_dimension_numbers<[1], [0], [0], [1], [0, 0, 1, 1], [], []>} : vector<24x8xf32>, vector<8x32xf32>, vector<24x32xf32> -> vector<24x32xf32>
    %158 = arith.addf %118, %157 : vector<24x32xf32>
    %c0_131 = arith.constant 0 : index
    %c3 = arith.constant 3 : index
    %c0_132 = arith.constant 0 : index
    %c0_133 = arith.constant 0 : index
    %159 = vector.load %arg6[%c0_131, %c3, %c0_132, %c0_133] : memref<2x4x32x8xf32, #tpu.memory_space<vmem>>, vector<1x1x32x8xf32>
    %160 = vector.shape_cast %159 : vector<1x1x32x8xf32> to vector<32x8xf32>
    %cst_134 = arith.constant dense<0.000000e+00> : vector<24x8xf32>
    %161 = tpu.matmul %35, %160, %cst_134 {dimension_numbers = #tpu.dot_dimension_numbers<[1], [0], [0], [1], [0, 0, 1, 1], [], []>} : vector<24x32xf32>, vector<32x8xf32>, vector<24x8xf32> -> vector<24x8xf32>
    %c0_135 = arith.constant 0 : index
    %c3_136 = arith.constant 3 : index
    %c0_137 = arith.constant 0 : index
    %c0_138 = arith.constant 0 : index
    %162 = vector.load %arg7[%c0_135, %c3_136, %c0_137, %c0_138] : memref<2x4x1x8xf32, #tpu.memory_space<vmem>>, vector<1x1x1x8xf32>
    %163 = vector.shape_cast %162 : vector<1x1x1x8xf32> to vector<1x8xf32>
    %164 = vector.broadcast %163 : vector<1x8xf32> to vector<24x8xf32>
    %165 = arith.addf %161, %164 : vector<24x8xf32>
    %c0_139 = arith.constant 0 : index
    %c3_140 = arith.constant 3 : index
    %c0_141 = arith.constant 0 : index
    %c0_142 = arith.constant 0 : index
    %166 = vector.load %arg8[%c0_139, %c3_140, %c0_141, %c0_142] : memref<2x4x32x8xf32, #tpu.memory_space<vmem>>, vector<1x1x32x8xf32>
    %167 = vector.shape_cast %166 : vector<1x1x32x8xf32> to vector<32x8xf32>
    %cst_143 = arith.constant dense<0.000000e+00> : vector<24x8xf32>
    %168 = tpu.matmul %35, %167, %cst_143 {dimension_numbers = #tpu.dot_dimension_numbers<[1], [0], [0], [1], [0, 0, 1, 1], [], []>} : vector<24x32xf32>, vector<32x8xf32>, vector<24x8xf32> -> vector<24x8xf32>
    %c0_144 = arith.constant 0 : index
    %c3_145 = arith.constant 3 : index
    %c0_146 = arith.constant 0 : index
    %c0_147 = arith.constant 0 : index
    %169 = vector.load %arg9[%c0_144, %c3_145, %c0_146, %c0_147] : memref<2x4x1x8xf32, #tpu.memory_space<vmem>>, vector<1x1x1x8xf32>
    %170 = vector.shape_cast %169 : vector<1x1x1x8xf32> to vector<1x8xf32>
    %171 = vector.broadcast %170 : vector<1x8xf32> to vector<24x8xf32>
    %172 = arith.addf %168, %171 : vector<24x8xf32>
    %c0_148 = arith.constant 0 : index
    %c3_149 = arith.constant 3 : index
    %c0_150 = arith.constant 0 : index
    %c0_151 = arith.constant 0 : index
    %173 = vector.load %arg10[%c0_148, %c3_149, %c0_150, %c0_151] : memref<2x4x32x8xf32, #tpu.memory_space<vmem>>, vector<1x1x32x8xf32>
    %174 = vector.shape_cast %173 : vector<1x1x32x8xf32> to vector<32x8xf32>
    %cst_152 = arith.constant dense<0.000000e+00> : vector<24x8xf32>
    %175 = tpu.matmul %35, %174, %cst_152 {dimension_numbers = #tpu.dot_dimension_numbers<[1], [0], [0], [1], [0, 0, 1, 1], [], []>} : vector<24x32xf32>, vector<32x8xf32>, vector<24x8xf32> -> vector<24x8xf32>
    %c0_153 = arith.constant 0 : index
    %c3_154 = arith.constant 3 : index
    %c0_155 = arith.constant 0 : index
    %c0_156 = arith.constant 0 : index
    %176 = vector.load %arg11[%c0_153, %c3_154, %c0_155, %c0_156] : memref<2x4x1x8xf32, #tpu.memory_space<vmem>>, vector<1x1x1x8xf32>
    %177 = vector.shape_cast %176 : vector<1x1x1x8xf32> to vector<1x8xf32>
    %178 = vector.broadcast %177 : vector<1x8xf32> to vector<24x8xf32>
    %179 = arith.addf %175, %178 : vector<24x8xf32>
    %cst_157 = arith.constant dense<0.000000e+00> : vector<24x24xf32>
    %180 = tpu.matmul %165, %172, %cst_157 {dimension_numbers = #tpu.dot_dimension_numbers<[1], [1], [0], [0], [0, 0, 1, 0], [], []>} : vector<24x8xf32>, vector<24x8xf32>, vector<24x24xf32> -> vector<24x24xf32>
    %cst_158 = arith.constant 0.353553385 : f32
    %181 = vector.broadcast %cst_158 : f32 to vector<24x24xf32>
    %182 = arith.mulf %180, %181 : vector<24x24xf32>
    %183 = vector.broadcast %11 : vector<1x24xf32> to vector<24x24xf32>
    %184 = arith.addf %182, %183 : vector<24x24xf32>
    %cst_159 = arith.constant dense<0xFF800000> : vector<24xf32>
    %185 = vector.multi_reduction <maximumf>, %184, %cst_159 [1] : vector<24x24xf32> to vector<24xf32>
    %186 = vector.shape_cast %185 : vector<24xf32> to vector<24x1xf32>
    %187 = vector.broadcast %186 : vector<24x1xf32> to vector<24x24xf32>
    %188 = arith.subf %184, %187 : vector<24x24xf32>
    %189 = math.exp %188 : vector<24x24xf32>
    %cst_160 = arith.constant dense<0.000000e+00> : vector<24xf32>
    %190 = vector.multi_reduction <add>, %189, %cst_160 [1] : vector<24x24xf32> to vector<24xf32>
    %191 = vector.shape_cast %190 : vector<24xf32> to vector<24x1xf32>
    %192 = vector.broadcast %191 : vector<24x1xf32> to vector<24x24xf32>
    %193 = arith.divf %189, %192 : vector<24x24xf32>
    %cst_161 = arith.constant dense<0.000000e+00> : vector<24x8xf32>
    %194 = tpu.matmul %193, %179, %cst_161 {dimension_numbers = #tpu.dot_dimension_numbers<[1], [0], [0], [1], [0, 0, 1, 1], [], []>} : vector<24x24xf32>, vector<24x8xf32>, vector<24x8xf32> -> vector<24x8xf32>
    %c0_162 = arith.constant 0 : index
    %c3_163 = arith.constant 3 : index
    %c0_164 = arith.constant 0 : index
    %c0_165 = arith.constant 0 : index
    %195 = vector.load %arg12[%c0_162, %c3_163, %c0_164, %c0_165] : memref<2x4x8x32xf32, #tpu.memory_space<vmem>>, vector<1x1x8x32xf32>
    %196 = vector.shape_cast %195 : vector<1x1x8x32xf32> to vector<8x32xf32>
    %cst_166 = arith.constant dense<0.000000e+00> : vector<24x32xf32>
    %197 = tpu.matmul %194, %196, %cst_166 {dimension_numbers = #tpu.dot_dimension_numbers<[1], [0], [0], [1], [0, 0, 1, 1], [], []>} : vector<24x8xf32>, vector<8x32xf32>, vector<24x32xf32> -> vector<24x32xf32>
    %198 = arith.addf %158, %197 : vector<24x32xf32>
    %199 = arith.addf %5, %198 : vector<24x32xf32>
    %c0_167 = arith.constant 0 : index
    %c0_168 = arith.constant 0 : index
    %c0_169 = arith.constant 0 : index
    %200 = vector.load %arg20[%c0_167, %c0_168, %c0_169] : memref<2x32x16xf32, #tpu.memory_space<vmem>>, vector<1x32x16xf32>
    %201 = vector.shape_cast %200 : vector<1x32x16xf32> to vector<32x16xf32>
    %cst_170 = arith.constant dense<0.000000e+00> : vector<24x16xf32>
    %202 = tpu.matmul %199, %201, %cst_170 {dimension_numbers = #tpu.dot_dimension_numbers<[1], [0], [0], [1], [0, 0, 1, 1], [], []>} : vector<24x32xf32>, vector<32x16xf32>, vector<24x16xf32> -> vector<24x16xf32>
    %c0_171 = arith.constant 0 : index
    %c0_172 = arith.constant 0 : index
    %c0_173 = arith.constant 0 : index
    %203 = vector.load %arg21[%c0_171, %c0_172, %c0_173] : memref<2x1x16xf32, #tpu.memory_space<vmem>>, vector<1x1x16xf32>
    %204 = vector.shape_cast %203 : vector<1x1x16xf32> to vector<1x16xf32>
    %205 = vector.broadcast %204 : vector<1x16xf32> to vector<24x16xf32>
    %206 = arith.addf %202, %205 : vector<24x16xf32>
    %cst_174 = arith.constant 0.000000e+00 : f32
    %207 = vector.broadcast %cst_174 : f32 to vector<24x16xf32>
    %208 = arith.maximumf %206, %207 : vector<24x16xf32>
    %c0_175 = arith.constant 0 : index
    %c0_176 = arith.constant 0 : index
    %c0_177 = arith.constant 0 : index
    %209 = vector.load %arg22[%c0_175, %c0_176, %c0_177] : memref<2x16x32xf32, #tpu.memory_space<vmem>>, vector<1x16x32xf32>
    %210 = vector.shape_cast %209 : vector<1x16x32xf32> to vector<16x32xf32>
    %cst_178 = arith.constant dense<0.000000e+00> : vector<24x32xf32>
    %211 = tpu.matmul %208, %210, %cst_178 {dimension_numbers = #tpu.dot_dimension_numbers<[1], [0], [0], [1], [0, 0, 1, 1], [], []>} : vector<24x16xf32>, vector<16x32xf32>, vector<24x32xf32> -> vector<24x32xf32>
    %c0_179 = arith.constant 0 : index
    %c0_180 = arith.constant 0 : index
    %c0_181 = arith.constant 0 : index
    %212 = vector.load %arg23[%c0_179, %c0_180, %c0_181] : memref<2x1x32xf32, #tpu.memory_space<vmem>>, vector<1x1x32xf32>
    %213 = vector.shape_cast %212 : vector<1x1x32xf32> to vector<1x32xf32>
    %214 = vector.broadcast %213 : vector<1x32xf32> to vector<24x32xf32>
    %215 = arith.addf %211, %214 : vector<24x32xf32>
    %cst_182 = arith.constant 1.000000e-01 : f32
    %216 = vector.broadcast %cst_182 : f32 to vector<24x32xf32>
    %217 = arith.mulf %215, %216 : vector<24x32xf32>
    %c0_183 = arith.constant 0 : index
    %c0_184 = arith.constant 0 : index
    %c0_185 = arith.constant 0 : index
    %218 = vector.load %arg14[%c0_183, %c0_184, %c0_185] : memref<2x1x32xf32, #tpu.memory_space<vmem>>, vector<1x1x32xf32>
    %219 = vector.shape_cast %218 : vector<1x1x32xf32> to vector<1x32xf32>
    %c0_186 = arith.constant 0 : index
    %c0_187 = arith.constant 0 : index
    %c0_188 = arith.constant 0 : index
    %220 = vector.load %arg15[%c0_186, %c0_187, %c0_188] : memref<2x1x32xf32, #tpu.memory_space<vmem>>, vector<1x1x32xf32>
    %221 = vector.shape_cast %220 : vector<1x1x32xf32> to vector<1x32xf32>
    %cst_189 = arith.constant dense<0.000000e+00> : vector<24xf32>
    %222 = vector.multi_reduction <add>, %199, %cst_189 [1] : vector<24x32xf32> to vector<24xf32>
    %223 = vector.shape_cast %222 : vector<24xf32> to vector<24x1xf32>
    %cst_190 = arith.constant 3.200000e+01 : f32
    %224 = vector.broadcast %cst_190 : f32 to vector<24x1xf32>
    %225 = arith.divf %223, %224 : vector<24x1xf32>
    %226 = vector.broadcast %225 : vector<24x1xf32> to vector<24x32xf32>
    %227 = arith.subf %199, %226 : vector<24x32xf32>
    %228 = arith.mulf %227, %227 : vector<24x32xf32>
    %cst_191 = arith.constant dense<0.000000e+00> : vector<24xf32>
    %229 = vector.multi_reduction <add>, %228, %cst_191 [1] : vector<24x32xf32> to vector<24xf32>
    %230 = vector.shape_cast %229 : vector<24xf32> to vector<24x1xf32>
    %cst_192 = arith.constant 3.200000e+01 : f32
    %231 = vector.broadcast %cst_192 : f32 to vector<24x1xf32>
    %232 = arith.divf %230, %231 : vector<24x1xf32>
    %cst_193 = arith.constant 9.99999997E-7 : f32
    %233 = vector.broadcast %cst_193 : f32 to vector<24x1xf32>
    %234 = arith.addf %232, %233 : vector<24x1xf32>
    %235 = math.rsqrt %234 : vector<24x1xf32>
    %236 = vector.broadcast %235 : vector<24x1xf32> to vector<24x32xf32>
    %237 = arith.mulf %227, %236 : vector<24x32xf32>
    %238 = vector.broadcast %219 : vector<1x32xf32> to vector<24x32xf32>
    %239 = arith.mulf %237, %238 : vector<24x32xf32>
    %240 = vector.broadcast %221 : vector<1x32xf32> to vector<24x32xf32>
    %241 = arith.addf %239, %240 : vector<24x32xf32>
    %c0_194 = arith.constant 0 : index
    %c0_195 = arith.constant 0 : index
    %c0_196 = arith.constant 0 : index
    %242 = vector.load %arg16[%c0_194, %c0_195, %c0_196] : memref<2x32x128xf32, #tpu.memory_space<vmem>>, vector<1x32x128xf32>
    %243 = vector.shape_cast %242 : vector<1x32x128xf32> to vector<32x128xf32>
    %cst_197 = arith.constant dense<0.000000e+00> : vector<24x128xf32>
    %244 = tpu.matmul %241, %243, %cst_197 {dimension_numbers = #tpu.dot_dimension_numbers<[1], [0], [0], [1], [0, 0, 1, 1], [], []>} : vector<24x32xf32>, vector<32x128xf32>, vector<24x128xf32> -> vector<24x128xf32>
    %c0_198 = arith.constant 0 : index
    %c0_199 = arith.constant 0 : index
    %c0_200 = arith.constant 0 : index
    %245 = vector.load %arg17[%c0_198, %c0_199, %c0_200] : memref<2x1x128xf32, #tpu.memory_space<vmem>>, vector<1x1x128xf32>
    %246 = vector.shape_cast %245 : vector<1x1x128xf32> to vector<1x128xf32>
    %247 = vector.broadcast %246 : vector<1x128xf32> to vector<24x128xf32>
    %248 = arith.addf %244, %247 : vector<24x128xf32>
    %cst_201 = arith.constant 0.707106769 : f32
    %249 = vector.broadcast %cst_201 : f32 to vector<24x128xf32>
    %250 = arith.mulf %248, %249 : vector<24x128xf32>
    %251 = math.absf %250 : vector<24x128xf32>
    %cst_202 = arith.constant 0.327591091 : f32
    %252 = vector.broadcast %cst_202 : f32 to vector<24x128xf32>
    %253 = arith.mulf %252, %251 : vector<24x128xf32>
    %cst_203 = arith.constant 1.000000e+00 : f32
    %254 = vector.broadcast %cst_203 : f32 to vector<24x128xf32>
    %255 = arith.addf %254, %253 : vector<24x128xf32>
    %cst_204 = arith.constant 1.000000e+00 : f32
    %256 = vector.broadcast %cst_204 : f32 to vector<24x128xf32>
    %257 = arith.divf %256, %255 : vector<24x128xf32>
    %cst_205 = arith.constant 1.06140542 : f32
    %258 = vector.broadcast %cst_205 : f32 to vector<24x128xf32>
    %259 = arith.mulf %258, %257 : vector<24x128xf32>
    %cst_206 = arith.constant 1.45315206 : f32
    %260 = vector.broadcast %cst_206 : f32 to vector<24x128xf32>
    %261 = arith.subf %259, %260 : vector<24x128xf32>
    %262 = arith.mulf %261, %257 : vector<24x128xf32>
    %cst_207 = arith.constant 1.42141378 : f32
    %263 = vector.broadcast %cst_207 : f32 to vector<24x128xf32>
    %264 = arith.addf %262, %263 : vector<24x128xf32>
    %265 = arith.mulf %264, %257 : vector<24x128xf32>
    %cst_208 = arith.constant 0.284496725 : f32
    %266 = vector.broadcast %cst_208 : f32 to vector<24x128xf32>
    %267 = arith.subf %265, %266 : vector<24x128xf32>
    %268 = arith.mulf %267, %257 : vector<24x128xf32>
    %cst_209 = arith.constant 0.254829586 : f32
    %269 = vector.broadcast %cst_209 : f32 to vector<24x128xf32>
    %270 = arith.addf %268, %269 : vector<24x128xf32>
    %271 = arith.mulf %270, %257 : vector<24x128xf32>
    %cst_210 = arith.constant 0.000000e+00 : f32
    %272 = vector.broadcast %cst_210 : f32 to vector<24x128xf32>
    %273 = arith.subf %272, %251 : vector<24x128xf32>
    %274 = arith.mulf %273, %251 : vector<24x128xf32>
    %275 = math.exp %274 : vector<24x128xf32>
    %276 = arith.mulf %271, %275 : vector<24x128xf32>
    %cst_211 = arith.constant 1.000000e+00 : f32
    %277 = vector.broadcast %cst_211 : f32 to vector<24x128xf32>
    %278 = arith.subf %277, %276 : vector<24x128xf32>
    %cst_212 = arith.constant 0.000000e+00 : f32
    %279 = vector.broadcast %cst_212 : f32 to vector<24x128xf32>
    %280 = arith.cmpf oge, %250, %279 : vector<24x128xf32>
    %cst_213 = arith.constant 0.000000e+00 : f32
    %281 = vector.broadcast %cst_213 : f32 to vector<24x128xf32>
    %282 = arith.subf %281, %278 : vector<24x128xf32>
    %283 = arith.select %280, %278, %282 : vector<24x128xi1>, vector<24x128xf32>
    %cst_214 = arith.constant 5.000000e-01 : f32
    %284 = vector.broadcast %cst_214 : f32 to vector<24x128xf32>
    %285 = arith.mulf %284, %248 : vector<24x128xf32>
    %cst_215 = arith.constant 1.000000e+00 : f32
    %286 = vector.broadcast %cst_215 : f32 to vector<24x128xf32>
    %287 = arith.addf %286, %283 : vector<24x128xf32>
    %288 = arith.mulf %285, %287 : vector<24x128xf32>
    %c0_216 = arith.constant 0 : index
    %c0_217 = arith.constant 0 : index
    %c0_218 = arith.constant 0 : index
    %289 = vector.load %arg18[%c0_216, %c0_217, %c0_218] : memref<2x128x32xf32, #tpu.memory_space<vmem>>, vector<1x128x32xf32>
    %290 = vector.shape_cast %289 : vector<1x128x32xf32> to vector<128x32xf32>
    %cst_219 = arith.constant dense<0.000000e+00> : vector<24x32xf32>
    %291 = tpu.matmul %288, %290, %cst_219 {dimension_numbers = #tpu.dot_dimension_numbers<[1], [0], [0], [1], [0, 0, 1, 1], [], []>} : vector<24x128xf32>, vector<128x32xf32>, vector<24x32xf32> -> vector<24x32xf32>
    %c0_220 = arith.constant 0 : index
    %c0_221 = arith.constant 0 : index
    %c0_222 = arith.constant 0 : index
    %292 = vector.load %arg19[%c0_220, %c0_221, %c0_222] : memref<2x1x32xf32, #tpu.memory_space<vmem>>, vector<1x1x32xf32>
    %293 = vector.shape_cast %292 : vector<1x1x32xf32> to vector<1x32xf32>
    %294 = vector.broadcast %293 : vector<1x32xf32> to vector<24x32xf32>
    %295 = arith.addf %291, %294 : vector<24x32xf32>
    %296 = arith.addf %199, %295 : vector<24x32xf32>
    %297 = arith.addf %296, %217 : vector<24x32xf32>
    %c1_223 = arith.constant 1 : index
    %c0_224 = arith.constant 0 : index
    %c0_225 = arith.constant 0 : index
    %298 = vector.load %arg4[%c1_223, %c0_224, %c0_225] : memref<2x1x32xf32, #tpu.memory_space<vmem>>, vector<1x1x32xf32>
    %299 = vector.shape_cast %298 : vector<1x1x32xf32> to vector<1x32xf32>
    %c1_226 = arith.constant 1 : index
    %c0_227 = arith.constant 0 : index
    %c0_228 = arith.constant 0 : index
    %300 = vector.load %arg5[%c1_226, %c0_227, %c0_228] : memref<2x1x32xf32, #tpu.memory_space<vmem>>, vector<1x1x32xf32>
    %301 = vector.shape_cast %300 : vector<1x1x32xf32> to vector<1x32xf32>
    %cst_229 = arith.constant dense<0.000000e+00> : vector<24xf32>
    %302 = vector.multi_reduction <add>, %297, %cst_229 [1] : vector<24x32xf32> to vector<24xf32>
    %303 = vector.shape_cast %302 : vector<24xf32> to vector<24x1xf32>
    %cst_230 = arith.constant 3.200000e+01 : f32
    %304 = vector.broadcast %cst_230 : f32 to vector<24x1xf32>
    %305 = arith.divf %303, %304 : vector<24x1xf32>
    %306 = vector.broadcast %305 : vector<24x1xf32> to vector<24x32xf32>
    %307 = arith.subf %297, %306 : vector<24x32xf32>
    %308 = arith.mulf %307, %307 : vector<24x32xf32>
    %cst_231 = arith.constant dense<0.000000e+00> : vector<24xf32>
    %309 = vector.multi_reduction <add>, %308, %cst_231 [1] : vector<24x32xf32> to vector<24xf32>
    %310 = vector.shape_cast %309 : vector<24xf32> to vector<24x1xf32>
    %cst_232 = arith.constant 3.200000e+01 : f32
    %311 = vector.broadcast %cst_232 : f32 to vector<24x1xf32>
    %312 = arith.divf %310, %311 : vector<24x1xf32>
    %cst_233 = arith.constant 9.99999997E-7 : f32
    %313 = vector.broadcast %cst_233 : f32 to vector<24x1xf32>
    %314 = arith.addf %312, %313 : vector<24x1xf32>
    %315 = math.rsqrt %314 : vector<24x1xf32>
    %316 = vector.broadcast %315 : vector<24x1xf32> to vector<24x32xf32>
    %317 = arith.mulf %307, %316 : vector<24x32xf32>
    %318 = vector.broadcast %299 : vector<1x32xf32> to vector<24x32xf32>
    %319 = arith.mulf %317, %318 : vector<24x32xf32>
    %320 = vector.broadcast %301 : vector<1x32xf32> to vector<24x32xf32>
    %321 = arith.addf %319, %320 : vector<24x32xf32>
    %c1_234 = arith.constant 1 : index
    %c0_235 = arith.constant 0 : index
    %c0_236 = arith.constant 0 : index
    %322 = vector.load %arg13[%c1_234, %c0_235, %c0_236] : memref<2x1x32xf32, #tpu.memory_space<vmem>>, vector<1x1x32xf32>
    %323 = vector.shape_cast %322 : vector<1x1x32xf32> to vector<1x32xf32>
    %c1_237 = arith.constant 1 : index
    %c0_238 = arith.constant 0 : index
    %c0_239 = arith.constant 0 : index
    %c0_240 = arith.constant 0 : index
    %324 = vector.load %arg6[%c1_237, %c0_238, %c0_239, %c0_240] : memref<2x4x32x8xf32, #tpu.memory_space<vmem>>, vector<1x1x32x8xf32>
    %325 = vector.shape_cast %324 : vector<1x1x32x8xf32> to vector<32x8xf32>
    %cst_241 = arith.constant dense<0.000000e+00> : vector<24x8xf32>
    %326 = tpu.matmul %321, %325, %cst_241 {dimension_numbers = #tpu.dot_dimension_numbers<[1], [0], [0], [1], [0, 0, 1, 1], [], []>} : vector<24x32xf32>, vector<32x8xf32>, vector<24x8xf32> -> vector<24x8xf32>
    %c1_242 = arith.constant 1 : index
    %c0_243 = arith.constant 0 : index
    %c0_244 = arith.constant 0 : index
    %c0_245 = arith.constant 0 : index
    %327 = vector.load %arg7[%c1_242, %c0_243, %c0_244, %c0_245] : memref<2x4x1x8xf32, #tpu.memory_space<vmem>>, vector<1x1x1x8xf32>
    %328 = vector.shape_cast %327 : vector<1x1x1x8xf32> to vector<1x8xf32>
    %329 = vector.broadcast %328 : vector<1x8xf32> to vector<24x8xf32>
    %330 = arith.addf %326, %329 : vector<24x8xf32>
    %c1_246 = arith.constant 1 : index
    %c0_247 = arith.constant 0 : index
    %c0_248 = arith.constant 0 : index
    %c0_249 = arith.constant 0 : index
    %331 = vector.load %arg8[%c1_246, %c0_247, %c0_248, %c0_249] : memref<2x4x32x8xf32, #tpu.memory_space<vmem>>, vector<1x1x32x8xf32>
    %332 = vector.shape_cast %331 : vector<1x1x32x8xf32> to vector<32x8xf32>
    %cst_250 = arith.constant dense<0.000000e+00> : vector<24x8xf32>
    %333 = tpu.matmul %321, %332, %cst_250 {dimension_numbers = #tpu.dot_dimension_numbers<[1], [0], [0], [1], [0, 0, 1, 1], [], []>} : vector<24x32xf32>, vector<32x8xf32>, vector<24x8xf32> -> vector<24x8xf32>
    %c1_251 = arith.constant 1 : index
    %c0_252 = arith.constant 0 : index
    %c0_253 = arith.constant 0 : index
    %c0_254 = arith.constant 0 : index
    %334 = vector.load %arg9[%c1_251, %c0_252, %c0_253, %c0_254] : memref<2x4x1x8xf32, #tpu.memory_space<vmem>>, vector<1x1x1x8xf32>
    %335 = vector.shape_cast %334 : vector<1x1x1x8xf32> to vector<1x8xf32>
    %336 = vector.broadcast %335 : vector<1x8xf32> to vector<24x8xf32>
    %337 = arith.addf %333, %336 : vector<24x8xf32>
    %c1_255 = arith.constant 1 : index
    %c0_256 = arith.constant 0 : index
    %c0_257 = arith.constant 0 : index
    %c0_258 = arith.constant 0 : index
    %338 = vector.load %arg10[%c1_255, %c0_256, %c0_257, %c0_258] : memref<2x4x32x8xf32, #tpu.memory_space<vmem>>, vector<1x1x32x8xf32>
    %339 = vector.shape_cast %338 : vector<1x1x32x8xf32> to vector<32x8xf32>
    %cst_259 = arith.constant dense<0.000000e+00> : vector<24x8xf32>
    %340 = tpu.matmul %321, %339, %cst_259 {dimension_numbers = #tpu.dot_dimension_numbers<[1], [0], [0], [1], [0, 0, 1, 1], [], []>} : vector<24x32xf32>, vector<32x8xf32>, vector<24x8xf32> -> vector<24x8xf32>
    %c1_260 = arith.constant 1 : index
    %c0_261 = arith.constant 0 : index
    %c0_262 = arith.constant 0 : index
    %c0_263 = arith.constant 0 : index
    %341 = vector.load %arg11[%c1_260, %c0_261, %c0_262, %c0_263] : memref<2x4x1x8xf32, #tpu.memory_space<vmem>>, vector<1x1x1x8xf32>
    %342 = vector.shape_cast %341 : vector<1x1x1x8xf32> to vector<1x8xf32>
    %343 = vector.broadcast %342 : vector<1x8xf32> to vector<24x8xf32>
    %344 = arith.addf %340, %343 : vector<24x8xf32>
    %cst_264 = arith.constant dense<0.000000e+00> : vector<24x24xf32>
    %345 = tpu.matmul %330, %337, %cst_264 {dimension_numbers = #tpu.dot_dimension_numbers<[1], [1], [0], [0], [0, 0, 1, 0], [], []>} : vector<24x8xf32>, vector<24x8xf32>, vector<24x24xf32> -> vector<24x24xf32>
    %cst_265 = arith.constant 0.353553385 : f32
    %346 = vector.broadcast %cst_265 : f32 to vector<24x24xf32>
    %347 = arith.mulf %345, %346 : vector<24x24xf32>
    %348 = vector.broadcast %11 : vector<1x24xf32> to vector<24x24xf32>
    %349 = arith.addf %347, %348 : vector<24x24xf32>
    %cst_266 = arith.constant dense<0xFF800000> : vector<24xf32>
    %350 = vector.multi_reduction <maximumf>, %349, %cst_266 [1] : vector<24x24xf32> to vector<24xf32>
    %351 = vector.shape_cast %350 : vector<24xf32> to vector<24x1xf32>
    %352 = vector.broadcast %351 : vector<24x1xf32> to vector<24x24xf32>
    %353 = arith.subf %349, %352 : vector<24x24xf32>
    %354 = math.exp %353 : vector<24x24xf32>
    %cst_267 = arith.constant dense<0.000000e+00> : vector<24xf32>
    %355 = vector.multi_reduction <add>, %354, %cst_267 [1] : vector<24x24xf32> to vector<24xf32>
    %356 = vector.shape_cast %355 : vector<24xf32> to vector<24x1xf32>
    %357 = vector.broadcast %356 : vector<24x1xf32> to vector<24x24xf32>
    %358 = arith.divf %354, %357 : vector<24x24xf32>
    %cst_268 = arith.constant dense<0.000000e+00> : vector<24x8xf32>
    %359 = tpu.matmul %358, %344, %cst_268 {dimension_numbers = #tpu.dot_dimension_numbers<[1], [0], [0], [1], [0, 0, 1, 1], [], []>} : vector<24x24xf32>, vector<24x8xf32>, vector<24x8xf32> -> vector<24x8xf32>
    %c1_269 = arith.constant 1 : index
    %c0_270 = arith.constant 0 : index
    %c0_271 = arith.constant 0 : index
    %c0_272 = arith.constant 0 : index
    %360 = vector.load %arg12[%c1_269, %c0_270, %c0_271, %c0_272] : memref<2x4x8x32xf32, #tpu.memory_space<vmem>>, vector<1x1x8x32xf32>
    %361 = vector.shape_cast %360 : vector<1x1x8x32xf32> to vector<8x32xf32>
    %cst_273 = arith.constant dense<0.000000e+00> : vector<24x32xf32>
    %362 = tpu.matmul %359, %361, %cst_273 {dimension_numbers = #tpu.dot_dimension_numbers<[1], [0], [0], [1], [0, 0, 1, 1], [], []>} : vector<24x8xf32>, vector<8x32xf32>, vector<24x32xf32> -> vector<24x32xf32>
    %363 = vector.broadcast %323 : vector<1x32xf32> to vector<24x32xf32>
    %364 = arith.addf %363, %362 : vector<24x32xf32>
    %c1_274 = arith.constant 1 : index
    %c1_275 = arith.constant 1 : index
    %c0_276 = arith.constant 0 : index
    %c0_277 = arith.constant 0 : index
    %365 = vector.load %arg6[%c1_274, %c1_275, %c0_276, %c0_277] : memref<2x4x32x8xf32, #tpu.memory_space<vmem>>, vector<1x1x32x8xf32>
    %366 = vector.shape_cast %365 : vector<1x1x32x8xf32> to vector<32x8xf32>
    %cst_278 = arith.constant dense<0.000000e+00> : vector<24x8xf32>
    %367 = tpu.matmul %321, %366, %cst_278 {dimension_numbers = #tpu.dot_dimension_numbers<[1], [0], [0], [1], [0, 0, 1, 1], [], []>} : vector<24x32xf32>, vector<32x8xf32>, vector<24x8xf32> -> vector<24x8xf32>
    %c1_279 = arith.constant 1 : index
    %c1_280 = arith.constant 1 : index
    %c0_281 = arith.constant 0 : index
    %c0_282 = arith.constant 0 : index
    %368 = vector.load %arg7[%c1_279, %c1_280, %c0_281, %c0_282] : memref<2x4x1x8xf32, #tpu.memory_space<vmem>>, vector<1x1x1x8xf32>
    %369 = vector.shape_cast %368 : vector<1x1x1x8xf32> to vector<1x8xf32>
    %370 = vector.broadcast %369 : vector<1x8xf32> to vector<24x8xf32>
    %371 = arith.addf %367, %370 : vector<24x8xf32>
    %c1_283 = arith.constant 1 : index
    %c1_284 = arith.constant 1 : index
    %c0_285 = arith.constant 0 : index
    %c0_286 = arith.constant 0 : index
    %372 = vector.load %arg8[%c1_283, %c1_284, %c0_285, %c0_286] : memref<2x4x32x8xf32, #tpu.memory_space<vmem>>, vector<1x1x32x8xf32>
    %373 = vector.shape_cast %372 : vector<1x1x32x8xf32> to vector<32x8xf32>
    %cst_287 = arith.constant dense<0.000000e+00> : vector<24x8xf32>
    %374 = tpu.matmul %321, %373, %cst_287 {dimension_numbers = #tpu.dot_dimension_numbers<[1], [0], [0], [1], [0, 0, 1, 1], [], []>} : vector<24x32xf32>, vector<32x8xf32>, vector<24x8xf32> -> vector<24x8xf32>
    %c1_288 = arith.constant 1 : index
    %c1_289 = arith.constant 1 : index
    %c0_290 = arith.constant 0 : index
    %c0_291 = arith.constant 0 : index
    %375 = vector.load %arg9[%c1_288, %c1_289, %c0_290, %c0_291] : memref<2x4x1x8xf32, #tpu.memory_space<vmem>>, vector<1x1x1x8xf32>
    %376 = vector.shape_cast %375 : vector<1x1x1x8xf32> to vector<1x8xf32>
    %377 = vector.broadcast %376 : vector<1x8xf32> to vector<24x8xf32>
    %378 = arith.addf %374, %377 : vector<24x8xf32>
    %c1_292 = arith.constant 1 : index
    %c1_293 = arith.constant 1 : index
    %c0_294 = arith.constant 0 : index
    %c0_295 = arith.constant 0 : index
    %379 = vector.load %arg10[%c1_292, %c1_293, %c0_294, %c0_295] : memref<2x4x32x8xf32, #tpu.memory_space<vmem>>, vector<1x1x32x8xf32>
    %380 = vector.shape_cast %379 : vector<1x1x32x8xf32> to vector<32x8xf32>
    %cst_296 = arith.constant dense<0.000000e+00> : vector<24x8xf32>
    %381 = tpu.matmul %321, %380, %cst_296 {dimension_numbers = #tpu.dot_dimension_numbers<[1], [0], [0], [1], [0, 0, 1, 1], [], []>} : vector<24x32xf32>, vector<32x8xf32>, vector<24x8xf32> -> vector<24x8xf32>
    %c1_297 = arith.constant 1 : index
    %c1_298 = arith.constant 1 : index
    %c0_299 = arith.constant 0 : index
    %c0_300 = arith.constant 0 : index
    %382 = vector.load %arg11[%c1_297, %c1_298, %c0_299, %c0_300] : memref<2x4x1x8xf32, #tpu.memory_space<vmem>>, vector<1x1x1x8xf32>
    %383 = vector.shape_cast %382 : vector<1x1x1x8xf32> to vector<1x8xf32>
    %384 = vector.broadcast %383 : vector<1x8xf32> to vector<24x8xf32>
    %385 = arith.addf %381, %384 : vector<24x8xf32>
    %cst_301 = arith.constant dense<0.000000e+00> : vector<24x24xf32>
    %386 = tpu.matmul %371, %378, %cst_301 {dimension_numbers = #tpu.dot_dimension_numbers<[1], [1], [0], [0], [0, 0, 1, 0], [], []>} : vector<24x8xf32>, vector<24x8xf32>, vector<24x24xf32> -> vector<24x24xf32>
    %cst_302 = arith.constant 0.353553385 : f32
    %387 = vector.broadcast %cst_302 : f32 to vector<24x24xf32>
    %388 = arith.mulf %386, %387 : vector<24x24xf32>
    %389 = vector.broadcast %11 : vector<1x24xf32> to vector<24x24xf32>
    %390 = arith.addf %388, %389 : vector<24x24xf32>
    %cst_303 = arith.constant dense<0xFF800000> : vector<24xf32>
    %391 = vector.multi_reduction <maximumf>, %390, %cst_303 [1] : vector<24x24xf32> to vector<24xf32>
    %392 = vector.shape_cast %391 : vector<24xf32> to vector<24x1xf32>
    %393 = vector.broadcast %392 : vector<24x1xf32> to vector<24x24xf32>
    %394 = arith.subf %390, %393 : vector<24x24xf32>
    %395 = math.exp %394 : vector<24x24xf32>
    %cst_304 = arith.constant dense<0.000000e+00> : vector<24xf32>
    %396 = vector.multi_reduction <add>, %395, %cst_304 [1] : vector<24x24xf32> to vector<24xf32>
    %397 = vector.shape_cast %396 : vector<24xf32> to vector<24x1xf32>
    %398 = vector.broadcast %397 : vector<24x1xf32> to vector<24x24xf32>
    %399 = arith.divf %395, %398 : vector<24x24xf32>
    %cst_305 = arith.constant dense<0.000000e+00> : vector<24x8xf32>
    %400 = tpu.matmul %399, %385, %cst_305 {dimension_numbers = #tpu.dot_dimension_numbers<[1], [0], [0], [1], [0, 0, 1, 1], [], []>} : vector<24x24xf32>, vector<24x8xf32>, vector<24x8xf32> -> vector<24x8xf32>
    %c1_306 = arith.constant 1 : index
    %c1_307 = arith.constant 1 : index
    %c0_308 = arith.constant 0 : index
    %c0_309 = arith.constant 0 : index
    %401 = vector.load %arg12[%c1_306, %c1_307, %c0_308, %c0_309] : memref<2x4x8x32xf32, #tpu.memory_space<vmem>>, vector<1x1x8x32xf32>
    %402 = vector.shape_cast %401 : vector<1x1x8x32xf32> to vector<8x32xf32>
    %cst_310 = arith.constant dense<0.000000e+00> : vector<24x32xf32>
    %403 = tpu.matmul %400, %402, %cst_310 {dimension_numbers = #tpu.dot_dimension_numbers<[1], [0], [0], [1], [0, 0, 1, 1], [], []>} : vector<24x8xf32>, vector<8x32xf32>, vector<24x32xf32> -> vector<24x32xf32>
    %404 = arith.addf %364, %403 : vector<24x32xf32>
    %c1_311 = arith.constant 1 : index
    %c2_312 = arith.constant 2 : index
    %c0_313 = arith.constant 0 : index
    %c0_314 = arith.constant 0 : index
    %405 = vector.load %arg6[%c1_311, %c2_312, %c0_313, %c0_314] : memref<2x4x32x8xf32, #tpu.memory_space<vmem>>, vector<1x1x32x8xf32>
    %406 = vector.shape_cast %405 : vector<1x1x32x8xf32> to vector<32x8xf32>
    %cst_315 = arith.constant dense<0.000000e+00> : vector<24x8xf32>
    %407 = tpu.matmul %321, %406, %cst_315 {dimension_numbers = #tpu.dot_dimension_numbers<[1], [0], [0], [1], [0, 0, 1, 1], [], []>} : vector<24x32xf32>, vector<32x8xf32>, vector<24x8xf32> -> vector<24x8xf32>
    %c1_316 = arith.constant 1 : index
    %c2_317 = arith.constant 2 : index
    %c0_318 = arith.constant 0 : index
    %c0_319 = arith.constant 0 : index
    %408 = vector.load %arg7[%c1_316, %c2_317, %c0_318, %c0_319] : memref<2x4x1x8xf32, #tpu.memory_space<vmem>>, vector<1x1x1x8xf32>
    %409 = vector.shape_cast %408 : vector<1x1x1x8xf32> to vector<1x8xf32>
    %410 = vector.broadcast %409 : vector<1x8xf32> to vector<24x8xf32>
    %411 = arith.addf %407, %410 : vector<24x8xf32>
    %c1_320 = arith.constant 1 : index
    %c2_321 = arith.constant 2 : index
    %c0_322 = arith.constant 0 : index
    %c0_323 = arith.constant 0 : index
    %412 = vector.load %arg8[%c1_320, %c2_321, %c0_322, %c0_323] : memref<2x4x32x8xf32, #tpu.memory_space<vmem>>, vector<1x1x32x8xf32>
    %413 = vector.shape_cast %412 : vector<1x1x32x8xf32> to vector<32x8xf32>
    %cst_324 = arith.constant dense<0.000000e+00> : vector<24x8xf32>
    %414 = tpu.matmul %321, %413, %cst_324 {dimension_numbers = #tpu.dot_dimension_numbers<[1], [0], [0], [1], [0, 0, 1, 1], [], []>} : vector<24x32xf32>, vector<32x8xf32>, vector<24x8xf32> -> vector<24x8xf32>
    %c1_325 = arith.constant 1 : index
    %c2_326 = arith.constant 2 : index
    %c0_327 = arith.constant 0 : index
    %c0_328 = arith.constant 0 : index
    %415 = vector.load %arg9[%c1_325, %c2_326, %c0_327, %c0_328] : memref<2x4x1x8xf32, #tpu.memory_space<vmem>>, vector<1x1x1x8xf32>
    %416 = vector.shape_cast %415 : vector<1x1x1x8xf32> to vector<1x8xf32>
    %417 = vector.broadcast %416 : vector<1x8xf32> to vector<24x8xf32>
    %418 = arith.addf %414, %417 : vector<24x8xf32>
    %c1_329 = arith.constant 1 : index
    %c2_330 = arith.constant 2 : index
    %c0_331 = arith.constant 0 : index
    %c0_332 = arith.constant 0 : index
    %419 = vector.load %arg10[%c1_329, %c2_330, %c0_331, %c0_332] : memref<2x4x32x8xf32, #tpu.memory_space<vmem>>, vector<1x1x32x8xf32>
    %420 = vector.shape_cast %419 : vector<1x1x32x8xf32> to vector<32x8xf32>
    %cst_333 = arith.constant dense<0.000000e+00> : vector<24x8xf32>
    %421 = tpu.matmul %321, %420, %cst_333 {dimension_numbers = #tpu.dot_dimension_numbers<[1], [0], [0], [1], [0, 0, 1, 1], [], []>} : vector<24x32xf32>, vector<32x8xf32>, vector<24x8xf32> -> vector<24x8xf32>
    %c1_334 = arith.constant 1 : index
    %c2_335 = arith.constant 2 : index
    %c0_336 = arith.constant 0 : index
    %c0_337 = arith.constant 0 : index
    %422 = vector.load %arg11[%c1_334, %c2_335, %c0_336, %c0_337] : memref<2x4x1x8xf32, #tpu.memory_space<vmem>>, vector<1x1x1x8xf32>
    %423 = vector.shape_cast %422 : vector<1x1x1x8xf32> to vector<1x8xf32>
    %424 = vector.broadcast %423 : vector<1x8xf32> to vector<24x8xf32>
    %425 = arith.addf %421, %424 : vector<24x8xf32>
    %cst_338 = arith.constant dense<0.000000e+00> : vector<24x24xf32>
    %426 = tpu.matmul %411, %418, %cst_338 {dimension_numbers = #tpu.dot_dimension_numbers<[1], [1], [0], [0], [0, 0, 1, 0], [], []>} : vector<24x8xf32>, vector<24x8xf32>, vector<24x24xf32> -> vector<24x24xf32>
    %cst_339 = arith.constant 0.353553385 : f32
    %427 = vector.broadcast %cst_339 : f32 to vector<24x24xf32>
    %428 = arith.mulf %426, %427 : vector<24x24xf32>
    %429 = vector.broadcast %11 : vector<1x24xf32> to vector<24x24xf32>
    %430 = arith.addf %428, %429 : vector<24x24xf32>
    %cst_340 = arith.constant dense<0xFF800000> : vector<24xf32>
    %431 = vector.multi_reduction <maximumf>, %430, %cst_340 [1] : vector<24x24xf32> to vector<24xf32>
    %432 = vector.shape_cast %431 : vector<24xf32> to vector<24x1xf32>
    %433 = vector.broadcast %432 : vector<24x1xf32> to vector<24x24xf32>
    %434 = arith.subf %430, %433 : vector<24x24xf32>
    %435 = math.exp %434 : vector<24x24xf32>
    %cst_341 = arith.constant dense<0.000000e+00> : vector<24xf32>
    %436 = vector.multi_reduction <add>, %435, %cst_341 [1] : vector<24x24xf32> to vector<24xf32>
    %437 = vector.shape_cast %436 : vector<24xf32> to vector<24x1xf32>
    %438 = vector.broadcast %437 : vector<24x1xf32> to vector<24x24xf32>
    %439 = arith.divf %435, %438 : vector<24x24xf32>
    %cst_342 = arith.constant dense<0.000000e+00> : vector<24x8xf32>
    %440 = tpu.matmul %439, %425, %cst_342 {dimension_numbers = #tpu.dot_dimension_numbers<[1], [0], [0], [1], [0, 0, 1, 1], [], []>} : vector<24x24xf32>, vector<24x8xf32>, vector<24x8xf32> -> vector<24x8xf32>
    %c1_343 = arith.constant 1 : index
    %c2_344 = arith.constant 2 : index
    %c0_345 = arith.constant 0 : index
    %c0_346 = arith.constant 0 : index
    %441 = vector.load %arg12[%c1_343, %c2_344, %c0_345, %c0_346] : memref<2x4x8x32xf32, #tpu.memory_space<vmem>>, vector<1x1x8x32xf32>
    %442 = vector.shape_cast %441 : vector<1x1x8x32xf32> to vector<8x32xf32>
    %cst_347 = arith.constant dense<0.000000e+00> : vector<24x32xf32>
    %443 = tpu.matmul %440, %442, %cst_347 {dimension_numbers = #tpu.dot_dimension_numbers<[1], [0], [0], [1], [0, 0, 1, 1], [], []>} : vector<24x8xf32>, vector<8x32xf32>, vector<24x32xf32> -> vector<24x32xf32>
    %444 = arith.addf %404, %443 : vector<24x32xf32>
    %c1_348 = arith.constant 1 : index
    %c3_349 = arith.constant 3 : index
    %c0_350 = arith.constant 0 : index
    %c0_351 = arith.constant 0 : index
    %445 = vector.load %arg6[%c1_348, %c3_349, %c0_350, %c0_351] : memref<2x4x32x8xf32, #tpu.memory_space<vmem>>, vector<1x1x32x8xf32>
    %446 = vector.shape_cast %445 : vector<1x1x32x8xf32> to vector<32x8xf32>
    %cst_352 = arith.constant dense<0.000000e+00> : vector<24x8xf32>
    %447 = tpu.matmul %321, %446, %cst_352 {dimension_numbers = #tpu.dot_dimension_numbers<[1], [0], [0], [1], [0, 0, 1, 1], [], []>} : vector<24x32xf32>, vector<32x8xf32>, vector<24x8xf32> -> vector<24x8xf32>
    %c1_353 = arith.constant 1 : index
    %c3_354 = arith.constant 3 : index
    %c0_355 = arith.constant 0 : index
    %c0_356 = arith.constant 0 : index
    %448 = vector.load %arg7[%c1_353, %c3_354, %c0_355, %c0_356] : memref<2x4x1x8xf32, #tpu.memory_space<vmem>>, vector<1x1x1x8xf32>
    %449 = vector.shape_cast %448 : vector<1x1x1x8xf32> to vector<1x8xf32>
    %450 = vector.broadcast %449 : vector<1x8xf32> to vector<24x8xf32>
    %451 = arith.addf %447, %450 : vector<24x8xf32>
    %c1_357 = arith.constant 1 : index
    %c3_358 = arith.constant 3 : index
    %c0_359 = arith.constant 0 : index
    %c0_360 = arith.constant 0 : index
    %452 = vector.load %arg8[%c1_357, %c3_358, %c0_359, %c0_360] : memref<2x4x32x8xf32, #tpu.memory_space<vmem>>, vector<1x1x32x8xf32>
    %453 = vector.shape_cast %452 : vector<1x1x32x8xf32> to vector<32x8xf32>
    %cst_361 = arith.constant dense<0.000000e+00> : vector<24x8xf32>
    %454 = tpu.matmul %321, %453, %cst_361 {dimension_numbers = #tpu.dot_dimension_numbers<[1], [0], [0], [1], [0, 0, 1, 1], [], []>} : vector<24x32xf32>, vector<32x8xf32>, vector<24x8xf32> -> vector<24x8xf32>
    %c1_362 = arith.constant 1 : index
    %c3_363 = arith.constant 3 : index
    %c0_364 = arith.constant 0 : index
    %c0_365 = arith.constant 0 : index
    %455 = vector.load %arg9[%c1_362, %c3_363, %c0_364, %c0_365] : memref<2x4x1x8xf32, #tpu.memory_space<vmem>>, vector<1x1x1x8xf32>
    %456 = vector.shape_cast %455 : vector<1x1x1x8xf32> to vector<1x8xf32>
    %457 = vector.broadcast %456 : vector<1x8xf32> to vector<24x8xf32>
    %458 = arith.addf %454, %457 : vector<24x8xf32>
    %c1_366 = arith.constant 1 : index
    %c3_367 = arith.constant 3 : index
    %c0_368 = arith.constant 0 : index
    %c0_369 = arith.constant 0 : index
    %459 = vector.load %arg10[%c1_366, %c3_367, %c0_368, %c0_369] : memref<2x4x32x8xf32, #tpu.memory_space<vmem>>, vector<1x1x32x8xf32>
    %460 = vector.shape_cast %459 : vector<1x1x32x8xf32> to vector<32x8xf32>
    %cst_370 = arith.constant dense<0.000000e+00> : vector<24x8xf32>
    %461 = tpu.matmul %321, %460, %cst_370 {dimension_numbers = #tpu.dot_dimension_numbers<[1], [0], [0], [1], [0, 0, 1, 1], [], []>} : vector<24x32xf32>, vector<32x8xf32>, vector<24x8xf32> -> vector<24x8xf32>
    %c1_371 = arith.constant 1 : index
    %c3_372 = arith.constant 3 : index
    %c0_373 = arith.constant 0 : index
    %c0_374 = arith.constant 0 : index
    %462 = vector.load %arg11[%c1_371, %c3_372, %c0_373, %c0_374] : memref<2x4x1x8xf32, #tpu.memory_space<vmem>>, vector<1x1x1x8xf32>
    %463 = vector.shape_cast %462 : vector<1x1x1x8xf32> to vector<1x8xf32>
    %464 = vector.broadcast %463 : vector<1x8xf32> to vector<24x8xf32>
    %465 = arith.addf %461, %464 : vector<24x8xf32>
    %cst_375 = arith.constant dense<0.000000e+00> : vector<24x24xf32>
    %466 = tpu.matmul %451, %458, %cst_375 {dimension_numbers = #tpu.dot_dimension_numbers<[1], [1], [0], [0], [0, 0, 1, 0], [], []>} : vector<24x8xf32>, vector<24x8xf32>, vector<24x24xf32> -> vector<24x24xf32>
    %cst_376 = arith.constant 0.353553385 : f32
    %467 = vector.broadcast %cst_376 : f32 to vector<24x24xf32>
    %468 = arith.mulf %466, %467 : vector<24x24xf32>
    %469 = vector.broadcast %11 : vector<1x24xf32> to vector<24x24xf32>
    %470 = arith.addf %468, %469 : vector<24x24xf32>
    %cst_377 = arith.constant dense<0xFF800000> : vector<24xf32>
    %471 = vector.multi_reduction <maximumf>, %470, %cst_377 [1] : vector<24x24xf32> to vector<24xf32>
    %472 = vector.shape_cast %471 : vector<24xf32> to vector<24x1xf32>
    %473 = vector.broadcast %472 : vector<24x1xf32> to vector<24x24xf32>
    %474 = arith.subf %470, %473 : vector<24x24xf32>
    %475 = math.exp %474 : vector<24x24xf32>
    %cst_378 = arith.constant dense<0.000000e+00> : vector<24xf32>
    %476 = vector.multi_reduction <add>, %475, %cst_378 [1] : vector<24x24xf32> to vector<24xf32>
    %477 = vector.shape_cast %476 : vector<24xf32> to vector<24x1xf32>
    %478 = vector.broadcast %477 : vector<24x1xf32> to vector<24x24xf32>
    %479 = arith.divf %475, %478 : vector<24x24xf32>
    %cst_379 = arith.constant dense<0.000000e+00> : vector<24x8xf32>
    %480 = tpu.matmul %479, %465, %cst_379 {dimension_numbers = #tpu.dot_dimension_numbers<[1], [0], [0], [1], [0, 0, 1, 1], [], []>} : vector<24x24xf32>, vector<24x8xf32>, vector<24x8xf32> -> vector<24x8xf32>
    %c1_380 = arith.constant 1 : index
    %c3_381 = arith.constant 3 : index
    %c0_382 = arith.constant 0 : index
    %c0_383 = arith.constant 0 : index
    %481 = vector.load %arg12[%c1_380, %c3_381, %c0_382, %c0_383] : memref<2x4x8x32xf32, #tpu.memory_space<vmem>>, vector<1x1x8x32xf32>
    %482 = vector.shape_cast %481 : vector<1x1x8x32xf32> to vector<8x32xf32>
    %cst_384 = arith.constant dense<0.000000e+00> : vector<24x32xf32>
    %483 = tpu.matmul %480, %482, %cst_384 {dimension_numbers = #tpu.dot_dimension_numbers<[1], [0], [0], [1], [0, 0, 1, 1], [], []>} : vector<24x8xf32>, vector<8x32xf32>, vector<24x32xf32> -> vector<24x32xf32>
    %484 = arith.addf %444, %483 : vector<24x32xf32>
    %485 = arith.addf %297, %484 : vector<24x32xf32>
    %c1_385 = arith.constant 1 : index
    %c0_386 = arith.constant 0 : index
    %c0_387 = arith.constant 0 : index
    %486 = vector.load %arg20[%c1_385, %c0_386, %c0_387] : memref<2x32x16xf32, #tpu.memory_space<vmem>>, vector<1x32x16xf32>
    %487 = vector.shape_cast %486 : vector<1x32x16xf32> to vector<32x16xf32>
    %cst_388 = arith.constant dense<0.000000e+00> : vector<24x16xf32>
    %488 = tpu.matmul %485, %487, %cst_388 {dimension_numbers = #tpu.dot_dimension_numbers<[1], [0], [0], [1], [0, 0, 1, 1], [], []>} : vector<24x32xf32>, vector<32x16xf32>, vector<24x16xf32> -> vector<24x16xf32>
    %c1_389 = arith.constant 1 : index
    %c0_390 = arith.constant 0 : index
    %c0_391 = arith.constant 0 : index
    %489 = vector.load %arg21[%c1_389, %c0_390, %c0_391] : memref<2x1x16xf32, #tpu.memory_space<vmem>>, vector<1x1x16xf32>
    %490 = vector.shape_cast %489 : vector<1x1x16xf32> to vector<1x16xf32>
    %491 = vector.broadcast %490 : vector<1x16xf32> to vector<24x16xf32>
    %492 = arith.addf %488, %491 : vector<24x16xf32>
    %cst_392 = arith.constant 0.000000e+00 : f32
    %493 = vector.broadcast %cst_392 : f32 to vector<24x16xf32>
    %494 = arith.maximumf %492, %493 : vector<24x16xf32>
    %c1_393 = arith.constant 1 : index
    %c0_394 = arith.constant 0 : index
    %c0_395 = arith.constant 0 : index
    %495 = vector.load %arg22[%c1_393, %c0_394, %c0_395] : memref<2x16x32xf32, #tpu.memory_space<vmem>>, vector<1x16x32xf32>
    %496 = vector.shape_cast %495 : vector<1x16x32xf32> to vector<16x32xf32>
    %cst_396 = arith.constant dense<0.000000e+00> : vector<24x32xf32>
    %497 = tpu.matmul %494, %496, %cst_396 {dimension_numbers = #tpu.dot_dimension_numbers<[1], [0], [0], [1], [0, 0, 1, 1], [], []>} : vector<24x16xf32>, vector<16x32xf32>, vector<24x32xf32> -> vector<24x32xf32>
    %c1_397 = arith.constant 1 : index
    %c0_398 = arith.constant 0 : index
    %c0_399 = arith.constant 0 : index
    %498 = vector.load %arg23[%c1_397, %c0_398, %c0_399] : memref<2x1x32xf32, #tpu.memory_space<vmem>>, vector<1x1x32xf32>
    %499 = vector.shape_cast %498 : vector<1x1x32xf32> to vector<1x32xf32>
    %500 = vector.broadcast %499 : vector<1x32xf32> to vector<24x32xf32>
    %501 = arith.addf %497, %500 : vector<24x32xf32>
    %cst_400 = arith.constant 1.000000e-01 : f32
    %502 = vector.broadcast %cst_400 : f32 to vector<24x32xf32>
    %503 = arith.mulf %501, %502 : vector<24x32xf32>
    %c1_401 = arith.constant 1 : index
    %c0_402 = arith.constant 0 : index
    %c0_403 = arith.constant 0 : index
    %504 = vector.load %arg14[%c1_401, %c0_402, %c0_403] : memref<2x1x32xf32, #tpu.memory_space<vmem>>, vector<1x1x32xf32>
    %505 = vector.shape_cast %504 : vector<1x1x32xf32> to vector<1x32xf32>
    %c1_404 = arith.constant 1 : index
    %c0_405 = arith.constant 0 : index
    %c0_406 = arith.constant 0 : index
    %506 = vector.load %arg15[%c1_404, %c0_405, %c0_406] : memref<2x1x32xf32, #tpu.memory_space<vmem>>, vector<1x1x32xf32>
    %507 = vector.shape_cast %506 : vector<1x1x32xf32> to vector<1x32xf32>
    %cst_407 = arith.constant dense<0.000000e+00> : vector<24xf32>
    %508 = vector.multi_reduction <add>, %485, %cst_407 [1] : vector<24x32xf32> to vector<24xf32>
    %509 = vector.shape_cast %508 : vector<24xf32> to vector<24x1xf32>
    %cst_408 = arith.constant 3.200000e+01 : f32
    %510 = vector.broadcast %cst_408 : f32 to vector<24x1xf32>
    %511 = arith.divf %509, %510 : vector<24x1xf32>
    %512 = vector.broadcast %511 : vector<24x1xf32> to vector<24x32xf32>
    %513 = arith.subf %485, %512 : vector<24x32xf32>
    %514 = arith.mulf %513, %513 : vector<24x32xf32>
    %cst_409 = arith.constant dense<0.000000e+00> : vector<24xf32>
    %515 = vector.multi_reduction <add>, %514, %cst_409 [1] : vector<24x32xf32> to vector<24xf32>
    %516 = vector.shape_cast %515 : vector<24xf32> to vector<24x1xf32>
    %cst_410 = arith.constant 3.200000e+01 : f32
    %517 = vector.broadcast %cst_410 : f32 to vector<24x1xf32>
    %518 = arith.divf %516, %517 : vector<24x1xf32>
    %cst_411 = arith.constant 9.99999997E-7 : f32
    %519 = vector.broadcast %cst_411 : f32 to vector<24x1xf32>
    %520 = arith.addf %518, %519 : vector<24x1xf32>
    %521 = math.rsqrt %520 : vector<24x1xf32>
    %522 = vector.broadcast %521 : vector<24x1xf32> to vector<24x32xf32>
    %523 = arith.mulf %513, %522 : vector<24x32xf32>
    %524 = vector.broadcast %505 : vector<1x32xf32> to vector<24x32xf32>
    %525 = arith.mulf %523, %524 : vector<24x32xf32>
    %526 = vector.broadcast %507 : vector<1x32xf32> to vector<24x32xf32>
    %527 = arith.addf %525, %526 : vector<24x32xf32>
    %c1_412 = arith.constant 1 : index
    %c0_413 = arith.constant 0 : index
    %c0_414 = arith.constant 0 : index
    %528 = vector.load %arg16[%c1_412, %c0_413, %c0_414] : memref<2x32x128xf32, #tpu.memory_space<vmem>>, vector<1x32x128xf32>
    %529 = vector.shape_cast %528 : vector<1x32x128xf32> to vector<32x128xf32>
    %cst_415 = arith.constant dense<0.000000e+00> : vector<24x128xf32>
    %530 = tpu.matmul %527, %529, %cst_415 {dimension_numbers = #tpu.dot_dimension_numbers<[1], [0], [0], [1], [0, 0, 1, 1], [], []>} : vector<24x32xf32>, vector<32x128xf32>, vector<24x128xf32> -> vector<24x128xf32>
    %c1_416 = arith.constant 1 : index
    %c0_417 = arith.constant 0 : index
    %c0_418 = arith.constant 0 : index
    %531 = vector.load %arg17[%c1_416, %c0_417, %c0_418] : memref<2x1x128xf32, #tpu.memory_space<vmem>>, vector<1x1x128xf32>
    %532 = vector.shape_cast %531 : vector<1x1x128xf32> to vector<1x128xf32>
    %533 = vector.broadcast %532 : vector<1x128xf32> to vector<24x128xf32>
    %534 = arith.addf %530, %533 : vector<24x128xf32>
    %cst_419 = arith.constant 0.707106769 : f32
    %535 = vector.broadcast %cst_419 : f32 to vector<24x128xf32>
    %536 = arith.mulf %534, %535 : vector<24x128xf32>
    %537 = math.absf %536 : vector<24x128xf32>
    %cst_420 = arith.constant 0.327591091 : f32
    %538 = vector.broadcast %cst_420 : f32 to vector<24x128xf32>
    %539 = arith.mulf %538, %537 : vector<24x128xf32>
    %cst_421 = arith.constant 1.000000e+00 : f32
    %540 = vector.broadcast %cst_421 : f32 to vector<24x128xf32>
    %541 = arith.addf %540, %539 : vector<24x128xf32>
    %cst_422 = arith.constant 1.000000e+00 : f32
    %542 = vector.broadcast %cst_422 : f32 to vector<24x128xf32>
    %543 = arith.divf %542, %541 : vector<24x128xf32>
    %cst_423 = arith.constant 1.06140542 : f32
    %544 = vector.broadcast %cst_423 : f32 to vector<24x128xf32>
    %545 = arith.mulf %544, %543 : vector<24x128xf32>
    %cst_424 = arith.constant 1.45315206 : f32
    %546 = vector.broadcast %cst_424 : f32 to vector<24x128xf32>
    %547 = arith.subf %545, %546 : vector<24x128xf32>
    %548 = arith.mulf %547, %543 : vector<24x128xf32>
    %cst_425 = arith.constant 1.42141378 : f32
    %549 = vector.broadcast %cst_425 : f32 to vector<24x128xf32>
    %550 = arith.addf %548, %549 : vector<24x128xf32>
    %551 = arith.mulf %550, %543 : vector<24x128xf32>
    %cst_426 = arith.constant 0.284496725 : f32
    %552 = vector.broadcast %cst_426 : f32 to vector<24x128xf32>
    %553 = arith.subf %551, %552 : vector<24x128xf32>
    %554 = arith.mulf %553, %543 : vector<24x128xf32>
    %cst_427 = arith.constant 0.254829586 : f32
    %555 = vector.broadcast %cst_427 : f32 to vector<24x128xf32>
    %556 = arith.addf %554, %555 : vector<24x128xf32>
    %557 = arith.mulf %556, %543 : vector<24x128xf32>
    %cst_428 = arith.constant 0.000000e+00 : f32
    %558 = vector.broadcast %cst_428 : f32 to vector<24x128xf32>
    %559 = arith.subf %558, %537 : vector<24x128xf32>
    %560 = arith.mulf %559, %537 : vector<24x128xf32>
    %561 = math.exp %560 : vector<24x128xf32>
    %562 = arith.mulf %557, %561 : vector<24x128xf32>
    %cst_429 = arith.constant 1.000000e+00 : f32
    %563 = vector.broadcast %cst_429 : f32 to vector<24x128xf32>
    %564 = arith.subf %563, %562 : vector<24x128xf32>
    %cst_430 = arith.constant 0.000000e+00 : f32
    %565 = vector.broadcast %cst_430 : f32 to vector<24x128xf32>
    %566 = arith.cmpf oge, %536, %565 : vector<24x128xf32>
    %cst_431 = arith.constant 0.000000e+00 : f32
    %567 = vector.broadcast %cst_431 : f32 to vector<24x128xf32>
    %568 = arith.subf %567, %564 : vector<24x128xf32>
    %569 = arith.select %566, %564, %568 : vector<24x128xi1>, vector<24x128xf32>
    %cst_432 = arith.constant 5.000000e-01 : f32
    %570 = vector.broadcast %cst_432 : f32 to vector<24x128xf32>
    %571 = arith.mulf %570, %534 : vector<24x128xf32>
    %cst_433 = arith.constant 1.000000e+00 : f32
    %572 = vector.broadcast %cst_433 : f32 to vector<24x128xf32>
    %573 = arith.addf %572, %569 : vector<24x128xf32>
    %574 = arith.mulf %571, %573 : vector<24x128xf32>
    %c1_434 = arith.constant 1 : index
    %c0_435 = arith.constant 0 : index
    %c0_436 = arith.constant 0 : index
    %575 = vector.load %arg18[%c1_434, %c0_435, %c0_436] : memref<2x128x32xf32, #tpu.memory_space<vmem>>, vector<1x128x32xf32>
    %576 = vector.shape_cast %575 : vector<1x128x32xf32> to vector<128x32xf32>
    %cst_437 = arith.constant dense<0.000000e+00> : vector<24x32xf32>
    %577 = tpu.matmul %574, %576, %cst_437 {dimension_numbers = #tpu.dot_dimension_numbers<[1], [0], [0], [1], [0, 0, 1, 1], [], []>} : vector<24x128xf32>, vector<128x32xf32>, vector<24x32xf32> -> vector<24x32xf32>
    %c1_438 = arith.constant 1 : index
    %c0_439 = arith.constant 0 : index
    %c0_440 = arith.constant 0 : index
    %578 = vector.load %arg19[%c1_438, %c0_439, %c0_440] : memref<2x1x32xf32, #tpu.memory_space<vmem>>, vector<1x1x32xf32>
    %579 = vector.shape_cast %578 : vector<1x1x32xf32> to vector<1x32xf32>
    %580 = vector.broadcast %579 : vector<1x32xf32> to vector<24x32xf32>
    %581 = arith.addf %577, %580 : vector<24x32xf32>
    %582 = arith.addf %485, %581 : vector<24x32xf32>
    %583 = arith.addf %582, %503 : vector<24x32xf32>
    %584 = vector.extract_strided_slice %583 {offsets = [0, 0], sizes = [1, 32], strides = [1, 1]} : vector<24x32xf32> to vector<1x32xf32>
    %c0_441 = arith.constant 0 : index
    %c0_442 = arith.constant 0 : index
    %585 = vector.load %arg24[%c0_441, %c0_442] : memref<1x32xf32, #tpu.memory_space<vmem>>, vector<1x32xf32>
    %c0_443 = arith.constant 0 : index
    %c0_444 = arith.constant 0 : index
    %586 = vector.load %arg25[%c0_443, %c0_444] : memref<1x32xf32, #tpu.memory_space<vmem>>, vector<1x32xf32>
    %cst_445 = arith.constant dense<0.000000e+00> : vector<1xf32>
    %587 = vector.multi_reduction <add>, %584, %cst_445 [1] : vector<1x32xf32> to vector<1xf32>
    %588 = vector.shape_cast %587 : vector<1xf32> to vector<1x1xf32>
    %cst_446 = arith.constant 3.200000e+01 : f32
    %589 = vector.broadcast %cst_446 : f32 to vector<1x1xf32>
    %590 = arith.divf %588, %589 : vector<1x1xf32>
    %591 = vector.broadcast %590 : vector<1x1xf32> to vector<1x32xf32>
    %592 = arith.subf %584, %591 : vector<1x32xf32>
    %593 = arith.mulf %592, %592 : vector<1x32xf32>
    %cst_447 = arith.constant dense<0.000000e+00> : vector<1xf32>
    %594 = vector.multi_reduction <add>, %593, %cst_447 [1] : vector<1x32xf32> to vector<1xf32>
    %595 = vector.shape_cast %594 : vector<1xf32> to vector<1x1xf32>
    %cst_448 = arith.constant 3.200000e+01 : f32
    %596 = vector.broadcast %cst_448 : f32 to vector<1x1xf32>
    %597 = arith.divf %595, %596 : vector<1x1xf32>
    %cst_449 = arith.constant 9.99999997E-7 : f32
    %598 = vector.broadcast %cst_449 : f32 to vector<1x1xf32>
    %599 = arith.addf %597, %598 : vector<1x1xf32>
    %600 = math.rsqrt %599 : vector<1x1xf32>
    %601 = vector.broadcast %600 : vector<1x1xf32> to vector<1x32xf32>
    %602 = arith.mulf %592, %601 : vector<1x32xf32>
    %603 = arith.mulf %602, %585 : vector<1x32xf32>
    %604 = arith.addf %603, %586 : vector<1x32xf32>
    %605 = vector.shape_cast %604 : vector<1x32xf32> to vector<1x1x32xf32>
    %c0_450 = arith.constant 0 : index
    %c0_451 = arith.constant 0 : index
    %c0_452 = arith.constant 0 : index
    %606 = vector.load %arg26[%c0_450, %c0_451, %c0_452] : memref<1x1x32xf32, #tpu.memory_space<vmem>>, vector<1x1x32xf32>
    tpu.vector_store %arg26[%c0_450, %c0_451, %c0_452], %605 {strides = array<i32>} : memref<1x1x32xf32, #tpu.memory_space<vmem>>, vector<1x1x32xf32>,
    return
  }
  func.func @transform_0(%arg0: i32) -> (i32, i32, i32) {
    %c0_i32 = arith.constant 0 : i32
    %c0_i32_0 = arith.constant 0 : i32
    %c0_i32_1 = arith.constant 0 : i32
    return %arg0, %c0_i32, %c0_i32_0 : i32, i32, i32
  }
  func.func @transform_1(%arg0: i32) -> (i32, i32) {
    %c0_i32 = arith.constant 0 : i32
    %c0_i32_0 = arith.constant 0 : i32
    %c0_i32_1 = arith.constant 0 : i32
    return %c0_i32, %c0_i32_0 : i32, i32
  }
  func.func @transform_2(%arg0: i32) -> (i32, i32) {
    %c0_i32 = arith.constant 0 : i32
    %c0_i32_0 = arith.constant 0 : i32
    %c0_i32_1 = arith.constant 0 : i32
    return %c0_i32, %c0_i32_0 : i32, i32
  }
  func.func @transform_3(%arg0: i32) -> (i32, i32, i32) {
    %c0_i32 = arith.constant 0 : i32
    %c0_i32_0 = arith.constant 0 : i32
    %c0_i32_1 = arith.constant 0 : i32
    %c0_i32_2 = arith.constant 0 : i32
    return %c0_i32, %c0_i32_0, %c0_i32_1 : i32, i32, i32
  }
  func.func @transform_4(%arg0: i32) -> (i32, i32, i32) {
    %c0_i32 = arith.constant 0 : i32
    %c0_i32_0 = arith.constant 0 : i32
    %c0_i32_1 = arith.constant 0 : i32
    %c0_i32_2 = arith.constant 0 : i32
    return %c0_i32, %c0_i32_0, %c0_i32_1 : i32, i32, i32
  }
  func.func @transform_5(%arg0: i32) -> (i32, i32, i32, i32) {
    %c0_i32 = arith.constant 0 : i32
    %c0_i32_0 = arith.constant 0 : i32
    %c0_i32_1 = arith.constant 0 : i32
    %c0_i32_2 = arith.constant 0 : i32
    %c0_i32_3 = arith.constant 0 : i32
    return %c0_i32, %c0_i32_0, %c0_i32_1, %c0_i32_2 : i32, i32, i32, i32
  }
  func.func @transform_6(%arg0: i32) -> (i32, i32, i32, i32) {
    %c0_i32 = arith.constant 0 : i32
    %c0_i32_0 = arith.constant 0 : i32
    %c0_i32_1 = arith.constant 0 : i32
    %c0_i32_2 = arith.constant 0 : i32
    %c0_i32_3 = arith.constant 0 : i32
    return %c0_i32, %c0_i32_0, %c0_i32_1, %c0_i32_2 : i32, i32, i32, i32
  }
  func.func @transform_7(%arg0: i32) -> (i32, i32, i32, i32) {
    %c0_i32 = arith.constant 0 : i32
    %c0_i32_0 = arith.constant 0 : i32
    %c0_i32_1 = arith.constant 0 : i32
    %c0_i32_2 = arith.constant 0 : i32
    %c0_i32_3 = arith.constant 0 : i32
    return %c0_i32, %c0_i32_0, %c0_i32_1, %c0_i32_2 : i32, i32, i32, i32
  }
  func.func @transform_8(%arg0: i32) -> (i32, i32, i32, i32) {
    %c0_i32 = arith.constant 0 : i32
    %c0_i32_0 = arith.constant 0 : i32
    %c0_i32_1 = arith.constant 0 : i32
    %c0_i32_2 = arith.constant 0 : i32
    %c0_i32_3 = arith.constant 0 : i32
    return %c0_i32, %c0_i32_0, %c0_i32_1, %c0_i32_2 : i32, i32, i32, i32
  }
  func.func @transform_9(%arg0: i32) -> (i32, i32, i32, i32) {
    %c0_i32 = arith.constant 0 : i32
    %c0_i32_0 = arith.constant 0 : i32
    %c0_i32_1 = arith.constant 0 : i32
    %c0_i32_2 = arith.constant 0 : i32
    %c0_i32_3 = arith.constant 0 : i32
    return %c0_i32, %c0_i32_0, %c0_i32_1, %c0_i32_2 : i32, i32, i32, i32
  }
  func.func @transform_10(%arg0: i32) -> (i32, i32, i32, i32) {
    %c0_i32 = arith.constant 0 : i32
    %c0_i32_0 = arith.constant 0 : i32
    %c0_i32_1 = arith.constant 0 : i32
    %c0_i32_2 = arith.constant 0 : i32
    %c0_i32_3 = arith.constant 0 : i32
    return %c0_i32, %c0_i32_0, %c0_i32_1, %c0_i32_2 : i32, i32, i32, i32
  }
  func.func @transform_11(%arg0: i32) -> (i32, i32, i32, i32) {
    %c0_i32 = arith.constant 0 : i32
    %c0_i32_0 = arith.constant 0 : i32
    %c0_i32_1 = arith.constant 0 : i32
    %c0_i32_2 = arith.constant 0 : i32
    %c0_i32_3 = arith.constant 0 : i32
    return %c0_i32, %c0_i32_0, %c0_i32_1, %c0_i32_2 : i32, i32, i32, i32
  }
  func.func @transform_12(%arg0: i32) -> (i32, i32, i32) {
    %c0_i32 = arith.constant 0 : i32
    %c0_i32_0 = arith.constant 0 : i32
    %c0_i32_1 = arith.constant 0 : i32
    %c0_i32_2 = arith.constant 0 : i32
    return %c0_i32, %c0_i32_0, %c0_i32_1 : i32, i32, i32
  }
  func.func @transform_13(%arg0: i32) -> (i32, i32, i32) {
    %c0_i32 = arith.constant 0 : i32
    %c0_i32_0 = arith.constant 0 : i32
    %c0_i32_1 = arith.constant 0 : i32
    %c0_i32_2 = arith.constant 0 : i32
    return %c0_i32, %c0_i32_0, %c0_i32_1 : i32, i32, i32
  }
  func.func @transform_14(%arg0: i32) -> (i32, i32, i32) {
    %c0_i32 = arith.constant 0 : i32
    %c0_i32_0 = arith.constant 0 : i32
    %c0_i32_1 = arith.constant 0 : i32
    %c0_i32_2 = arith.constant 0 : i32
    return %c0_i32, %c0_i32_0, %c0_i32_1 : i32, i32, i32
  }
  func.func @transform_15(%arg0: i32) -> (i32, i32, i32) {
    %c0_i32 = arith.constant 0 : i32
    %c0_i32_0 = arith.constant 0 : i32
    %c0_i32_1 = arith.constant 0 : i32
    %c0_i32_2 = arith.constant 0 : i32
    return %c0_i32, %c0_i32_0, %c0_i32_1 : i32, i32, i32
  }
  func.func @transform_16(%arg0: i32) -> (i32, i32, i32) {
    %c0_i32 = arith.constant 0 : i32
    %c0_i32_0 = arith.constant 0 : i32
    %c0_i32_1 = arith.constant 0 : i32
    %c0_i32_2 = arith.constant 0 : i32
    return %c0_i32, %c0_i32_0, %c0_i32_1 : i32, i32, i32
  }
  func.func @transform_17(%arg0: i32) -> (i32, i32, i32) {
    %c0_i32 = arith.constant 0 : i32
    %c0_i32_0 = arith.constant 0 : i32
    %c0_i32_1 = arith.constant 0 : i32
    %c0_i32_2 = arith.constant 0 : i32
    return %c0_i32, %c0_i32_0, %c0_i32_1 : i32, i32, i32
  }
  func.func @transform_18(%arg0: i32) -> (i32, i32, i32) {
    %c0_i32 = arith.constant 0 : i32
    %c0_i32_0 = arith.constant 0 : i32
    %c0_i32_1 = arith.constant 0 : i32
    %c0_i32_2 = arith.constant 0 : i32
    return %c0_i32, %c0_i32_0, %c0_i32_1 : i32, i32, i32
  }
  func.func @transform_19(%arg0: i32) -> (i32, i32, i32) {
    %c0_i32 = arith.constant 0 : i32
    %c0_i32_0 = arith.constant 0 : i32
    %c0_i32_1 = arith.constant 0 : i32
    %c0_i32_2 = arith.constant 0 : i32
    return %c0_i32, %c0_i32_0, %c0_i32_1 : i32, i32, i32
  }
  func.func @transform_20(%arg0: i32) -> (i32, i32, i32) {
    %c0_i32 = arith.constant 0 : i32
    %c0_i32_0 = arith.constant 0 : i32
    %c0_i32_1 = arith.constant 0 : i32
    %c0_i32_2 = arith.constant 0 : i32
    return %c0_i32, %c0_i32_0, %c0_i32_1 : i32, i32, i32
  }
  func.func @transform_21(%arg0: i32) -> (i32, i32, i32) {
    %c0_i32 = arith.constant 0 : i32
    %c0_i32_0 = arith.constant 0 : i32
    %c0_i32_1 = arith.constant 0 : i32
    %c0_i32_2 = arith.constant 0 : i32
    return %c0_i32, %c0_i32_0, %c0_i32_1 : i32, i32, i32
  }
  func.func @transform_22(%arg0: i32) -> (i32, i32, i32) {
    %c0_i32 = arith.constant 0 : i32
    %c0_i32_0 = arith.constant 0 : i32
    %c0_i32_1 = arith.constant 0 : i32
    %c0_i32_2 = arith.constant 0 : i32
    return %c0_i32, %c0_i32_0, %c0_i32_1 : i32, i32, i32
  }
  func.func @transform_23(%arg0: i32) -> (i32, i32) {
    %c0_i32 = arith.constant 0 : i32
    %c0_i32_0 = arith.constant 0 : i32
    %c0_i32_1 = arith.constant 0 : i32
    return %c0_i32, %c0_i32_0 : i32, i32
  }
  func.func @transform_24(%arg0: i32) -> (i32, i32) {
    %c0_i32 = arith.constant 0 : i32
    %c0_i32_0 = arith.constant 0 : i32
    %c0_i32_1 = arith.constant 0 : i32
    return %c0_i32, %c0_i32_0 : i32, i32
  }
  func.func @transform_25(%arg0: i32) -> (i32, i32, i32) {
    %c0_i32 = arith.constant 0 : i32
    %c0_i32_0 = arith.constant 0 : i32
    %c0_i32_1 = arith.constant 0 : i32
    return %arg0, %c0_i32, %c0_i32_0 : i32, i32, i32
  }
}

</mosaic_0001>

<llo_original>
// kernel: vit_forward.1
$region0: #{vit_forward.1}
  #allocation0 [shape = 'u32[]', space=smem, size = 0x4, offset = 0x4, fixed_abs, tag = 'smem constant byte address 0x4 - core index']
  #allocation1 [shape = 'u32[144,128]{1,0:T(1,128)}', space=vmem, size = 0x12000, scoped, tag = 'internal scratch']
  %s0 = inlined_call_operand.vmem [shape: f32[2,24,48], index: 0, kind: input, shape index: {}]
  %s1 = inlined_call_operand.vmem [shape: f32[24,32], index: 1, kind: input, shape index: {}]
  %s2 = inlined_call_operand.vmem [shape: f32[48,32], index: 2, kind: input, shape index: {}]
  %s3 = inlined_call_operand.vmem [shape: f32[2,1,32], index: 3, kind: input, shape index: {}]
  %s4 = inlined_call_operand.vmem [shape: f32[2,1,32], index: 4, kind: input, shape index: {}]
  %s5 = inlined_call_operand.vmem [shape: f32[2,4,32,8], index: 5, kind: input, shape index: {}]
  %s6 = inlined_call_operand.vmem [shape: f32[2,4,1,8], index: 6, kind: input, shape index: {}]
  %s7 = inlined_call_operand.vmem [shape: f32[2,4,32,8], index: 7, kind: input, shape index: {}]
  %s8 = inlined_call_operand.vmem [shape: f32[2,4,1,8], index: 8, kind: input, shape index: {}]
  %s9 = inlined_call_operand.vmem [shape: f32[2,4,32,8], index: 9, kind: input, shape index: {}]
  %s10 = inlined_call_operand.vmem [shape: f32[2,4,1,8], index: 10, kind: input, shape index: {}]
  %s11 = inlined_call_operand.vmem [shape: f32[2,4,8,32], index: 11, kind: input, shape index: {}]
  %s12 = inlined_call_operand.vmem [shape: f32[2,1,32], index: 12, kind: input, shape index: {}]
  %s13 = inlined_call_operand.vmem [shape: f32[2,1,32], index: 13, kind: input, shape index: {}]
  %s14 = inlined_call_operand.vmem [shape: f32[2,1,32], index: 14, kind: input, shape index: {}]
  %s15 = inlined_call_operand.vmem [shape: f32[2,32,128], index: 15, kind: input, shape index: {}]
  %s16 = inlined_call_operand.vmem [shape: f32[2,1,128], index: 16, kind: input, shape index: {}]
  %s17 = inlined_call_operand.vmem [shape: f32[2,128,32], index: 17, kind: input, shape index: {}]
  %s18 = inlined_call_operand.vmem [shape: f32[2,1,32], index: 18, kind: input, shape index: {}]
  %s19 = inlined_call_operand.vmem [shape: f32[2,32,16], index: 19, kind: input, shape index: {}]
  %s20 = inlined_call_operand.vmem [shape: f32[2,1,16], index: 20, kind: input, shape index: {}]
  %s21 = inlined_call_operand.vmem [shape: f32[2,16,32], index: 21, kind: input, shape index: {}]
  %s22 = inlined_call_operand.vmem [shape: f32[2,1,32], index: 22, kind: input, shape index: {}]
  %s23 = inlined_call_operand.vmem [shape: f32[1,32], index: 23, kind: input, shape index: {}]
  %s24 = inlined_call_operand.vmem [shape: f32[1,32], index: 24, kind: input, shape index: {}]
  %s25 = inlined_call_operand.hbm [shape: f32[2,1,32], index: 25, kind: output, shape index: {}]
  %s26 = sld [smem:[#allocation0]]
  $region133: #{vit_forward.1} parent=0
    _
  %s28 = ssub.s32 1, %s26
  %s29 = scalar_select 0, %s28, %s26
  $region1: #{vit_forward.1} parent=0
    #allocation2 [shape = 'u8[1024]{0}', space=vmem, size = 0x400, scoped, tag = 'output window, operand 0']
    #allocation3 [shape = 's32[2]{0}', space=sflag, size = 0x8, scoped, tag = 'scoped memory for vit_forward.1']
    %30 = vsyncpa [#allocation3], 0
    %s31 = scalar_lea.sflag [#allocation3], 1
    %32 = vsyncpa %s31, 0
    loop: start=0, step=1, limit=4
    $region2: #{vit_forward.1} parent=1 // loop_pre_header
      _
    $region3: #{vit_forward.1} parent=1 // loop_header
      %s34 = sphi 0, %s38
      %p35 = scmp.ge.s32.totalorder %s34, 4
      %s44 = sphi 0, %s46
      %s47 = sphi 0, %s44
      %s48 = sphi 0, %s47
      %s64 = sphi 0, %s48
      %s68 = sphi 0, %s68
      %s70 = sphi 0, %s68
      %s71 = sphi 0, %s70
      %s85 = sphi 0, %s71
      %s89 = sphi 0, %s89
      %s91 = sphi 0, %s89
      %s92 = sphi 0, %s91
      %s106 = sphi 0, %s92
      %s110 = sphi 0, %s110
      %s112 = sphi 0, %s110
      %s113 = sphi 0, %s112
      %s127 = sphi 0, %s113
      %s131 = sphi 0, %s131
      %s133 = sphi 0, %s131
      %s134 = sphi 0, %s133
      %s148 = sphi 0, %s134
      %s152 = sphi 0, %s152
      %s154 = sphi 0, %s152
      %s155 = sphi 0, %s154
      %s169 = sphi 0, %s155
      %s173 = sphi 0, %s173
      %s175 = sphi 0, %s173
      %s176 = sphi 0, %s175
      %s190 = sphi 0, %s176
      %s194 = sphi 0, %s194
      %s196 = sphi 0, %s194
      %s197 = sphi 0, %s196
      %s211 = sphi 0, %s197
      %s215 = sphi 0, %s215
      %s217 = sphi 0, %s215
      %s218 = sphi 0, %s217
      %s232 = sphi 0, %s218
      %s236 = sphi 0, %s236
      %s238 = sphi 0, %s236
      %s239 = sphi 0, %s238
      %s253 = sphi 0, %s239
      %s257 = sphi 0, %s257
      %s259 = sphi 0, %s257
      %s260 = sphi 0, %s259
      %s274 = sphi 0, %s260
      %s278 = sphi 0, %s278
      %s280 = sphi 0, %s278
      %s281 = sphi 0, %s280
      %s295 = sphi 0, %s281
      %s299 = sphi 0, %s299
      %s301 = sphi 0, %s299
      %s302 = sphi 0, %s301
      %s316 = sphi 0, %s302
      %s320 = sphi 0, %s320
      %s322 = sphi 0, %s320
      %s323 = sphi 0, %s322
      %s337 = sphi 0, %s323
      %s341 = sphi 0, %s341
      %s343 = sphi 0, %s341
      %s344 = sphi 0, %s343
      %s358 = sphi 0, %s344
      %s362 = sphi 0, %s362
      %s364 = sphi 0, %s362
      %s365 = sphi 0, %s364
      %s379 = sphi 0, %s365
      %s383 = sphi 0, %s383
      %s385 = sphi 0, %s383
      %s386 = sphi 0, %s385
      %s400 = sphi 0, %s386
      %s404 = sphi 0, %s404
      %s406 = sphi 0, %s404
      %s407 = sphi 0, %s406
      %s421 = sphi 0, %s407
      %s425 = sphi 0, %s425
      %s427 = sphi 0, %s425
      %s428 = sphi 0, %s427
      %s442 = sphi 0, %s428
      %s446 = sphi 0, %s446
      %s448 = sphi 0, %s446
      %s449 = sphi 0, %s448
      %s463 = sphi 0, %s449
      %s467 = sphi 0, %s467
      %s469 = sphi 0, %s467
      %s470 = sphi 0, %s469
      %s484 = sphi 0, %s470
      %s488 = sphi 0, %s488
      %s490 = sphi 0, %s488
      %s491 = sphi 0, %s490
      %s505 = sphi 0, %s491
      %s509 = sphi 0, %s509
      %s511 = sphi 0, %s509
      %s512 = sphi 0, %s511
      %s526 = sphi 0, %s512
      %s530 = sphi 0, %s530
      %s532 = sphi 0, %s530
      %s533 = sphi 0, %s532
      %s547 = sphi 0, %s533
      %s551 = sphi 0, %s551
      %s553 = sphi 0, %s551
      %s554 = sphi 0, %s553
      %s568 = sphi 0, %s554
      %s574 = sphi 0, %s576
      %s577 = sphi 0, %s574
      %s578 = sphi 0, %s577
      %s594 = sphi 0, %s578
    $region4: #{vit_forward.1} parent=1 // loop_header_branch
      %37 = sbr.rel (%p35) target = $region8
    $region5: #{vit_forward.1} parent=1 // loop_body
      %s39 = ssub.s32 %s34, 1
      %s40 = ssub.s32 %s34, 2
      %s41 = sadd.s32 %s34, 1
      %s42 = ssub.s32 %s34, %s41
      %p43 = scmp.eq.s32.totalorder %s42, 0
      %s45 = sadd.s32 %s44, 1
      %s46 = scalar_select %p43, %s44, %s45
      %p49 = pneg %p43
      %p50 = scmp.eq.s32.totalorder %s34, 1
      %p51 = por %p49, %p50
      %p52 = scmp.ne.s32.totalorder %s44, %s47
      %p53 = scmp.eq.s32.totalorder %s34, 0
      %p54 = por %p52, %p53
      %p55 = scmp.ne.s32.totalorder %s44, %s47
      %p56 = scmp.eq.s32.totalorder %s39, 1
      %p57 = por %p55, %p56
      %p58 = scmp.ne.s32.totalorder %s47, %s48
      %p59 = scmp.eq.s32.totalorder %s39, 0
      %p60 = por %p58, %p59
      %p61 = scmp.ne.s32.totalorder %s47, %s48
      %p62 = scmp.eq.s32.totalorder %s40, 1
      %p63 = por %p61, %p62
      %p65 = scmp.ne.s32.totalorder %s48, %s64
      %p66 = scmp.eq.s32.totalorder %s40, 0
      %p67 = por %p65, %p66
      %s69 = sadd.s32 %s68, 1
      %p72 = scmp.eq.s32.totalorder %s34, 1
      %p73 = scmp.ne.s32.totalorder %s68, %s70
      %p74 = scmp.eq.s32.totalorder %s34, 0
      %p75 = por %p73, %p74
      %p76 = scmp.ne.s32.totalorder %s68, %s70
      %p77 = scmp.eq.s32.totalorder %s39, 1
      %p78 = por %p76, %p77
      %p79 = scmp.ne.s32.totalorder %s70, %s71
      %p80 = scmp.eq.s32.totalorder %s39, 0
      %p81 = por %p79, %p80
      %p82 = scmp.ne.s32.totalorder %s70, %s71
      %p83 = scmp.eq.s32.totalorder %s40, 1
      %p84 = por %p82, %p83
      %p86 = scmp.ne.s32.totalorder %s71, %s85
      %p87 = scmp.eq.s32.totalorder %s40, 0
      %p88 = por %p86, %p87
      %s90 = sadd.s32 %s89, 1
      %p93 = scmp.eq.s32.totalorder %s34, 1
      %p94 = scmp.ne.s32.totalorder %s89, %s91
      %p95 = scmp.eq.s32.totalorder %s34, 0
      %p96 = por %p94, %p95
      %p97 = scmp.ne.s32.totalorder %s89, %s91
      %p98 = scmp.eq.s32.totalorder %s39, 1
      %p99 = por %p97, %p98
      %p100 = scmp.ne.s32.totalorder %s91, %s92
      %p101 = scmp.eq.s32.totalorder %s39, 0
      %p102 = por %p100, %p101
      %p103 = scmp.ne.s32.totalorder %s91, %s92
      %p104 = scmp.eq.s32.totalorder %s40, 1
      %p105 = por %p103, %p104
      %p107 = scmp.ne.s32.totalorder %s92, %s106
      %p108 = scmp.eq.s32.totalorder %s40, 0
      %p109 = por %p107, %p108
      %s111 = sadd.s32 %s110, 1
      %p114 = scmp.eq.s32.totalorder %s34, 1
      %p115 = scmp.ne.s32.totalorder %s110, %s112
      %p116 = scmp.eq.s32.totalorder %s34, 0
      %p117 = por %p115, %p116
      %p118 = scmp.ne.s32.totalorder %s110, %s112
      %p119 = scmp.eq.s32.totalorder %s39, 1
      %p120 = por %p118, %p119
      %p121 = scmp.ne.s32.totalorder %s112, %s113
      %p122 = scmp.eq.s32.totalorder %s39, 0
      %p123 = por %p121, %p122
      %p124 = scmp.ne.s32.totalorder %s112, %s113
      %p125 = scmp.eq.s32.totalorder %s40, 1
      %p126 = por %p124, %p125
      %p128 = scmp.ne.s32.totalorder %s113, %s127
      %p129 = scmp.eq.s32.totalorder %s40, 0
      %p130 = por %p128, %p129
      %s132 = sadd.s32 %s131, 1
      %p135 = scmp.eq.s32.totalorder %s34, 1
      %p136 = scmp.ne.s32.totalorder %s131, %s133
      %p137 = scmp.eq.s32.totalorder %s34, 0
      %p138 = por %p136, %p137
      %p139 = scmp.ne.s32.totalorder %s131, %s133
      %p140 = scmp.eq.s32.totalorder %s39, 1
      %p141 = por %p139, %p140
      %p142 = scmp.ne.s32.totalorder %s133, %s134
      %p143 = scmp.eq.s32.totalorder %s39, 0
      %p144 = por %p142, %p143
      %p145 = scmp.ne.s32.totalorder %s133, %s134
      %p146 = scmp.eq.s32.totalorder %s40, 1
      %p147 = por %p145, %p146
      %p149 = scmp.ne.s32.totalorder %s134, %s148
      %p150 = scmp.eq.s32.totalorder %s40, 0
      %p151 = por %p149, %p150
      %s153 = sadd.s32 %s152, 1
      %p156 = scmp.eq.s32.totalorder %s34, 1
      %p157 = scmp.ne.s32.totalorder %s152, %s154
      %p158 = scmp.eq.s32.totalorder %s34, 0
      %p159 = por %p157, %p158
      %p160 = scmp.ne.s32.totalorder %s152, %s154
      %p161 = scmp.eq.s32.totalorder %s39, 1
      %p162 = por %p160, %p161
      %p163 = scmp.ne.s32.totalorder %s154, %s155
      %p164 = scmp.eq.s32.totalorder %s39, 0
      %p165 = por %p163, %p164
      %p166 = scmp.ne.s32.totalorder %s154, %s155
      %p167 = scmp.eq.s32.totalorder %s40, 1
      %p168 = por %p166, %p167
      %p170 = scmp.ne.s32.totalorder %s155, %s169
      %p171 = scmp.eq.s32.totalorder %s40, 0
      %p172 = por %p170, %p171
      %s174 = sadd.s32 %s173, 1
      %p177 = scmp.eq.s32.totalorder %s34, 1
      %p178 = scmp.ne.s32.totalorder %s173, %s175
      %p179 = scmp.eq.s32.totalorder %s34, 0
      %p180 = por %p178, %p179
      %p181 = scmp.ne.s32.totalorder %s173, %s175
      %p182 = scmp.eq.s32.totalorder %s39, 1
      %p183 = por %p181, %p182
      %p184 = scmp.ne.s32.totalorder %s175, %s176
      %p185 = scmp.eq.s32.totalorder %s39, 0
      %p186 = por %p184, %p185
      %p187 = scmp.ne.s32.totalorder %s175, %s176
      %p188 = scmp.eq.s32.totalorder %s40, 1
      %p189 = por %p187, %p188
      %p191 = scmp.ne.s32.totalorder %s176, %s190
      %p192 = scmp.eq.s32.totalorder %s40, 0
      %p193 = por %p191, %p192
      %s195 = sadd.s32 %s194, 1
      %p198 = scmp.eq.s32.totalorder %s34, 1
      %p199 = scmp.ne.s32.totalorder %s194, %s196
      %p200 = scmp.eq.s32.totalorder %s34, 0
      %p201 = por %p199, %p200
      %p202 = scmp.ne.s32.totalorder %s194, %s196
      %p203 = scmp.eq.s32.totalorder %s39, 1
      %p204 = por %p202, %p203
      %p205 = scmp.ne.s32.totalorder %s196, %s197
      %p206 = scmp.eq.s32.totalorder %s39, 0
      %p207 = por %p205, %p206
      %p208 = scmp.ne.s32.totalorder %s196, %s197
      %p209 = scmp.eq.s32.totalorder %s40, 1
      %p210 = por %p208, %p209
      %p212 = scmp.ne.s32.totalorder %s197, %s211
      %p213 = scmp.eq.s32.totalorder %s40, 0
      %p214 = por %p212, %p213
      %s216 = sadd.s32 %s215, 1
      %p219 = scmp.eq.s32.totalorder %s34, 1
      %p220 = scmp.ne.s32.totalorder %s215, %s217
      %p221 = scmp.eq.s32.totalorder %s34, 0
      %p222 = por %p220, %p221
      %p223 = scmp.ne.s32.totalorder %s215, %s217
      %p224 = scmp.eq.s32.totalorder %s39, 1
      %p225 = por %p223, %p224
      %p226 = scmp.ne.s32.totalorder %s217, %s218
      %p227 = scmp.eq.s32.totalorder %s39, 0
      %p228 = por %p226, %p227
      %p229 = scmp.ne.s32.totalorder %s217, %s218
      %p230 = scmp.eq.s32.totalorder %s40, 1
      %p231 = por %p229, %p230
      %p233 = scmp.ne.s32.totalorder %s218, %s232
      %p234 = scmp.eq.s32.totalorder %s40, 0
      %p235 = por %p233, %p234
      %s237 = sadd.s32 %s236, 1
      %p240 = scmp.eq.s32.totalorder %s34, 1
      %p241 = scmp.ne.s32.totalorder %s236, %s238
      %p242 = scmp.eq.s32.totalorder %s34, 0
      %p243 = por %p241, %p242
      %p244 = scmp.ne.s32.totalorder %s236, %s238
      %p245 = scmp.eq.s32.totalorder %s39, 1
      %p246 = por %p244, %p245
      %p247 = scmp.ne.s32.totalorder %s238, %s239
      %p248 = scmp.eq.s32.totalorder %s39, 0
      %p249 = por %p247, %p248
      %p250 = scmp.ne.s32.totalorder %s238, %s239
      %p251 = scmp.eq.s32.totalorder %s40, 1
      %p252 = por %p250, %p251
      %p254 = scmp.ne.s32.totalorder %s239, %s253
      %p255 = scmp.eq.s32.totalorder %s40, 0
      %p256 = por %p254, %p255
      %s258 = sadd.s32 %s257, 1
      %p261 = scmp.eq.s32.totalorder %s34, 1
      %p262 = scmp.ne.s32.totalorder %s257, %s259
      %p263 = scmp.eq.s32.totalorder %s34, 0
      %p264 = por %p262, %p263
      %p265 = scmp.ne.s32.totalorder %s257, %s259
      %p266 = scmp.eq.s32.totalorder %s39, 1
      %p267 = por %p265, %p266
      %p268 = scmp.ne.s32.totalorder %s259, %s260
      %p269 = scmp.eq.s32.totalorder %s39, 0
      %p270 = por %p268, %p269
      %p271 = scmp.ne.s32.totalorder %s259, %s260
      %p272 = scmp.eq.s32.totalorder %s40, 1
      %p273 = por %p271, %p272
      %p275 = scmp.ne.s32.totalorder %s260, %s274
      %p276 = scmp.eq.s32.totalorder %s40, 0
      %p277 = por %p275, %p276
      %s279 = sadd.s32 %s278, 1
      %p282 = scmp.eq.s32.totalorder %s34, 1
      %p283 = scmp.ne.s32.totalorder %s278, %s280
      %p284 = scmp.eq.s32.totalorder %s34, 0
      %p285 = por %p283, %p284
      %p286 = scmp.ne.s32.totalorder %s278, %s280
      %p287 = scmp.eq.s32.totalorder %s39, 1
      %p288 = por %p286, %p287
      %p289 = scmp.ne.s32.totalorder %s280, %s281
      %p290 = scmp.eq.s32.totalorder %s39, 0
      %p291 = por %p289, %p290
      %p292 = scmp.ne.s32.totalorder %s280, %s281
      %p293 = scmp.eq.s32.totalorder %s40, 1
      %p294 = por %p292, %p293
      %p296 = scmp.ne.s32.totalorder %s281, %s295
      %p297 = scmp.eq.s32.totalorder %s40, 0
      %p298 = por %p296, %p297
      %s300 = sadd.s32 %s299, 1
      %p303 = scmp.eq.s32.totalorder %s34, 1
      %p304 = scmp.ne.s32.totalorder %s299, %s301
      %p305 = scmp.eq.s32.totalorder %s34, 0
      %p306 = por %p304, %p305
      %p307 = scmp.ne.s32.totalorder %s299, %s301
      %p308 = scmp.eq.s32.totalorder %s39, 1
      %p309 = por %p307, %p308
      %p310 = scmp.ne.s32.totalorder %s301, %s302
      %p311 = scmp.eq.s32.totalorder %s39, 0
      %p312 = por %p310, %p311
      %p313 = scmp.ne.s32.totalorder %s301, %s302
      %p314 = scmp.eq.s32.totalorder %s40, 1
      %p315 = por %p313, %p314
      %p317 = scmp.ne.s32.totalorder %s302, %s316
      %p318 = scmp.eq.s32.totalorder %s40, 0
      %p319 = por %p317, %p318
      %s321 = sadd.s32 %s320, 1
      %p324 = scmp.eq.s32.totalorder %s34, 1
      %p325 = scmp.ne.s32.totalorder %s320, %s322
      %p326 = scmp.eq.s32.totalorder %s34, 0
      %p327 = por %p325, %p326
      %p328 = scmp.ne.s32.totalorder %s320, %s322
      %p329 = scmp.eq.s32.totalorder %s39, 1
      %p330 = por %p328, %p329
      %p331 = scmp.ne.s32.totalorder %s322, %s323
      %p332 = scmp.eq.s32.totalorder %s39, 0
      %p333 = por %p331, %p332
      %p334 = scmp.ne.s32.totalorder %s322, %s323
      %p335 = scmp.eq.s32.totalorder %s40, 1
      %p336 = por %p334, %p335
      %p338 = scmp.ne.s32.totalorder %s323, %s337
      %p339 = scmp.eq.s32.totalorder %s40, 0
      %p340 = por %p338, %p339
      %s342 = sadd.s32 %s341, 1
      %p345 = scmp.eq.s32.totalorder %s34, 1
      %p346 = scmp.ne.s32.totalorder %s341, %s343
      %p347 = scmp.eq.s32.totalorder %s34, 0
      %p348 = por %p346, %p347
      %p349 = scmp.ne.s32.totalorder %s341, %s343
      %p350 = scmp.eq.s32.totalorder %s39, 1
      %p351 = por %p349, %p350
      %p352 = scmp.ne.s32.totalorder %s343, %s344
      %p353 = scmp.eq.s32.totalorder %s39, 0
      %p354 = por %p352, %p353
      %p355 = scmp.ne.s32.totalorder %s343, %s344
      %p356 = scmp.eq.s32.totalorder %s40, 1
      %p357 = por %p355, %p356
      %p359 = scmp.ne.s32.totalorder %s344, %s358
      %p360 = scmp.eq.s32.totalorder %s40, 0
      %p361 = por %p359, %p360
      %s363 = sadd.s32 %s362, 1
      %p366 = scmp.eq.s32.totalorder %s34, 1
      %p367 = scmp.ne.s32.totalorder %s362, %s364
      %p368 = scmp.eq.s32.totalorder %s34, 0
      %p369 = por %p367, %p368
      %p370 = scmp.ne.s32.totalorder %s362, %s364
      %p371 = scmp.eq.s32.totalorder %s39, 1
      %p372 = por %p370, %p371
      %p373 = scmp.ne.s32.totalorder %s364, %s365
      %p374 = scmp.eq.s32.totalorder %s39, 0
      %p375 = por %p373, %p374
      %p376 = scmp.ne.s32.totalorder %s364, %s365
      %p377 = scmp.eq.s32.totalorder %s40, 1
      %p378 = por %p376, %p377
      %p380 = scmp.ne.s32.totalorder %s365, %s379
      %p381 = scmp.eq.s32.totalorder %s40, 0
      %p382 = por %p380, %p381
      %s384 = sadd.s32 %s383, 1
      %p387 = scmp.eq.s32.totalorder %s34, 1
      %p388 = scmp.ne.s32.totalorder %s383, %s385
      %p389 = scmp.eq.s32.totalorder %s34, 0
      %p390 = por %p388, %p389
      %p391 = scmp.ne.s32.totalorder %s383, %s385
      %p392 = scmp.eq.s32.totalorder %s39, 1
      %p393 = por %p391, %p392
      %p394 = scmp.ne.s32.totalorder %s385, %s386
      %p395 = scmp.eq.s32.totalorder %s39, 0
      %p396 = por %p394, %p395
      %p397 = scmp.ne.s32.totalorder %s385, %s386
      %p398 = scmp.eq.s32.totalorder %s40, 1
      %p399 = por %p397, %p398
      %p401 = scmp.ne.s32.totalorder %s386, %s400
      %p402 = scmp.eq.s32.totalorder %s40, 0
      %p403 = por %p401, %p402
      %s405 = sadd.s32 %s404, 1
      %p408 = scmp.eq.s32.totalorder %s34, 1
      %p409 = scmp.ne.s32.totalorder %s404, %s406
      %p410 = scmp.eq.s32.totalorder %s34, 0
      %p411 = por %p409, %p410
      %p412 = scmp.ne.s32.totalorder %s404, %s406
      %p413 = scmp.eq.s32.totalorder %s39, 1
      %p414 = por %p412, %p413
      %p415 = scmp.ne.s32.totalorder %s406, %s407
      %p416 = scmp.eq.s32.totalorder %s39, 0
      %p417 = por %p415, %p416
      %p418 = scmp.ne.s32.totalorder %s406, %s407
      %p419 = scmp.eq.s32.totalorder %s40, 1
      %p420 = por %p418, %p419
      %p422 = scmp.ne.s32.totalorder %s407, %s421
      %p423 = scmp.eq.s32.totalorder %s40, 0
      %p424 = por %p422, %p423
      %s426 = sadd.s32 %s425, 1
      %p429 = scmp.eq.s32.totalorder %s34, 1
      %p430 = scmp.ne.s32.totalorder %s425, %s427
      %p431 = scmp.eq.s32.totalorder %s34, 0
      %p432 = por %p430, %p431
      %p433 = scmp.ne.s32.totalorder %s425, %s427
      %p434 = scmp.eq.s32.totalorder %s39, 1
      %p435 = por %p433, %p434
      %p436 = scmp.ne.s32.totalorder %s427, %s428
      %p437 = scmp.eq.s32.totalorder %s39, 0
      %p438 = por %p436, %p437
      %p439 = scmp.ne.s32.totalorder %s427, %s428
      %p440 = scmp.eq.s32.totalorder %s40, 1
      %p441 = por %p439, %p440
      %p443 = scmp.ne.s32.totalorder %s428, %s442
      %p444 = scmp.eq.s32.totalorder %s40, 0
      %p445 = por %p443, %p444
      %s447 = sadd.s32 %s446, 1
      %p450 = scmp.eq.s32.totalorder %s34, 1
      %p451 = scmp.ne.s32.totalorder %s446, %s448
      %p452 = scmp.eq.s32.totalorder %s34, 0
      %p453 = por %p451, %p452
      %p454 = scmp.ne.s32.totalorder %s446, %s448
      %p455 = scmp.eq.s32.totalorder %s39, 1
      %p456 = por %p454, %p455
      %p457 = scmp.ne.s32.totalorder %s448, %s449
      %p458 = scmp.eq.s32.totalorder %s39, 0
      %p459 = por %p457, %p458
      %p460 = scmp.ne.s32.totalorder %s448, %s449
      %p461 = scmp.eq.s32.totalorder %s40, 1
      %p462 = por %p460, %p461
      %p464 = scmp.ne.s32.totalorder %s449, %s463
      %p465 = scmp.eq.s32.totalorder %s40, 0
      %p466 = por %p464, %p465
      %s468 = sadd.s32 %s467, 1
      %p471 = scmp.eq.s32.totalorder %s34, 1
      %p472 = scmp.ne.s32.totalorder %s467, %s469
      %p473 = scmp.eq.s32.totalorder %s34, 0
      %p474 = por %p472, %p473
      %p475 = scmp.ne.s32.totalorder %s467, %s469
      %p476 = scmp.eq.s32.totalorder %s39, 1
      %p477 = por %p475, %p476
      %p478 = scmp.ne.s32.totalorder %s469, %s470
      %p479 = scmp.eq.s32.totalorder %s39, 0
      %p480 = por %p478, %p479
      %p481 = scmp.ne.s32.totalorder %s469, %s470
      %p482 = scmp.eq.s32.totalorder %s40, 1
      %p483 = por %p481, %p482
      %p485 = scmp.ne.s32.totalorder %s470, %s484
      %p486 = scmp.eq.s32.totalorder %s40, 0
      %p487 = por %p485, %p486
      %s489 = sadd.s32 %s488, 1
      %p492 = scmp.eq.s32.totalorder %s34, 1
      %p493 = scmp.ne.s32.totalorder %s488, %s490
      %p494 = scmp.eq.s32.totalorder %s34, 0
      %p495 = por %p493, %p494
      %p496 = scmp.ne.s32.totalorder %s488, %s490
      %p497 = scmp.eq.s32.totalorder %s39, 1
      %p498 = por %p496, %p497
      %p499 = scmp.ne.s32.totalorder %s490, %s491
      %p500 = scmp.eq.s32.totalorder %s39, 0
      %p501 = por %p499, %p500
      %p502 = scmp.ne.s32.totalorder %s490, %s491
      %p503 = scmp.eq.s32.totalorder %s40, 1
      %p504 = por %p502, %p503
      %p506 = scmp.ne.s32.totalorder %s491, %s505
      %p507 = scmp.eq.s32.totalorder %s40, 0
      %p508 = por %p506, %p507
      %s510 = sadd.s32 %s509, 1
      %p513 = scmp.eq.s32.totalorder %s34, 1
      %p514 = scmp.ne.s32.totalorder %s509, %s511
      %p515 = scmp.eq.s32.totalorder %s34, 0
      %p516 = por %p514, %p515
      %p517 = scmp.ne.s32.totalorder %s509, %s511
      %p518 = scmp.eq.s32.totalorder %s39, 1
      %p519 = por %p517, %p518
      %p520 = scmp.ne.s32.totalorder %s511, %s512
      %p521 = scmp.eq.s32.totalorder %s39, 0
      %p522 = por %p520, %p521
      %p523 = scmp.ne.s32.totalorder %s511, %s512
      %p524 = scmp.eq.s32.totalorder %s40, 1
      %p525 = por %p523, %p524
      %p527 = scmp.ne.s32.totalorder %s512, %s526
      %p528 = scmp.eq.s32.totalorder %s40, 0
      %p529 = por %p527, %p528
      %s531 = sadd.s32 %s530, 1
      %p534 = scmp.eq.s32.totalorder %s34, 1
      %p535 = scmp.ne.s32.totalorder %s530, %s532
      %p536 = scmp.eq.s32.totalorder %s34, 0
      %p537 = por %p535, %p536
      %p538 = scmp.ne.s32.totalorder %s530, %s532
      %p539 = scmp.eq.s32.totalorder %s39, 1
      %p540 = por %p538, %p539
      %p541 = scmp.ne.s32.totalorder %s532, %s533
      %p542 = scmp.eq.s32.totalorder %s39, 0
      %p543 = por %p541, %p542
      %p544 = scmp.ne.s32.totalorder %s532, %s533
      %p545 = scmp.eq.s32.totalorder %s40, 1
      %p546 = por %p544, %p545
      %p548 = scmp.ne.s32.totalorder %s533, %s547
      %p549 = scmp.eq.s32.totalorder %s40, 0
      %p550 = por %p548, %p549
      %s552 = sadd.s32 %s551, 1
      %p555 = scmp.eq.s32.totalorder %s34, 1
      %p556 = scmp.ne.s32.totalorder %s551, %s553
      %p557 = scmp.eq.s32.totalorder %s34, 0
      %p558 = por %p556, %p557
      %p559 = scmp.ne.s32.totalorder %s551, %s553
      %p560 = scmp.eq.s32.totalorder %s39, 1
      %p561 = por %p559, %p560
      %p562 = scmp.ne.s32.totalorder %s553, %s554
      %p563 = scmp.eq.s32.totalorder %s39, 0
      %p564 = por %p562, %p563
      %p565 = scmp.ne.s32.totalorder %s553, %s554
      %p566 = scmp.eq.s32.totalorder %s40, 1
      %p567 = por %p565, %p566
      %p569 = scmp.ne.s32.totalorder %s554, %s568
      %p570 = scmp.eq.s32.totalorder %s40, 0
      %p571 = por %p569, %p570
      %s572 = ssub.s32 %s34, %s41
      %p573 = scmp.eq.s32.totalorder %s572, 0
      %s575 = sadd.s32 %s574, 1
      %s576 = scalar_select %p573, %s574, %s575
      %p579 = pneg %p573
      %p580 = scmp.eq.s32.totalorder %s34, 1
      %p581 = por %p579, %p580
      %p582 = scmp.ne.s32.totalorder %s574, %s577
      %p583 = scmp.eq.s32.totalorder %s34, 0
      %p584 = por %p582, %p583
      %p585 = scmp.ne.s32.totalorder %s574, %s577
      %p586 = scmp.eq.s32.totalorder %s39, 1
      %p587 = por %p585, %p586
      %p588 = scmp.ne.s32.totalorder %s577, %s578
      %p589 = scmp.eq.s32.totalorder %s39, 0
      %p590 = por %p588, %p589
      %p591 = scmp.ne.s32.totalorder %s577, %s578
      %p592 = scmp.eq.s32.totalorder %s40, 1
      %p593 = por %p591, %p592
      %p595 = scmp.ne.s32.totalorder %s578, %s594
      %p596 = scmp.eq.s32.totalorder %s40, 0
      %p597 = por %p595, %p596
      %p598 = scmp.le.s32.totalorder 1, %s34
      %p599 = scmp.lt.s32.totalorder %s34, 3
      %p600 = pnand %p598, %p599
      %p601 = pneg %p600
      // Predicated region
      $region9: #{vit_forward.1} parent=5 // pred_check
        _
      $region10: #{vit_forward.1} parent=5 // pred_check_branch
        %603 = sbr.rel (%p600) target = $region12
      $region11: #{vit_forward.1} parent=5 // pred_region
        %s604 = ssub.s32 %s34, 1
        // Predicated region
        $region13: #{vit_forward.1} parent=11 // pred_check
          %p605 = pneg %p81
        $region14: #{vit_forward.1} parent=11 // pred_check_branch
          %607 = sbr.rel (%p605) target = $region16
        $region15: #{vit_forward.1} parent=11 // pred_region
          _
        $region16: #{vit_forward.1} parent=11 // pred_fallthru
          _
        // Predicated region
        $region17: #{vit_forward.1} parent=11 // pred_check
          %p608 = pneg %p102
        $region18: #{vit_forward.1} parent=11 // pred_check_branch
          %610 = sbr.rel (%p608) target = $region20
        $region19: #{vit_forward.1} parent=11 // pred_region
          _
        $region20: #{vit_forward.1} parent=11 // pred_fallthru
          _
        // Predicated region
        $region21: #{vit_forward.1} parent=11 // pred_check
          %p611 = pneg %p123
        $region22: #{vit_forward.1} parent=11 // pred_check_branch
          %613 = sbr.rel (%p611) target = $region24
        $region23: #{vit_forward.1} parent=11 // pred_region
          _
        $region24: #{vit_forward.1} parent=11 // pred_fallthru
          _
        // Predicated region
        $region25: #{vit_forward.1} parent=11 // pred_check
          %p614 = pneg %p144
        $region26: #{vit_forward.1} parent=11 // pred_check_branch
          %616 = sbr.rel (%p614) target = $region28
        $region27: #{vit_forward.1} parent=11 // pred_region
          _
        $region28: #{vit_forward.1} parent=11 // pred_fallthru
          _
        // Predicated region
        $region29: #{vit_forward.1} parent=11 // pred_check
          %p617 = pneg %p165
        $region30: #{vit_forward.1} parent=11 // pred_check_branch
          %619 = sbr.rel (%p617) target = $region32
        $region31: #{vit_forward.1} parent=11 // pred_region
          _
        $region32: #{vit_forward.1} parent=11 // pred_fallthru
          _
        // Predicated region
        $region33: #{vit_forward.1} parent=11 // pred_check
          %p620 = pneg %p186
        $region34: #{vit_forward.1} parent=11 // pred_check_branch
          %622 = sbr.rel (%p620) target = $region36
        $region35: #{vit_forward.1} parent=11 // pred_region
          _
        $region36: #{vit_forward.1} parent=11 // pred_fallthru
          _
        // Predicated region
        $region37: #{vit_forward.1} parent=11 // pred_check
          %p623 = pneg %p207
        $region38: #{vit_forward.1} parent=11 // pred_check_branch
          %625 = sbr.rel (%p623) target = $region40
        $region39: #{vit_forward.1} parent=11 // pred_region
          _
        $region40: #{vit_forward.1} parent=11 // pred_fallthru
          _
        // Predicated region
        $region41: #{vit_forward.1} parent=11 // pred_check
          %p626 = pneg %p228
        $region42: #{vit_forward.1} parent=11 // pred_check_branch
          %628 = sbr.rel (%p626) target = $region44
        $region43: #{vit_forward.1} parent=11 // pred_region
          _
        $region44: #{vit_forward.1} parent=11 // pred_fallthru
          _
        // Predicated region
        $region45: #{vit_forward.1} parent=11 // pred_check
          %p629 = pneg %p249
        $region46: #{vit_forward.1} parent=11 // pred_check_branch
          %631 = sbr.rel (%p629) target = $region48
        $region47: #{vit_forward.1} parent=11 // pred_region
          _
        $region48: #{vit_forward.1} parent=11 // pred_fallthru
          _
        // Predicated region
        $region49: #{vit_forward.1} parent=11 // pred_check
          %p632 = pneg %p270
        $region50: #{vit_forward.1} parent=11 // pred_check_branch
          %634 = sbr.rel (%p632) target = $region52
        $region51: #{vit_forward.1} parent=11 // pred_region
          _
        $region52: #{vit_forward.1} parent=11 // pred_fallthru
          _
        // Predicated region
        $region53: #{vit_forward.1} parent=11 // pred_check
          %p635 = pneg %p291
        $region54: #{vit_forward.1} parent=11 // pred_check_branch
          %637 = sbr.rel (%p635) target = $region56
        $region55: #{vit_forward.1} parent=11 // pred_region
          _
        $region56: #{vit_forward.1} parent=11 // pred_fallthru
          _
        // Predicated region
        $region57: #{vit_forward.1} parent=11 // pred_check
          %p638 = pneg %p312
        $region58: #{vit_forward.1} parent=11 // pred_check_branch
          %640 = sbr.rel (%p638) target = $region60
        $region59: #{vit_forward.1} parent=11 // pred_region
          _
        $region60: #{vit_forward.1} parent=11 // pred_fallthru
          _
        // Predicated region
        $region61: #{vit_forward.1} parent=11 // pred_check
          %p641 = pneg %p333
        $region62: #{vit_forward.1} parent=11 // pred_check_branch
          %643 = sbr.rel (%p641) target = $region64
        $region63: #{vit_forward.1} parent=11 // pred_region
          _
        $region64: #{vit_forward.1} parent=11 // pred_fallthru
          _
        // Predicated region
        $region65: #{vit_forward.1} parent=11 // pred_check
          %p644 = pneg %p354
        $region66: #{vit_forward.1} parent=11 // pred_check_branch
          %646 = sbr.rel (%p644) target = $region68
        $region67: #{vit_forward.1} parent=11 // pred_region
          _
        $region68: #{vit_forward.1} parent=11 // pred_fallthru
          _
        // Predicated region
        $region69: #{vit_forward.1} parent=11 // pred_check
          %p647 = pneg %p375
        $region70: #{vit_forward.1} parent=11 // pred_check_branch
          %649 = sbr.rel (%p647) target = $region72
        $region71: #{vit_forward.1} parent=11 // pred_region
          _
        $region72: #{vit_forward.1} parent=11 // pred_fallthru
          _
        // Predicated region
        $region73: #{vit_forward.1} parent=11 // pred_check
          %p650 = pneg %p396
        $region74: #{vit_forward.1} parent=11 // pred_check_branch
          %652 = sbr.rel (%p650) target = $region76
        $region75: #{vit_forward.1} parent=11 // pred_region
          _
        $region76: #{vit_forward.1} parent=11 // pred_fallthru
          _
        // Predicated region
        $region77: #{vit_forward.1} parent=11 // pred_check
          %p653 = pneg %p417
        $region78: #{vit_forward.1} parent=11 // pred_check_branch
          %655 = sbr.rel (%p653) target = $region80
        $region79: #{vit_forward.1} parent=11 // pred_region
          _
        $region80: #{vit_forward.1} parent=11 // pred_fallthru
          _
        // Predicated region
        $region81: #{vit_forward.1} parent=11 // pred_check
          %p656 = pneg %p438
        $region82: #{vit_forward.1} parent=11 // pred_check_branch
          %658 = sbr.rel (%p656) target = $region84
        $region83: #{vit_forward.1} parent=11 // pred_region
          _
        $region84: #{vit_forward.1} parent=11 // pred_fallthru
          _
        // Predicated region
        $region85: #{vit_forward.1} parent=11 // pred_check
          %p659 = pneg %p459
        $region86: #{vit_forward.1} parent=11 // pred_check_branch
          %661 = sbr.rel (%p659) target = $region88
        $region87: #{vit_forward.1} parent=11 // pred_region
          _
        $region88: #{vit_forward.1} parent=11 // pred_fallthru
          _
        // Predicated region
        $region89: #{vit_forward.1} parent=11 // pred_check
          %p662 = pneg %p480
        $region90: #{vit_forward.1} parent=11 // pred_check_branch
          %664 = sbr.rel (%p662) target = $region92
        $region91: #{vit_forward.1} parent=11 // pred_region
          _
        $region92: #{vit_forward.1} parent=11 // pred_fallthru
          _
        // Predicated region
        $region93: #{vit_forward.1} parent=11 // pred_check
          %p665 = pneg %p501
        $region94: #{vit_forward.1} parent=11 // pred_check_branch
          %667 = sbr.rel (%p665) target = $region96
        $region95: #{vit_forward.1} parent=11 // pred_region
          _
        $region96: #{vit_forward.1} parent=11 // pred_fallthru
          _
        // Predicated region
        $region97: #{vit_forward.1} parent=11 // pred_check
          %p668 = pneg %p522
        $region98: #{vit_forward.1} parent=11 // pred_check_branch
          %670 = sbr.rel (%p668) target = $region100
        $region99: #{vit_forward.1} parent=11 // pred_region
          _
        $region100: #{vit_forward.1} parent=11 // pred_fallthru
          _
        // Predicated region
        $region101: #{vit_forward.1} parent=11 // pred_check
          %p671 = pneg %p543
        $region102: #{vit_forward.1} parent=11 // pred_check_branch
          %673 = sbr.rel (%p671) target = $region104
        $region103: #{vit_forward.1} parent=11 // pred_region
          _
        $region104: #{vit_forward.1} parent=11 // pred_fallthru
          _
        // Predicated region
        $region105: #{vit_forward.1} parent=11 // pred_check
          %p674 = pneg %p564
        $region106: #{vit_forward.1} parent=11 // pred_check_branch
          %676 = sbr.rel (%p674) target = $region108
        $region107: #{vit_forward.1} parent=11 // pred_region
          _
        $region108: #{vit_forward.1} parent=11 // pred_fallthru
          _
      $region12: #{vit_forward.1} parent=5 // pred_fallthru
        _
      %p677 = scmp.lt.s32.totalorder %s34, 2
      // Predicated region
      $region109: #{vit_forward.1} parent=5 // pred_check
        %p678 = pneg %p677
      $region110: #{vit_forward.1} parent=5 // pred_check_branch
        %680 = sbr.rel (%p678) target = $region112
      $region111: #{vit_forward.1} parent=5 // pred_region
        // Predicated region
        $region113: #{vit_forward.1} parent=111 // pred_check
          %p681 = pneg %p54
        $region114: #{vit_forward.1} parent=111 // pred_check_branch
          %683 = sbr.rel (%p681) target = $region116
        $region115: #{vit_forward.1} parent=111 // pred_region
          %p684 = scmp.lt.s32.totalorder %s34, 1
          %s685 = scalar_select %p684, %s34, 1
          %s686 = smul.addr %s685, 3
          %s687 = smul.addr %s686, 8
          %s688 = scalar_lea.vmem %s0, %s687
        $region116: #{vit_forward.1} parent=111 // pred_fallthru
          _
      $region112: #{vit_forward.1} parent=5 // pred_fallthru
        _
      %p689 = scmp.le.s32.totalorder 1, %s34
      %p690 = scmp.lt.s32.totalorder %s34, 3
      %p691 = pnand %p689, %p690
      %p692 = pneg %p691
      // Predicated region
      $region117: #{vit_forward.1} parent=5 // pred_check
        _
      $region118: #{vit_forward.1} parent=5 // pred_check_branch
        %694 = sbr.rel (%p691) target = $region120
      $region119: #{vit_forward.1} parent=5 // pred_region
        %s695 = ssub.s32 %s34, 1
        %p696 = scmp.lt.s32.totalorder %s39, 1
        %s697 = scalar_select %p696, %s39, 1
        %s698 = smul.addr %s697, 3
        %s699 = smul.addr %s698, 8
        %s700 = scalar_lea.vmem %s0, %s699
        %p701 = pneg %p60
        %p702 = pneg %p57
        %p703 = pneg %p81
        %p704 = pneg %p78
        %p705 = pneg %p102
        %p706 = pneg %p99
        %p707 = pneg %p123
        %p708 = pneg %p120
        %p709 = pneg %p144
        %p710 = pneg %p141
        %p711 = pneg %p165
        %p712 = pneg %p162
        %p713 = pneg %p186
        %p714 = pneg %p183
        %p715 = pneg %p207
        %p716 = pneg %p204
        %p717 = pneg %p228
        %p718 = pneg %p225
        %p719 = pneg %p249
        %p720 = pneg %p246
        %p721 = pneg %p270
        %p722 = pneg %p267
        %p723 = pneg %p291
        %p724 = pneg %p288
        %p725 = pneg %p312
        %p726 = pneg %p309
        %p727 = pneg %p333
        %p728 = pneg %p330
        %p729 = pneg %p354
        %p730 = pneg %p351
        %p731 = pneg %p375
        %p732 = pneg %p372
        %p733 = pneg %p396
        %p734 = pneg %p393
        %p735 = pneg %p417
        %p736 = pneg %p414
        %p737 = pneg %p438
        %p738 = pneg %p435
        %p739 = pneg %p459
        %p740 = pneg %p456
        %p741 = pneg %p480
        %p742 = pneg %p477
        %p743 = pneg %p501
        %p744 = pneg %p498
        %p745 = pneg %p522
        %p746 = pneg %p519
        %p747 = pneg %p543
        %p748 = pneg %p540
        %p749 = pneg %p564
        %p750 = pneg %p561
        %p751 = pneg %p590
        %p752 = pneg %p587
        %s753 = sand.u32 %s577, 1
        %s754 = scalar_lea.sflag [#allocation3], %s753
        %s755 = sand.u32 %s577, 1
        %s756 = scalar_lea.vmem [#allocation2], %s755
        %p757 = scmp.lt.s32.totalorder %s39, 1
        %s758 = scalar_select %p757, %s39, 1
        %s759 = smul.addr %s758, 3
        %s760 = smul.addr %s759, 8
        %s761 = scalar_lea.vmem %s0, %s760
        %v762 = vld [vmem:[%s761] sm:$0xff]
        %v763 = vld [vmem:[%s761 + $0x8] sm:$0xff]
        %v764 = vld [vmem:[%s761 + $0x10] sm:$0xff]
        %v765 = vld [vmem:[%s2] sm:$0xff]
        %v766 = vld [vmem:[%s2 + $0x8] sm:$0xff]
        %v767 = vld [vmem:[%s2 + $0x10] sm:$0xff]
        %v768 = vld [vmem:[%s2 + $0x18] sm:$0xff]
        %v769 = vld [vmem:[%s2 + $0x20] sm:$0xff]
        %v770 = vld [vmem:[%s2 + $0x28] sm:$0xff]
        %v771 = vld [vmem:[%s1] sm:$0xff]
        %v772 = vld [vmem:[%s1 + $0x8] sm:$0xff]
        %v773 = vld [vmem:[%s1 + $0x10] sm:$0xff]
        %vm774 = vcmask 392192
        %v776 = vsel %vm774, %v762, 0
        %v779 = vsel %vm774, %v763, 0
        %v782 = vsel %vm774, %v764, 0
        %784 = vmatprep.subr.mxu0 0.0
        %785 = vmatpush1.msra.mxu0 0.0
        %786 = vmatprep.subr.mxu0 0.0
        %787 = vmatpush1.msra.mxu0 0.0
        %788 = vmatprep.subr.mxu0 0.0
        %789 = vmatpush1.msra.mxu0 0.0
        %790 = vmatprep.subr.mxu0 0.0
        %791 = vmatpush1.msra.mxu0 0.0
        %792 = vmatprep.subr.mxu0 0.0
        %793 = vmatpush1.msra.mxu0 0.0
        %794 = vmatprep.subr.mxu0 0.0
        %795 = vmatpush1.msra.mxu0 0.0
        %796 = vmatprep.subr.mxu0 0.0
        %797 = vmatpush1.msra.mxu0 0.0
        %798 = vmatprep.subr.mxu0 0.0
        %799 = vmatpush1.msra.mxu0 0.0
        %800 = vmatprep.subr.mxu0 0.0
        %801 = vmatpush1.msra.mxu0 0.0
        %802 = vmatprep.subr.mxu0 0.0
        %803 = vmatpush1.msra.mxu0 0.0
        %804 = vmatprep.subr.mxu0 0.0
        %805 = vmatpush1.msra.mxu0 %v770
        %806 = vmatprep.subr.mxu0 0.0
        %807 = vmatpush1.msra.mxu0 %v769
        %808 = vmatprep.subr.mxu0 0.0
        %809 = vmatpush1.msra.mxu0 %v768
        %810 = vmatprep.subr.mxu0 0.0
        %811 = vmatpush1.msra.mxu0 %v767
        %812 = vmatprep.subr.mxu0 0.0
        %813 = vmatpush1.msra.mxu0 %v766
        %814 = vmatprep.subr.mxu0 0.0
        %815 = vmatpush1.msra.mxu0 %v765
        %816 = vmatprep.subr.mxu0 0.0
        %817 = vmatpush2.msra.mxu0 0.0
        %818 = vmatprep.subr.mxu0 0.0
        %819 = vmatpush2.msra.mxu0 0.0
        %820 = vmatprep.subr.mxu0 0.0
        %821 = vmatpush2.msra.mxu0 0.0
        %822 = vmatprep.subr.mxu0 0.0
        %823 = vmatpush2.msra.mxu0 0.0
        %824 = vmatprep.subr.mxu0 0.0
        %825 = vmatpush2.msra.mxu0 0.0
        %826 = vmatprep.subr.mxu0 0.0
        %827 = vmatpush2.msra.mxu0 0.0
        %828 = vmatprep.subr.mxu0 0.0
        %829 = vmatpush2.msra.mxu0 0.0
        %830 = vmatprep.subr.mxu0 0.0
        %831 = vmatpush2.msra.mxu0 0.0
        %832 = vmatprep.subr.mxu0 0.0
        %833 = vmatpush2.msra.mxu0 0.0
        %834 = vmatprep.subr.mxu0 0.0
        %835 = vmatpush2.msra.mxu0 0.0
        %836 = vmatprep.subr.mxu0 0.0
        %837 = vmatpush2.msra.mxu0 0.0
        %838 = vmatprep.subr.mxu0 0.0
        %839 = vmatpush2.msra.mxu0 0.0
        %840 = vmatprep.subr.mxu0 0.0
        %841 = vmatpush2.msra.mxu0 0.0
        %842 = vmatprep.subr.mxu0 0.0
        %843 = vmatpush2.msra.mxu0 0.0
        %844 = vmatprep.subr.mxu0 0.0
        %845 = vmatpush2.msra.mxu0 0.0
        %846 = vmatprep.subr.mxu0 0.0
        %847 = vmatpush2.msra.mxu0 0.0
        %848 = vmatprep.mubr.f32.mxu0 0.0
        %849 = vmatmul.mubr.f32.gmra.mxu0 %v776
        %v850 = vpop.f32.mrf.mxu0
        %v851 = vadd.f32 %v771, %v850
        %v852 = vpop.f32.mrf.mxu0
        %853 = vmatprep.mubr.f32.mxu0 0.0
        %854 = vmatmul.mubr.f32.gmra.mxu0 %v779
        %v855 = vpop.f32.mrf.mxu0
        %v856 = vadd.f32 %v772, %v855
        %v857 = vpop.f32.mrf.mxu0
        %858 = vmatprep.mubr.f32.mxu0 0.0
        %859 = vmatmul.mubr.f32.gmra.mxu0 %v782
        %v860 = vpop.f32.mrf.mxu0
        %v861 = vadd.f32 %v773, %v860
        %v862 = vpop.f32.mrf.mxu0
        %863 = vdwg.mxu0
        %v864 = vlaneseq
        %v865 = vand.u32 %v864, 127
        %vm866 = vcmp.lt.s32.totalorder %v865, 17
        %v867 = vsel %vm866, 0.0, -1e+30
        %v868 = vld [vmem:[%s3] sm:$0x1]
        %v869 = vld [vmem:[%s4] sm:$0x1]
        %vm870 = vcmask 261120
        %v871 = vsel %vm870, %v851, 0.0
        %872 = vadd.xlane.f32.xlu0 %v871
        %v873 = vpop.xlane.xlu0 %872
        %v874 = vsel %vm870, %v856, 0.0
        %875 = vadd.xlane.f32.xlu0 %v874
        %v876 = vpop.xlane.xlu0 %875
        %v877 = vsel %vm870, %v861, 0.0
        %878 = vadd.xlane.f32.xlu0 %v877
        %v879 = vpop.xlane.xlu0 %878
        %v880 = vrcp.pop 32.0
        %v881 = vmul.f32 %v873, %v880
        %v882 = vmul.f32 %v876, %v880
        %v883 = vmul.f32 %v879, %v880
        %v884 = vsub.f32 %v851, %v881
        %v885 = vsub.f32 %v856, %v882
        %v886 = vsub.f32 %v861, %v883
        %v887 = vmul.f32 %v884, %v884
        %v888 = vmul.f32 %v885, %v885
        %v889 = vmul.f32 %v886, %v886
        %v890 = vsel %vm870, %v887, 0.0
        %891 = vadd.xlane.f32.xlu0 %v890
        %v892 = vpop.xlane.xlu0 %891
        %v893 = vsel %vm870, %v888, 0.0
        %894 = vadd.xlane.f32.xlu0 %v893
        %v895 = vpop.xlane.xlu0 %894
        %v896 = vsel %vm870, %v889, 0.0
        %897 = vadd.xlane.f32.xlu0 %v896
        %v898 = vpop.xlane.xlu0 %897
        %v899 = vmul.f32 %v892, %v880
        %v900 = vmul.f32 %v895, %v880
        %v901 = vmul.f32 %v898, %v880
        %v902 = vadd.f32 %v899, 1e-06
        %v903 = vadd.f32 %v900, 1e-06
        %v904 = vadd.f32 %v901, 1e-06
        %v905 = vrsqrt.pop %v902
        %v906 = vrsqrt.pop %v903
        %v907 = vrsqrt.pop %v904
        %v908 = vmul.f32 %v884, %v905
        %v909 = vmul.f32 %v885, %v906
        %v910 = vmul.f32 %v886, %v907
        %v912 = vlaneseq
        %v913 = vshrl.u32 %v912, 7
        %v914 = vsub.s32 0, %v913
        %v915 = vrot.slane %v868, %v914
        %v917 = vmul.f32 %v908, %v915
        %v918 = vmul.f32 %v909, %v915
        %v919 = vmul.f32 %v910, %v915
        %v921 = vlaneseq
        %v922 = vshrl.u32 %v921, 7
        %v923 = vsub.s32 0, %v922
        %v924 = vrot.slane %v869, %v923
        %v926 = vadd.f32 %v917, %v924
        %v927 = vadd.f32 %v918, %v924
        %v928 = vadd.f32 %v919, %v924
        %v929 = vld [vmem:[%s12] sm:$0x1]
        %v930 = vld [vmem:[%s5] sm:$0xff]
        %v931 = vld [vmem:[%s5 + $0x8] sm:$0xff]
        %v932 = vld [vmem:[%s5 + $0x10] sm:$0xff]
        %v933 = vld [vmem:[%s5 + $0x18] sm:$0xff]
        %v934 = vld [vmem:[%s6] sm:$0x1]
        %v936 = vlaneseq
        %v937 = vshrl.u32 %v936, 7
        %v938 = vsub.s32 0, %v937
        %v939 = vrot.slane %v934, %v938
        %v942 = vsel %vm870, %v926, 0
        %v945 = vsel %vm870, %v927, 0
        %v948 = vsel %vm870, %v928, 0
        %950 = vmatprep.subr.mxu0 0.0
        %951 = vmatpush1.msra.mxu0 0.0
        %952 = vmatprep.subr.mxu0 0.0
        %953 = vmatpush1.msra.mxu0 0.0
        %954 = vmatprep.subr.mxu0 0.0
        %955 = vmatpush1.msra.mxu0 0.0
        %956 = vmatprep.subr.mxu0 0.0
        %957 = vmatpush1.msra.mxu0 0.0
        %958 = vmatprep.subr.mxu0 0.0
        %959 = vmatpush1.msra.mxu0 0.0
        %960 = vmatprep.subr.mxu0 0.0
        %961 = vmatpush1.msra.mxu0 0.0
        %962 = vmatprep.subr.mxu0 0.0
        %963 = vmatpush1.msra.mxu0 0.0
        %964 = vmatprep.subr.mxu0 0.0
        %965 = vmatpush1.msra.mxu0 0.0
        %966 = vmatprep.subr.mxu0 0.0
        %967 = vmatpush1.msra.mxu0 0.0
        %968 = vmatprep.subr.mxu0 0.0
        %969 = vmatpush1.msra.mxu0 0.0
        %970 = vmatprep.subr.mxu0 0.0
        %971 = vmatpush1.msra.mxu0 0.0
        %972 = vmatprep.subr.mxu0 0.0
        %973 = vmatpush1.msra.mxu0 0.0
        %974 = vmatprep.subr.mxu0 0.0
        %975 = vmatpush1.msra.mxu0 %v933
        %976 = vmatprep.subr.mxu0 0.0
        %977 = vmatpush1.msra.mxu0 %v932
        %978 = vmatprep.subr.mxu0 0.0
        %979 = vmatpush1.msra.mxu0 %v931
        %980 = vmatprep.subr.mxu0 0.0
        %981 = vmatpush1.msra.mxu0 %v930
        %982 = vmatprep.subr.mxu0 0.0
        %983 = vmatpush2.msra.mxu0 0.0
        %984 = vmatprep.subr.mxu0 0.0
        %985 = vmatpush2.msra.mxu0 0.0
        %986 = vmatprep.subr.mxu0 0.0
        %987 = vmatpush2.msra.mxu0 0.0
        %988 = vmatprep.subr.mxu0 0.0
        %989 = vmatpush2.msra.mxu0 0.0
        %990 = vmatprep.subr.mxu0 0.0
        %991 = vmatpush2.msra.mxu0 0.0
        %992 = vmatprep.subr.mxu0 0.0
        %993 = vmatpush2.msra.mxu0 0.0
        %994 = vmatprep.subr.mxu0 0.0
        %995 = vmatpush2.msra.mxu0 0.0
        %996 = vmatprep.subr.mxu0 0.0
        %997 = vmatpush2.msra.mxu0 0.0
        %998 = vmatprep.subr.mxu0 0.0
        %999 = vmatpush2.msra.mxu0 0.0
        %1000 = vmatprep.subr.mxu0 0.0
        %1001 = vmatpush2.msra.mxu0 0.0
        %1002 = vmatprep.subr.mxu0 0.0
        %1003 = vmatpush2.msra.mxu0 0.0
        %1004 = vmatprep.subr.mxu0 0.0
        %1005 = vmatpush2.msra.mxu0 0.0
        %1006 = vmatprep.subr.mxu0 0.0
        %1007 = vmatpush2.msra.mxu0 0.0
        %1008 = vmatprep.subr.mxu0 0.0
        %1009 = vmatpush2.msra.mxu0 0.0
        %1010 = vmatprep.subr.mxu0 0.0
        %1011 = vmatpush2.msra.mxu0 0.0
        %1012 = vmatprep.subr.mxu0 0.0
        %1013 = vmatpush2.msra.mxu0 0.0
        %1014 = vmatprep.mubr.f32.mxu0 0.0
        %1015 = vmatmul.mubr.f32.gmra.mxu0 %v942
        %v1016 = vpop.f32.mrf.mxu0
        %v1017 = vadd.f32 %v939, %v1016
        %v1018 = vpop.f32.mrf.mxu0
        %1019 = vmatprep.mubr.f32.mxu0 0.0
        %1020 = vmatmul.mubr.f32.gmra.mxu0 %v945
        %v1021 = vpop.f32.mrf.mxu0
        %v1022 = vadd.f32 %v939, %v1021
        %v1023 = vpop.f32.mrf.mxu0
        %1024 = vmatprep.mubr.f32.mxu0 0.0
        %1025 = vmatmul.mubr.f32.gmra.mxu0 %v948
        %v1026 = vpop.f32.mrf.mxu0
        %v1027 = vadd.f32 %v939, %v1026
        %v1028 = vpop.f32.mrf.mxu0
        %1029 = vdwg.mxu0
        %v1030 = vld [vmem:[%s7] sm:$0xff]
        %v1031 = vld [vmem:[%s7 + $0x8] sm:$0xff]
        %v1032 = vld [vmem:[%s7 + $0x10] sm:$0xff]
        %v1033 = vld [vmem:[%s7 + $0x18] sm:$0xff]
        %v1034 = vld [vmem:[%s8] sm:$0x1]
        %v1036 = vlaneseq
        %v1037 = vshrl.u32 %v1036, 7
        %v1038 = vsub.s32 0, %v1037
        %v1039 = vrot.slane %v1034, %v1038
        %1041 = vmatprep.subr.mxu0 0.0
        %1042 = vmatpush1.msra.mxu0 0.0
        %1043 = vmatprep.subr.mxu0 0.0
        %1044 = vmatpush1.msra.mxu0 0.0
        %1045 = vmatprep.subr.mxu0 0.0
        %1046 = vmatpush1.msra.mxu0 0.0
        %1047 = vmatprep.subr.mxu0 0.0
        %1048 = vmatpush1.msra.mxu0 0.0
        %1049 = vmatprep.subr.mxu0 0.0
        %1050 = vmatpush1.msra.mxu0 0.0
        %1051 = vmatprep.subr.mxu0 0.0
        %1052 = vmatpush1.msra.mxu0 0.0
        %1053 = vmatprep.subr.mxu0 0.0
        %1054 = vmatpush1.msra.mxu0 0.0
        %1055 = vmatprep.subr.mxu0 0.0
        %1056 = vmatpush1.msra.mxu0 0.0
        %1057 = vmatprep.subr.mxu0 0.0
        %1058 = vmatpush1.msra.mxu0 0.0
        %1059 = vmatprep.subr.mxu0 0.0
        %1060 = vmatpush1.msra.mxu0 0.0
        %1061 = vmatprep.subr.mxu0 0.0
        %1062 = vmatpush1.msra.mxu0 0.0
        %1063 = vmatprep.subr.mxu0 0.0
        %1064 = vmatpush1.msra.mxu0 0.0
        %1065 = vmatprep.subr.mxu0 0.0
        %1066 = vmatpush1.msra.mxu0 %v1033
        %1067 = vmatprep.subr.mxu0 0.0
        %1068 = vmatpush1.msra.mxu0 %v1032
        %1069 = vmatprep.subr.mxu0 0.0
        %1070 = vmatpush1.msra.mxu0 %v1031
        %1071 = vmatprep.subr.mxu0 0.0
        %1072 = vmatpush1.msra.mxu0 %v1030
        %1073 = vmatprep.subr.mxu0 0.0
        %1074 = vmatpush2.msra.mxu0 0.0
        %1075 = vmatprep.subr.mxu0 0.0
        %1076 = vmatpush2.msra.mxu0 0.0
        %1077 = vmatprep.subr.mxu0 0.0
        %1078 = vmatpush2.msra.mxu0 0.0
        %1079 = vmatprep.subr.mxu0 0.0
        %1080 = vmatpush2.msra.mxu0 0.0
        %1081 = vmatprep.subr.mxu0 0.0
        %1082 = vmatpush2.msra.mxu0 0.0
        %1083 = vmatprep.subr.mxu0 0.0
        %1084 = vmatpush2.msra.mxu0 0.0
        %1085 = vmatprep.subr.mxu0 0.0
        %1086 = vmatpush2.msra.mxu0 0.0
        %1087 = vmatprep.subr.mxu0 0.0
        %1088 = vmatpush2.msra.mxu0 0.0
        %1089 = vmatprep.subr.mxu0 0.0
        %1090 = vmatpush2.msra.mxu0 0.0
        %1091 = vmatprep.subr.mxu0 0.0
        %1092 = vmatpush2.msra.mxu0 0.0
        %1093 = vmatprep.subr.mxu0 0.0
        %1094 = vmatpush2.msra.mxu0 0.0
        %1095 = vmatprep.subr.mxu0 0.0
        %1096 = vmatpush2.msra.mxu0 0.0
        %1097 = vmatprep.subr.mxu0 0.0
        %1098 = vmatpush2.msra.mxu0 0.0
        %1099 = vmatprep.subr.mxu0 0.0
        %1100 = vmatpush2.msra.mxu0 0.0
        %1101 = vmatprep.subr.mxu0 0.0
        %1102 = vmatpush2.msra.mxu0 0.0
        %1103 = vmatprep.subr.mxu0 0.0
        %1104 = vmatpush2.msra.mxu0 0.0
        %1105 = vmatprep.mubr.f32.mxu0 0.0
        %1106 = vmatmul.mubr.f32.gmra.mxu0 %v942
        %v1107 = vpop.f32.mrf.mxu0
        %v1108 = vadd.f32 %v1039, %v1107
        %v1109 = vpop.f32.mrf.mxu0
        %1110 = vmatprep.mubr.f32.mxu0 0.0
        %1111 = vmatmul.mubr.f32.gmra.mxu0 %v945
        %v1112 = vpop.f32.mrf.mxu0
        %v1113 = vadd.f32 %v1039, %v1112
        %v1114 = vpop.f32.mrf.mxu0
        %1115 = vmatprep.mubr.f32.mxu0 0.0
        %1116 = vmatmul.mubr.f32.gmra.mxu0 %v948
        %v1117 = vpop.f32.mrf.mxu0
        %v1118 = vadd.f32 %v1039, %v1117
        %v1119 = vpop.f32.mrf.mxu0
        %1120 = vdwg.mxu0
        %v1121 = vld [vmem:[%s9] sm:$0xff]
        %v1122 = vld [vmem:[%s9 + $0x8] sm:$0xff]
        %v1123 = vld [vmem:[%s9 + $0x10] sm:$0xff]
        %v1124 = vld [vmem:[%s9 + $0x18] sm:$0xff]
        %v1125 = vld [vmem:[%s10] sm:$0x1]
        %v1127 = vlaneseq
        %v1128 = vshrl.u32 %v1127, 7
        %v1129 = vsub.s32 0, %v1128
        %v1130 = vrot.slane %v1125, %v1129
        %1132 = vmatprep.subr.mxu0 0.0
        %1133 = vmatpush1.msra.mxu0 0.0
        %1134 = vmatprep.subr.mxu0 0.0
        %1135 = vmatpush1.msra.mxu0 0.0
        %1136 = vmatprep.subr.mxu0 0.0
        %1137 = vmatpush1.msra.mxu0 0.0
        %1138 = vmatprep.subr.mxu0 0.0
        %1139 = vmatpush1.msra.mxu0 0.0
        %1140 = vmatprep.subr.mxu0 0.0
        %1141 = vmatpush1.msra.mxu0 0.0
        %1142 = vmatprep.subr.mxu0 0.0
        %1143 = vmatpush1.msra.mxu0 0.0
        %1144 = vmatprep.subr.mxu0 0.0
        %1145 = vmatpush1.msra.mxu0 0.0
        %1146 = vmatprep.subr.mxu0 0.0
        %1147 = vmatpush1.msra.mxu0 0.0
        %1148 = vmatprep.subr.mxu0 0.0
        %1149 = vmatpush1.msra.mxu0 0.0
        %1150 = vmatprep.subr.mxu0 0.0
        %1151 = vmatpush1.msra.mxu0 0.0
        %1152 = vmatprep.subr.mxu0 0.0
        %1153 = vmatpush1.msra.mxu0 0.0
        %1154 = vmatprep.subr.mxu0 0.0
        %1155 = vmatpush1.msra.mxu0 0.0
        %1156 = vmatprep.subr.mxu0 0.0
        %1157 = vmatpush1.msra.mxu0 %v1124
        %1158 = vmatprep.subr.mxu0 0.0
        %1159 = vmatpush1.msra.mxu0 %v1123
        %1160 = vmatprep.subr.mxu0 0.0
        %1161 = vmatpush1.msra.mxu0 %v1122
        %1162 = vmatprep.subr.mxu0 0.0
        %1163 = vmatpush1.msra.mxu0 %v1121
        %1164 = vmatprep.subr.mxu0 0.0
        %1165 = vmatpush2.msra.mxu0 0.0
        %1166 = vmatprep.subr.mxu0 0.0
        %1167 = vmatpush2.msra.mxu0 0.0
        %1168 = vmatprep.subr.mxu0 0.0
        %1169 = vmatpush2.msra.mxu0 0.0
        %1170 = vmatprep.subr.mxu0 0.0
        %1171 = vmatpush2.msra.mxu0 0.0
        %1172 = vmatprep.subr.mxu0 0.0
        %1173 = vmatpush2.msra.mxu0 0.0
        %1174 = vmatprep.subr.mxu0 0.0
        %1175 = vmatpush2.msra.mxu0 0.0
        %1176 = vmatprep.subr.mxu0 0.0
        %1177 = vmatpush2.msra.mxu0 0.0
        %1178 = vmatprep.subr.mxu0 0.0
        %1179 = vmatpush2.msra.mxu0 0.0
        %1180 = vmatprep.subr.mxu0 0.0
        %1181 = vmatpush2.msra.mxu0 0.0
        %1182 = vmatprep.subr.mxu0 0.0
        %1183 = vmatpush2.msra.mxu0 0.0
        %1184 = vmatprep.subr.mxu0 0.0
        %1185 = vmatpush2.msra.mxu0 0.0
        %1186 = vmatprep.subr.mxu0 0.0
        %1187 = vmatpush2.msra.mxu0 0.0
        %1188 = vmatprep.subr.mxu0 0.0
        %1189 = vmatpush2.msra.mxu0 0.0
        %1190 = vmatprep.subr.mxu0 0.0
        %1191 = vmatpush2.msra.mxu0 0.0
        %1192 = vmatprep.subr.mxu0 0.0
        %1193 = vmatpush2.msra.mxu0 0.0
        %1194 = vmatprep.subr.mxu0 0.0
        %1195 = vmatpush2.msra.mxu0 0.0
        %1196 = vmatprep.mubr.f32.mxu0 0.0
        %1197 = vmatmul.mubr.f32.gmra.mxu0 %v942
        %v1198 = vpop.f32.mrf.mxu0
        %v1199 = vadd.f32 %v1130, %v1198
        %v1200 = vpop.f32.mrf.mxu0
        %1201 = vmatprep.mubr.f32.mxu0 0.0
        %1202 = vmatmul.mubr.f32.gmra.mxu0 %v945
        %v1203 = vpop.f32.mrf.mxu0
        %v1204 = vadd.f32 %v1130, %v1203
        %v1205 = vpop.f32.mrf.mxu0
        %1206 = vmatprep.mubr.f32.mxu0 0.0
        %1207 = vmatmul.mubr.f32.gmra.mxu0 %v948
        %v1208 = vpop.f32.mrf.mxu0
        %v1209 = vadd.f32 %v1130, %v1208
        %v1210 = vpop.f32.mrf.mxu0
        %1211 = vdwg.mxu0
        %vm1212 = vcmask 64512
        %v1214 = vsel %vm1212, %v1017, 0
        %v1217 = vsel %vm1212, %v1022, 0
        %v1220 = vsel %vm1212, %v1027, 0
        %v1223 = vsel %vm1212, %v1108, 0
        %v1226 = vsel %vm1212, %v1113, 0
        %v1229 = vsel %vm1212, %v1118, 0
        %1231 = vmatprep.subr.mxu0 0.0
        %1232 = vmatpush1.xpose.msra.mxu0 0.0
        %1233 = vmatprep.subr.mxu0 0.0
        %1234 = vmatpush1.xpose.msra.mxu0 0.0
        %1235 = vmatprep.subr.mxu0 0.0
        %1236 = vmatpush1.xpose.msra.mxu0 0.0
        %1237 = vmatprep.subr.mxu0 0.0
        %1238 = vmatpush1.xpose.msra.mxu0 0.0
        %1239 = vmatprep.subr.mxu0 0.0
        %1240 = vmatpush1.xpose.msra.mxu0 0.0
        %1241 = vmatprep.subr.mxu0 0.0
        %1242 = vmatpush1.xpose.msra.mxu0 0.0
        %1243 = vmatprep.subr.mxu0 0.0
        %1244 = vmatpush1.xpose.msra.mxu0 0.0
        %1245 = vmatprep.subr.mxu0 0.0
        %1246 = vmatpush1.xpose.msra.mxu0 0.0
        %1247 = vmatprep.subr.mxu0 0.0
        %1248 = vmatpush1.xpose.msra.mxu0 0.0
        %1249 = vmatprep.subr.mxu0 0.0
        %1250 = vmatpush1.xpose.msra.mxu0 0.0
        %1251 = vmatprep.subr.mxu0 0.0
        %1252 = vmatpush1.xpose.msra.mxu0 0.0
        %1253 = vmatprep.subr.mxu0 0.0
        %1254 = vmatpush1.xpose.msra.mxu0 0.0
        %1255 = vmatprep.subr.mxu0 0.0
        %1256 = vmatpush1.xpose.msra.mxu0 0.0
        %1257 = vmatprep.subr.mxu0 0.0
        %1258 = vmatpush1.xpose.msra.mxu0 %v1229
        %1259 = vmatprep.subr.mxu0 0.0
        %1260 = vmatpush1.xpose.msra.mxu0 %v1226
        %1261 = vmatprep.subr.mxu0 0.0
        %1262 = vmatpush1.xpose.msra.mxu0 %v1223
        %1263 = vmatprep.subr.mxu0 0.0
        %1264 = vmatpush2.xpose.msra.mxu0 0.0
        %1265 = vmatprep.subr.mxu0 0.0
        %1266 = vmatpush2.xpose.msra.mxu0 0.0
        %1267 = vmatprep.subr.mxu0 0.0
        %1268 = vmatpush2.xpose.msra.mxu0 0.0
        %1269 = vmatprep.subr.mxu0 0.0
        %1270 = vmatpush2.xpose.msra.mxu0 0.0
        %1271 = vmatprep.subr.mxu0 0.0
        %1272 = vmatpush2.xpose.msra.mxu0 0.0
        %1273 = vmatprep.subr.mxu0 0.0
        %1274 = vmatpush2.xpose.msra.mxu0 0.0
        %1275 = vmatprep.subr.mxu0 0.0
        %1276 = vmatpush2.xpose.msra.mxu0 0.0
        %1277 = vmatprep.subr.mxu0 0.0
        %1278 = vmatpush2.xpose.msra.mxu0 0.0
        %1279 = vmatprep.subr.mxu0 0.0
        %1280 = vmatpush2.xpose.msra.mxu0 0.0
        %1281 = vmatprep.subr.mxu0 0.0
        %1282 = vmatpush2.xpose.msra.mxu0 0.0
        %1283 = vmatprep.subr.mxu0 0.0
        %1284 = vmatpush2.xpose.msra.mxu0 0.0
        %1285 = vmatprep.subr.mxu0 0.0
        %1286 = vmatpush2.xpose.msra.mxu0 0.0
        %1287 = vmatprep.subr.mxu0 0.0
        %1288 = vmatpush2.xpose.msra.mxu0 0.0
        %1289 = vmatprep.subr.mxu0 0.0
        %1290 = vmatpush2.xpose.msra.mxu0 0.0
        %1291 = vmatprep.subr.mxu0 0.0
        %1292 = vmatpush2.xpose.msra.mxu0 0.0
        %1293 = vmatprep.subr.mxu0 0.0
        %1294 = vmatpush2.xpose.msra.mxu0 0.0
        %1295 = vmatprep.mubr.f32.mxu0 0.0
        %1296 = vmatmul.mubr.f32.gmra.mxu0 %v1214
        %v1297 = vpop.f32.mrf.mxu0
        %v1298 = vadd.f32 0.0, %v1297
        %v1299 = vpop.f32.mrf.mxu0
        %1300 = vmatprep.mubr.f32.mxu0 0.0
        %1301 = vmatmul.mubr.f32.gmra.mxu0 %v1217
        %v1302 = vpop.f32.mrf.mxu0
        %v1303 = vadd.f32 0.0, %v1302
        %v1304 = vpop.f32.mrf.mxu0
        %1305 = vmatprep.mubr.f32.mxu0 0.0
        %1306 = vmatmul.mubr.f32.gmra.mxu0 %v1220
        %v1307 = vpop.f32.mrf.mxu0
        %v1308 = vadd.f32 0.0, %v1307
        %v1309 = vpop.f32.mrf.mxu0
        %1310 = vdwg.mxu0
        %v1311 = vmul.f32 %v1298, 0.35355338
        %v1312 = vmul.f32 %v1303, 0.35355338
        %v1313 = vmul.f32 %v1308, 0.35355338
        %v1314 = vadd.f32 %v1311, %v867
        %v1315 = vadd.f32 %v1312, %v867
        %v1316 = vadd.f32 %v1313, %v867
        %vm1317 = vcmask 195584
        %v1318 = vsel %vm1317, %v1314, -inf
        %1319 = vmax.xlane.f32.xlu0 %v1318
        %v1320 = vpop.xlane.xlu0 %1319
        %v1321 = vsel %vm1317, %v1315, -inf
        %1322 = vmax.xlane.f32.xlu0 %v1321
        %v1323 = vpop.xlane.xlu0 %1322
        %v1324 = vsel %vm1317, %v1316, -inf
        %1325 = vmax.xlane.f32.xlu0 %v1324
        %v1326 = vpop.xlane.xlu0 %1325
        %v1327 = vsub.f32 %v1314, %v1320
        %v1328 = vsub.f32 %v1315, %v1323
        %v1329 = vsub.f32 %v1316, %v1326
        %v1330 = vmul.f32 %v1327, 1.442695
        %v1331 = vpow.pop %v1330
        %v1332 = vmul.f32 %v1328, 1.442695
        %v1333 = vpow.pop %v1332
        %v1334 = vmul.f32 %v1329, 1.442695
        %v1335 = vpow.pop %v1334
        %v1336 = vsel %vm1317, %v1331, 0.0
        %1337 = vadd.xlane.f32.xlu0 %v1336
        %v1338 = vpop.xlane.xlu0 %1337
        %v1339 = vsel %vm1317, %v1333, 0.0
        %1340 = vadd.xlane.f32.xlu0 %v1339
        %v1341 = vpop.xlane.xlu0 %1340
        %v1342 = vsel %vm1317, %v1335, 0.0
        %1343 = vadd.xlane.f32.xlu0 %v1342
        %v1344 = vpop.xlane.xlu0 %1343
        %v1345 = vrcp.pop %v1338
        %v1346 = vmul.f32 %v1331, %v1345
        %v1347 = vrcp.pop %v1341
        %v1348 = vmul.f32 %v1333, %v1347
        %v1349 = vrcp.pop %v1344
        %v1350 = vmul.f32 %v1335, %v1349
        %v1352 = vsel %vm1317, %v1346, 0
        %v1355 = vsel %vm1317, %v1348, 0
        %v1358 = vsel %vm1317, %v1350, 0
        %1360 = vmatprep.subr.mxu0 0.0
        %1361 = vmatpush1.msra.mxu0 0.0
        %1362 = vmatprep.subr.mxu0 0.0
        %1363 = vmatpush1.msra.mxu0 0.0
        %1364 = vmatprep.subr.mxu0 0.0
        %1365 = vmatpush1.msra.mxu0 0.0
        %1366 = vmatprep.subr.mxu0 0.0
        %1367 = vmatpush1.msra.mxu0 0.0
        %1368 = vmatprep.subr.mxu0 0.0
        %1369 = vmatpush1.msra.mxu0 0.0
        %1370 = vmatprep.subr.mxu0 0.0
        %1371 = vmatpush1.msra.mxu0 0.0
        %1372 = vmatprep.subr.mxu0 0.0
        %1373 = vmatpush1.msra.mxu0 0.0
        %1374 = vmatprep.subr.mxu0 0.0
        %1375 = vmatpush1.msra.mxu0 0.0
        %1376 = vmatprep.subr.mxu0 0.0
        %1377 = vmatpush1.msra.mxu0 0.0
        %1378 = vmatprep.subr.mxu0 0.0
        %1379 = vmatpush1.msra.mxu0 0.0
        %1380 = vmatprep.subr.mxu0 0.0
        %1381 = vmatpush1.msra.mxu0 0.0
        %1382 = vmatprep.subr.mxu0 0.0
        %1383 = vmatpush1.msra.mxu0 0.0
        %1384 = vmatprep.subr.mxu0 0.0
        %1385 = vmatpush1.msra.mxu0 0.0
        %1386 = vmatprep.subr.mxu0 0.0
        %1387 = vmatpush1.msra.mxu0 %v1209
        %1388 = vmatprep.subr.mxu0 0.0
        %1389 = vmatpush1.msra.mxu0 %v1204
        %1390 = vmatprep.subr.mxu0 0.0
        %1391 = vmatpush1.msra.mxu0 %v1199
        %1392 = vmatprep.subr.mxu0 0.0
        %1393 = vmatpush2.msra.mxu0 0.0
        %1394 = vmatprep.subr.mxu0 0.0
        %1395 = vmatpush2.msra.mxu0 0.0
        %1396 = vmatprep.subr.mxu0 0.0
        %1397 = vmatpush2.msra.mxu0 0.0
        %1398 = vmatprep.subr.mxu0 0.0
        %1399 = vmatpush2.msra.mxu0 0.0
        %1400 = vmatprep.subr.mxu0 0.0
        %1401 = vmatpush2.msra.mxu0 0.0
        %1402 = vmatprep.subr.mxu0 0.0
        %1403 = vmatpush2.msra.mxu0 0.0
        %1404 = vmatprep.subr.mxu0 0.0
        %1405 = vmatpush2.msra.mxu0 0.0
        %1406 = vmatprep.subr.mxu0 0.0
        %1407 = vmatpush2.msra.mxu0 0.0
        %1408 = vmatprep.subr.mxu0 0.0
        %1409 = vmatpush2.msra.mxu0 0.0
        %1410 = vmatprep.subr.mxu0 0.0
        %1411 = vmatpush2.msra.mxu0 0.0
        %1412 = vmatprep.subr.mxu0 0.0
        %1413 = vmatpush2.msra.mxu0 0.0
        %1414 = vmatprep.subr.mxu0 0.0
        %1415 = vmatpush2.msra.mxu0 0.0
        %1416 = vmatprep.subr.mxu0 0.0
        %1417 = vmatpush2.msra.mxu0 0.0
        %1418 = vmatprep.subr.mxu0 0.0
        %1419 = vmatpush2.msra.mxu0 0.0
        %1420 = vmatprep.subr.mxu0 0.0
        %1421 = vmatpush2.msra.mxu0 0.0
        %1422 = vmatprep.subr.mxu0 0.0
        %1423 = vmatpush2.msra.mxu0 0.0
        %1424 = vmatprep.mubr.f32.mxu0 0.0
        %1425 = vmatmul.mubr.f32.gmra.mxu0 %v1352
        %v1426 = vpop.f32.mrf.mxu0
        %v1427 = vadd.f32 0.0, %v1426
        %v1428 = vpop.f32.mrf.mxu0
        %1429 = vmatprep.mubr.f32.mxu0 0.0
        %1430 = vmatmul.mubr.f32.gmra.mxu0 %v1355
        %v1431 = vpop.f32.mrf.mxu0
        %v1432 = vadd.f32 0.0, %v1431
        %v1433 = vpop.f32.mrf.mxu0
        %1434 = vmatprep.mubr.f32.mxu0 0.0
        %1435 = vmatmul.mubr.f32.gmra.mxu0 %v1358
        %v1436 = vpop.f32.mrf.mxu0
        %v1437 = vadd.f32 0.0, %v1436
        %v1438 = vpop.f32.mrf.mxu0
        %1439 = vdwg.mxu0
        %v1440 = vld [vmem:[%s11] sm:$0xff]
        %v1442 = vsel %vm1212, %v1427, 0
        %v1445 = vsel %vm1212, %v1432, 0
        %v1448 = vsel %vm1212, %v1437, 0
        %1450 = vmatprep.subr.mxu0 0.0
        %1451 = vmatpush1.msra.mxu0 0.0
        %1452 = vmatprep.subr.mxu0 0.0
        %1453 = vmatpush1.msra.mxu0 0.0
        %1454 = vmatprep.subr.mxu0 0.0
        %1455 = vmatpush1.msra.mxu0 0.0
        %1456 = vmatprep.subr.mxu0 0.0
        %1457 = vmatpush1.msra.mxu0 0.0
        %1458 = vmatprep.subr.mxu0 0.0
        %1459 = vmatpush1.msra.mxu0 0.0
        %1460 = vmatprep.subr.mxu0 0.0
        %1461 = vmatpush1.msra.mxu0 0.0
        %1462 = vmatprep.subr.mxu0 0.0
        %1463 = vmatpush1.msra.mxu0 0.0
        %1464 = vmatprep.subr.mxu0 0.0
        %1465 = vmatpush1.msra.mxu0 0.0
        %1466 = vmatprep.subr.mxu0 0.0
        %1467 = vmatpush1.msra.mxu0 0.0
        %1468 = vmatprep.subr.mxu0 0.0
        %1469 = vmatpush1.msra.mxu0 0.0
        %1470 = vmatprep.subr.mxu0 0.0
        %1471 = vmatpush1.msra.mxu0 0.0
        %1472 = vmatprep.subr.mxu0 0.0
        %1473 = vmatpush1.msra.mxu0 0.0
        %1474 = vmatprep.subr.mxu0 0.0
        %1475 = vmatpush1.msra.mxu0 0.0
        %1476 = vmatprep.subr.mxu0 0.0
        %1477 = vmatpush1.msra.mxu0 0.0
        %1478 = vmatprep.subr.mxu0 0.0
        %1479 = vmatpush1.msra.mxu0 0.0
        %1480 = vmatprep.subr.mxu0 0.0
        %1481 = vmatpush1.msra.mxu0 %v1440
        %1482 = vmatprep.subr.mxu0 0.0
        %1483 = vmatpush2.msra.mxu0 0.0
        %1484 = vmatprep.subr.mxu0 0.0
        %1485 = vmatpush2.msra.mxu0 0.0
        %1486 = vmatprep.subr.mxu0 0.0
        %1487 = vmatpush2.msra.mxu0 0.0
        %1488 = vmatprep.subr.mxu0 0.0
        %1489 = vmatpush2.msra.mxu0 0.0
        %1490 = vmatprep.subr.mxu0 0.0
        %1491 = vmatpush2.msra.mxu0 0.0
        %1492 = vmatprep.subr.mxu0 0.0
        %1493 = vmatpush2.msra.mxu0 0.0
        %1494 = vmatprep.subr.mxu0 0.0
        %1495 = vmatpush2.msra.mxu0 0.0
        %1496 = vmatprep.subr.mxu0 0.0
        %1497 = vmatpush2.msra.mxu0 0.0
        %1498 = vmatprep.subr.mxu0 0.0
        %1499 = vmatpush2.msra.mxu0 0.0
        %1500 = vmatprep.subr.mxu0 0.0
        %1501 = vmatpush2.msra.mxu0 0.0
        %1502 = vmatprep.subr.mxu0 0.0
        %1503 = vmatpush2.msra.mxu0 0.0
        %1504 = vmatprep.subr.mxu0 0.0
        %1505 = vmatpush2.msra.mxu0 0.0
        %1506 = vmatprep.subr.mxu0 0.0
        %1507 = vmatpush2.msra.mxu0 0.0
        %1508 = vmatprep.subr.mxu0 0.0
        %1509 = vmatpush2.msra.mxu0 0.0
        %1510 = vmatprep.subr.mxu0 0.0
        %1511 = vmatpush2.msra.mxu0 0.0
        %1512 = vmatprep.subr.mxu0 0.0
        %1513 = vmatpush2.msra.mxu0 0.0
        %1514 = vmatprep.mubr.f32.mxu0 0.0
        %1515 = vmatmul.mubr.f32.gmra.mxu0 %v1442
        %v1516 = vpop.f32.mrf.mxu0
        %v1517 = vadd.f32 0.0, %v1516
        %v1518 = vpop.f32.mrf.mxu0
        %1519 = vmatprep.mubr.f32.mxu0 0.0
        %1520 = vmatmul.mubr.f32.gmra.mxu0 %v1445
        %v1521 = vpop.f32.mrf.mxu0
        %v1522 = vadd.f32 0.0, %v1521
        %v1523 = vpop.f32.mrf.mxu0
        %1524 = vmatprep.mubr.f32.mxu0 0.0
        %1525 = vmatmul.mubr.f32.gmra.mxu0 %v1448
        %v1526 = vpop.f32.mrf.mxu0
        %v1527 = vadd.f32 0.0, %v1526
        %v1528 = vpop.f32.mrf.mxu0
        %1529 = vdwg.mxu0
        %v1531 = vlaneseq
        %v1532 = vshrl.u32 %v1531, 7
        %v1533 = vsub.s32 0, %v1532
        %v1534 = vrot.slane %v929, %v1533
        %v1536 = vadd.f32 %v1534, %v1517
        %v1537 = vadd.f32 %v1534, %v1522
        %v1538 = vadd.f32 %v1534, %v1527
        %s1539 = scalar_lea.vmem %s5, 32
        %v1540 = vld [vmem:[%s1539] sm:$0xff]
        %v1541 = vld [vmem:[%s1539 + $0x8] sm:$0xff]
        %v1542 = vld [vmem:[%s1539 + $0x10] sm:$0xff]
        %v1543 = vld [vmem:[%s1539 + $0x18] sm:$0xff]
        %s1544 = scalar_lea.vmem %s6, 1
        %v1545 = vld [vmem:[%s1544] sm:$0x1]
        %v1547 = vlaneseq
        %v1548 = vshrl.u32 %v1547, 7
        %v1549 = vsub.s32 0, %v1548
        %v1550 = vrot.slane %v1545, %v1549
        %1552 = vmatprep.subr.mxu0 0.0
        %1553 = vmatpush1.msra.mxu0 0.0
        %1554 = vmatprep.subr.mxu0 0.0
        %1555 = vmatpush1.msra.mxu0 0.0
        %1556 = vmatprep.subr.mxu0 0.0
        %1557 = vmatpush1.msra.mxu0 0.0
        %1558 = vmatprep.subr.mxu0 0.0
        %1559 = vmatpush1.msra.mxu0 0.0
        %1560 = vmatprep.subr.mxu0 0.0
        %1561 = vmatpush1.msra.mxu0 0.0
        %1562 = vmatprep.subr.mxu0 0.0
        %1563 = vmatpush1.msra.mxu0 0.0
        %1564 = vmatprep.subr.mxu0 0.0
        %1565 = vmatpush1.msra.mxu0 0.0
        %1566 = vmatprep.subr.mxu0 0.0
        %1567 = vmatpush1.msra.mxu0 0.0
        %1568 = vmatprep.subr.mxu0 0.0
        %1569 = vmatpush1.msra.mxu0 0.0
        %1570 = vmatprep.subr.mxu0 0.0
        %1571 = vmatpush1.msra.mxu0 0.0
        %1572 = vmatprep.subr.mxu0 0.0
        %1573 = vmatpush1.msra.mxu0 0.0
        %1574 = vmatprep.subr.mxu0 0.0
        %1575 = vmatpush1.msra.mxu0 0.0
        %1576 = vmatprep.subr.mxu0 0.0
        %1577 = vmatpush1.msra.mxu0 %v1543
        %1578 = vmatprep.subr.mxu0 0.0
        %1579 = vmatpush1.msra.mxu0 %v1542
        %1580 = vmatprep.subr.mxu0 0.0
        %1581 = vmatpush1.msra.mxu0 %v1541
        %1582 = vmatprep.subr.mxu0 0.0
        %1583 = vmatpush1.msra.mxu0 %v1540
        %1584 = vmatprep.subr.mxu0 0.0
        %1585 = vmatpush2.msra.mxu0 0.0
        %1586 = vmatprep.subr.mxu0 0.0
        %1587 = vmatpush2.msra.mxu0 0.0
        %1588 = vmatprep.subr.mxu0 0.0
        %1589 = vmatpush2.msra.mxu0 0.0
        %1590 = vmatprep.subr.mxu0 0.0
        %1591 = vmatpush2.msra.mxu0 0.0
        %1592 = vmatprep.subr.mxu0 0.0
        %1593 = vmatpush2.msra.mxu0 0.0
        %1594 = vmatprep.subr.mxu0 0.0
        %1595 = vmatpush2.msra.mxu0 0.0
        %1596 = vmatprep.subr.mxu0 0.0
        %1597 = vmatpush2.msra.mxu0 0.0
        %1598 = vmatprep.subr.mxu0 0.0
        %1599 = vmatpush2.msra.mxu0 0.0
        %1600 = vmatprep.subr.mxu0 0.0
        %1601 = vmatpush2.msra.mxu0 0.0
        %1602 = vmatprep.subr.mxu0 0.0
        %1603 = vmatpush2.msra.mxu0 0.0
        %1604 = vmatprep.subr.mxu0 0.0
        %1605 = vmatpush2.msra.mxu0 0.0
        %1606 = vmatprep.subr.mxu0 0.0
        %1607 = vmatpush2.msra.mxu0 0.0
        %1608 = vmatprep.subr.mxu0 0.0
        %1609 = vmatpush2.msra.mxu0 0.0
        %1610 = vmatprep.subr.mxu0 0.0
        %1611 = vmatpush2.msra.mxu0 0.0
        %1612 = vmatprep.subr.mxu0 0.0
        %1613 = vmatpush2.msra.mxu0 0.0
        %1614 = vmatprep.subr.mxu0 0.0
        %1615 = vmatpush2.msra.mxu0 0.0
        %1616 = vmatprep.mubr.f32.mxu0 0.0
        %1617 = vmatmul.mubr.f32.gmra.mxu0 %v942
        %v1618 = vpop.f32.mrf.mxu0
        %v1619 = vadd.f32 %v1550, %v1618
        %v1620 = vpop.f32.mrf.mxu0
        %1621 = vmatprep.mubr.f32.mxu0 0.0
        %1622 = vmatmul.mubr.f32.gmra.mxu0 %v945
        %v1623 = vpop.f32.mrf.mxu0
        %v1624 = vadd.f32 %v1550, %v1623
        %v1625 = vpop.f32.mrf.mxu0
        %1626 = vmatprep.mubr.f32.mxu0 0.0
        %1627 = vmatmul.mubr.f32.gmra.mxu0 %v948
        %v1628 = vpop.f32.mrf.mxu0
        %v1629 = vadd.f32 %v1550, %v1628
        %v1630 = vpop.f32.mrf.mxu0
        %1631 = vdwg.mxu0
        %s1632 = scalar_lea.vmem %s7, 32
        %v1633 = vld [vmem:[%s1632] sm:$0xff]
        %v1634 = vld [vmem:[%s1632 + $0x8] sm:$0xff]
        %v1635 = vld [vmem:[%s1632 + $0x10] sm:$0xff]
        %v1636 = vld [vmem:[%s1632 + $0x18] sm:$0xff]
        %s1637 = scalar_lea.vmem %s8, 1
        %v1638 = vld [vmem:[%s1637] sm:$0x1]
        %v1640 = vlaneseq
        %v1641 = vshrl.u32 %v1640, 7
        %v1642 = vsub.s32 0, %v1641
        %v1643 = vrot.slane %v1638, %v1642
        %1645 = vmatprep.subr.mxu0 0.0
        %1646 = vmatpush1.msra.mxu0 0.0
        %1647 = vmatprep.subr.mxu0 0.0
        %1648 = vmatpush1.msra.mxu0 0.0
        %1649 = vmatprep.subr.mxu0 0.0
        %1650 = vmatpush1.msra.mxu0 0.0
        %1651 = vmatprep.subr.mxu0 0.0
        %1652 = vmatpush1.msra.mxu0 0.0
        %1653 = vmatprep.subr.mxu0 0.0
        %1654 = vmatpush1.msra.mxu0 0.0
        %1655 = vmatprep.subr.mxu0 0.0
        %1656 = vmatpush1.msra.mxu0 0.0
        %1657 = vmatprep.subr.mxu0 0.0
        %1658 = vmatpush1.msra.mxu0 0.0
        %1659 = vmatprep.subr.mxu0 0.0
        %1660 = vmatpush1.msra.mxu0 0.0
        %1661 = vmatprep.subr.mxu0 0.0
        %1662 = vmatpush1.msra.mxu0 0.0
        %1663 = vmatprep.subr.mxu0 0.0
        %1664 = vmatpush1.msra.mxu0 0.0
        %1665 = vmatprep.subr.mxu0 0.0
        %1666 = vmatpush1.msra.mxu0 0.0
        %1667 = vmatprep.subr.mxu0 0.0
        %1668 = vmatpush1.msra.mxu0 0.0
        %1669 = vmatprep.subr.mxu0 0.0
        %1670 = vmatpush1.msra.mxu0 %v1636
        %1671 = vmatprep.subr.mxu0 0.0
        %1672 = vmatpush1.msra.mxu0 %v1635
        %1673 = vmatprep.subr.mxu0 0.0
        %1674 = vmatpush1.msra.mxu0 %v1634
        %1675 = vmatprep.subr.mxu0 0.0
        %1676 = vmatpush1.msra.mxu0 %v1633
        %1677 = vmatprep.subr.mxu0 0.0
        %1678 = vmatpush2.msra.mxu0 0.0
        %1679 = vmatprep.subr.mxu0 0.0
        %1680 = vmatpush2.msra.mxu0 0.0
        %1681 = vmatprep.subr.mxu0 0.0
        %1682 = vmatpush2.msra.mxu0 0.0
        %1683 = vmatprep.subr.mxu0 0.0
        %1684 = vmatpush2.msra.mxu0 0.0
        %1685 = vmatprep.subr.mxu0 0.0
        %1686 = vmatpush2.msra.mxu0 0.0
        %1687 = vmatprep.subr.mxu0 0.0
        %1688 = vmatpush2.msra.mxu0 0.0
        %1689 = vmatprep.subr.mxu0 0.0
        %1690 = vmatpush2.msra.mxu0 0.0
        %1691 = vmatprep.subr.mxu0 0.0
        %1692 = vmatpush2.msra.mxu0 0.0
        %1693 = vmatprep.subr.mxu0 0.0
        %1694 = vmatpush2.msra.mxu0 0.0
        %1695 = vmatprep.subr.mxu0 0.0
        %1696 = vmatpush2.msra.mxu0 0.0
        %1697 = vmatprep.subr.mxu0 0.0
        %1698 = vmatpush2.msra.mxu0 0.0
        %1699 = vmatprep.subr.mxu0 0.0
        %1700 = vmatpush2.msra.mxu0 0.0
        %1701 = vmatprep.subr.mxu0 0.0
        %1702 = vmatpush2.msra.mxu0 0.0
        %1703 = vmatprep.subr.mxu0 0.0
        %1704 = vmatpush2.msra.mxu0 0.0
        %1705 = vmatprep.subr.mxu0 0.0
        %1706 = vmatpush2.msra.mxu0 0.0
        %1707 = vmatprep.subr.mxu0 0.0
        %1708 = vmatpush2.msra.mxu0 0.0
        %1709 = vmatprep.mubr.f32.mxu0 0.0
        %1710 = vmatmul.mubr.f32.gmra.mxu0 %v942
        %v1711 = vpop.f32.mrf.mxu0
        %v1712 = vadd.f32 %v1643, %v1711
        %v1713 = vpop.f32.mrf.mxu0
        %1714 = vmatprep.mubr.f32.mxu0 0.0
        %1715 = vmatmul.mubr.f32.gmra.mxu0 %v945
        %v1716 = vpop.f32.mrf.mxu0
        %v1717 = vadd.f32 %v1643, %v1716
        %v1718 = vpop.f32.mrf.mxu0
        %1719 = vmatprep.mubr.f32.mxu0 0.0
        %1720 = vmatmul.mubr.f32.gmra.mxu0 %v948
        %v1721 = vpop.f32.mrf.mxu0
        %v1722 = vadd.f32 %v1643, %v1721
        %v1723 = vpop.f32.mrf.mxu0
        %1724 = vdwg.mxu0
        %s1725 = scalar_lea.vmem %s9, 32
        %v1726 = vld [vmem:[%s1725] sm:$0xff]
        %v1727 = vld [vmem:[%s1725 + $0x8] sm:$0xff]
        %v1728 = vld [vmem:[%s1725 + $0x10] sm:$0xff]
        %v1729 = vld [vmem:[%s1725 + $0x18] sm:$0xff]
        %s1730 = scalar_lea.vmem %s10, 1
        %v1731 = vld [vmem:[%s1730] sm:$0x1]
        %v1733 = vlaneseq
        %v1734 = vshrl.u32 %v1733, 7
        %v1735 = vsub.s32 0, %v1734
        %v1736 = vrot.slane %v1731, %v1735
        %1738 = vmatprep.subr.mxu0 0.0
        %1739 = vmatpush1.msra.mxu0 0.0
        %1740 = vmatprep.subr.mxu0 0.0
        %1741 = vmatpush1.msra.mxu0 0.0
        %1742 = vmatprep.subr.mxu0 0.0
        %1743 = vmatpush1.msra.mxu0 0.0
        %1744 = vmatprep.subr.mxu0 0.0
        %1745 = vmatpush1.msra.mxu0 0.0
        %1746 = vmatprep.subr.mxu0 0.0
        %1747 = vmatpush1.msra.mxu0 0.0
        %1748 = vmatprep.subr.mxu0 0.0
        %1749 = vmatpush1.msra.mxu0 0.0
        %1750 = vmatprep.subr.mxu0 0.0
        %1751 = vmatpush1.msra.mxu0 0.0
        %1752 = vmatprep.subr.mxu0 0.0
        %1753 = vmatpush1.msra.mxu0 0.0
        %1754 = vmatprep.subr.mxu0 0.0
        %1755 = vmatpush1.msra.mxu0 0.0
        %1756 = vmatprep.subr.mxu0 0.0
        %1757 = vmatpush1.msra.mxu0 0.0
        %1758 = vmatprep.subr.mxu0 0.0
        %1759 = vmatpush1.msra.mxu0 0.0
        %1760 = vmatprep.subr.mxu0 0.0
        %1761 = vmatpush1.msra.mxu0 0.0
        %1762 = vmatprep.subr.mxu0 0.0
        %1763 = vmatpush1.msra.mxu0 %v1729
        %1764 = vmatprep.subr.mxu0 0.0
        %1765 = vmatpush1.msra.mxu0 %v1728
        %1766 = vmatprep.subr.mxu0 0.0
        %1767 = vmatpush1.msra.mxu0 %v1727
        %1768 = vmatprep.subr.mxu0 0.0
        %1769 = vmatpush1.msra.mxu0 %v1726
        %1770 = vmatprep.subr.mxu0 0.0
        %1771 = vmatpush2.msra.mxu0 0.0
        %1772 = vmatprep.subr.mxu0 0.0
        %1773 = vmatpush2.msra.mxu0 0.0
        %1774 = vmatprep.subr.mxu0 0.0
        %1775 = vmatpush2.msra.mxu0 0.0
        %1776 = vmatprep.subr.mxu0 0.0
        %1777 = vmatpush2.msra.mxu0 0.0
        %1778 = vmatprep.subr.mxu0 0.0
        %1779 = vmatpush2.msra.mxu0 0.0
        %1780 = vmatprep.subr.mxu0 0.0
        %1781 = vmatpush2.msra.mxu0 0.0
        %1782 = vmatprep.subr.mxu0 0.0
        %1783 = vmatpush2.msra.mxu0 0.0
        %1784 = vmatprep.subr.mxu0 0.0
        %1785 = vmatpush2.msra.mxu0 0.0
        %1786 = vmatprep.subr.mxu0 0.0
        %1787 = vmatpush2.msra.mxu0 0.0
        %1788 = vmatprep.subr.mxu0 0.0
        %1789 = vmatpush2.msra.mxu0 0.0
        %1790 = vmatprep.subr.mxu0 0.0
        %1791 = vmatpush2.msra.mxu0 0.0
        %1792 = vmatprep.subr.mxu0 0.0
        %1793 = vmatpush2.msra.mxu0 0.0
        %1794 = vmatprep.subr.mxu0 0.0
        %1795 = vmatpush2.msra.mxu0 0.0
        %1796 = vmatprep.subr.mxu0 0.0
        %1797 = vmatpush2.msra.mxu0 0.0
        %1798 = vmatprep.subr.mxu0 0.0
        %1799 = vmatpush2.msra.mxu0 0.0
        %1800 = vmatprep.subr.mxu0 0.0
        %1801 = vmatpush2.msra.mxu0 0.0
        %1802 = vmatprep.mubr.f32.mxu0 0.0
        %1803 = vmatmul.mubr.f32.gmra.mxu0 %v942
        %v1804 = vpop.f32.mrf.mxu0
        %v1805 = vadd.f32 %v1736, %v1804
        %v1806 = vpop.f32.mrf.mxu0
        %1807 = vmatprep.mubr.f32.mxu0 0.0
        %1808 = vmatmul.mubr.f32.gmra.mxu0 %v945
        %v1809 = vpop.f32.mrf.mxu0
        %v1810 = vadd.f32 %v1736, %v1809
        %v1811 = vpop.f32.mrf.mxu0
        %1812 = vmatprep.mubr.f32.mxu0 0.0
        %1813 = vmatmul.mubr.f32.gmra.mxu0 %v948
        %v1814 = vpop.f32.mrf.mxu0
        %v1815 = vadd.f32 %v1736, %v1814
        %v1816 = vpop.f32.mrf.mxu0
        %1817 = vdwg.mxu0
        %v1819 = vsel %vm1212, %v1619, 0
        %v1822 = vsel %vm1212, %v1624, 0
        %v1825 = vsel %vm1212, %v1629, 0
        %v1828 = vsel %vm1212, %v1712, 0
        %v1831 = vsel %vm1212, %v1717, 0
        %v1834 = vsel %vm1212, %v1722, 0
        %1836 = vmatprep.subr.mxu0 0.0
        %1837 = vmatpush1.xpose.msra.mxu0 0.0
        %1838 = vmatprep.subr.mxu0 0.0
        %1839 = vmatpush1.xpose.msra.mxu0 0.0
        %1840 = vmatprep.subr.mxu0 0.0
        %1841 = vmatpush1.xpose.msra.mxu0 0.0
        %1842 = vmatprep.subr.mxu0 0.0
        %1843 = vmatpush1.xpose.msra.mxu0 0.0
        %1844 = vmatprep.subr.mxu0 0.0
        %1845 = vmatpush1.xpose.msra.mxu0 0.0
        %1846 = vmatprep.subr.mxu0 0.0
        %1847 = vmatpush1.xpose.msra.mxu0 0.0
        %1848 = vmatprep.subr.mxu0 0.0
        %1849 = vmatpush1.xpose.msra.mxu0 0.0
        %1850 = vmatprep.subr.mxu0 0.0
        %1851 = vmatpush1.xpose.msra.mxu0 0.0
        %1852 = vmatprep.subr.mxu0 0.0
        %1853 = vmatpush1.xpose.msra.mxu0 0.0
        %1854 = vmatprep.subr.mxu0 0.0
        %1855 = vmatpush1.xpose.msra.mxu0 0.0
        %1856 = vmatprep.subr.mxu0 0.0
        %1857 = vmatpush1.xpose.msra.mxu0 0.0
        %1858 = vmatprep.subr.mxu0 0.0
        %1859 = vmatpush1.xpose.msra.mxu0 0.0
        %1860 = vmatprep.subr.mxu0 0.0
        %1861 = vmatpush1.xpose.msra.mxu0 0.0
        %1862 = vmatprep.subr.mxu0 0.0
        %1863 = vmatpush1.xpose.msra.mxu0 %v1834
        %1864 = vmatprep.subr.mxu0 0.0
        %1865 = vmatpush1.xpose.msra.mxu0 %v1831
        %1866 = vmatprep.subr.mxu0 0.0
        %1867 = vmatpush1.xpose.msra.mxu0 %v1828
        %1868 = vmatprep.subr.mxu0 0.0
        %1869 = vmatpush2.xpose.msra.mxu0 0.0
        %1870 = vmatprep.subr.mxu0 0.0
        %1871 = vmatpush2.xpose.msra.mxu0 0.0
        %1872 = vmatprep.subr.mxu0 0.0
        %1873 = vmatpush2.xpose.msra.mxu0 0.0
        %1874 = vmatprep.subr.mxu0 0.0
        %1875 = vmatpush2.xpose.msra.mxu0 0.0
        %1876 = vmatprep.subr.mxu0 0.0
        %1877 = vmatpush2.xpose.msra.mxu0 0.0
        %1878 = vmatprep.subr.mxu0 0.0
        %1879 = vmatpush2.xpose.msra.mxu0 0.0
        %1880 = vmatprep.subr.mxu0 0.0
        %1881 = vmatpush2.xpose.msra.mxu0 0.0
        %1882 = vmatprep.subr.mxu0 0.0
        %1883 = vmatpush2.xpose.msra.mxu0 0.0
        %1884 = vmatprep.subr.mxu0 0.0
        %1885 = vmatpush2.xpose.msra.mxu0 0.0
        %1886 = vmatprep.subr.mxu0 0.0
        %1887 = vmatpush2.xpose.msra.mxu0 0.0
        %1888 = vmatprep.subr.mxu0 0.0
        %1889 = vmatpush2.xpose.msra.mxu0 0.0
        %1890 = vmatprep.subr.mxu0 0.0
        %1891 = vmatpush2.xpose.msra.mxu0 0.0
        %1892 = vmatprep.subr.mxu0 0.0
        %1893 = vmatpush2.xpose.msra.mxu0 0.0
        %1894 = vmatprep.subr.mxu0 0.0
        %1895 = vmatpush2.xpose.msra.mxu0 0.0
        %1896 = vmatprep.subr.mxu0 0.0
        %1897 = vmatpush2.xpose.msra.mxu0 0.0
        %1898 = vmatprep.subr.mxu0 0.0
        %1899 = vmatpush2.xpose.msra.mxu0 0.0
        %1900 = vmatprep.mubr.f32.mxu0 0.0
        %1901 = vmatmul.mubr.f32.gmra.mxu0 %v1819
        %v1902 = vpop.f32.mrf.mxu0
        %v1903 = vadd.f32 0.0, %v1902
        %v1904 = vpop.f32.mrf.mxu0
        %1905 = vmatprep.mubr.f32.mxu0 0.0
        %1906 = vmatmul.mubr.f32.gmra.mxu0 %v1822
        %v1907 = vpop.f32.mrf.mxu0
        %v1908 = vadd.f32 0.0, %v1907
        %v1909 = vpop.f32.mrf.mxu0
        %1910 = vmatprep.mubr.f32.mxu0 0.0
        %1911 = vmatmul.mubr.f32.gmra.mxu0 %v1825
        %v1912 = vpop.f32.mrf.mxu0
        %v1913 = vadd.f32 0.0, %v1912
        %v1914 = vpop.f32.mrf.mxu0
        %1915 = vdwg.mxu0
        %v1916 = vmul.f32 %v1903, 0.35355338
        %v1917 = vmul.f32 %v1908, 0.35355338
        %v1918 = vmul.f32 %v1913, 0.35355338
        %v1919 = vadd.f32 %v1916, %v867
        %v1920 = vadd.f32 %v1917, %v867
        %v1921 = vadd.f32 %v1918, %v867
        %v1922 = vsel %vm1317, %v1919, -inf
        %1923 = vmax.xlane.f32.xlu0 %v1922
        %v1924 = vpop.xlane.xlu0 %1923
        %v1925 = vsel %vm1317, %v1920, -inf
        %1926 = vmax.xlane.f32.xlu0 %v1925
        %v1927 = vpop.xlane.xlu0 %1926
        %v1928 = vsel %vm1317, %v1921, -inf
        %1929 = vmax.xlane.f32.xlu0 %v1928
        %v1930 = vpop.xlane.xlu0 %1929
        %v1931 = vsub.f32 %v1919, %v1924
        %v1932 = vsub.f32 %v1920, %v1927
        %v1933 = vsub.f32 %v1921, %v1930
        %v1934 = vmul.f32 %v1931, 1.442695
        %v1935 = vpow.pop %v1934
        %v1936 = vmul.f32 %v1932, 1.442695
        %v1937 = vpow.pop %v1936
        %v1938 = vmul.f32 %v1933, 1.442695
        %v1939 = vpow.pop %v1938
        %v1940 = vsel %vm1317, %v1935, 0.0
        %1941 = vadd.xlane.f32.xlu0 %v1940
        %v1942 = vpop.xlane.xlu0 %1941
        %v1943 = vsel %vm1317, %v1937, 0.0
        %1944 = vadd.xlane.f32.xlu0 %v1943
        %v1945 = vpop.xlane.xlu0 %1944
        %v1946 = vsel %vm1317, %v1939, 0.0
        %1947 = vadd.xlane.f32.xlu0 %v1946
        %v1948 = vpop.xlane.xlu0 %1947
        %v1949 = vrcp.pop %v1942
        %v1950 = vmul.f32 %v1935, %v1949
        %v1951 = vrcp.pop %v1945
        %v1952 = vmul.f32 %v1937, %v1951
        %v1953 = vrcp.pop %v1948
        %v1954 = vmul.f32 %v1939, %v1953
        %v1956 = vsel %vm1317, %v1950, 0
        %v1959 = vsel %vm1317, %v1952, 0
        %v1962 = vsel %vm1317, %v1954, 0
        %1964 = vmatprep.subr.mxu0 0.0
        %1965 = vmatpush1.msra.mxu0 0.0
        %1966 = vmatprep.subr.mxu0 0.0
        %1967 = vmatpush1.msra.mxu0 0.0
        %1968 = vmatprep.subr.mxu0 0.0
        %1969 = vmatpush1.msra.mxu0 0.0
        %1970 = vmatprep.subr.mxu0 0.0
        %1971 = vmatpush1.msra.mxu0 0.0
        %1972 = vmatprep.subr.mxu0 0.0
        %1973 = vmatpush1.msra.mxu0 0.0
        %1974 = vmatprep.subr.mxu0 0.0
        %1975 = vmatpush1.msra.mxu0 0.0
        %1976 = vmatprep.subr.mxu0 0.0
        %1977 = vmatpush1.msra.mxu0 0.0
        %1978 = vmatprep.subr.mxu0 0.0
        %1979 = vmatpush1.msra.mxu0 0.0
        %1980 = vmatprep.subr.mxu0 0.0
        %1981 = vmatpush1.msra.mxu0 0.0
        %1982 = vmatprep.subr.mxu0 0.0
        %1983 = vmatpush1.msra.mxu0 0.0
        %1984 = vmatprep.subr.mxu0 0.0
        %1985 = vmatpush1.msra.mxu0 0.0
        %1986 = vmatprep.subr.mxu0 0.0
        %1987 = vmatpush1.msra.mxu0 0.0
        %1988 = vmatprep.subr.mxu0 0.0
        %1989 = vmatpush1.msra.mxu0 0.0
        %1990 = vmatprep.subr.mxu0 0.0
        %1991 = vmatpush1.msra.mxu0 %v1815
        %1992 = vmatprep.subr.mxu0 0.0
        %1993 = vmatpush1.msra.mxu0 %v1810
        %1994 = vmatprep.subr.mxu0 0.0
        %1995 = vmatpush1.msra.mxu0 %v1805
        %1996 = vmatprep.subr.mxu0 0.0
        %1997 = vmatpush2.msra.mxu0 0.0
        %1998 = vmatprep.subr.mxu0 0.0
        %1999 = vmatpush2.msra.mxu0 0.0
        %2000 = vmatprep.subr.mxu0 0.0
        %2001 = vmatpush2.msra.mxu0 0.0
        %2002 = vmatprep.subr.mxu0 0.0
        %2003 = vmatpush2.msra.mxu0 0.0
        %2004 = vmatprep.subr.mxu0 0.0
        %2005 = vmatpush2.msra.mxu0 0.0
        %2006 = vmatprep.subr.mxu0 0.0
        %2007 = vmatpush2.msra.mxu0 0.0
        %2008 = vmatprep.subr.mxu0 0.0
        %2009 = vmatpush2.msra.mxu0 0.0
        %2010 = vmatprep.subr.mxu0 0.0
        %2011 = vmatpush2.msra.mxu0 0.0
        %2012 = vmatprep.subr.mxu0 0.0
        %2013 = vmatpush2.msra.mxu0 0.0
        %2014 = vmatprep.subr.mxu0 0.0
        %2015 = vmatpush2.msra.mxu0 0.0
        %2016 = vmatprep.subr.mxu0 0.0
        %2017 = vmatpush2.msra.mxu0 0.0
        %2018 = vmatprep.subr.mxu0 0.0
        %2019 = vmatpush2.msra.mxu0 0.0
        %2020 = vmatprep.subr.mxu0 0.0
        %2021 = vmatpush2.msra.mxu0 0.0
        %2022 = vmatprep.subr.mxu0 0.0
        %2023 = vmatpush2.msra.mxu0 0.0
        %2024 = vmatprep.subr.mxu0 0.0
        %2025 = vmatpush2.msra.mxu0 0.0
        %2026 = vmatprep.subr.mxu0 0.0
        %2027 = vmatpush2.msra.mxu0 0.0
        %2028 = vmatprep.mubr.f32.mxu0 0.0
        %2029 = vmatmul.mubr.f32.gmra.mxu0 %v1956
        %v2030 = vpop.f32.mrf.mxu0
        %v2031 = vadd.f32 0.0, %v2030
        %v2032 = vpop.f32.mrf.mxu0
        %2033 = vmatprep.mubr.f32.mxu0 0.0
        %2034 = vmatmul.mubr.f32.gmra.mxu0 %v1959
        %v2035 = vpop.f32.mrf.mxu0
        %v2036 = vadd.f32 0.0, %v2035
        %v2037 = vpop.f32.mrf.mxu0
        %2038 = vmatprep.mubr.f32.mxu0 0.0
        %2039 = vmatmul.mubr.f32.gmra.mxu0 %v1962
        %v2040 = vpop.f32.mrf.mxu0
        %v2041 = vadd.f32 0.0, %v2040
        %v2042 = vpop.f32.mrf.mxu0
        %2043 = vdwg.mxu0
        %s2044 = scalar_lea.vmem %s11, 8
        %v2045 = vld [vmem:[%s2044] sm:$0xff]
        %v2047 = vsel %vm1212, %v2031, 0
        %v2050 = vsel %vm1212, %v2036, 0
        %v2053 = vsel %vm1212, %v2041, 0
        %2055 = vmatprep.subr.mxu0 0.0
        %2056 = vmatpush1.msra.mxu0 0.0
        %2057 = vmatprep.subr.mxu0 0.0
        %2058 = vmatpush1.msra.mxu0 0.0
        %2059 = vmatprep.subr.mxu0 0.0
        %2060 = vmatpush1.msra.mxu0 0.0
        %2061 = vmatprep.subr.mxu0 0.0
        %2062 = vmatpush1.msra.mxu0 0.0
        %2063 = vmatprep.subr.mxu0 0.0
        %2064 = vmatpush1.msra.mxu0 0.0
        %2065 = vmatprep.subr.mxu0 0.0
        %2066 = vmatpush1.msra.mxu0 0.0
        %2067 = vmatprep.subr.mxu0 0.0
        %2068 = vmatpush1.msra.mxu0 0.0
        %2069 = vmatprep.subr.mxu0 0.0
        %2070 = vmatpush1.msra.mxu0 0.0
        %2071 = vmatprep.subr.mxu0 0.0
        %2072 = vmatpush1.msra.mxu0 0.0
        %2073 = vmatprep.subr.mxu0 0.0
        %2074 = vmatpush1.msra.mxu0 0.0
        %2075 = vmatprep.subr.mxu0 0.0
        %2076 = vmatpush1.msra.mxu0 0.0
        %2077 = vmatprep.subr.mxu0 0.0
        %2078 = vmatpush1.msra.mxu0 0.0
        %2079 = vmatprep.subr.mxu0 0.0
        %2080 = vmatpush1.msra.mxu0 0.0
        %2081 = vmatprep.subr.mxu0 0.0
        %2082 = vmatpush1.msra.mxu0 0.0
        %2083 = vmatprep.subr.mxu0 0.0
        %2084 = vmatpush1.msra.mxu0 0.0
        %2085 = vmatprep.subr.mxu0 0.0
        %2086 = vmatpush1.msra.mxu0 %v2045
        %2087 = vmatprep.subr.mxu0 0.0
        %2088 = vmatpush2.msra.mxu0 0.0
        %2089 = vmatprep.subr.mxu0 0.0
        %2090 = vmatpush2.msra.mxu0 0.0
        %2091 = vmatprep.subr.mxu0 0.0
        %2092 = vmatpush2.msra.mxu0 0.0
        %2093 = vmatprep.subr.mxu0 0.0
        %2094 = vmatpush2.msra.mxu0 0.0
        %2095 = vmatprep.subr.mxu0 0.0
        %2096 = vmatpush2.msra.mxu0 0.0
        %2097 = vmatprep.subr.mxu0 0.0
        %2098 = vmatpush2.msra.mxu0 0.0
        %2099 = vmatprep.subr.mxu0 0.0
        %2100 = vmatpush2.msra.mxu0 0.0
        %2101 = vmatprep.subr.mxu0 0.0
        %2102 = vmatpush2.msra.mxu0 0.0
        %2103 = vmatprep.subr.mxu0 0.0
        %2104 = vmatpush2.msra.mxu0 0.0
        %2105 = vmatprep.subr.mxu0 0.0
        %2106 = vmatpush2.msra.mxu0 0.0
        %2107 = vmatprep.subr.mxu0 0.0
        %2108 = vmatpush2.msra.mxu0 0.0
        %2109 = vmatprep.subr.mxu0 0.0
        %2110 = vmatpush2.msra.mxu0 0.0
        %2111 = vmatprep.subr.mxu0 0.0
        %2112 = vmatpush2.msra.mxu0 0.0
        %2113 = vmatprep.subr.mxu0 0.0
        %2114 = vmatpush2.msra.mxu0 0.0
        %2115 = vmatprep.subr.mxu0 0.0
        %2116 = vmatpush2.msra.mxu0 0.0
        %2117 = vmatprep.subr.mxu0 0.0
        %2118 = vmatpush2.msra.mxu0 0.0
        %2119 = vmatprep.mubr.f32.mxu0 0.0
        %2120 = vmatmul.mubr.f32.gmra.mxu0 %v2047
        %v2121 = vpop.f32.mrf.mxu0
        %v2122 = vadd.f32 0.0, %v2121
        %v2123 = vpop.f32.mrf.mxu0
        %2124 = vmatprep.mubr.f32.mxu0 0.0
        %2125 = vmatmul.mubr.f32.gmra.mxu0 %v2050
        %v2126 = vpop.f32.mrf.mxu0
        %v2127 = vadd.f32 0.0, %v2126
        %v2128 = vpop.f32.mrf.mxu0
        %2129 = vmatprep.mubr.f32.mxu0 0.0
        %2130 = vmatmul.mubr.f32.gmra.mxu0 %v2053
        %v2131 = vpop.f32.mrf.mxu0
        %v2132 = vadd.f32 0.0, %v2131
        %v2133 = vpop.f32.mrf.mxu0
        %2134 = vdwg.mxu0
        %v2135 = vadd.f32 %v1536, %v2122
        %v2136 = vadd.f32 %v1537, %v2127
        %v2137 = vadd.f32 %v1538, %v2132
        %s2138 = scalar_lea.vmem %s5, 64
        %v2139 = vld [vmem:[%s2138] sm:$0xff]
        %v2140 = vld [vmem:[%s2138 + $0x8] sm:$0xff]
        %v2141 = vld [vmem:[%s2138 + $0x10] sm:$0xff]
        %v2142 = vld [vmem:[%s2138 + $0x18] sm:$0xff]
        %s2143 = scalar_lea.vmem %s6, 2
        %v2144 = vld [vmem:[%s2143] sm:$0x1]
        %v2146 = vlaneseq
        %v2147 = vshrl.u32 %v2146, 7
        %v2148 = vsub.s32 0, %v2147
        %v2149 = vrot.slane %v2144, %v2148
        %2151 = vmatprep.subr.mxu0 0.0
        %2152 = vmatpush1.msra.mxu0 0.0
        %2153 = vmatprep.subr.mxu0 0.0
        %2154 = vmatpush1.msra.mxu0 0.0
        %2155 = vmatprep.subr.mxu0 0.0
        %2156 = vmatpush1.msra.mxu0 0.0
        %2157 = vmatprep.subr.mxu0 0.0
        %2158 = vmatpush1.msra.mxu0 0.0
        %2159 = vmatprep.subr.mxu0 0.0
        %2160 = vmatpush1.msra.mxu0 0.0
        %2161 = vmatprep.subr.mxu0 0.0
        %2162 = vmatpush1.msra.mxu0 0.0
        %2163 = vmatprep.subr.mxu0 0.0
        %2164 = vmatpush1.msra.mxu0 0.0
        %2165 = vmatprep.subr.mxu0 0.0
        %2166 = vmatpush1.msra.mxu0 0.0
        %2167 = vmatprep.subr.mxu0 0.0
        %2168 = vmatpush1.msra.mxu0 0.0
        %2169 = vmatprep.subr.mxu0 0.0
        %2170 = vmatpush1.msra.mxu0 0.0
        %2171 = vmatprep.subr.mxu0 0.0
        %2172 = vmatpush1.msra.mxu0 0.0
        %2173 = vmatprep.subr.mxu0 0.0
        %2174 = vmatpush1.msra.mxu0 0.0
        %2175 = vmatprep.subr.mxu0 0.0
        %2176 = vmatpush1.msra.mxu0 %v2142
        %2177 = vmatprep.subr.mxu0 0.0
        %2178 = vmatpush1.msra.mxu0 %v2141
        %2179 = vmatprep.subr.mxu0 0.0
        %2180 = vmatpush1.msra.mxu0 %v2140
        %2181 = vmatprep.subr.mxu0 0.0
        %2182 = vmatpush1.msra.mxu0 %v2139
        %2183 = vmatprep.subr.mxu0 0.0
        %2184 = vmatpush2.msra.mxu0 0.0
        %2185 = vmatprep.subr.mxu0 0.0
        %2186 = vmatpush2.msra.mxu0 0.0
        %2187 = vmatprep.subr.mxu0 0.0
        %2188 = vmatpush2.msra.mxu0 0.0
        %2189 = vmatprep.subr.mxu0 0.0
        %2190 = vmatpush2.msra.mxu0 0.0
        %2191 = vmatprep.subr.mxu0 0.0
        %2192 = vmatpush2.msra.mxu0 0.0
        %2193 = vmatprep.subr.mxu0 0.0
        %2194 = vmatpush2.msra.mxu0 0.0
        %2195 = vmatprep.subr.mxu0 0.0
        %2196 = vmatpush2.msra.mxu0 0.0
        %2197 = vmatprep.subr.mxu0 0.0
        %2198 = vmatpush2.msra.mxu0 0.0
        %2199 = vmatprep.subr.mxu0 0.0
        %2200 = vmatpush2.msra.mxu0 0.0
        %2201 = vmatprep.subr.mxu0 0.0
        %2202 = vmatpush2.msra.mxu0 0.0
        %2203 = vmatprep.subr.mxu0 0.0
        %2204 = vmatpush2.msra.mxu0 0.0
        %2205 = vmatprep.subr.mxu0 0.0
        %2206 = vmatpush2.msra.mxu0 0.0
        %2207 = vmatprep.subr.mxu0 0.0
        %2208 = vmatpush2.msra.mxu0 0.0
        %2209 = vmatprep.subr.mxu0 0.0
        %2210 = vmatpush2.msra.mxu0 0.0
        %2211 = vmatprep.subr.mxu0 0.0
        %2212 = vmatpush2.msra.mxu0 0.0
        %2213 = vmatprep.subr.mxu0 0.0
        %2214 = vmatpush2.msra.mxu0 0.0
        %2215 = vmatprep.mubr.f32.mxu0 0.0
        %2216 = vmatmul.mubr.f32.gmra.mxu0 %v942
        %v2217 = vpop.f32.mrf.mxu0
        %v2218 = vadd.f32 %v2149, %v2217
        %v2219 = vpop.f32.mrf.mxu0
        %2220 = vmatprep.mubr.f32.mxu0 0.0
        %2221 = vmatmul.mubr.f32.gmra.mxu0 %v945
        %v2222 = vpop.f32.mrf.mxu0
        %v2223 = vadd.f32 %v2149, %v2222
        %v2224 = vpop.f32.mrf.mxu0
        %2225 = vmatprep.mubr.f32.mxu0 0.0
        %2226 = vmatmul.mubr.f32.gmra.mxu0 %v948
        %v2227 = vpop.f32.mrf.mxu0
        %v2228 = vadd.f32 %v2149, %v2227
        %v2229 = vpop.f32.mrf.mxu0
        %2230 = vdwg.mxu0
        %s2231 = scalar_lea.vmem %s7, 64
        %v2232 = vld [vmem:[%s2231] sm:$0xff]
        %v2233 = vld [vmem:[%s2231 + $0x8] sm:$0xff]
        %v2234 = vld [vmem:[%s2231 + $0x10] sm:$0xff]
        %v2235 = vld [vmem:[%s2231 + $0x18] sm:$0xff]
        %s2236 = scalar_lea.vmem %s8, 2
        %v2237 = vld [vmem:[%s2236] sm:$0x1]
        %v2239 = vlaneseq
        %v2240 = vshrl.u32 %v2239, 7
        %v2241 = vsub.s32 0, %v2240
        %v2242 = vrot.slane %v2237, %v2241
        %2244 = vmatprep.subr.mxu0 0.0
        %2245 = vmatpush1.msra.mxu0 0.0
        %2246 = vmatprep.subr.mxu0 0.0
        %2247 = vmatpush1.msra.mxu0 0.0
        %2248 = vmatprep.subr.mxu0 0.0
        %2249 = vmatpush1.msra.mxu0 0.0
        %2250 = vmatprep.subr.mxu0 0.0
        %2251 = vmatpush1.msra.mxu0 0.0
        %2252 = vmatprep.subr.mxu0 0.0
        %2253 = vmatpush1.msra.mxu0 0.0
        %2254 = vmatprep.subr.mxu0 0.0
        %2255 = vmatpush1.msra.mxu0 0.0
        %2256 = vmatprep.subr.mxu0 0.0
        %2257 = vmatpush1.msra.mxu0 0.0
        %2258 = vmatprep.subr.mxu0 0.0
        %2259 = vmatpush1.msra.mxu0 0.0
        %2260 = vmatprep.subr.mxu0 0.0
        %2261 = vmatpush1.msra.mxu0 0.0
        %2262 = vmatprep.subr.mxu0 0.0
        %2263 = vmatpush1.msra.mxu0 0.0
        %2264 = vmatprep.subr.mxu0 0.0
        %2265 = vmatpush1.msra.mxu0 0.0
        %2266 = vmatprep.subr.mxu0 0.0
        %2267 = vmatpush1.msra.mxu0 0.0
        %2268 = vmatprep.subr.mxu0 0.0
        %2269 = vmatpush1.msra.mxu0 %v2235
        %2270 = vmatprep.subr.mxu0 0.0
        %2271 = vmatpush1.msra.mxu0 %v2234
        %2272 = vmatprep.subr.mxu0 0.0
        %2273 = vmatpush1.msra.mxu0 %v2233
        %2274 = vmatprep.subr.mxu0 0.0
        %2275 = vmatpush1.msra.mxu0 %v2232
        %2276 = vmatprep.subr.mxu0 0.0
        %2277 = vmatpush2.msra.mxu0 0.0
        %2278 = vmatprep.subr.mxu0 0.0
        %2279 = vmatpush2.msra.mxu0 0.0
        %2280 = vmatprep.subr.mxu0 0.0
        %2281 = vmatpush2.msra.mxu0 0.0
        %2282 = vmatprep.subr.mxu0 0.0
        %2283 = vmatpush2.msra.mxu0 0.0
        %2284 = vmatprep.subr.mxu0 0.0
        %2285 = vmatpush2.msra.mxu0 0.0
        %2286 = vmatprep.subr.mxu0 0.0
        %2287 = vmatpush2.msra.mxu0 0.0
        %2288 = vmatprep.subr.mxu0 0.0
        %2289 = vmatpush2.msra.mxu0 0.0
        %2290 = vmatprep.subr.mxu0 0.0
        %2291 = vmatpush2.msra.mxu0 0.0
        %2292 = vmatprep.subr.mxu0 0.0
        %2293 = vmatpush2.msra.mxu0 0.0
        %2294 = vmatprep.subr.mxu0 0.0
        %2295 = vmatpush2.msra.mxu0 0.0
        %2296 = vmatprep.subr.mxu0 0.0
        %2297 = vmatpush2.msra.mxu0 0.0
        %2298 = vmatprep.subr.mxu0 0.0
        %2299 = vmatpush2.msra.mxu0 0.0
        %2300 = vmatprep.subr.mxu0 0.0
        %2301 = vmatpush2.msra.mxu0 0.0
        %2302 = vmatprep.subr.mxu0 0.0
        %2303 = vmatpush2.msra.mxu0 0.0
        %2304 = vmatprep.subr.mxu0 0.0
        %2305 = vmatpush2.msra.mxu0 0.0
        %2306 = vmatprep.subr.mxu0 0.0
        %2307 = vmatpush2.msra.mxu0 0.0
        %2308 = vmatprep.mubr.f32.mxu0 0.0
        %2309 = vmatmul.mubr.f32.gmra.mxu0 %v942
        %v2310 = vpop.f32.mrf.mxu0
        %v2311 = vadd.f32 %v2242, %v2310
        %v2312 = vpop.f32.mrf.mxu0
        %2313 = vmatprep.mubr.f32.mxu0 0.0
        %2314 = vmatmul.mubr.f32.gmra.mxu0 %v945
        %v2315 = vpop.f32.mrf.mxu0
        %v2316 = vadd.f32 %v2242, %v2315
        %v2317 = vpop.f32.mrf.mxu0
        %2318 = vmatprep.mubr.f32.mxu0 0.0
        %2319 = vmatmul.mubr.f32.gmra.mxu0 %v948
        %v2320 = vpop.f32.mrf.mxu0
        %v2321 = vadd.f32 %v2242, %v2320
        %v2322 = vpop.f32.mrf.mxu0
        %2323 = vdwg.mxu0
        %s2324 = scalar_lea.vmem %s9, 64
        %v2325 = vld [vmem:[%s2324] sm:$0xff]
        %v2326 = vld [vmem:[%s2324 + $0x8] sm:$0xff]
        %v2327 = vld [vmem:[%s2324 + $0x10] sm:$0xff]
        %v2328 = vld [vmem:[%s2324 + $0x18] sm:$0xff]
        %s2329 = scalar_lea.vmem %s10, 2
        %v2330 = vld [vmem:[%s2329] sm:$0x1]
        %v2332 = vlaneseq
        %v2333 = vshrl.u32 %v2332, 7
        %v2334 = vsub.s32 0, %v2333
        %v2335 = vrot.slane %v2330, %v2334
        %2337 = vmatprep.subr.mxu0 0.0
        %2338 = vmatpush1.msra.mxu0 0.0
        %2339 = vmatprep.subr.mxu0 0.0
        %2340 = vmatpush1.msra.mxu0 0.0
        %2341 = vmatprep.subr.mxu0 0.0
        %2342 = vmatpush1.msra.mxu0 0.0
        %2343 = vmatprep.subr.mxu0 0.0
        %2344 = vmatpush1.msra.mxu0 0.0
        %2345 = vmatprep.subr.mxu0 0.0
        %2346 = vmatpush1.msra.mxu0 0.0
        %2347 = vmatprep.subr.mxu0 0.0
        %2348 = vmatpush1.msra.mxu0 0.0
        %2349 = vmatprep.subr.mxu0 0.0
        %2350 = vmatpush1.msra.mxu0 0.0
        %2351 = vmatprep.subr.mxu0 0.0
        %2352 = vmatpush1.msra.mxu0 0.0
        %2353 = vmatprep.subr.mxu0 0.0
        %2354 = vmatpush1.msra.mxu0 0.0
        %2355 = vmatprep.subr.mxu0 0.0
        %2356 = vmatpush1.msra.mxu0 0.0
        %2357 = vmatprep.subr.mxu0 0.0
        %2358 = vmatpush1.msra.mxu0 0.0
        %2359 = vmatprep.subr.mxu0 0.0
        %2360 = vmatpush1.msra.mxu0 0.0
        %2361 = vmatprep.subr.mxu0 0.0
        %2362 = vmatpush1.msra.mxu0 %v2328
        %2363 = vmatprep.subr.mxu0 0.0
        %2364 = vmatpush1.msra.mxu0 %v2327
        %2365 = vmatprep.subr.mxu0 0.0
        %2366 = vmatpush1.msra.mxu0 %v2326
        %2367 = vmatprep.subr.mxu0 0.0
        %2368 = vmatpush1.msra.mxu0 %v2325
        %2369 = vmatprep.subr.mxu0 0.0
        %2370 = vmatpush2.msra.mxu0 0.0
        %2371 = vmatprep.subr.mxu0 0.0
        %2372 = vmatpush2.msra.mxu0 0.0
        %2373 = vmatprep.subr.mxu0 0.0
        %2374 = vmatpush2.msra.mxu0 0.0
        %2375 = vmatprep.subr.mxu0 0.0
        %2376 = vmatpush2.msra.mxu0 0.0
        %2377 = vmatprep.subr.mxu0 0.0
        %2378 = vmatpush2.msra.mxu0 0.0
        %2379 = vmatprep.subr.mxu0 0.0
        %2380 = vmatpush2.msra.mxu0 0.0
        %2381 = vmatprep.subr.mxu0 0.0
        %2382 = vmatpush2.msra.mxu0 0.0
        %2383 = vmatprep.subr.mxu0 0.0
        %2384 = vmatpush2.msra.mxu0 0.0
        %2385 = vmatprep.subr.mxu0 0.0
        %2386 = vmatpush2.msra.mxu0 0.0
        %2387 = vmatprep.subr.mxu0 0.0
        %2388 = vmatpush2.msra.mxu0 0.0
        %2389 = vmatprep.subr.mxu0 0.0
        %2390 = vmatpush2.msra.mxu0 0.0
        %2391 = vmatprep.subr.mxu0 0.0
        %2392 = vmatpush2.msra.mxu0 0.0
        %2393 = vmatprep.subr.mxu0 0.0
        %2394 = vmatpush2.msra.mxu0 0.0
        %2395 = vmatprep.subr.mxu0 0.0
        %2396 = vmatpush2.msra.mxu0 0.0
        %2397 = vmatprep.subr.mxu0 0.0
        %2398 = vmatpush2.msra.mxu0 0.0
        %2399 = vmatprep.subr.mxu0 0.0
        %2400 = vmatpush2.msra.mxu0 0.0
        %2401 = vmatprep.mubr.f32.mxu0 0.0
        %2402 = vmatmul.mubr.f32.gmra.mxu0 %v942
        %v2403 = vpop.f32.mrf.mxu0
        %v2404 = vadd.f32 %v2335, %v2403
        %v2405 = vpop.f32.mrf.mxu0
        %2406 = vmatprep.mubr.f32.mxu0 0.0
        %2407 = vmatmul.mubr.f32.gmra.mxu0 %v945
        %v2408 = vpop.f32.mrf.mxu0
        %v2409 = vadd.f32 %v2335, %v2408
        %v2410 = vpop.f32.mrf.mxu0
        %2411 = vmatprep.mubr.f32.mxu0 0.0
        %2412 = vmatmul.mubr.f32.gmra.mxu0 %v948
        %v2413 = vpop.f32.mrf.mxu0
        %v2414 = vadd.f32 %v2335, %v2413
        %v2415 = vpop.f32.mrf.mxu0
        %2416 = vdwg.mxu0
        %v2418 = vsel %vm1212, %v2218, 0
        %v2421 = vsel %vm1212, %v2223, 0
        %v2424 = vsel %vm1212, %v2228, 0
        %v2427 = vsel %vm1212, %v2311, 0
        %v2430 = vsel %vm1212, %v2316, 0
        %v2433 = vsel %vm1212, %v2321, 0
        %2435 = vmatprep.subr.mxu0 0.0
        %2436 = vmatpush1.xpose.msra.mxu0 0.0
        %2437 = vmatprep.subr.mxu0 0.0
        %2438 = vmatpush1.xpose.msra.mxu0 0.0
        %2439 = vmatprep.subr.mxu0 0.0
        %2440 = vmatpush1.xpose.msra.mxu0 0.0
        %2441 = vmatprep.subr.mxu0 0.0
        %2442 = vmatpush1.xpose.msra.mxu0 0.0
        %2443 = vmatprep.subr.mxu0 0.0
        %2444 = vmatpush1.xpose.msra.mxu0 0.0
        %2445 = vmatprep.subr.mxu0 0.0
        %2446 = vmatpush1.xpose.msra.mxu0 0.0
        %2447 = vmatprep.subr.mxu0 0.0
        %2448 = vmatpush1.xpose.msra.mxu0 0.0
        %2449 = vmatprep.subr.mxu0 0.0
        %2450 = vmatpush1.xpose.msra.mxu0 0.0
        %2451 = vmatprep.subr.mxu0 0.0
        %2452 = vmatpush1.xpose.msra.mxu0 0.0
        %2453 = vmatprep.subr.mxu0 0.0
        %2454 = vmatpush1.xpose.msra.mxu0 0.0
        %2455 = vmatprep.subr.mxu0 0.0
        %2456 = vmatpush1.xpose.msra.mxu0 0.0
        %2457 = vmatprep.subr.mxu0 0.0
        %2458 = vmatpush1.xpose.msra.mxu0 0.0
        %2459 = vmatprep.subr.mxu0 0.0
        %2460 = vmatpush1.xpose.msra.mxu0 0.0
        %2461 = vmatprep.subr.mxu0 0.0
        %2462 = vmatpush1.xpose.msra.mxu0 %v2433
        %2463 = vmatprep.subr.mxu0 0.0
        %2464 = vmatpush1.xpose.msra.mxu0 %v2430
        %2465 = vmatprep.subr.mxu0 0.0
        %2466 = vmatpush1.xpose.msra.mxu0 %v2427
        %2467 = vmatprep.subr.mxu0 0.0
        %2468 = vmatpush2.xpose.msra.mxu0 0.0
        %2469 = vmatprep.subr.mxu0 0.0
        %2470 = vmatpush2.xpose.msra.mxu0 0.0
        %2471 = vmatprep.subr.mxu0 0.0
        %2472 = vmatpush2.xpose.msra.mxu0 0.0
        %2473 = vmatprep.subr.mxu0 0.0
        %2474 = vmatpush2.xpose.msra.mxu0 0.0
        %2475 = vmatprep.subr.mxu0 0.0
        %2476 = vmatpush2.xpose.msra.mxu0 0.0
        %2477 = vmatprep.subr.mxu0 0.0
        %2478 = vmatpush2.xpose.msra.mxu0 0.0
        %2479 = vmatprep.subr.mxu0 0.0
        %2480 = vmatpush2.xpose.msra.mxu0 0.0
        %2481 = vmatprep.subr.mxu0 0.0
        %2482 = vmatpush2.xpose.msra.mxu0 0.0
        %2483 = vmatprep.subr.mxu0 0.0
        %2484 = vmatpush2.xpose.msra.mxu0 0.0
        %2485 = vmatprep.subr.mxu0 0.0
        %2486 = vmatpush2.xpose.msra.mxu0 0.0
        %2487 = vmatprep.subr.mxu0 0.0
        %2488 = vmatpush2.xpose.msra.mxu0 0.0
        %2489 = vmatprep.subr.mxu0 0.0
        %2490 = vmatpush2.xpose.msra.mxu0 0.0
        %2491 = vmatprep.subr.mxu0 0.0
        %2492 = vmatpush2.xpose.msra.mxu0 0.0
        %2493 = vmatprep.subr.mxu0 0.0
        %2494 = vmatpush2.xpose.msra.mxu0 0.0
        %2495 = vmatprep.subr.mxu0 0.0
        %2496 = vmatpush2.xpose.msra.mxu0 0.0
        %2497 = vmatprep.subr.mxu0 0.0
        %2498 = vmatpush2.xpose.msra.mxu0 0.0
        %2499 = vmatprep.mubr.f32.mxu0 0.0
        %2500 = vmatmul.mubr.f32.gmra.mxu0 %v2418
        %v2501 = vpop.f32.mrf.mxu0
        %v2502 = vadd.f32 0.0, %v2501
        %v2503 = vpop.f32.mrf.mxu0
        %2504 = vmatprep.mubr.f32.mxu0 0.0
        %2505 = vmatmul.mubr.f32.gmra.mxu0 %v2421
        %v2506 = vpop.f32.mrf.mxu0
        %v2507 = vadd.f32 0.0, %v2506
        %v2508 = vpop.f32.mrf.mxu0
        %2509 = vmatprep.mubr.f32.mxu0 0.0
        %2510 = vmatmul.mubr.f32.gmra.mxu0 %v2424
        %v2511 = vpop.f32.mrf.mxu0
        %v2512 = vadd.f32 0.0, %v2511
        %v2513 = vpop.f32.mrf.mxu0
        %2514 = vdwg.mxu0
        %v2515 = vmul.f32 %v2502, 0.35355338
        %v2516 = vmul.f32 %v2507, 0.35355338
        %v2517 = vmul.f32 %v2512, 0.35355338
        %v2518 = vadd.f32 %v2515, %v867
        %v2519 = vadd.f32 %v2516, %v867
        %v2520 = vadd.f32 %v2517, %v867
        %v2521 = vsel %vm1317, %v2518, -inf
        %2522 = vmax.xlane.f32.xlu0 %v2521
        %v2523 = vpop.xlane.xlu0 %2522
        %v2524 = vsel %vm1317, %v2519, -inf
        %2525 = vmax.xlane.f32.xlu0 %v2524
        %v2526 = vpop.xlane.xlu0 %2525
        %v2527 = vsel %vm1317, %v2520, -inf
        %2528 = vmax.xlane.f32.xlu0 %v2527
        %v2529 = vpop.xlane.xlu0 %2528
        %v2530 = vsub.f32 %v2518, %v2523
        %v2531 = vsub.f32 %v2519, %v2526
        %v2532 = vsub.f32 %v2520, %v2529
        %v2533 = vmul.f32 %v2530, 1.442695
        %v2534 = vpow.pop %v2533
        %v2535 = vmul.f32 %v2531, 1.442695
        %v2536 = vpow.pop %v2535
        %v2537 = vmul.f32 %v2532, 1.442695
        %v2538 = vpow.pop %v2537
        %v2539 = vsel %vm1317, %v2534, 0.0
        %2540 = vadd.xlane.f32.xlu0 %v2539
        %v2541 = vpop.xlane.xlu0 %2540
        %v2542 = vsel %vm1317, %v2536, 0.0
        %2543 = vadd.xlane.f32.xlu0 %v2542
        %v2544 = vpop.xlane.xlu0 %2543
        %v2545 = vsel %vm1317, %v2538, 0.0
        %2546 = vadd.xlane.f32.xlu0 %v2545
        %v2547 = vpop.xlane.xlu0 %2546
        %v2548 = vrcp.pop %v2541
        %v2549 = vmul.f32 %v2534, %v2548
        %v2550 = vrcp.pop %v2544
        %v2551 = vmul.f32 %v2536, %v2550
        %v2552 = vrcp.pop %v2547
        %v2553 = vmul.f32 %v2538, %v2552
        %v2555 = vsel %vm1317, %v2549, 0
        %v2558 = vsel %vm1317, %v2551, 0
        %v2561 = vsel %vm1317, %v2553, 0
        %2563 = vmatprep.subr.mxu0 0.0
        %2564 = vmatpush1.msra.mxu0 0.0
        %2565 = vmatprep.subr.mxu0 0.0
        %2566 = vmatpush1.msra.mxu0 0.0
        %2567 = vmatprep.subr.mxu0 0.0
        %2568 = vmatpush1.msra.mxu0 0.0
        %2569 = vmatprep.subr.mxu0 0.0
        %2570 = vmatpush1.msra.mxu0 0.0
        %2571 = vmatprep.subr.mxu0 0.0
        %2572 = vmatpush1.msra.mxu0 0.0
        %2573 = vmatprep.subr.mxu0 0.0
        %2574 = vmatpush1.msra.mxu0 0.0
        %2575 = vmatprep.subr.mxu0 0.0
        %2576 = vmatpush1.msra.mxu0 0.0
        %2577 = vmatprep.subr.mxu0 0.0
        %2578 = vmatpush1.msra.mxu0 0.0
        %2579 = vmatprep.subr.mxu0 0.0
        %2580 = vmatpush1.msra.mxu0 0.0
        %2581 = vmatprep.subr.mxu0 0.0
        %2582 = vmatpush1.msra.mxu0 0.0
        %2583 = vmatprep.subr.mxu0 0.0
        %2584 = vmatpush1.msra.mxu0 0.0
        %2585 = vmatprep.subr.mxu0 0.0
        %2586 = vmatpush1.msra.mxu0 0.0
        %2587 = vmatprep.subr.mxu0 0.0
        %2588 = vmatpush1.msra.mxu0 0.0
        %2589 = vmatprep.subr.mxu0 0.0
        %2590 = vmatpush1.msra.mxu0 %v2414
        %2591 = vmatprep.subr.mxu0 0.0
        %2592 = vmatpush1.msra.mxu0 %v2409
        %2593 = vmatprep.subr.mxu0 0.0
        %2594 = vmatpush1.msra.mxu0 %v2404
        %2595 = vmatprep.subr.mxu0 0.0
        %2596 = vmatpush2.msra.mxu0 0.0
        %2597 = vmatprep.subr.mxu0 0.0
        %2598 = vmatpush2.msra.mxu0 0.0
        %2599 = vmatprep.subr.mxu0 0.0
        %2600 = vmatpush2.msra.mxu0 0.0
        %2601 = vmatprep.subr.mxu0 0.0
        %2602 = vmatpush2.msra.mxu0 0.0
        %2603 = vmatprep.subr.mxu0 0.0
        %2604 = vmatpush2.msra.mxu0 0.0
        %2605 = vmatprep.subr.mxu0 0.0
        %2606 = vmatpush2.msra.mxu0 0.0
        %2607 = vmatprep.subr.mxu0 0.0
        %2608 = vmatpush2.msra.mxu0 0.0
        %2609 = vmatprep.subr.mxu0 0.0
        %2610 = vmatpush2.msra.mxu0 0.0
        %2611 = vmatprep.subr.mxu0 0.0
        %2612 = vmatpush2.msra.mxu0 0.0
        %2613 = vmatprep.subr.mxu0 0.0
        %2614 = vmatpush2.msra.mxu0 0.0
        %2615 = vmatprep.subr.mxu0 0.0
        %2616 = vmatpush2.msra.mxu0 0.0
        %2617 = vmatprep.subr.mxu0 0.0
        %2618 = vmatpush2.msra.mxu0 0.0
        %2619 = vmatprep.subr.mxu0 0.0
        %2620 = vmatpush2.msra.mxu0 0.0
        %2621 = vmatprep.subr.mxu0 0.0
        %2622 = vmatpush2.msra.mxu0 0.0
        %2623 = vmatprep.subr.mxu0 0.0
        %2624 = vmatpush2.msra.mxu0 0.0
        %2625 = vmatprep.subr.mxu0 0.0
        %2626 = vmatpush2.msra.mxu0 0.0
        %2627 = vmatprep.mubr.f32.mxu0 0.0
        %2628 = vmatmul.mubr.f32.gmra.mxu0 %v2555
        %v2629 = vpop.f32.mrf.mxu0
        %v2630 = vadd.f32 0.0, %v2629
        %v2631 = vpop.f32.mrf.mxu0
        %2632 = vmatprep.mubr.f32.mxu0 0.0
        %2633 = vmatmul.mubr.f32.gmra.mxu0 %v2558
        %v2634 = vpop.f32.mrf.mxu0
        %v2635 = vadd.f32 0.0, %v2634
        %v2636 = vpop.f32.mrf.mxu0
        %2637 = vmatprep.mubr.f32.mxu0 0.0
        %2638 = vmatmul.mubr.f32.gmra.mxu0 %v2561
        %v2639 = vpop.f32.mrf.mxu0
        %v2640 = vadd.f32 0.0, %v2639
        %v2641 = vpop.f32.mrf.mxu0
        %2642 = vdwg.mxu0
        %s2643 = scalar_lea.vmem %s11, 16
        %v2644 = vld [vmem:[%s2643] sm:$0xff]
        %v2646 = vsel %vm1212, %v2630, 0
        %v2649 = vsel %vm1212, %v2635, 0
        %v2652 = vsel %vm1212, %v2640, 0
        %2654 = vmatprep.subr.mxu0 0.0
        %2655 = vmatpush1.msra.mxu0 0.0
        %2656 = vmatprep.subr.mxu0 0.0
        %2657 = vmatpush1.msra.mxu0 0.0
        %2658 = vmatprep.subr.mxu0 0.0
        %2659 = vmatpush1.msra.mxu0 0.0
        %2660 = vmatprep.subr.mxu0 0.0
        %2661 = vmatpush1.msra.mxu0 0.0
        %2662 = vmatprep.subr.mxu0 0.0
        %2663 = vmatpush1.msra.mxu0 0.0
        %2664 = vmatprep.subr.mxu0 0.0
        %2665 = vmatpush1.msra.mxu0 0.0
        %2666 = vmatprep.subr.mxu0 0.0
        %2667 = vmatpush1.msra.mxu0 0.0
        %2668 = vmatprep.subr.mxu0 0.0
        %2669 = vmatpush1.msra.mxu0 0.0
        %2670 = vmatprep.subr.mxu0 0.0
        %2671 = vmatpush1.msra.mxu0 0.0
        %2672 = vmatprep.subr.mxu0 0.0
        %2673 = vmatpush1.msra.mxu0 0.0
        %2674 = vmatprep.subr.mxu0 0.0
        %2675 = vmatpush1.msra.mxu0 0.0
        %2676 = vmatprep.subr.mxu0 0.0
        %2677 = vmatpush1.msra.mxu0 0.0
        %2678 = vmatprep.subr.mxu0 0.0
        %2679 = vmatpush1.msra.mxu0 0.0
        %2680 = vmatprep.subr.mxu0 0.0
        %2681 = vmatpush1.msra.mxu0 0.0
        %2682 = vmatprep.subr.mxu0 0.0
        %2683 = vmatpush1.msra.mxu0 0.0
        %2684 = vmatprep.subr.mxu0 0.0
        %2685 = vmatpush1.msra.mxu0 %v2644
        %2686 = vmatprep.subr.mxu0 0.0
        %2687 = vmatpush2.msra.mxu0 0.0
        %2688 = vmatprep.subr.mxu0 0.0
        %2689 = vmatpush2.msra.mxu0 0.0
        %2690 = vmatprep.subr.mxu0 0.0
        %2691 = vmatpush2.msra.mxu0 0.0
        %2692 = vmatprep.subr.mxu0 0.0
        %2693 = vmatpush2.msra.mxu0 0.0
        %2694 = vmatprep.subr.mxu0 0.0
        %2695 = vmatpush2.msra.mxu0 0.0
        %2696 = vmatprep.subr.mxu0 0.0
        %2697 = vmatpush2.msra.mxu0 0.0
        %2698 = vmatprep.subr.mxu0 0.0
        %2699 = vmatpush2.msra.mxu0 0.0
        %2700 = vmatprep.subr.mxu0 0.0
        %2701 = vmatpush2.msra.mxu0 0.0
        %2702 = vmatprep.subr.mxu0 0.0
        %2703 = vmatpush2.msra.mxu0 0.0
        %2704 = vmatprep.subr.mxu0 0.0
        %2705 = vmatpush2.msra.mxu0 0.0
        %2706 = vmatprep.subr.mxu0 0.0
        %2707 = vmatpush2.msra.mxu0 0.0
        %2708 = vmatprep.subr.mxu0 0.0
        %2709 = vmatpush2.msra.mxu0 0.0
        %2710 = vmatprep.subr.mxu0 0.0
        %2711 = vmatpush2.msra.mxu0 0.0
        %2712 = vmatprep.subr.mxu0 0.0
        %2713 = vmatpush2.msra.mxu0 0.0
        %2714 = vmatprep.subr.mxu0 0.0
        %2715 = vmatpush2.msra.mxu0 0.0
        %2716 = vmatprep.subr.mxu0 0.0
        %2717 = vmatpush2.msra.mxu0 0.0
        %2718 = vmatprep.mubr.f32.mxu0 0.0
        %2719 = vmatmul.mubr.f32.gmra.mxu0 %v2646
        %v2720 = vpop.f32.mrf.mxu0
        %v2721 = vadd.f32 0.0, %v2720
        %v2722 = vpop.f32.mrf.mxu0
        %2723 = vmatprep.mubr.f32.mxu0 0.0
        %2724 = vmatmul.mubr.f32.gmra.mxu0 %v2649
        %v2725 = vpop.f32.mrf.mxu0
        %v2726 = vadd.f32 0.0, %v2725
        %v2727 = vpop.f32.mrf.mxu0
        %2728 = vmatprep.mubr.f32.mxu0 0.0
        %2729 = vmatmul.mubr.f32.gmra.mxu0 %v2652
        %v2730 = vpop.f32.mrf.mxu0
        %v2731 = vadd.f32 0.0, %v2730
        %v2732 = vpop.f32.mrf.mxu0
        %2733 = vdwg.mxu0
        %v2734 = vadd.f32 %v2135, %v2721
        %v2735 = vadd.f32 %v2136, %v2726
        %v2736 = vadd.f32 %v2137, %v2731
        %s2737 = scalar_lea.vmem %s5, 96
        %v2738 = vld [vmem:[%s2737] sm:$0xff]
        %v2739 = vld [vmem:[%s2737 + $0x8] sm:$0xff]
        %v2740 = vld [vmem:[%s2737 + $0x10] sm:$0xff]
        %v2741 = vld [vmem:[%s2737 + $0x18] sm:$0xff]
        %s2742 = scalar_lea.vmem %s6, 3
        %v2743 = vld [vmem:[%s2742] sm:$0x1]
        %v2745 = vlaneseq
        %v2746 = vshrl.u32 %v2745, 7
        %v2747 = vsub.s32 0, %v2746
        %v2748 = vrot.slane %v2743, %v2747
        %2750 = vmatprep.subr.mxu0 0.0
        %2751 = vmatpush1.msra.mxu0 0.0
        %2752 = vmatprep.subr.mxu0 0.0
        %2753 = vmatpush1.msra.mxu0 0.0
        %2754 = vmatprep.subr.mxu0 0.0
        %2755 = vmatpush1.msra.mxu0 0.0
        %2756 = vmatprep.subr.mxu0 0.0
        %2757 = vmatpush1.msra.mxu0 0.0
        %2758 = vmatprep.subr.mxu0 0.0
        %2759 = vmatpush1.msra.mxu0 0.0
        %2760 = vmatprep.subr.mxu0 0.0
        %2761 = vmatpush1.msra.mxu0 0.0
        %2762 = vmatprep.subr.mxu0 0.0
        %2763 = vmatpush1.msra.mxu0 0.0
        %2764 = vmatprep.subr.mxu0 0.0
        %2765 = vmatpush1.msra.mxu0 0.0
        %2766 = vmatprep.subr.mxu0 0.0
        %2767 = vmatpush1.msra.mxu0 0.0
        %2768 = vmatprep.subr.mxu0 0.0
        %2769 = vmatpush1.msra.mxu0 0.0
        %2770 = vmatprep.subr.mxu0 0.0
        %2771 = vmatpush1.msra.mxu0 0.0
        %2772 = vmatprep.subr.mxu0 0.0
        %2773 = vmatpush1.msra.mxu0 0.0
        %2774 = vmatprep.subr.mxu0 0.0
        %2775 = vmatpush1.msra.mxu0 %v2741
        %2776 = vmatprep.subr.mxu0 0.0
        %2777 = vmatpush1.msra.mxu0 %v2740
        %2778 = vmatprep.subr.mxu0 0.0
        %2779 = vmatpush1.msra.mxu0 %v2739
        %2780 = vmatprep.subr.mxu0 0.0
        %2781 = vmatpush1.msra.mxu0 %v2738
        %2782 = vmatprep.subr.mxu0 0.0
        %2783 = vmatpush2.msra.mxu0 0.0
        %2784 = vmatprep.subr.mxu0 0.0
        %2785 = vmatpush2.msra.mxu0 0.0
        %2786 = vmatprep.subr.mxu0 0.0
        %2787 = vmatpush2.msra.mxu0 0.0
        %2788 = vmatprep.subr.mxu0 0.0
        %2789 = vmatpush2.msra.mxu0 0.0
        %2790 = vmatprep.subr.mxu0 0.0
        %2791 = vmatpush2.msra.mxu0 0.0
        %2792 = vmatprep.subr.mxu0 0.0
        %2793 = vmatpush2.msra.mxu0 0.0
        %2794 = vmatprep.subr.mxu0 0.0
        %2795 = vmatpush2.msra.mxu0 0.0
        %2796 = vmatprep.subr.mxu0 0.0
        %2797 = vmatpush2.msra.mxu0 0.0
        %2798 = vmatprep.subr.mxu0 0.0
        %2799 = vmatpush2.msra.mxu0 0.0
        %2800 = vmatprep.subr.mxu0 0.0
        %2801 = vmatpush2.msra.mxu0 0.0
        %2802 = vmatprep.subr.mxu0 0.0
        %2803 = vmatpush2.msra.mxu0 0.0
        %2804 = vmatprep.subr.mxu0 0.0
        %2805 = vmatpush2.msra.mxu0 0.0
        %2806 = vmatprep.subr.mxu0 0.0
        %2807 = vmatpush2.msra.mxu0 0.0
        %2808 = vmatprep.subr.mxu0 0.0
        %2809 = vmatpush2.msra.mxu0 0.0
        %2810 = vmatprep.subr.mxu0 0.0
        %2811 = vmatpush2.msra.mxu0 0.0
        %2812 = vmatprep.subr.mxu0 0.0
        %2813 = vmatpush2.msra.mxu0 0.0
        %2814 = vmatprep.mubr.f32.mxu0 0.0
        %2815 = vmatmul.mubr.f32.gmra.mxu0 %v942
        %v2816 = vpop.f32.mrf.mxu0
        %v2817 = vadd.f32 %v2748, %v2816
        %v2818 = vpop.f32.mrf.mxu0
        %2819 = vmatprep.mubr.f32.mxu0 0.0
        %2820 = vmatmul.mubr.f32.gmra.mxu0 %v945
        %v2821 = vpop.f32.mrf.mxu0
        %v2822 = vadd.f32 %v2748, %v2821
        %v2823 = vpop.f32.mrf.mxu0
        %2824 = vmatprep.mubr.f32.mxu0 0.0
        %2825 = vmatmul.mubr.f32.gmra.mxu0 %v948
        %v2826 = vpop.f32.mrf.mxu0
        %v2827 = vadd.f32 %v2748, %v2826
        %v2828 = vpop.f32.mrf.mxu0
        %2829 = vdwg.mxu0
        %s2830 = scalar_lea.vmem %s7, 96
        %v2831 = vld [vmem:[%s2830] sm:$0xff]
        %v2832 = vld [vmem:[%s2830 + $0x8] sm:$0xff]
        %v2833 = vld [vmem:[%s2830 + $0x10] sm:$0xff]
        %v2834 = vld [vmem:[%s2830 + $0x18] sm:$0xff]
        %s2835 = scalar_lea.vmem %s8, 3
        %v2836 = vld [vmem:[%s2835] sm:$0x1]
        %v2838 = vlaneseq
        %v2839 = vshrl.u32 %v2838, 7
        %v2840 = vsub.s32 0, %v2839
        %v2841 = vrot.slane %v2836, %v2840
        %2843 = vmatprep.subr.mxu0 0.0
        %2844 = vmatpush1.msra.mxu0 0.0
        %2845 = vmatprep.subr.mxu0 0.0
        %2846 = vmatpush1.msra.mxu0 0.0
        %2847 = vmatprep.subr.mxu0 0.0
        %2848 = vmatpush1.msra.mxu0 0.0
        %2849 = vmatprep.subr.mxu0 0.0
        %2850 = vmatpush1.msra.mxu0 0.0
        %2851 = vmatprep.subr.mxu0 0.0
        %2852 = vmatpush1.msra.mxu0 0.0
        %2853 = vmatprep.subr.mxu0 0.0
        %2854 = vmatpush1.msra.mxu0 0.0
        %2855 = vmatprep.subr.mxu0 0.0
        %2856 = vmatpush1.msra.mxu0 0.0
        %2857 = vmatprep.subr.mxu0 0.0
        %2858 = vmatpush1.msra.mxu0 0.0
        %2859 = vmatprep.subr.mxu0 0.0
        %2860 = vmatpush1.msra.mxu0 0.0
        %2861 = vmatprep.subr.mxu0 0.0
        %2862 = vmatpush1.msra.mxu0 0.0
        %2863 = vmatprep.subr.mxu0 0.0
        %2864 = vmatpush1.msra.mxu0 0.0
        %2865 = vmatprep.subr.mxu0 0.0
        %2866 = vmatpush1.msra.mxu0 0.0
        %2867 = vmatprep.subr.mxu0 0.0
        %2868 = vmatpush1.msra.mxu0 %v2834
        %2869 = vmatprep.subr.mxu0 0.0
        %2870 = vmatpush1.msra.mxu0 %v2833
        %2871 = vmatprep.subr.mxu0 0.0
        %2872 = vmatpush1.msra.mxu0 %v2832
        %2873 = vmatprep.subr.mxu0 0.0
        %2874 = vmatpush1.msra.mxu0 %v2831
        %2875 = vmatprep.subr.mxu0 0.0
        %2876 = vmatpush2.msra.mxu0 0.0
        %2877 = vmatprep.subr.mxu0 0.0
        %2878 = vmatpush2.msra.mxu0 0.0
        %2879 = vmatprep.subr.mxu0 0.0
        %2880 = vmatpush2.msra.mxu0 0.0
        %2881 = vmatprep.subr.mxu0 0.0
        %2882 = vmatpush2.msra.mxu0 0.0
        %2883 = vmatprep.subr.mxu0 0.0
        %2884 = vmatpush2.msra.mxu0 0.0
        %2885 = vmatprep.subr.mxu0 0.0
        %2886 = vmatpush2.msra.mxu0 0.0
        %2887 = vmatprep.subr.mxu0 0.0
        %2888 = vmatpush2.msra.mxu0 0.0
        %2889 = vmatprep.subr.mxu0 0.0
        %2890 = vmatpush2.msra.mxu0 0.0
        %2891 = vmatprep.subr.mxu0 0.0
        %2892 = vmatpush2.msra.mxu0 0.0
        %2893 = vmatprep.subr.mxu0 0.0
        %2894 = vmatpush2.msra.mxu0 0.0
        %2895 = vmatprep.subr.mxu0 0.0
        %2896 = vmatpush2.msra.mxu0 0.0
        %2897 = vmatprep.subr.mxu0 0.0
        %2898 = vmatpush2.msra.mxu0 0.0
        %2899 = vmatprep.subr.mxu0 0.0
        %2900 = vmatpush2.msra.mxu0 0.0
        %2901 = vmatprep.subr.mxu0 0.0
        %2902 = vmatpush2.msra.mxu0 0.0
        %2903 = vmatprep.subr.mxu0 0.0
        %2904 = vmatpush2.msra.mxu0 0.0
        %2905 = vmatprep.subr.mxu0 0.0
        %2906 = vmatpush2.msra.mxu0 0.0
        %2907 = vmatprep.mubr.f32.mxu0 0.0
        %2908 = vmatmul.mubr.f32.gmra.mxu0 %v942
        %v2909 = vpop.f32.mrf.mxu0
        %v2910 = vadd.f32 %v2841, %v2909
        %v2911 = vpop.f32.mrf.mxu0
        %2912 = vmatprep.mubr.f32.mxu0 0.0
        %2913 = vmatmul.mubr.f32.gmra.mxu0 %v945
        %v2914 = vpop.f32.mrf.mxu0
        %v2915 = vadd.f32 %v2841, %v2914
        %v2916 = vpop.f32.mrf.mxu0
        %2917 = vmatprep.mubr.f32.mxu0 0.0
        %2918 = vmatmul.mubr.f32.gmra.mxu0 %v948
        %v2919 = vpop.f32.mrf.mxu0
        %v2920 = vadd.f32 %v2841, %v2919
        %v2921 = vpop.f32.mrf.mxu0
        %2922 = vdwg.mxu0
        %s2923 = scalar_lea.vmem %s9, 96
        %v2924 = vld [vmem:[%s2923] sm:$0xff]
        %v2925 = vld [vmem:[%s2923 + $0x8] sm:$0xff]
        %v2926 = vld [vmem:[%s2923 + $0x10] sm:$0xff]
        %v2927 = vld [vmem:[%s2923 + $0x18] sm:$0xff]
        %s2928 = scalar_lea.vmem %s10, 3
        %v2929 = vld [vmem:[%s2928] sm:$0x1]
        %v2931 = vlaneseq
        %v2932 = vshrl.u32 %v2931, 7
        %v2933 = vsub.s32 0, %v2932
        %v2934 = vrot.slane %v2929, %v2933
        %2936 = vmatprep.subr.mxu0 0.0
        %2937 = vmatpush1.msra.mxu0 0.0
        %2938 = vmatprep.subr.mxu0 0.0
        %2939 = vmatpush1.msra.mxu0 0.0
        %2940 = vmatprep.subr.mxu0 0.0
        %2941 = vmatpush1.msra.mxu0 0.0
        %2942 = vmatprep.subr.mxu0 0.0
        %2943 = vmatpush1.msra.mxu0 0.0
        %2944 = vmatprep.subr.mxu0 0.0
        %2945 = vmatpush1.msra.mxu0 0.0
        %2946 = vmatprep.subr.mxu0 0.0
        %2947 = vmatpush1.msra.mxu0 0.0
        %2948 = vmatprep.subr.mxu0 0.0
        %2949 = vmatpush1.msra.mxu0 0.0
        %2950 = vmatprep.subr.mxu0 0.0
        %2951 = vmatpush1.msra.mxu0 0.0
        %2952 = vmatprep.subr.mxu0 0.0
        %2953 = vmatpush1.msra.mxu0 0.0
        %2954 = vmatprep.subr.mxu0 0.0
        %2955 = vmatpush1.msra.mxu0 0.0
        %2956 = vmatprep.subr.mxu0 0.0
        %2957 = vmatpush1.msra.mxu0 0.0
        %2958 = vmatprep.subr.mxu0 0.0
        %2959 = vmatpush1.msra.mxu0 0.0
        %2960 = vmatprep.subr.mxu0 0.0
        %2961 = vmatpush1.msra.mxu0 %v2927
        %2962 = vmatprep.subr.mxu0 0.0
        %2963 = vmatpush1.msra.mxu0 %v2926
        %2964 = vmatprep.subr.mxu0 0.0
        %2965 = vmatpush1.msra.mxu0 %v2925
        %2966 = vmatprep.subr.mxu0 0.0
        %2967 = vmatpush1.msra.mxu0 %v2924
        %2968 = vmatprep.subr.mxu0 0.0
        %2969 = vmatpush2.msra.mxu0 0.0
        %2970 = vmatprep.subr.mxu0 0.0
        %2971 = vmatpush2.msra.mxu0 0.0
        %2972 = vmatprep.subr.mxu0 0.0
        %2973 = vmatpush2.msra.mxu0 0.0
        %2974 = vmatprep.subr.mxu0 0.0
        %2975 = vmatpush2.msra.mxu0 0.0
        %2976 = vmatprep.subr.mxu0 0.0
        %2977 = vmatpush2.msra.mxu0 0.0
        %2978 = vmatprep.subr.mxu0 0.0
        %2979 = vmatpush2.msra.mxu0 0.0
        %2980 = vmatprep.subr.mxu0 0.0
        %2981 = vmatpush2.msra.mxu0 0.0
        %2982 = vmatprep.subr.mxu0 0.0
        %2983 = vmatpush2.msra.mxu0 0.0
        %2984 = vmatprep.subr.mxu0 0.0
        %2985 = vmatpush2.msra.mxu0 0.0
        %2986 = vmatprep.subr.mxu0 0.0
        %2987 = vmatpush2.msra.mxu0 0.0
        %2988 = vmatprep.subr.mxu0 0.0
        %2989 = vmatpush2.msra.mxu0 0.0
        %2990 = vmatprep.subr.mxu0 0.0
        %2991 = vmatpush2.msra.mxu0 0.0
        %2992 = vmatprep.subr.mxu0 0.0
        %2993 = vmatpush2.msra.mxu0 0.0
        %2994 = vmatprep.subr.mxu0 0.0
        %2995 = vmatpush2.msra.mxu0 0.0
        %2996 = vmatprep.subr.mxu0 0.0
        %2997 = vmatpush2.msra.mxu0 0.0
        %2998 = vmatprep.subr.mxu0 0.0
        %2999 = vmatpush2.msra.mxu0 0.0
        %3000 = vmatprep.mubr.f32.mxu0 0.0
        %3001 = vmatmul.mubr.f32.gmra.mxu0 %v942
        %v3002 = vpop.f32.mrf.mxu0
        %v3003 = vadd.f32 %v2934, %v3002
        %v3004 = vpop.f32.mrf.mxu0
        %3005 = vmatprep.mubr.f32.mxu0 0.0
        %3006 = vmatmul.mubr.f32.gmra.mxu0 %v945
        %v3007 = vpop.f32.mrf.mxu0
        %v3008 = vadd.f32 %v2934, %v3007
        %v3009 = vpop.f32.mrf.mxu0
        %3010 = vmatprep.mubr.f32.mxu0 0.0
        %3011 = vmatmul.mubr.f32.gmra.mxu0 %v948
        %v3012 = vpop.f32.mrf.mxu0
        %v3013 = vadd.f32 %v2934, %v3012
        %v3014 = vpop.f32.mrf.mxu0
        %3015 = vdwg.mxu0
        %v3017 = vsel %vm1212, %v2817, 0
        %v3020 = vsel %vm1212, %v2822, 0
        %v3023 = vsel %vm1212, %v2827, 0
        %v3026 = vsel %vm1212, %v2910, 0
        %v3029 = vsel %vm1212, %v2915, 0
        %v3032 = vsel %vm1212, %v2920, 0
        %3034 = vmatprep.subr.mxu0 0.0
        %3035 = vmatpush1.xpose.msra.mxu0 0.0
        %3036 = vmatprep.subr.mxu0 0.0
        %3037 = vmatpush1.xpose.msra.mxu0 0.0
        %3038 = vmatprep.subr.mxu0 0.0
        %3039 = vmatpush1.xpose.msra.mxu0 0.0
        %3040 = vmatprep.subr.mxu0 0.0
        %3041 = vmatpush1.xpose.msra.mxu0 0.0
        %3042 = vmatprep.subr.mxu0 0.0
        %3043 = vmatpush1.xpose.msra.mxu0 0.0
        %3044 = vmatprep.subr.mxu0 0.0
        %3045 = vmatpush1.xpose.msra.mxu0 0.0
        %3046 = vmatprep.subr.mxu0 0.0
        %3047 = vmatpush1.xpose.msra.mxu0 0.0
        %3048 = vmatprep.subr.mxu0 0.0
        %3049 = vmatpush1.xpose.msra.mxu0 0.0
        %3050 = vmatprep.subr.mxu0 0.0
        %3051 = vmatpush1.xpose.msra.mxu0 0.0
        %3052 = vmatprep.subr.mxu0 0.0
        %3053 = vmatpush1.xpose.msra.mxu0 0.0
        %3054 = vmatprep.subr.mxu0 0.0
        %3055 = vmatpush1.xpose.msra.mxu0 0.0
        %3056 = vmatprep.subr.mxu0 0.0
        %3057 = vmatpush1.xpose.msra.mxu0 0.0
        %3058 = vmatprep.subr.mxu0 0.0
        %3059 = vmatpush1.xpose.msra.mxu0 0.0
        %3060 = vmatprep.subr.mxu0 0.0
        %3061 = vmatpush1.xpose.msra.mxu0 %v3032
        %3062 = vmatprep.subr.mxu0 0.0
        %3063 = vmatpush1.xpose.msra.mxu0 %v3029
        %3064 = vmatprep.subr.mxu0 0.0
        %3065 = vmatpush1.xpose.msra.mxu0 %v3026
        %3066 = vmatprep.subr.mxu0 0.0
        %3067 = vmatpush2.xpose.msra.mxu0 0.0
        %3068 = vmatprep.subr.mxu0 0.0
        %3069 = vmatpush2.xpose.msra.mxu0 0.0
        %3070 = vmatprep.subr.mxu0 0.0
        %3071 = vmatpush2.xpose.msra.mxu0 0.0
        %3072 = vmatprep.subr.mxu0 0.0
        %3073 = vmatpush2.xpose.msra.mxu0 0.0
        %3074 = vmatprep.subr.mxu0 0.0
        %3075 = vmatpush2.xpose.msra.mxu0 0.0
        %3076 = vmatprep.subr.mxu0 0.0
        %3077 = vmatpush2.xpose.msra.mxu0 0.0
        %3078 = vmatprep.subr.mxu0 0.0
        %3079 = vmatpush2.xpose.msra.mxu0 0.0
        %3080 = vmatprep.subr.mxu0 0.0
        %3081 = vmatpush2.xpose.msra.mxu0 0.0
        %3082 = vmatprep.subr.mxu0 0.0
        %3083 = vmatpush2.xpose.msra.mxu0 0.0
        %3084 = vmatprep.subr.mxu0 0.0
        %3085 = vmatpush2.xpose.msra.mxu0 0.0
        %3086 = vmatprep.subr.mxu0 0.0
        %3087 = vmatpush2.xpose.msra.mxu0 0.0
        %3088 = vmatprep.subr.mxu0 0.0
        %3089 = vmatpush2.xpose.msra.mxu0 0.0
        %3090 = vmatprep.subr.mxu0 0.0
        %3091 = vmatpush2.xpose.msra.mxu0 0.0
        %3092 = vmatprep.subr.mxu0 0.0
        %3093 = vmatpush2.xpose.msra.mxu0 0.0
        %3094 = vmatprep.subr.mxu0 0.0
        %3095 = vmatpush2.xpose.msra.mxu0 0.0
        %3096 = vmatprep.subr.mxu0 0.0
        %3097 = vmatpush2.xpose.msra.mxu0 0.0
        %3098 = vmatprep.mubr.f32.mxu0 0.0
        %3099 = vmatmul.mubr.f32.gmra.mxu0 %v3017
        %v3100 = vpop.f32.mrf.mxu0
        %v3101 = vadd.f32 0.0, %v3100
        %v3102 = vpop.f32.mrf.mxu0
        %3103 = vmatprep.mubr.f32.mxu0 0.0
        %3104 = vmatmul.mubr.f32.gmra.mxu0 %v3020
        %v3105 = vpop.f32.mrf.mxu0
        %v3106 = vadd.f32 0.0, %v3105
        %v3107 = vpop.f32.mrf.mxu0
        %3108 = vmatprep.mubr.f32.mxu0 0.0
        %3109 = vmatmul.mubr.f32.gmra.mxu0 %v3023
        %v3110 = vpop.f32.mrf.mxu0
        %v3111 = vadd.f32 0.0, %v3110
        %v3112 = vpop.f32.mrf.mxu0
        %3113 = vdwg.mxu0
        %v3114 = vmul.f32 %v3101, 0.35355338
        %v3115 = vmul.f32 %v3106, 0.35355338
        %v3116 = vmul.f32 %v3111, 0.35355338
        %v3117 = vadd.f32 %v3114, %v867
        %v3118 = vadd.f32 %v3115, %v867
        %v3119 = vadd.f32 %v3116, %v867
        %v3120 = vsel %vm1317, %v3117, -inf
        %3121 = vmax.xlane.f32.xlu0 %v3120
        %v3122 = vpop.xlane.xlu0 %3121
        %v3123 = vsel %vm1317, %v3118, -inf
        %3124 = vmax.xlane.f32.xlu0 %v3123
        %v3125 = vpop.xlane.xlu0 %3124
        %v3126 = vsel %vm1317, %v3119, -inf
        %3127 = vmax.xlane.f32.xlu0 %v3126
        %v3128 = vpop.xlane.xlu0 %3127
        %v3129 = vsub.f32 %v3117, %v3122
        %v3130 = vsub.f32 %v3118, %v3125
        %v3131 = vsub.f32 %v3119, %v3128
        %v3132 = vmul.f32 %v3129, 1.442695
        %v3133 = vpow.pop %v3132
        %v3134 = vmul.f32 %v3130, 1.442695
        %v3135 = vpow.pop %v3134
        %v3136 = vmul.f32 %v3131, 1.442695
        %v3137 = vpow.pop %v3136
        %v3138 = vsel %vm1317, %v3133, 0.0
        %3139 = vadd.xlane.f32.xlu0 %v3138
        %v3140 = vpop.xlane.xlu0 %3139
        %v3141 = vsel %vm1317, %v3135, 0.0
        %3142 = vadd.xlane.f32.xlu0 %v3141
        %v3143 = vpop.xlane.xlu0 %3142
        %v3144 = vsel %vm1317, %v3137, 0.0
        %3145 = vadd.xlane.f32.xlu0 %v3144
        %v3146 = vpop.xlane.xlu0 %3145
        %v3147 = vrcp.pop %v3140
        %v3148 = vmul.f32 %v3133, %v3147
        %v3149 = vrcp.pop %v3143
        %v3150 = vmul.f32 %v3135, %v3149
        %v3151 = vrcp.pop %v3146
        %v3152 = vmul.f32 %v3137, %v3151
        %v3154 = vsel %vm1317, %v3148, 0
        %v3157 = vsel %vm1317, %v3150, 0
        %v3160 = vsel %vm1317, %v3152, 0
        %3162 = vmatprep.subr.mxu0 0.0
        %3163 = vmatpush1.msra.mxu0 0.0
        %3164 = vmatprep.subr.mxu0 0.0
        %3165 = vmatpush1.msra.mxu0 0.0
        %3166 = vmatprep.subr.mxu0 0.0
        %3167 = vmatpush1.msra.mxu0 0.0
        %3168 = vmatprep.subr.mxu0 0.0
        %3169 = vmatpush1.msra.mxu0 0.0
        %3170 = vmatprep.subr.mxu0 0.0
        %3171 = vmatpush1.msra.mxu0 0.0
        %3172 = vmatprep.subr.mxu0 0.0
        %3173 = vmatpush1.msra.mxu0 0.0
        %3174 = vmatprep.subr.mxu0 0.0
        %3175 = vmatpush1.msra.mxu0 0.0
        %3176 = vmatprep.subr.mxu0 0.0
        %3177 = vmatpush1.msra.mxu0 0.0
        %3178 = vmatprep.subr.mxu0 0.0
        %3179 = vmatpush1.msra.mxu0 0.0
        %3180 = vmatprep.subr.mxu0 0.0
        %3181 = vmatpush1.msra.mxu0 0.0
        %3182 = vmatprep.subr.mxu0 0.0
        %3183 = vmatpush1.msra.mxu0 0.0
        %3184 = vmatprep.subr.mxu0 0.0
        %3185 = vmatpush1.msra.mxu0 0.0
        %3186 = vmatprep.subr.mxu0 0.0
        %3187 = vmatpush1.msra.mxu0 0.0
        %3188 = vmatprep.subr.mxu0 0.0
        %3189 = vmatpush1.msra.mxu0 %v3013
        %3190 = vmatprep.subr.mxu0 0.0
        %3191 = vmatpush1.msra.mxu0 %v3008
        %3192 = vmatprep.subr.mxu0 0.0
        %3193 = vmatpush1.msra.mxu0 %v3003
        %3194 = vmatprep.subr.mxu0 0.0
        %3195 = vmatpush2.msra.mxu0 0.0
        %3196 = vmatprep.subr.mxu0 0.0
        %3197 = vmatpush2.msra.mxu0 0.0
        %3198 = vmatprep.subr.mxu0 0.0
        %3199 = vmatpush2.msra.mxu0 0.0
        %3200 = vmatprep.subr.mxu0 0.0
        %3201 = vmatpush2.msra.mxu0 0.0
        %3202 = vmatprep.subr.mxu0 0.0
        %3203 = vmatpush2.msra.mxu0 0.0
        %3204 = vmatprep.subr.mxu0 0.0
        %3205 = vmatpush2.msra.mxu0 0.0
        %3206 = vmatprep.subr.mxu0 0.0
        %3207 = vmatpush2.msra.mxu0 0.0
        %3208 = vmatprep.subr.mxu0 0.0
        %3209 = vmatpush2.msra.mxu0 0.0
        %3210 = vmatprep.subr.mxu0 0.0
        %3211 = vmatpush2.msra.mxu0 0.0
        %3212 = vmatprep.subr.mxu0 0.0
        %3213 = vmatpush2.msra.mxu0 0.0
        %3214 = vmatprep.subr.mxu0 0.0
        %3215 = vmatpush2.msra.mxu0 0.0
        %3216 = vmatprep.subr.mxu0 0.0
        %3217 = vmatpush2.msra.mxu0 0.0
        %3218 = vmatprep.subr.mxu0 0.0
        %3219 = vmatpush2.msra.mxu0 0.0
        %3220 = vmatprep.subr.mxu0 0.0
        %3221 = vmatpush2.msra.mxu0 0.0
        %3222 = vmatprep.subr.mxu0 0.0
        %3223 = vmatpush2.msra.mxu0 0.0
        %3224 = vmatprep.subr.mxu0 0.0
        %3225 = vmatpush2.msra.mxu0 0.0
        %3226 = vmatprep.mubr.f32.mxu0 0.0
        %3227 = vmatmul.mubr.f32.gmra.mxu0 %v3154
        %v3228 = vpop.f32.mrf.mxu0
        %v3229 = vadd.f32 0.0, %v3228
        %v3230 = vpop.f32.mrf.mxu0
        %3231 = vmatprep.mubr.f32.mxu0 0.0
        %3232 = vmatmul.mubr.f32.gmra.mxu0 %v3157
        %v3233 = vpop.f32.mrf.mxu0
        %v3234 = vadd.f32 0.0, %v3233
        %v3235 = vpop.f32.mrf.mxu0
        %3236 = vmatprep.mubr.f32.mxu0 0.0
        %3237 = vmatmul.mubr.f32.gmra.mxu0 %v3160
        %v3238 = vpop.f32.mrf.mxu0
        %v3239 = vadd.f32 0.0, %v3238
        %v3240 = vpop.f32.mrf.mxu0
        %3241 = vdwg.mxu0
        %s3242 = scalar_lea.vmem %s11, 24
        %v3243 = vld [vmem:[%s3242] sm:$0xff]
        %v3245 = vsel %vm1212, %v3229, 0
        %v3248 = vsel %vm1212, %v3234, 0
        %v3251 = vsel %vm1212, %v3239, 0
        %3253 = vmatprep.subr.mxu0 0.0
        %3254 = vmatpush1.msra.mxu0 0.0
        %3255 = vmatprep.subr.mxu0 0.0
        %3256 = vmatpush1.msra.mxu0 0.0
        %3257 = vmatprep.subr.mxu0 0.0
        %3258 = vmatpush1.msra.mxu0 0.0
        %3259 = vmatprep.subr.mxu0 0.0
        %3260 = vmatpush1.msra.mxu0 0.0
        %3261 = vmatprep.subr.mxu0 0.0
        %3262 = vmatpush1.msra.mxu0 0.0
        %3263 = vmatprep.subr.mxu0 0.0
        %3264 = vmatpush1.msra.mxu0 0.0
        %3265 = vmatprep.subr.mxu0 0.0
        %3266 = vmatpush1.msra.mxu0 0.0
        %3267 = vmatprep.subr.mxu0 0.0
        %3268 = vmatpush1.msra.mxu0 0.0
        %3269 = vmatprep.subr.mxu0 0.0
        %3270 = vmatpush1.msra.mxu0 0.0
        %3271 = vmatprep.subr.mxu0 0.0
        %3272 = vmatpush1.msra.mxu0 0.0
        %3273 = vmatprep.subr.mxu0 0.0
        %3274 = vmatpush1.msra.mxu0 0.0
        %3275 = vmatprep.subr.mxu0 0.0
        %3276 = vmatpush1.msra.mxu0 0.0
        %3277 = vmatprep.subr.mxu0 0.0
        %3278 = vmatpush1.msra.mxu0 0.0
        %3279 = vmatprep.subr.mxu0 0.0
        %3280 = vmatpush1.msra.mxu0 0.0
        %3281 = vmatprep.subr.mxu0 0.0
        %3282 = vmatpush1.msra.mxu0 0.0
        %3283 = vmatprep.subr.mxu0 0.0
        %3284 = vmatpush1.msra.mxu0 %v3243
        %3285 = vmatprep.subr.mxu0 0.0
        %3286 = vmatpush2.msra.mxu0 0.0
        %3287 = vmatprep.subr.mxu0 0.0
        %3288 = vmatpush2.msra.mxu0 0.0
        %3289 = vmatprep.subr.mxu0 0.0
        %3290 = vmatpush2.msra.mxu0 0.0
        %3291 = vmatprep.subr.mxu0 0.0
        %3292 = vmatpush2.msra.mxu0 0.0
        %3293 = vmatprep.subr.mxu0 0.0
        %3294 = vmatpush2.msra.mxu0 0.0
        %3295 = vmatprep.subr.mxu0 0.0
        %3296 = vmatpush2.msra.mxu0 0.0
        %3297 = vmatprep.subr.mxu0 0.0
        %3298 = vmatpush2.msra.mxu0 0.0
        %3299 = vmatprep.subr.mxu0 0.0
        %3300 = vmatpush2.msra.mxu0 0.0
        %3301 = vmatprep.subr.mxu0 0.0
        %3302 = vmatpush2.msra.mxu0 0.0
        %3303 = vmatprep.subr.mxu0 0.0
        %3304 = vmatpush2.msra.mxu0 0.0
        %3305 = vmatprep.subr.mxu0 0.0
        %3306 = vmatpush2.msra.mxu0 0.0
        %3307 = vmatprep.subr.mxu0 0.0
        %3308 = vmatpush2.msra.mxu0 0.0
        %3309 = vmatprep.subr.mxu0 0.0
        %3310 = vmatpush2.msra.mxu0 0.0
        %3311 = vmatprep.subr.mxu0 0.0
        %3312 = vmatpush2.msra.mxu0 0.0
        %3313 = vmatprep.subr.mxu0 0.0
        %3314 = vmatpush2.msra.mxu0 0.0
        %3315 = vmatprep.subr.mxu0 0.0
        %3316 = vmatpush2.msra.mxu0 0.0
        %3317 = vmatprep.mubr.f32.mxu0 0.0
        %3318 = vmatmul.mubr.f32.gmra.mxu0 %v3245
        %v3319 = vpop.f32.mrf.mxu0
        %v3320 = vadd.f32 0.0, %v3319
        %v3321 = vpop.f32.mrf.mxu0
        %3322 = vmatprep.mubr.f32.mxu0 0.0
        %3323 = vmatmul.mubr.f32.gmra.mxu0 %v3248
        %v3324 = vpop.f32.mrf.mxu0
        %v3325 = vadd.f32 0.0, %v3324
        %v3326 = vpop.f32.mrf.mxu0
        %3327 = vmatprep.mubr.f32.mxu0 0.0
        %3328 = vmatmul.mubr.f32.gmra.mxu0 %v3251
        %v3329 = vpop.f32.mrf.mxu0
        %v3330 = vadd.f32 0.0, %v3329
        %v3331 = vpop.f32.mrf.mxu0
        %3332 = vdwg.mxu0
        %v3333 = vadd.f32 %v2734, %v3320
        %v3334 = vadd.f32 %v2735, %v3325
        %v3335 = vadd.f32 %v2736, %v3330
        %v3336 = vadd.f32 %v851, %v3333
        %v3337 = vadd.f32 %v856, %v3334
        %v3338 = vadd.f32 %v861, %v3335
        %v3339 = vld [vmem:[%s19] sm:$0xff]
        %v3340 = vld [vmem:[%s19 + $0x8] sm:$0xff]
        %v3341 = vld [vmem:[%s19 + $0x10] sm:$0xff]
        %v3342 = vld [vmem:[%s19 + $0x18] sm:$0xff]
        %v3343 = vld [vmem:[%s20] sm:$0x1]
        %v3345 = vlaneseq
        %v3346 = vshrl.u32 %v3345, 7
        %v3347 = vsub.s32 0, %v3346
        %v3348 = vrot.slane %v3343, %v3347
        %v3351 = vsel %vm870, %v3336, 0
        %v3354 = vsel %vm870, %v3337, 0
        %v3357 = vsel %vm870, %v3338, 0
        %3359 = vmatprep.subr.mxu0 0.0
        %3360 = vmatpush1.msra.mxu0 0.0
        %3361 = vmatprep.subr.mxu0 0.0
        %3362 = vmatpush1.msra.mxu0 0.0
        %3363 = vmatprep.subr.mxu0 0.0
        %3364 = vmatpush1.msra.mxu0 0.0
        %3365 = vmatprep.subr.mxu0 0.0
        %3366 = vmatpush1.msra.mxu0 0.0
        %3367 = vmatprep.subr.mxu0 0.0
        %3368 = vmatpush1.msra.mxu0 0.0
        %3369 = vmatprep.subr.mxu0 0.0
        %3370 = vmatpush1.msra.mxu0 0.0
        %3371 = vmatprep.subr.mxu0 0.0
        %3372 = vmatpush1.msra.mxu0 0.0
        %3373 = vmatprep.subr.mxu0 0.0
        %3374 = vmatpush1.msra.mxu0 0.0
        %3375 = vmatprep.subr.mxu0 0.0
        %3376 = vmatpush1.msra.mxu0 0.0
        %3377 = vmatprep.subr.mxu0 0.0
        %3378 = vmatpush1.msra.mxu0 0.0
        %3379 = vmatprep.subr.mxu0 0.0
        %3380 = vmatpush1.msra.mxu0 0.0
        %3381 = vmatprep.subr.mxu0 0.0
        %3382 = vmatpush1.msra.mxu0 0.0
        %3383 = vmatprep.subr.mxu0 0.0
        %3384 = vmatpush1.msra.mxu0 %v3342
        %3385 = vmatprep.subr.mxu0 0.0
        %3386 = vmatpush1.msra.mxu0 %v3341
        %3387 = vmatprep.subr.mxu0 0.0
        %3388 = vmatpush1.msra.mxu0 %v3340
        %3389 = vmatprep.subr.mxu0 0.0
        %3390 = vmatpush1.msra.mxu0 %v3339
        %3391 = vmatprep.subr.mxu0 0.0
        %3392 = vmatpush2.msra.mxu0 0.0
        %3393 = vmatprep.subr.mxu0 0.0
        %3394 = vmatpush2.msra.mxu0 0.0
        %3395 = vmatprep.subr.mxu0 0.0
        %3396 = vmatpush2.msra.mxu0 0.0
        %3397 = vmatprep.subr.mxu0 0.0
        %3398 = vmatpush2.msra.mxu0 0.0
        %3399 = vmatprep.subr.mxu0 0.0
        %3400 = vmatpush2.msra.mxu0 0.0
        %3401 = vmatprep.subr.mxu0 0.0
        %3402 = vmatpush2.msra.mxu0 0.0
        %3403 = vmatprep.subr.mxu0 0.0
        %3404 = vmatpush2.msra.mxu0 0.0
        %3405 = vmatprep.subr.mxu0 0.0
        %3406 = vmatpush2.msra.mxu0 0.0
        %3407 = vmatprep.subr.mxu0 0.0
        %3408 = vmatpush2.msra.mxu0 0.0
        %3409 = vmatprep.subr.mxu0 0.0
        %3410 = vmatpush2.msra.mxu0 0.0
        %3411 = vmatprep.subr.mxu0 0.0
        %3412 = vmatpush2.msra.mxu0 0.0
        %3413 = vmatprep.subr.mxu0 0.0
        %3414 = vmatpush2.msra.mxu0 0.0
        %3415 = vmatprep.subr.mxu0 0.0
        %3416 = vmatpush2.msra.mxu0 0.0
        %3417 = vmatprep.subr.mxu0 0.0
        %3418 = vmatpush2.msra.mxu0 0.0
        %3419 = vmatprep.subr.mxu0 0.0
        %3420 = vmatpush2.msra.mxu0 0.0
        %3421 = vmatprep.subr.mxu0 0.0
        %3422 = vmatpush2.msra.mxu0 0.0
        %3423 = vmatprep.mubr.f32.mxu0 0.0
        %3424 = vmatmul.mubr.f32.gmra.mxu0 %v3351
        %v3425 = vpop.f32.mrf.mxu0
        %v3426 = vadd.f32 %v3348, %v3425
        %v3427 = vpop.f32.mrf.mxu0
        %3428 = vmatprep.mubr.f32.mxu0 0.0
        %3429 = vmatmul.mubr.f32.gmra.mxu0 %v3354
        %v3430 = vpop.f32.mrf.mxu0
        %v3431 = vadd.f32 %v3348, %v3430
        %v3432 = vpop.f32.mrf.mxu0
        %3433 = vmatprep.mubr.f32.mxu0 0.0
        %3434 = vmatmul.mubr.f32.gmra.mxu0 %v3357
        %v3435 = vpop.f32.mrf.mxu0
        %v3436 = vadd.f32 %v3348, %v3435
        %v3437 = vpop.f32.mrf.mxu0
        %3438 = vdwg.mxu0
        %v3439 = vmax.f32 %v3426, 0.0
        %v3440 = vmax.f32 %v3431, 0.0
        %v3441 = vmax.f32 %v3436, 0.0
        %v3442 = vld [vmem:[%s21] sm:$0xff]
        %v3443 = vld [vmem:[%s21 + $0x8] sm:$0xff]
        %v3444 = vld [vmem:[%s22] sm:$0x1]
        %v3446 = vlaneseq
        %v3447 = vshrl.u32 %v3446, 7
        %v3448 = vsub.s32 0, %v3447
        %v3449 = vrot.slane %v3444, %v3448
        %vm3451 = vcmask 130048
        %v3453 = vsel %vm3451, %v3439, 0
        %v3456 = vsel %vm3451, %v3440, 0
        %v3459 = vsel %vm3451, %v3441, 0
        %3461 = vmatprep.subr.mxu0 0.0
        %3462 = vmatpush1.msra.mxu0 0.0
        %3463 = vmatprep.subr.mxu0 0.0
        %3464 = vmatpush1.msra.mxu0 0.0
        %3465 = vmatprep.subr.mxu0 0.0
        %3466 = vmatpush1.msra.mxu0 0.0
        %3467 = vmatprep.subr.mxu0 0.0
        %3468 = vmatpush1.msra.mxu0 0.0
        %3469 = vmatprep.subr.mxu0 0.0
        %3470 = vmatpush1.msra.mxu0 0.0
        %3471 = vmatprep.subr.mxu0 0.0
        %3472 = vmatpush1.msra.mxu0 0.0
        %3473 = vmatprep.subr.mxu0 0.0
        %3474 = vmatpush1.msra.mxu0 0.0
        %3475 = vmatprep.subr.mxu0 0.0
        %3476 = vmatpush1.msra.mxu0 0.0
        %3477 = vmatprep.subr.mxu0 0.0
        %3478 = vmatpush1.msra.mxu0 0.0
        %3479 = vmatprep.subr.mxu0 0.0
        %3480 = vmatpush1.msra.mxu0 0.0
        %3481 = vmatprep.subr.mxu0 0.0
        %3482 = vmatpush1.msra.mxu0 0.0
        %3483 = vmatprep.subr.mxu0 0.0
        %3484 = vmatpush1.msra.mxu0 0.0
        %3485 = vmatprep.subr.mxu0 0.0
        %3486 = vmatpush1.msra.mxu0 0.0
        %3487 = vmatprep.subr.mxu0 0.0
        %3488 = vmatpush1.msra.mxu0 0.0
        %3489 = vmatprep.subr.mxu0 0.0
        %3490 = vmatpush1.msra.mxu0 %v3443
        %3491 = vmatprep.subr.mxu0 0.0
        %3492 = vmatpush1.msra.mxu0 %v3442
        %3493 = vmatprep.subr.mxu0 0.0
        %3494 = vmatpush2.msra.mxu0 0.0
        %3495 = vmatprep.subr.mxu0 0.0
        %3496 = vmatpush2.msra.mxu0 0.0
        %3497 = vmatprep.subr.mxu0 0.0
        %3498 = vmatpush2.msra.mxu0 0.0
        %3499 = vmatprep.subr.mxu0 0.0
        %3500 = vmatpush2.msra.mxu0 0.0
        %3501 = vmatprep.subr.mxu0 0.0
        %3502 = vmatpush2.msra.mxu0 0.0
        %3503 = vmatprep.subr.mxu0 0.0
        %3504 = vmatpush2.msra.mxu0 0.0
        %3505 = vmatprep.subr.mxu0 0.0
        %3506 = vmatpush2.msra.mxu0 0.0
        %3507 = vmatprep.subr.mxu0 0.0
        %3508 = vmatpush2.msra.mxu0 0.0
        %3509 = vmatprep.subr.mxu0 0.0
        %3510 = vmatpush2.msra.mxu0 0.0
        %3511 = vmatprep.subr.mxu0 0.0
        %3512 = vmatpush2.msra.mxu0 0.0
        %3513 = vmatprep.subr.mxu0 0.0
        %3514 = vmatpush2.msra.mxu0 0.0
        %3515 = vmatprep.subr.mxu0 0.0
        %3516 = vmatpush2.msra.mxu0 0.0
        %3517 = vmatprep.subr.mxu0 0.0
        %3518 = vmatpush2.msra.mxu0 0.0
        %3519 = vmatprep.subr.mxu0 0.0
        %3520 = vmatpush2.msra.mxu0 0.0
        %3521 = vmatprep.subr.mxu0 0.0
        %3522 = vmatpush2.msra.mxu0 0.0
        %3523 = vmatprep.subr.mxu0 0.0
        %3524 = vmatpush2.msra.mxu0 0.0
        %3525 = vmatprep.mubr.f32.mxu0 0.0
        %3526 = vmatmul.mubr.f32.gmra.mxu0 %v3453
        %v3527 = vpop.f32.mrf.mxu0
        %v3528 = vadd.f32 %v3449, %v3527
        %v3529 = vpop.f32.mrf.mxu0
        %3530 = vmatprep.mubr.f32.mxu0 0.0
        %3531 = vmatmul.mubr.f32.gmra.mxu0 %v3456
        %v3532 = vpop.f32.mrf.mxu0
        %v3533 = vadd.f32 %v3449, %v3532
        %v3534 = vpop.f32.mrf.mxu0
        %3535 = vmatprep.mubr.f32.mxu0 0.0
        %3536 = vmatmul.mubr.f32.gmra.mxu0 %v3459
        %v3537 = vpop.f32.mrf.mxu0
        %v3538 = vadd.f32 %v3449, %v3537
        %v3539 = vpop.f32.mrf.mxu0
        %3540 = vdwg.mxu0
        %v3541 = vmul.f32 %v3528, 0.1
        %v3542 = vmul.f32 %v3533, 0.1
        %v3543 = vmul.f32 %v3538, 0.1
        %v3544 = vld [vmem:[%s13] sm:$0x1]
        %v3545 = vld [vmem:[%s14] sm:$0x1]
        %v3546 = vsel %vm870, %v3336, 0.0
        %3547 = vadd.xlane.f32.xlu0 %v3546
        %v3548 = vpop.xlane.xlu0 %3547
        %v3549 = vsel %vm870, %v3337, 0.0
        %3550 = vadd.xlane.f32.xlu0 %v3549
        %v3551 = vpop.xlane.xlu0 %3550
        %v3552 = vsel %vm870, %v3338, 0.0
        %3553 = vadd.xlane.f32.xlu0 %v3552
        %v3554 = vpop.xlane.xlu0 %3553
        %v3555 = vmul.f32 %v3548, %v880
        %v3556 = vmul.f32 %v3551, %v880
        %v3557 = vmul.f32 %v3554, %v880
        %v3558 = vsub.f32 %v3336, %v3555
        %v3559 = vsub.f32 %v3337, %v3556
        %v3560 = vsub.f32 %v3338, %v3557
        %v3561 = vmul.f32 %v3558, %v3558
        %v3562 = vmul.f32 %v3559, %v3559
        %v3563 = vmul.f32 %v3560, %v3560
        %v3564 = vsel %vm870, %v3561, 0.0
        %3565 = vadd.xlane.f32.xlu0 %v3564
        %v3566 = vpop.xlane.xlu0 %3565
        %v3567 = vsel %vm870, %v3562, 0.0
        %3568 = vadd.xlane.f32.xlu0 %v3567
        %v3569 = vpop.xlane.xlu0 %3568
        %v3570 = vsel %vm870, %v3563, 0.0
        %3571 = vadd.xlane.f32.xlu0 %v3570
        %v3572 = vpop.xlane.xlu0 %3571
        %v3573 = vmul.f32 %v3566, %v880
        %v3574 = vmul.f32 %v3569, %v880
        %v3575 = vmul.f32 %v3572, %v880
        %v3576 = vadd.f32 %v3573, 1e-06
        %v3577 = vadd.f32 %v3574, 1e-06
        %v3578 = vadd.f32 %v3575, 1e-06
        %v3579 = vrsqrt.pop %v3576
        %v3580 = vrsqrt.pop %v3577
        %v3581 = vrsqrt.pop %v3578
        %v3582 = vmul.f32 %v3558, %v3579
        %v3583 = vmul.f32 %v3559, %v3580
        %v3584 = vmul.f32 %v3560, %v3581
        %v3586 = vlaneseq
        %v3587 = vshrl.u32 %v3586, 7
        %v3588 = vsub.s32 0, %v3587
        %v3589 = vrot.slane %v3544, %v3588
        %v3591 = vmul.f32 %v3582, %v3589
        %v3592 = vmul.f32 %v3583, %v3589
        %v3593 = vmul.f32 %v3584, %v3589
        %v3595 = vlaneseq
        %v3596 = vshrl.u32 %v3595, 7
        %v3597 = vsub.s32 0, %v3596
        %v3598 = vrot.slane %v3545, %v3597
        %v3600 = vadd.f32 %v3591, %v3598
        %v3601 = vadd.f32 %v3592, %v3598
        %v3602 = vadd.f32 %v3593, %v3598
        %v3603 = vld [vmem:[%s15] sm:$0xff]
        %v3604 = vld [vmem:[%s15 + $0x8] sm:$0xff]
        %v3605 = vld [vmem:[%s15 + $0x10] sm:$0xff]
        %v3606 = vld [vmem:[%s15 + $0x18] sm:$0xff]
        %v3607 = vld [vmem:[%s16] sm:$0x1]
        %v3609 = vlaneseq
        %v3610 = vshrl.u32 %v3609, 7
        %v3611 = vsub.s32 0, %v3610
        %v3612 = vrot.slane %v3607, %v3611
        %v3615 = vsel %vm870, %v3600, 0
        %v3618 = vsel %vm870, %v3601, 0
        %v3621 = vsel %vm870, %v3602, 0
        %3623 = vmatprep.subr.mxu0 0.0
        %3624 = vmatpush1.msra.mxu0 0.0
        %3625 = vmatprep.subr.mxu0 0.0
        %3626 = vmatpush1.msra.mxu0 0.0
        %3627 = vmatprep.subr.mxu0 0.0
        %3628 = vmatpush1.msra.mxu0 0.0
        %3629 = vmatprep.subr.mxu0 0.0
        %3630 = vmatpush1.msra.mxu0 0.0
        %3631 = vmatprep.subr.mxu0 0.0
        %3632 = vmatpush1.msra.mxu0 0.0
        %3633 = vmatprep.subr.mxu0 0.0
        %3634 = vmatpush1.msra.mxu0 0.0
        %3635 = vmatprep.subr.mxu0 0.0
        %3636 = vmatpush1.msra.mxu0 0.0
        %3637 = vmatprep.subr.mxu0 0.0
        %3638 = vmatpush1.msra.mxu0 0.0
        %3639 = vmatprep.subr.mxu0 0.0
        %3640 = vmatpush1.msra.mxu0 0.0
        %3641 = vmatprep.subr.mxu0 0.0
        %3642 = vmatpush1.msra.mxu0 0.0
        %3643 = vmatprep.subr.mxu0 0.0
        %3644 = vmatpush1.msra.mxu0 0.0
        %3645 = vmatprep.subr.mxu0 0.0
        %3646 = vmatpush1.msra.mxu0 0.0
        %3647 = vmatprep.subr.mxu0 0.0
        %3648 = vmatpush1.msra.mxu0 %v3606
        %3649 = vmatprep.subr.mxu0 0.0
        %3650 = vmatpush1.msra.mxu0 %v3605
        %3651 = vmatprep.subr.mxu0 0.0
        %3652 = vmatpush1.msra.mxu0 %v3604
        %3653 = vmatprep.subr.mxu0 0.0
        %3654 = vmatpush1.msra.mxu0 %v3603
        %3655 = vmatprep.subr.mxu0 0.0
        %3656 = vmatpush2.msra.mxu0 0.0
        %3657 = vmatprep.subr.mxu0 0.0
        %3658 = vmatpush2.msra.mxu0 0.0
        %3659 = vmatprep.subr.mxu0 0.0
        %3660 = vmatpush2.msra.mxu0 0.0
        %3661 = vmatprep.subr.mxu0 0.0
        %3662 = vmatpush2.msra.mxu0 0.0
        %3663 = vmatprep.subr.mxu0 0.0
        %3664 = vmatpush2.msra.mxu0 0.0
        %3665 = vmatprep.subr.mxu0 0.0
        %3666 = vmatpush2.msra.mxu0 0.0
        %3667 = vmatprep.subr.mxu0 0.0
        %3668 = vmatpush2.msra.mxu0 0.0
        %3669 = vmatprep.subr.mxu0 0.0
        %3670 = vmatpush2.msra.mxu0 0.0
        %3671 = vmatprep.subr.mxu0 0.0
        %3672 = vmatpush2.msra.mxu0 0.0
        %3673 = vmatprep.subr.mxu0 0.0
        %3674 = vmatpush2.msra.mxu0 0.0
        %3675 = vmatprep.subr.mxu0 0.0
        %3676 = vmatpush2.msra.mxu0 0.0
        %3677 = vmatprep.subr.mxu0 0.0
        %3678 = vmatpush2.msra.mxu0 0.0
        %3679 = vmatprep.subr.mxu0 0.0
        %3680 = vmatpush2.msra.mxu0 0.0
        %3681 = vmatprep.subr.mxu0 0.0
        %3682 = vmatpush2.msra.mxu0 0.0
        %3683 = vmatprep.subr.mxu0 0.0
        %3684 = vmatpush2.msra.mxu0 0.0
        %3685 = vmatprep.subr.mxu0 0.0
        %3686 = vmatpush2.msra.mxu0 0.0
        %3687 = vmatprep.mubr.f32.mxu0 0.0
        %3688 = vmatmul.mubr.f32.gmra.mxu0 %v3615
        %v3689 = vpop.f32.mrf.mxu0
        %v3690 = vadd.f32 %v3612, %v3689
        %v3691 = vpop.f32.mrf.mxu0
        %3692 = vmatprep.mubr.f32.mxu0 0.0
        %3693 = vmatmul.mubr.f32.gmra.mxu0 %v3618
        %v3694 = vpop.f32.mrf.mxu0
        %v3695 = vadd.f32 %v3612, %v3694
        %v3696 = vpop.f32.mrf.mxu0
        %3697 = vmatprep.mubr.f32.mxu0 0.0
        %3698 = vmatmul.mubr.f32.gmra.mxu0 %v3621
        %v3699 = vpop.f32.mrf.mxu0
        %v3700 = vadd.f32 %v3612, %v3699
        %v3701 = vpop.f32.mrf.mxu0
        %3702 = vdwg.mxu0
        %v3703 = vmul.f32 %v3690, 0.70710677
        %v3704 = vmul.f32 %v3695, 0.70710677
        %v3705 = vmul.f32 %v3700, 0.70710677
        %v3706 = vand.u32 2147483647, %v3703
        %v3707 = vand.u32 2147483647, %v3704
        %v3708 = vand.u32 2147483647, %v3705
        %v3709 = vmul.f32 %v3706, 0.3275911
        %v3710 = vmul.f32 %v3707, 0.3275911
        %v3711 = vmul.f32 %v3708, 0.3275911
        %v3712 = vadd.f32 %v3709, 1.0
        %v3713 = vadd.f32 %v3710, 1.0
        %v3714 = vadd.f32 %v3711, 1.0
        %v3715 = vrcp.pop %v3712
        %v3716 = vmul.f32 1.0, %v3715
        %v3717 = vrcp.pop %v3713
        %v3718 = vmul.f32 1.0, %v3717
        %v3719 = vrcp.pop %v3714
        %v3720 = vmul.f32 1.0, %v3719
        %v3721 = vmul.f32 %v3716, 1.0614054
        %v3722 = vmul.f32 %v3718, 1.0614054
        %v3723 = vmul.f32 %v3720, 1.0614054
        %v3724 = vsub.f32 %v3721, 1.4531521
        %v3725 = vsub.f32 %v3722, 1.4531521
        %v3726 = vsub.f32 %v3723, 1.4531521
        %v3727 = vmul.f32 %v3724, %v3716
        %v3728 = vmul.f32 %v3725, %v3718
        %v3729 = vmul.f32 %v3726, %v3720
        %v3730 = vadd.f32 %v3727, 1.4214138
        %v3731 = vadd.f32 %v3728, 1.4214138
        %v3732 = vadd.f32 %v3729, 1.4214138
        %v3733 = vmul.f32 %v3730, %v3716
        %v3734 = vmul.f32 %v3731, %v3718
        %v3735 = vmul.f32 %v3732, %v3720
        %v3736 = vsub.f32 %v3733, 0.28449672
        %v3737 = vsub.f32 %v3734, 0.28449672
        %v3738 = vsub.f32 %v3735, 0.28449672
        %v3739 = vmul.f32 %v3736, %v3716
        %v3740 = vmul.f32 %v3737, %v3718
        %v3741 = vmul.f32 %v3738, %v3720
        %v3742 = vadd.f32 %v3739, 0.2548296
        %v3743 = vadd.f32 %v3740, 0.2548296
        %v3744 = vadd.f32 %v3741, 0.2548296
        %v3745 = vmul.f32 %v3742, %v3716
        %v3746 = vmul.f32 %v3743, %v3718
        %v3747 = vmul.f32 %v3744, %v3720
        %v3748 = vsub.f32 0.0, %v3706
        %v3749 = vsub.f32 0.0, %v3707
        %v3750 = vsub.f32 0.0, %v3708
        %v3751 = vmul.f32 %v3748, %v3706
        %v3752 = vmul.f32 %v3749, %v3707
        %v3753 = vmul.f32 %v3750, %v3708
        %v3754 = vmul.f32 %v3751, 1.442695
        %v3755 = vpow.pop %v3754
        %v3756 = vmul.f32 %v3752, 1.442695
        %v3757 = vpow.pop %v3756
        %v3758 = vmul.f32 %v3753, 1.442695
        %v3759 = vpow.pop %v3758
        %v3760 = vmul.f32 %v3745, %v3755
        %v3761 = vmul.f32 %v3746, %v3757
        %v3762 = vmul.f32 %v3747, %v3759
        %v3763 = vsub.f32 1.0, %v3760
        %v3764 = vsub.f32 1.0, %v3761
        %v3765 = vsub.f32 1.0, %v3762
        %vm3766 = vcmp.ge.f32.partialorder %v3703, 0.0
        %vm3767 = vcmp.ge.f32.partialorder %v3704, 0.0
        %vm3768 = vcmp.ge.f32.partialorder %v3705, 0.0
        %v3769 = vsub.f32 0.0, %v3763
        %v3770 = vsub.f32 0.0, %v3764
        %v3771 = vsub.f32 0.0, %v3765
        %v3772 = vsel %vm3766, %v3763, %v3769
        %v3773 = vsel %vm3767, %v3764, %v3770
        %v3774 = vsel %vm3768, %v3765, %v3771
        %v3775 = vmul.f32 %v3690, 0.5
        %v3776 = vmul.f32 %v3695, 0.5
        %v3777 = vmul.f32 %v3700, 0.5
        %v3778 = vadd.f32 %v3772, 1.0
        %v3779 = vadd.f32 %v3773, 1.0
        %v3780 = vadd.f32 %v3774, 1.0
        %v3781 = vmul.f32 %v3775, %v3778
        %v3782 = vmul.f32 %v3776, %v3779
        %v3783 = vmul.f32 %v3777, %v3780
        %v3784 = vld [vmem:[%s17] sm:$0xff]
        %v3785 = vld [vmem:[%s17 + $0x8] sm:$0xff]
        %v3786 = vld [vmem:[%s17 + $0x10] sm:$0xff]
        %v3787 = vld [vmem:[%s17 + $0x18] sm:$0xff]
        %v3788 = vld [vmem:[%s17 + $0x20] sm:$0xff]
        %v3789 = vld [vmem:[%s17 + $0x28] sm:$0xff]
        %v3790 = vld [vmem:[%s17 + $0x30] sm:$0xff]
        %v3791 = vld [vmem:[%s17 + $0x38] sm:$0xff]
        %v3792 = vld [vmem:[%s17 + $0x40] sm:$0xff]
        %v3793 = vld [vmem:[%s17 + $0x48] sm:$0xff]
        %v3794 = vld [vmem:[%s17 + $0x50] sm:$0xff]
        %v3795 = vld [vmem:[%s17 + $0x58] sm:$0xff]
        %v3796 = vld [vmem:[%s17 + $0x60] sm:$0xff]
        %v3797 = vld [vmem:[%s17 + $0x68] sm:$0xff]
        %v3798 = vld [vmem:[%s17 + $0x70] sm:$0xff]
        %v3799 = vld [vmem:[%s17 + $0x78] sm:$0xff]
        %v3800 = vld [vmem:[%s18] sm:$0x1]
        %v3802 = vlaneseq
        %v3803 = vshrl.u32 %v3802, 7
        %v3804 = vsub.s32 0, %v3803
        %v3805 = vrot.slane %v3800, %v3804
        %3807 = vmatprep.subr.mxu0 0.0
        %3808 = vmatpush1.msra.mxu0 %v3799
        %3809 = vmatprep.subr.mxu0 0.0
        %3810 = vmatpush1.msra.mxu0 %v3798
        %3811 = vmatprep.subr.mxu0 0.0
        %3812 = vmatpush1.msra.mxu0 %v3797
        %3813 = vmatprep.subr.mxu0 0.0
        %3814 = vmatpush1.msra.mxu0 %v3796
        %3815 = vmatprep.subr.mxu0 0.0
        %3816 = vmatpush1.msra.mxu0 %v3795
        %3817 = vmatprep.subr.mxu0 0.0
        %3818 = vmatpush1.msra.mxu0 %v3794
        %3819 = vmatprep.subr.mxu0 0.0
        %3820 = vmatpush1.msra.mxu0 %v3793
        %3821 = vmatprep.subr.mxu0 0.0
        %3822 = vmatpush1.msra.mxu0 %v3792
        %3823 = vmatprep.subr.mxu0 0.0
        %3824 = vmatpush1.msra.mxu0 %v3791
        %3825 = vmatprep.subr.mxu0 0.0
        %3826 = vmatpush1.msra.mxu0 %v3790
        %3827 = vmatprep.subr.mxu0 0.0
        %3828 = vmatpush1.msra.mxu0 %v3789
        %3829 = vmatprep.subr.mxu0 0.0
        %3830 = vmatpush1.msra.mxu0 %v3788
        %3831 = vmatprep.subr.mxu0 0.0
        %3832 = vmatpush1.msra.mxu0 %v3787
        %3833 = vmatprep.subr.mxu0 0.0
        %3834 = vmatpush1.msra.mxu0 %v3786
        %3835 = vmatprep.subr.mxu0 0.0
        %3836 = vmatpush1.msra.mxu0 %v3785
        %3837 = vmatprep.subr.mxu0 0.0
        %3838 = vmatpush1.msra.mxu0 %v3784
        %3839 = vmatprep.subr.mxu0 0.0
        %3840 = vmatpush2.msra.mxu0 0.0
        %3841 = vmatprep.subr.mxu0 0.0
        %3842 = vmatpush2.msra.mxu0 0.0
        %3843 = vmatprep.subr.mxu0 0.0
        %3844 = vmatpush2.msra.mxu0 0.0
        %3845 = vmatprep.subr.mxu0 0.0
        %3846 = vmatpush2.msra.mxu0 0.0
        %3847 = vmatprep.subr.mxu0 0.0
        %3848 = vmatpush2.msra.mxu0 0.0
        %3849 = vmatprep.subr.mxu0 0.0
        %3850 = vmatpush2.msra.mxu0 0.0
        %3851 = vmatprep.subr.mxu0 0.0
        %3852 = vmatpush2.msra.mxu0 0.0
        %3853 = vmatprep.subr.mxu0 0.0
        %3854 = vmatpush2.msra.mxu0 0.0
        %3855 = vmatprep.subr.mxu0 0.0
        %3856 = vmatpush2.msra.mxu0 0.0
        %3857 = vmatprep.subr.mxu0 0.0
        %3858 = vmatpush2.msra.mxu0 0.0
        %3859 = vmatprep.subr.mxu0 0.0
        %3860 = vmatpush2.msra.mxu0 0.0
        %3861 = vmatprep.subr.mxu0 0.0
        %3862 = vmatpush2.msra.mxu0 0.0
        %3863 = vmatprep.subr.mxu0 0.0
        %3864 = vmatpush2.msra.mxu0 0.0
        %3865 = vmatprep.subr.mxu0 0.0
        %3866 = vmatpush2.msra.mxu0 0.0
        %3867 = vmatprep.subr.mxu0 0.0
        %3868 = vmatpush2.msra.mxu0 0.0
        %3869 = vmatprep.subr.mxu0 0.0
        %3870 = vmatpush2.msra.mxu0 0.0
        %3871 = vmatprep.mubr.f32.mxu0 0.0
        %3872 = vmatmul.mubr.f32.gmra.mxu0 %v3781
        %v3873 = vpop.f32.mrf.mxu0
        %v3874 = vadd.f32 %v3805, %v3873
        %v3875 = vpop.f32.mrf.mxu0
        %3876 = vmatprep.mubr.f32.mxu0 0.0
        %3877 = vmatmul.mubr.f32.gmra.mxu0 %v3782
        %v3878 = vpop.f32.mrf.mxu0
        %v3879 = vadd.f32 %v3805, %v3878
        %v3880 = vpop.f32.mrf.mxu0
        %3881 = vmatprep.mubr.f32.mxu0 0.0
        %3882 = vmatmul.mubr.f32.gmra.mxu0 %v3783
        %v3883 = vpop.f32.mrf.mxu0
        %v3884 = vadd.f32 %v3805, %v3883
        %v3885 = vpop.f32.mrf.mxu0
        %3886 = vdwg.mxu0
        %v3887 = vadd.f32 %v3336, %v3874
        %v3888 = vadd.f32 %v3337, %v3879
        %v3889 = vadd.f32 %v3338, %v3884
        %v3890 = vadd.f32 %v3887, %v3541
        %v3891 = vadd.f32 %v3888, %v3542
        %v3892 = vadd.f32 %v3889, %v3543
        %s3893 = scalar_lea.vmem %s3, 1
        %v3894 = vld [vmem:[%s3893] sm:$0x1]
        %s3895 = scalar_lea.vmem %s4, 1
        %v3896 = vld [vmem:[%s3895] sm:$0x1]
        %v3897 = vsel %vm870, %v3890, 0.0
        %3898 = vadd.xlane.f32.xlu0 %v3897
        %v3899 = vpop.xlane.xlu0 %3898
        %v3900 = vsel %vm870, %v3891, 0.0
        %3901 = vadd.xlane.f32.xlu0 %v3900
        %v3902 = vpop.xlane.xlu0 %3901
        %v3903 = vsel %vm870, %v3892, 0.0
        %3904 = vadd.xlane.f32.xlu0 %v3903
        %v3905 = vpop.xlane.xlu0 %3904
        %v3906 = vmul.f32 %v3899, %v880
        %v3907 = vmul.f32 %v3902, %v880
        %v3908 = vmul.f32 %v3905, %v880
        %v3909 = vsub.f32 %v3890, %v3906
        %v3910 = vsub.f32 %v3891, %v3907
        %v3911 = vsub.f32 %v3892, %v3908
        %v3912 = vmul.f32 %v3909, %v3909
        %v3913 = vmul.f32 %v3910, %v3910
        %v3914 = vmul.f32 %v3911, %v3911
        %v3915 = vsel %vm870, %v3912, 0.0
        %3916 = vadd.xlane.f32.xlu0 %v3915
        %v3917 = vpop.xlane.xlu0 %3916
        %v3918 = vsel %vm870, %v3913, 0.0
        %3919 = vadd.xlane.f32.xlu0 %v3918
        %v3920 = vpop.xlane.xlu0 %3919
        %v3921 = vsel %vm870, %v3914, 0.0
        %3922 = vadd.xlane.f32.xlu0 %v3921
        %v3923 = vpop.xlane.xlu0 %3922
        %v3924 = vmul.f32 %v3917, %v880
        %v3925 = vmul.f32 %v3920, %v880
        %v3926 = vmul.f32 %v3923, %v880
        %v3927 = vadd.f32 %v3924, 1e-06
        %v3928 = vadd.f32 %v3925, 1e-06
        %v3929 = vadd.f32 %v3926, 1e-06
        %v3930 = vrsqrt.pop %v3927
        %v3931 = vrsqrt.pop %v3928
        %v3932 = vrsqrt.pop %v3929
        %v3933 = vmul.f32 %v3909, %v3930
        %v3934 = vmul.f32 %v3910, %v3931
        %v3935 = vmul.f32 %v3911, %v3932
        %v3937 = vlaneseq
        %v3938 = vshrl.u32 %v3937, 7
        %v3939 = vsub.s32 0, %v3938
        %v3940 = vrot.slane %v3894, %v3939
        %v3942 = vmul.f32 %v3933, %v3940
        %v3943 = vmul.f32 %v3934, %v3940
        %v3944 = vmul.f32 %v3935, %v3940
        %v3946 = vlaneseq
        %v3947 = vshrl.u32 %v3946, 7
        %v3948 = vsub.s32 0, %v3947
        %v3949 = vrot.slane %v3896, %v3948
        %v3951 = vadd.f32 %v3942, %v3949
        %v3952 = vadd.f32 %v3943, %v3949
        %v3953 = vadd.f32 %v3944, %v3949
        %s3954 = scalar_lea.vmem %s12, 1
        %v3955 = vld [vmem:[%s3954] sm:$0x1]
        %s3956 = scalar_lea.vmem %s5, 128
        %v3957 = vld [vmem:[%s3956] sm:$0xff]
        %v3958 = vld [vmem:[%s3956 + $0x8] sm:$0xff]
        %v3959 = vld [vmem:[%s3956 + $0x10] sm:$0xff]
        %v3960 = vld [vmem:[%s3956 + $0x18] sm:$0xff]
        %s3961 = scalar_lea.vmem %s6, 4
        %v3962 = vld [vmem:[%s3961] sm:$0x1]
        %v3964 = vlaneseq
        %v3965 = vshrl.u32 %v3964, 7
        %v3966 = vsub.s32 0, %v3965
        %v3967 = vrot.slane %v3962, %v3966
        %v3970 = vsel %vm870, %v3951, 0
        %v3973 = vsel %vm870, %v3952, 0
        %v3976 = vsel %vm870, %v3953, 0
        %3978 = vmatprep.subr.mxu0 0.0
        %3979 = vmatpush1.msra.mxu0 0.0
        %3980 = vmatprep.subr.mxu0 0.0
        %3981 = vmatpush1.msra.mxu0 0.0
        %3982 = vmatprep.subr.mxu0 0.0
        %3983 = vmatpush1.msra.mxu0 0.0
        %3984 = vmatprep.subr.mxu0 0.0
        %3985 = vmatpush1.msra.mxu0 0.0
        %3986 = vmatprep.subr.mxu0 0.0
        %3987 = vmatpush1.msra.mxu0 0.0
        %3988 = vmatprep.subr.mxu0 0.0
        %3989 = vmatpush1.msra.mxu0 0.0
        %3990 = vmatprep.subr.mxu0 0.0
        %3991 = vmatpush1.msra.mxu0 0.0
        %3992 = vmatprep.subr.mxu0 0.0
        %3993 = vmatpush1.msra.mxu0 0.0
        %3994 = vmatprep.subr.mxu0 0.0
        %3995 = vmatpush1.msra.mxu0 0.0
        %3996 = vmatprep.subr.mxu0 0.0
        %3997 = vmatpush1.msra.mxu0 0.0
        %3998 = vmatprep.subr.mxu0 0.0
        %3999 = vmatpush1.msra.mxu0 0.0
        %4000 = vmatprep.subr.mxu0 0.0
        %4001 = vmatpush1.msra.mxu0 0.0
        %4002 = vmatprep.subr.mxu0 0.0
        %4003 = vmatpush1.msra.mxu0 %v3960
        %4004 = vmatprep.subr.mxu0 0.0
        %4005 = vmatpush1.msra.mxu0 %v3959
        %4006 = vmatprep.subr.mxu0 0.0
        %4007 = vmatpush1.msra.mxu0 %v3958
        %4008 = vmatprep.subr.mxu0 0.0
        %4009 = vmatpush1.msra.mxu0 %v3957
        %4010 = vmatprep.subr.mxu0 0.0
        %4011 = vmatpush2.msra.mxu0 0.0
        %4012 = vmatprep.subr.mxu0 0.0
        %4013 = vmatpush2.msra.mxu0 0.0
        %4014 = vmatprep.subr.mxu0 0.0
        %4015 = vmatpush2.msra.mxu0 0.0
        %4016 = vmatprep.subr.mxu0 0.0
        %4017 = vmatpush2.msra.mxu0 0.0
        %4018 = vmatprep.subr.mxu0 0.0
        %4019 = vmatpush2.msra.mxu0 0.0
        %4020 = vmatprep.subr.mxu0 0.0
        %4021 = vmatpush2.msra.mxu0 0.0
        %4022 = vmatprep.subr.mxu0 0.0
        %4023 = vmatpush2.msra.mxu0 0.0
        %4024 = vmatprep.subr.mxu0 0.0
        %4025 = vmatpush2.msra.mxu0 0.0
        %4026 = vmatprep.subr.mxu0 0.0
        %4027 = vmatpush2.msra.mxu0 0.0
        %4028 = vmatprep.subr.mxu0 0.0
        %4029 = vmatpush2.msra.mxu0 0.0
        %4030 = vmatprep.subr.mxu0 0.0
        %4031 = vmatpush2.msra.mxu0 0.0
        %4032 = vmatprep.subr.mxu0 0.0
        %4033 = vmatpush2.msra.mxu0 0.0
        %4034 = vmatprep.subr.mxu0 0.0
        %4035 = vmatpush2.msra.mxu0 0.0
        %4036 = vmatprep.subr.mxu0 0.0
        %4037 = vmatpush2.msra.mxu0 0.0
        %4038 = vmatprep.subr.mxu0 0.0
        %4039 = vmatpush2.msra.mxu0 0.0
        %4040 = vmatprep.subr.mxu0 0.0
        %4041 = vmatpush2.msra.mxu0 0.0
        %4042 = vmatprep.mubr.f32.mxu0 0.0
        %4043 = vmatmul.mubr.f32.gmra.mxu0 %v3970
        %v4044 = vpop.f32.mrf.mxu0
        %v4045 = vadd.f32 %v3967, %v4044
        %v4046 = vpop.f32.mrf.mxu0
        %4047 = vmatprep.mubr.f32.mxu0 0.0
        %4048 = vmatmul.mubr.f32.gmra.mxu0 %v3973
        %v4049 = vpop.f32.mrf.mxu0
        %v4050 = vadd.f32 %v3967, %v4049
        %v4051 = vpop.f32.mrf.mxu0
        %4052 = vmatprep.mubr.f32.mxu0 0.0
        %4053 = vmatmul.mubr.f32.gmra.mxu0 %v3976
        %v4054 = vpop.f32.mrf.mxu0
        %v4055 = vadd.f32 %v3967, %v4054
        %v4056 = vpop.f32.mrf.mxu0
        %4057 = vdwg.mxu0
        %s4058 = scalar_lea.vmem %s7, 128
        %v4059 = vld [vmem:[%s4058] sm:$0xff]
        %v4060 = vld [vmem:[%s4058 + $0x8] sm:$0xff]
        %v4061 = vld [vmem:[%s4058 + $0x10] sm:$0xff]
        %v4062 = vld [vmem:[%s4058 + $0x18] sm:$0xff]
        %s4063 = scalar_lea.vmem %s8, 4
        %v4064 = vld [vmem:[%s4063] sm:$0x1]
        %v4066 = vlaneseq
        %v4067 = vshrl.u32 %v4066, 7
        %v4068 = vsub.s32 0, %v4067
        %v4069 = vrot.slane %v4064, %v4068
        %4071 = vmatprep.subr.mxu0 0.0
        %4072 = vmatpush1.msra.mxu0 0.0
        %4073 = vmatprep.subr.mxu0 0.0
        %4074 = vmatpush1.msra.mxu0 0.0
        %4075 = vmatprep.subr.mxu0 0.0
        %4076 = vmatpush1.msra.mxu0 0.0
        %4077 = vmatprep.subr.mxu0 0.0
        %4078 = vmatpush1.msra.mxu0 0.0
        %4079 = vmatprep.subr.mxu0 0.0
        %4080 = vmatpush1.msra.mxu0 0.0
        %4081 = vmatprep.subr.mxu0 0.0
        %4082 = vmatpush1.msra.mxu0 0.0
        %4083 = vmatprep.subr.mxu0 0.0
        %4084 = vmatpush1.msra.mxu0 0.0
        %4085 = vmatprep.subr.mxu0 0.0
        %4086 = vmatpush1.msra.mxu0 0.0
        %4087 = vmatprep.subr.mxu0 0.0
        %4088 = vmatpush1.msra.mxu0 0.0
        %4089 = vmatprep.subr.mxu0 0.0
        %4090 = vmatpush1.msra.mxu0 0.0
        %4091 = vmatprep.subr.mxu0 0.0
        %4092 = vmatpush1.msra.mxu0 0.0
        %4093 = vmatprep.subr.mxu0 0.0
        %4094 = vmatpush1.msra.mxu0 0.0
        %4095 = vmatprep.subr.mxu0 0.0
        %4096 = vmatpush1.msra.mxu0 %v4062
        %4097 = vmatprep.subr.mxu0 0.0
        %4098 = vmatpush1.msra.mxu0 %v4061
        %4099 = vmatprep.subr.mxu0 0.0
        %4100 = vmatpush1.msra.mxu0 %v4060
        %4101 = vmatprep.subr.mxu0 0.0
        %4102 = vmatpush1.msra.mxu0 %v4059
        %4103 = vmatprep.subr.mxu0 0.0
        %4104 = vmatpush2.msra.mxu0 0.0
        %4105 = vmatprep.subr.mxu0 0.0
        %4106 = vmatpush2.msra.mxu0 0.0
        %4107 = vmatprep.subr.mxu0 0.0
        %4108 = vmatpush2.msra.mxu0 0.0
        %4109 = vmatprep.subr.mxu0 0.0
        %4110 = vmatpush2.msra.mxu0 0.0
        %4111 = vmatprep.subr.mxu0 0.0
        %4112 = vmatpush2.msra.mxu0 0.0
        %4113 = vmatprep.subr.mxu0 0.0
        %4114 = vmatpush2.msra.mxu0 0.0
        %4115 = vmatprep.subr.mxu0 0.0
        %4116 = vmatpush2.msra.mxu0 0.0
        %4117 = vmatprep.subr.mxu0 0.0
        %4118 = vmatpush2.msra.mxu0 0.0
        %4119 = vmatprep.subr.mxu0 0.0
        %4120 = vmatpush2.msra.mxu0 0.0
        %4121 = vmatprep.subr.mxu0 0.0
        %4122 = vmatpush2.msra.mxu0 0.0
        %4123 = vmatprep.subr.mxu0 0.0
        %4124 = vmatpush2.msra.mxu0 0.0
        %4125 = vmatprep.subr.mxu0 0.0
        %4126 = vmatpush2.msra.mxu0 0.0
        %4127 = vmatprep.subr.mxu0 0.0
        %4128 = vmatpush2.msra.mxu0 0.0
        %4129 = vmatprep.subr.mxu0 0.0
        %4130 = vmatpush2.msra.mxu0 0.0
        %4131 = vmatprep.subr.mxu0 0.0
        %4132 = vmatpush2.msra.mxu0 0.0
        %4133 = vmatprep.subr.mxu0 0.0
        %4134 = vmatpush2.msra.mxu0 0.0
        %4135 = vmatprep.mubr.f32.mxu0 0.0
        %4136 = vmatmul.mubr.f32.gmra.mxu0 %v3970
        %v4137 = vpop.f32.mrf.mxu0
        %v4138 = vadd.f32 %v4069, %v4137
        %v4139 = vpop.f32.mrf.mxu0
        %4140 = vmatprep.mubr.f32.mxu0 0.0
        %4141 = vmatmul.mubr.f32.gmra.mxu0 %v3973
        %v4142 = vpop.f32.mrf.mxu0
        %v4143 = vadd.f32 %v4069, %v4142
        %v4144 = vpop.f32.mrf.mxu0
        %4145 = vmatprep.mubr.f32.mxu0 0.0
        %4146 = vmatmul.mubr.f32.gmra.mxu0 %v3976
        %v4147 = vpop.f32.mrf.mxu0
        %v4148 = vadd.f32 %v4069, %v4147
        %v4149 = vpop.f32.mrf.mxu0
        %4150 = vdwg.mxu0
        %s4151 = scalar_lea.vmem %s9, 128
        %v4152 = vld [vmem:[%s4151] sm:$0xff]
        %v4153 = vld [vmem:[%s4151 + $0x8] sm:$0xff]
        %v4154 = vld [vmem:[%s4151 + $0x10] sm:$0xff]
        %v4155 = vld [vmem:[%s4151 + $0x18] sm:$0xff]
        %s4156 = scalar_lea.vmem %s10, 4
        %v4157 = vld [vmem:[%s4156] sm:$0x1]
        %v4159 = vlaneseq
        %v4160 = vshrl.u32 %v4159, 7
        %v4161 = vsub.s32 0, %v4160
        %v4162 = vrot.slane %v4157, %v4161
        %4164 = vmatprep.subr.mxu0 0.0
        %4165 = vmatpush1.msra.mxu0 0.0
        %4166 = vmatprep.subr.mxu0 0.0
        %4167 = vmatpush1.msra.mxu0 0.0
        %4168 = vmatprep.subr.mxu0 0.0
        %4169 = vmatpush1.msra.mxu0 0.0
        %4170 = vmatprep.subr.mxu0 0.0
        %4171 = vmatpush1.msra.mxu0 0.0
        %4172 = vmatprep.subr.mxu0 0.0
        %4173 = vmatpush1.msra.mxu0 0.0
        %4174 = vmatprep.subr.mxu0 0.0
        %4175 = vmatpush1.msra.mxu0 0.0
        %4176 = vmatprep.subr.mxu0 0.0
        %4177 = vmatpush1.msra.mxu0 0.0
        %4178 = vmatprep.subr.mxu0 0.0
        %4179 = vmatpush1.msra.mxu0 0.0
        %4180 = vmatprep.subr.mxu0 0.0
        %4181 = vmatpush1.msra.mxu0 0.0
        %4182 = vmatprep.subr.mxu0 0.0
        %4183 = vmatpush1.msra.mxu0 0.0
        %4184 = vmatprep.subr.mxu0 0.0
        %4185 = vmatpush1.msra.mxu0 0.0
        %4186 = vmatprep.subr.mxu0 0.0
        %4187 = vmatpush1.msra.mxu0 0.0
        %4188 = vmatprep.subr.mxu0 0.0
        %4189 = vmatpush1.msra.mxu0 %v4155
        %4190 = vmatprep.subr.mxu0 0.0
        %4191 = vmatpush1.msra.mxu0 %v4154
        %4192 = vmatprep.subr.mxu0 0.0
        %4193 = vmatpush1.msra.mxu0 %v4153
        %4194 = vmatprep.subr.mxu0 0.0
        %4195 = vmatpush1.msra.mxu0 %v4152
        %4196 = vmatprep.subr.mxu0 0.0
        %4197 = vmatpush2.msra.mxu0 0.0
        %4198 = vmatprep.subr.mxu0 0.0
        %4199 = vmatpush2.msra.mxu0 0.0
        %4200 = vmatprep.subr.mxu0 0.0
        %4201 = vmatpush2.msra.mxu0 0.0
        %4202 = vmatprep.subr.mxu0 0.0
        %4203 = vmatpush2.msra.mxu0 0.0
        %4204 = vmatprep.subr.mxu0 0.0
        %4205 = vmatpush2.msra.mxu0 0.0
        %4206 = vmatprep.subr.mxu0 0.0
        %4207 = vmatpush2.msra.mxu0 0.0
        %4208 = vmatprep.subr.mxu0 0.0
        %4209 = vmatpush2.msra.mxu0 0.0
        %4210 = vmatprep.subr.mxu0 0.0
        %4211 = vmatpush2.msra.mxu0 0.0
        %4212 = vmatprep.subr.mxu0 0.0
        %4213 = vmatpush2.msra.mxu0 0.0
        %4214 = vmatprep.subr.mxu0 0.0
        %4215 = vmatpush2.msra.mxu0 0.0
        %4216 = vmatprep.subr.mxu0 0.0
        %4217 = vmatpush2.msra.mxu0 0.0
        %4218 = vmatprep.subr.mxu0 0.0
        %4219 = vmatpush2.msra.mxu0 0.0
        %4220 = vmatprep.subr.mxu0 0.0
        %4221 = vmatpush2.msra.mxu0 0.0
        %4222 = vmatprep.subr.mxu0 0.0
        %4223 = vmatpush2.msra.mxu0 0.0
        %4224 = vmatprep.subr.mxu0 0.0
        %4225 = vmatpush2.msra.mxu0 0.0
        %4226 = vmatprep.subr.mxu0 0.0
        %4227 = vmatpush2.msra.mxu0 0.0
        %4228 = vmatprep.mubr.f32.mxu0 0.0
        %4229 = vmatmul.mubr.f32.gmra.mxu0 %v3970
        %v4230 = vpop.f32.mrf.mxu0
        %v4231 = vadd.f32 %v4162, %v4230
        %v4232 = vpop.f32.mrf.mxu0
        %4233 = vmatprep.mubr.f32.mxu0 0.0
        %4234 = vmatmul.mubr.f32.gmra.mxu0 %v3973
        %v4235 = vpop.f32.mrf.mxu0
        %v4236 = vadd.f32 %v4162, %v4235
        %v4237 = vpop.f32.mrf.mxu0
        %4238 = vmatprep.mubr.f32.mxu0 0.0
        %4239 = vmatmul.mubr.f32.gmra.mxu0 %v3976
        %v4240 = vpop.f32.mrf.mxu0
        %v4241 = vadd.f32 %v4162, %v4240
        %v4242 = vpop.f32.mrf.mxu0
        %4243 = vdwg.mxu0
        %v4245 = vsel %vm1212, %v4045, 0
        %v4248 = vsel %vm1212, %v4050, 0
        %v4251 = vsel %vm1212, %v4055, 0
        %v4254 = vsel %vm1212, %v4138, 0
        %v4257 = vsel %vm1212, %v4143, 0
        %v4260 = vsel %vm1212, %v4148, 0
        %4262 = vmatprep.subr.mxu0 0.0
        %4263 = vmatpush1.xpose.msra.mxu0 0.0
        %4264 = vmatprep.subr.mxu0 0.0
        %4265 = vmatpush1.xpose.msra.mxu0 0.0
        %4266 = vmatprep.subr.mxu0 0.0
        %4267 = vmatpush1.xpose.msra.mxu0 0.0
        %4268 = vmatprep.subr.mxu0 0.0
        %4269 = vmatpush1.xpose.msra.mxu0 0.0
        %4270 = vmatprep.subr.mxu0 0.0
        %4271 = vmatpush1.xpose.msra.mxu0 0.0
        %4272 = vmatprep.subr.mxu0 0.0
        %4273 = vmatpush1.xpose.msra.mxu0 0.0
        %4274 = vmatprep.subr.mxu0 0.0
        %4275 = vmatpush1.xpose.msra.mxu0 0.0
        %4276 = vmatprep.subr.mxu0 0.0
        %4277 = vmatpush1.xpose.msra.mxu0 0.0
        %4278 = vmatprep.subr.mxu0 0.0
        %4279 = vmatpush1.xpose.msra.mxu0 0.0
        %4280 = vmatprep.subr.mxu0 0.0
        %4281 = vmatpush1.xpose.msra.mxu0 0.0
        %4282 = vmatprep.subr.mxu0 0.0
        %4283 = vmatpush1.xpose.msra.mxu0 0.0
        %4284 = vmatprep.subr.mxu0 0.0
        %4285 = vmatpush1.xpose.msra.mxu0 0.0
        %4286 = vmatprep.subr.mxu0 0.0
        %4287 = vmatpush1.xpose.msra.mxu0 0.0
        %4288 = vmatprep.subr.mxu0 0.0
        %4289 = vmatpush1.xpose.msra.mxu0 %v4260
        %4290 = vmatprep.subr.mxu0 0.0
        %4291 = vmatpush1.xpose.msra.mxu0 %v4257
        %4292 = vmatprep.subr.mxu0 0.0
        %4293 = vmatpush1.xpose.msra.mxu0 %v4254
        %4294 = vmatprep.subr.mxu0 0.0
        %4295 = vmatpush2.xpose.msra.mxu0 0.0
        %4296 = vmatprep.subr.mxu0 0.0
        %4297 = vmatpush2.xpose.msra.mxu0 0.0
        %4298 = vmatprep.subr.mxu0 0.0
        %4299 = vmatpush2.xpose.msra.mxu0 0.0
        %4300 = vmatprep.subr.mxu0 0.0
        %4301 = vmatpush2.xpose.msra.mxu0 0.0
        %4302 = vmatprep.subr.mxu0 0.0
        %4303 = vmatpush2.xpose.msra.mxu0 0.0
        %4304 = vmatprep.subr.mxu0 0.0
        %4305 = vmatpush2.xpose.msra.mxu0 0.0
        %4306 = vmatprep.subr.mxu0 0.0
        %4307 = vmatpush2.xpose.msra.mxu0 0.0
        %4308 = vmatprep.subr.mxu0 0.0
        %4309 = vmatpush2.xpose.msra.mxu0 0.0
        %4310 = vmatprep.subr.mxu0 0.0
        %4311 = vmatpush2.xpose.msra.mxu0 0.0
        %4312 = vmatprep.subr.mxu0 0.0
        %4313 = vmatpush2.xpose.msra.mxu0 0.0
        %4314 = vmatprep.subr.mxu0 0.0
        %4315 = vmatpush2.xpose.msra.mxu0 0.0
        %4316 = vmatprep.subr.mxu0 0.0
        %4317 = vmatpush2.xpose.msra.mxu0 0.0
        %4318 = vmatprep.subr.mxu0 0.0
        %4319 = vmatpush2.xpose.msra.mxu0 0.0
        %4320 = vmatprep.subr.mxu0 0.0
        %4321 = vmatpush2.xpose.msra.mxu0 0.0
        %4322 = vmatprep.subr.mxu0 0.0
        %4323 = vmatpush2.xpose.msra.mxu0 0.0
        %4324 = vmatprep.subr.mxu0 0.0
        %4325 = vmatpush2.xpose.msra.mxu0 0.0
        %4326 = vmatprep.mubr.f32.mxu0 0.0
        %4327 = vmatmul.mubr.f32.gmra.mxu0 %v4245
        %v4328 = vpop.f32.mrf.mxu0
        %v4329 = vadd.f32 0.0, %v4328
        %v4330 = vpop.f32.mrf.mxu0
        %4331 = vmatprep.mubr.f32.mxu0 0.0
        %4332 = vmatmul.mubr.f32.gmra.mxu0 %v4248
        %v4333 = vpop.f32.mrf.mxu0
        %v4334 = vadd.f32 0.0, %v4333
        %v4335 = vpop.f32.mrf.mxu0
        %4336 = vmatprep.mubr.f32.mxu0 0.0
        %4337 = vmatmul.mubr.f32.gmra.mxu0 %v4251
        %v4338 = vpop.f32.mrf.mxu0
        %v4339 = vadd.f32 0.0, %v4338
        %v4340 = vpop.f32.mrf.mxu0
        %4341 = vdwg.mxu0
        %v4342 = vmul.f32 %v4329, 0.35355338
        %v4343 = vmul.f32 %v4334, 0.35355338
        %v4344 = vmul.f32 %v4339, 0.35355338
        %v4345 = vadd.f32 %v4342, %v867
        %v4346 = vadd.f32 %v4343, %v867
        %v4347 = vadd.f32 %v4344, %v867
        %v4348 = vsel %vm1317, %v4345, -inf
        %4349 = vmax.xlane.f32.xlu0 %v4348
        %v4350 = vpop.xlane.xlu0 %4349
        %v4351 = vsel %vm1317, %v4346, -inf
        %4352 = vmax.xlane.f32.xlu0 %v4351
        %v4353 = vpop.xlane.xlu0 %4352
        %v4354 = vsel %vm1317, %v4347, -inf
        %4355 = vmax.xlane.f32.xlu0 %v4354
        %v4356 = vpop.xlane.xlu0 %4355
        %v4357 = vsub.f32 %v4345, %v4350
        %v4358 = vsub.f32 %v4346, %v4353
        %v4359 = vsub.f32 %v4347, %v4356
        %v4360 = vmul.f32 %v4357, 1.442695
        %v4361 = vpow.pop %v4360
        %v4362 = vmul.f32 %v4358, 1.442695
        %v4363 = vpow.pop %v4362
        %v4364 = vmul.f32 %v4359, 1.442695
        %v4365 = vpow.pop %v4364
        %v4366 = vsel %vm1317, %v4361, 0.0
        %4367 = vadd.xlane.f32.xlu0 %v4366
        %v4368 = vpop.xlane.xlu0 %4367
        %v4369 = vsel %vm1317, %v4363, 0.0
        %4370 = vadd.xlane.f32.xlu0 %v4369
        %v4371 = vpop.xlane.xlu0 %4370
        %v4372 = vsel %vm1317, %v4365, 0.0
        %4373 = vadd.xlane.f32.xlu0 %v4372
        %v4374 = vpop.xlane.xlu0 %4373
        %v4375 = vrcp.pop %v4368
        %v4376 = vmul.f32 %v4361, %v4375
        %v4377 = vrcp.pop %v4371
        %v4378 = vmul.f32 %v4363, %v4377
        %v4379 = vrcp.pop %v4374
        %v4380 = vmul.f32 %v4365, %v4379
        %v4382 = vsel %vm1317, %v4376, 0
        %v4385 = vsel %vm1317, %v4378, 0
        %v4388 = vsel %vm1317, %v4380, 0
        %4390 = vmatprep.subr.mxu0 0.0
        %4391 = vmatpush1.msra.mxu0 0.0
        %4392 = vmatprep.subr.mxu0 0.0
        %4393 = vmatpush1.msra.mxu0 0.0
        %4394 = vmatprep.subr.mxu0 0.0
        %4395 = vmatpush1.msra.mxu0 0.0
        %4396 = vmatprep.subr.mxu0 0.0
        %4397 = vmatpush1.msra.mxu0 0.0
        %4398 = vmatprep.subr.mxu0 0.0
        %4399 = vmatpush1.msra.mxu0 0.0
        %4400 = vmatprep.subr.mxu0 0.0
        %4401 = vmatpush1.msra.mxu0 0.0
        %4402 = vmatprep.subr.mxu0 0.0
        %4403 = vmatpush1.msra.mxu0 0.0
        %4404 = vmatprep.subr.mxu0 0.0
        %4405 = vmatpush1.msra.mxu0 0.0
        %4406 = vmatprep.subr.mxu0 0.0
        %4407 = vmatpush1.msra.mxu0 0.0
        %4408 = vmatprep.subr.mxu0 0.0
        %4409 = vmatpush1.msra.mxu0 0.0
        %4410 = vmatprep.subr.mxu0 0.0
        %4411 = vmatpush1.msra.mxu0 0.0
        %4412 = vmatprep.subr.mxu0 0.0
        %4413 = vmatpush1.msra.mxu0 0.0
        %4414 = vmatprep.subr.mxu0 0.0
        %4415 = vmatpush1.msra.mxu0 0.0
        %4416 = vmatprep.subr.mxu0 0.0
        %4417 = vmatpush1.msra.mxu0 %v4241
        %4418 = vmatprep.subr.mxu0 0.0
        %4419 = vmatpush1.msra.mxu0 %v4236
        %4420 = vmatprep.subr.mxu0 0.0
        %4421 = vmatpush1.msra.mxu0 %v4231
        %4422 = vmatprep.subr.mxu0 0.0
        %4423 = vmatpush2.msra.mxu0 0.0
        %4424 = vmatprep.subr.mxu0 0.0
        %4425 = vmatpush2.msra.mxu0 0.0
        %4426 = vmatprep.subr.mxu0 0.0
        %4427 = vmatpush2.msra.mxu0 0.0
        %4428 = vmatprep.subr.mxu0 0.0
        %4429 = vmatpush2.msra.mxu0 0.0
        %4430 = vmatprep.subr.mxu0 0.0
        %4431 = vmatpush2.msra.mxu0 0.0
        %4432 = vmatprep.subr.mxu0 0.0
        %4433 = vmatpush2.msra.mxu0 0.0
        %4434 = vmatprep.subr.mxu0 0.0
        %4435 = vmatpush2.msra.mxu0 0.0
        %4436 = vmatprep.subr.mxu0 0.0
        %4437 = vmatpush2.msra.mxu0 0.0
        %4438 = vmatprep.subr.mxu0 0.0
        %4439 = vmatpush2.msra.mxu0 0.0
        %4440 = vmatprep.subr.mxu0 0.0
        %4441 = vmatpush2.msra.mxu0 0.0
        %4442 = vmatprep.subr.mxu0 0.0
        %4443 = vmatpush2.msra.mxu0 0.0
        %4444 = vmatprep.subr.mxu0 0.0
        %4445 = vmatpush2.msra.mxu0 0.0
        %4446 = vmatprep.subr.mxu0 0.0
        %4447 = vmatpush2.msra.mxu0 0.0
        %4448 = vmatprep.subr.mxu0 0.0
        %4449 = vmatpush2.msra.mxu0 0.0
        %4450 = vmatprep.subr.mxu0 0.0
        %4451 = vmatpush2.msra.mxu0 0.0
        %4452 = vmatprep.subr.mxu0 0.0
        %4453 = vmatpush2.msra.mxu0 0.0
        %4454 = vmatprep.mubr.f32.mxu0 0.0
        %4455 = vmatmul.mubr.f32.gmra.mxu0 %v4382
        %v4456 = vpop.f32.mrf.mxu0
        %v4457 = vadd.f32 0.0, %v4456
        %v4458 = vpop.f32.mrf.mxu0
        %4459 = vmatprep.mubr.f32.mxu0 0.0
        %4460 = vmatmul.mubr.f32.gmra.mxu0 %v4385
        %v4461 = vpop.f32.mrf.mxu0
        %v4462 = vadd.f32 0.0, %v4461
        %v4463 = vpop.f32.mrf.mxu0
        %4464 = vmatprep.mubr.f32.mxu0 0.0
        %4465 = vmatmul.mubr.f32.gmra.mxu0 %v4388
        %v4466 = vpop.f32.mrf.mxu0
        %v4467 = vadd.f32 0.0, %v4466
        %v4468 = vpop.f32.mrf.mxu0
        %4469 = vdwg.mxu0
        %s4470 = scalar_lea.vmem %s11, 32
        %v4471 = vld [vmem:[%s4470] sm:$0xff]
        %v4473 = vsel %vm1212, %v4457, 0
        %v4476 = vsel %vm1212, %v4462, 0
        %v4479 = vsel %vm1212, %v4467, 0
        %4481 = vmatprep.subr.mxu0 0.0
        %4482 = vmatpush1.msra.mxu0 0.0
        %4483 = vmatprep.subr.mxu0 0.0
        %4484 = vmatpush1.msra.mxu0 0.0
        %4485 = vmatprep.subr.mxu0 0.0
        %4486 = vmatpush1.msra.mxu0 0.0
        %4487 = vmatprep.subr.mxu0 0.0
        %4488 = vmatpush1.msra.mxu0 0.0
        %4489 = vmatprep.subr.mxu0 0.0
        %4490 = vmatpush1.msra.mxu0 0.0
        %4491 = vmatprep.subr.mxu0 0.0
        %4492 = vmatpush1.msra.mxu0 0.0
        %4493 = vmatprep.subr.mxu0 0.0
        %4494 = vmatpush1.msra.mxu0 0.0
        %4495 = vmatprep.subr.mxu0 0.0
        %4496 = vmatpush1.msra.mxu0 0.0
        %4497 = vmatprep.subr.mxu0 0.0
        %4498 = vmatpush1.msra.mxu0 0.0
        %4499 = vmatprep.subr.mxu0 0.0
        %4500 = vmatpush1.msra.mxu0 0.0
        %4501 = vmatprep.subr.mxu0 0.0
        %4502 = vmatpush1.msra.mxu0 0.0
        %4503 = vmatprep.subr.mxu0 0.0
        %4504 = vmatpush1.msra.mxu0 0.0
        %4505 = vmatprep.subr.mxu0 0.0
        %4506 = vmatpush1.msra.mxu0 0.0
        %4507 = vmatprep.subr.mxu0 0.0
        %4508 = vmatpush1.msra.mxu0 0.0
        %4509 = vmatprep.subr.mxu0 0.0
        %4510 = vmatpush1.msra.mxu0 0.0
        %4511 = vmatprep.subr.mxu0 0.0
        %4512 = vmatpush1.msra.mxu0 %v4471
        %4513 = vmatprep.subr.mxu0 0.0
        %4514 = vmatpush2.msra.mxu0 0.0
        %4515 = vmatprep.subr.mxu0 0.0
        %4516 = vmatpush2.msra.mxu0 0.0
        %4517 = vmatprep.subr.mxu0 0.0
        %4518 = vmatpush2.msra.mxu0 0.0
        %4519 = vmatprep.subr.mxu0 0.0
        %4520 = vmatpush2.msra.mxu0 0.0
        %4521 = vmatprep.subr.mxu0 0.0
        %4522 = vmatpush2.msra.mxu0 0.0
        %4523 = vmatprep.subr.mxu0 0.0
        %4524 = vmatpush2.msra.mxu0 0.0
        %4525 = vmatprep.subr.mxu0 0.0
        %4526 = vmatpush2.msra.mxu0 0.0
        %4527 = vmatprep.subr.mxu0 0.0
        %4528 = vmatpush2.msra.mxu0 0.0
        %4529 = vmatprep.subr.mxu0 0.0
        %4530 = vmatpush2.msra.mxu0 0.0
        %4531 = vmatprep.subr.mxu0 0.0
        %4532 = vmatpush2.msra.mxu0 0.0
        %4533 = vmatprep.subr.mxu0 0.0
        %4534 = vmatpush2.msra.mxu0 0.0
        %4535 = vmatprep.subr.mxu0 0.0
        %4536 = vmatpush2.msra.mxu0 0.0
        %4537 = vmatprep.subr.mxu0 0.0
        %4538 = vmatpush2.msra.mxu0 0.0
        %4539 = vmatprep.subr.mxu0 0.0
        %4540 = vmatpush2.msra.mxu0 0.0
        %4541 = vmatprep.subr.mxu0 0.0
        %4542 = vmatpush2.msra.mxu0 0.0
        %4543 = vmatprep.subr.mxu0 0.0
        %4544 = vmatpush2.msra.mxu0 0.0
        %4545 = vmatprep.mubr.f32.mxu0 0.0
        %4546 = vmatmul.mubr.f32.gmra.mxu0 %v4473
        %v4547 = vpop.f32.mrf.mxu0
        %v4548 = vadd.f32 0.0, %v4547
        %v4549 = vpop.f32.mrf.mxu0
        %4550 = vmatprep.mubr.f32.mxu0 0.0
        %4551 = vmatmul.mubr.f32.gmra.mxu0 %v4476
        %v4552 = vpop.f32.mrf.mxu0
        %v4553 = vadd.f32 0.0, %v4552
        %v4554 = vpop.f32.mrf.mxu0
        %4555 = vmatprep.mubr.f32.mxu0 0.0
        %4556 = vmatmul.mubr.f32.gmra.mxu0 %v4479
        %v4557 = vpop.f32.mrf.mxu0
        %v4558 = vadd.f32 0.0, %v4557
        %v4559 = vpop.f32.mrf.mxu0
        %4560 = vdwg.mxu0
        %v4562 = vlaneseq
        %v4563 = vshrl.u32 %v4562, 7
        %v4564 = vsub.s32 0, %v4563
        %v4565 = vrot.slane %v3955, %v4564
        %v4567 = vadd.f32 %v4565, %v4548
        %v4568 = vadd.f32 %v4565, %v4553
        %v4569 = vadd.f32 %v4565, %v4558
        %s4570 = scalar_lea.vmem %s5, 160
        %v4571 = vld [vmem:[%s4570] sm:$0xff]
        %v4572 = vld [vmem:[%s4570 + $0x8] sm:$0xff]
        %v4573 = vld [vmem:[%s4570 + $0x10] sm:$0xff]
        %v4574 = vld [vmem:[%s4570 + $0x18] sm:$0xff]
        %s4575 = scalar_lea.vmem %s6, 5
        %v4576 = vld [vmem:[%s4575] sm:$0x1]
        %v4578 = vlaneseq
        %v4579 = vshrl.u32 %v4578, 7
        %v4580 = vsub.s32 0, %v4579
        %v4581 = vrot.slane %v4576, %v4580
        %4583 = vmatprep.subr.mxu0 0.0
        %4584 = vmatpush1.msra.mxu0 0.0
        %4585 = vmatprep.subr.mxu0 0.0
        %4586 = vmatpush1.msra.mxu0 0.0
        %4587 = vmatprep.subr.mxu0 0.0
        %4588 = vmatpush1.msra.mxu0 0.0
        %4589 = vmatprep.subr.mxu0 0.0
        %4590 = vmatpush1.msra.mxu0 0.0
        %4591 = vmatprep.subr.mxu0 0.0
        %4592 = vmatpush1.msra.mxu0 0.0
        %4593 = vmatprep.subr.mxu0 0.0
        %4594 = vmatpush1.msra.mxu0 0.0
        %4595 = vmatprep.subr.mxu0 0.0
        %4596 = vmatpush1.msra.mxu0 0.0
        %4597 = vmatprep.subr.mxu0 0.0
        %4598 = vmatpush1.msra.mxu0 0.0
        %4599 = vmatprep.subr.mxu0 0.0
        %4600 = vmatpush1.msra.mxu0 0.0
        %4601 = vmatprep.subr.mxu0 0.0
        %4602 = vmatpush1.msra.mxu0 0.0
        %4603 = vmatprep.subr.mxu0 0.0
        %4604 = vmatpush1.msra.mxu0 0.0
        %4605 = vmatprep.subr.mxu0 0.0
        %4606 = vmatpush1.msra.mxu0 0.0
        %4607 = vmatprep.subr.mxu0 0.0
        %4608 = vmatpush1.msra.mxu0 %v4574
        %4609 = vmatprep.subr.mxu0 0.0
        %4610 = vmatpush1.msra.mxu0 %v4573
        %4611 = vmatprep.subr.mxu0 0.0
        %4612 = vmatpush1.msra.mxu0 %v4572
        %4613 = vmatprep.subr.mxu0 0.0
        %4614 = vmatpush1.msra.mxu0 %v4571
        %4615 = vmatprep.subr.mxu0 0.0
        %4616 = vmatpush2.msra.mxu0 0.0
        %4617 = vmatprep.subr.mxu0 0.0
        %4618 = vmatpush2.msra.mxu0 0.0
        %4619 = vmatprep.subr.mxu0 0.0
        %4620 = vmatpush2.msra.mxu0 0.0
        %4621 = vmatprep.subr.mxu0 0.0
        %4622 = vmatpush2.msra.mxu0 0.0
        %4623 = vmatprep.subr.mxu0 0.0
        %4624 = vmatpush2.msra.mxu0 0.0
        %4625 = vmatprep.subr.mxu0 0.0
        %4626 = vmatpush2.msra.mxu0 0.0
        %4627 = vmatprep.subr.mxu0 0.0
        %4628 = vmatpush2.msra.mxu0 0.0
        %4629 = vmatprep.subr.mxu0 0.0
        %4630 = vmatpush2.msra.mxu0 0.0
        %4631 = vmatprep.subr.mxu0 0.0
        %4632 = vmatpush2.msra.mxu0 0.0
        %4633 = vmatprep.subr.mxu0 0.0
        %4634 = vmatpush2.msra.mxu0 0.0
        %4635 = vmatprep.subr.mxu0 0.0
        %4636 = vmatpush2.msra.mxu0 0.0
        %4637 = vmatprep.subr.mxu0 0.0
        %4638 = vmatpush2.msra.mxu0 0.0
        %4639 = vmatprep.subr.mxu0 0.0
        %4640 = vmatpush2.msra.mxu0 0.0
        %4641 = vmatprep.subr.mxu0 0.0
        %4642 = vmatpush2.msra.mxu0 0.0
        %4643 = vmatprep.subr.mxu0 0.0
        %4644 = vmatpush2.msra.mxu0 0.0
        %4645 = vmatprep.subr.mxu0 0.0
        %4646 = vmatpush2.msra.mxu0 0.0
        %4647 = vmatprep.mubr.f32.mxu0 0.0
        %4648 = vmatmul.mubr.f32.gmra.mxu0 %v3970
        %v4649 = vpop.f32.mrf.mxu0
        %v4650 = vadd.f32 %v4581, %v4649
        %v4651 = vpop.f32.mrf.mxu0
        %4652 = vmatprep.mubr.f32.mxu0 0.0
        %4653 = vmatmul.mubr.f32.gmra.mxu0 %v3973
        %v4654 = vpop.f32.mrf.mxu0
        %v4655 = vadd.f32 %v4581, %v4654
        %v4656 = vpop.f32.mrf.mxu0
        %4657 = vmatprep.mubr.f32.mxu0 0.0
        %4658 = vmatmul.mubr.f32.gmra.mxu0 %v3976
        %v4659 = vpop.f32.mrf.mxu0
        %v4660 = vadd.f32 %v4581, %v4659
        %v4661 = vpop.f32.mrf.mxu0
        %4662 = vdwg.mxu0
        %s4663 = scalar_lea.vmem %s7, 160
        %v4664 = vld [vmem:[%s4663] sm:$0xff]
        %v4665 = vld [vmem:[%s4663 + $0x8] sm:$0xff]
        %v4666 = vld [vmem:[%s4663 + $0x10] sm:$0xff]
        %v4667 = vld [vmem:[%s4663 + $0x18] sm:$0xff]
        %s4668 = scalar_lea.vmem %s8, 5
        %v4669 = vld [vmem:[%s4668] sm:$0x1]
        %v4671 = vlaneseq
        %v4672 = vshrl.u32 %v4671, 7
        %v4673 = vsub.s32 0, %v4672
        %v4674 = vrot.slane %v4669, %v4673
        %4676 = vmatprep.subr.mxu0 0.0
        %4677 = vmatpush1.msra.mxu0 0.0
        %4678 = vmatprep.subr.mxu0 0.0
        %4679 = vmatpush1.msra.mxu0 0.0
        %4680 = vmatprep.subr.mxu0 0.0
        %4681 = vmatpush1.msra.mxu0 0.0
        %4682 = vmatprep.subr.mxu0 0.0
        %4683 = vmatpush1.msra.mxu0 0.0
        %4684 = vmatprep.subr.mxu0 0.0
        %4685 = vmatpush1.msra.mxu0 0.0
        %4686 = vmatprep.subr.mxu0 0.0
        %4687 = vmatpush1.msra.mxu0 0.0
        %4688 = vmatprep.subr.mxu0 0.0
        %4689 = vmatpush1.msra.mxu0 0.0
        %4690 = vmatprep.subr.mxu0 0.0
        %4691 = vmatpush1.msra.mxu0 0.0
        %4692 = vmatprep.subr.mxu0 0.0
        %4693 = vmatpush1.msra.mxu0 0.0
        %4694 = vmatprep.subr.mxu0 0.0
        %4695 = vmatpush1.msra.mxu0 0.0
        %4696 = vmatprep.subr.mxu0 0.0
        %4697 = vmatpush1.msra.mxu0 0.0
        %4698 = vmatprep.subr.mxu0 0.0
        %4699 = vmatpush1.msra.mxu0 0.0
        %4700 = vmatprep.subr.mxu0 0.0
        %4701 = vmatpush1.msra.mxu0 %v4667
        %4702 = vmatprep.subr.mxu0 0.0
        %4703 = vmatpush1.msra.mxu0 %v4666
        %4704 = vmatprep.subr.mxu0 0.0
        %4705 = vmatpush1.msra.mxu0 %v4665
        %4706 = vmatprep.subr.mxu0 0.0
        %4707 = vmatpush1.msra.mxu0 %v4664
        %4708 = vmatprep.subr.mxu0 0.0
        %4709 = vmatpush2.msra.mxu0 0.0
        %4710 = vmatprep.subr.mxu0 0.0
        %4711 = vmatpush2.msra.mxu0 0.0
        %4712 = vmatprep.subr.mxu0 0.0
        %4713 = vmatpush2.msra.mxu0 0.0
        %4714 = vmatprep.subr.mxu0 0.0
        %4715 = vmatpush2.msra.mxu0 0.0
        %4716 = vmatprep.subr.mxu0 0.0
        %4717 = vmatpush2.msra.mxu0 0.0
        %4718 = vmatprep.subr.mxu0 0.0
        %4719 = vmatpush2.msra.mxu0 0.0
        %4720 = vmatprep.subr.mxu0 0.0
        %4721 = vmatpush2.msra.mxu0 0.0
        %4722 = vmatprep.subr.mxu0 0.0
        %4723 = vmatpush2.msra.mxu0 0.0
        %4724 = vmatprep.subr.mxu0 0.0
        %4725 = vmatpush2.msra.mxu0 0.0
        %4726 = vmatprep.subr.mxu0 0.0
        %4727 = vmatpush2.msra.mxu0 0.0
        %4728 = vmatprep.subr.mxu0 0.0
        %4729 = vmatpush2.msra.mxu0 0.0
        %4730 = vmatprep.subr.mxu0 0.0
        %4731 = vmatpush2.msra.mxu0 0.0
        %4732 = vmatprep.subr.mxu0 0.0
        %4733 = vmatpush2.msra.mxu0 0.0
        %4734 = vmatprep.subr.mxu0 0.0
        %4735 = vmatpush2.msra.mxu0 0.0
        %4736 = vmatprep.subr.mxu0 0.0
        %4737 = vmatpush2.msra.mxu0 0.0
        %4738 = vmatprep.subr.mxu0 0.0
        %4739 = vmatpush2.msra.mxu0 0.0
        %4740 = vmatprep.mubr.f32.mxu0 0.0
        %4741 = vmatmul.mubr.f32.gmra.mxu0 %v3970
        %v4742 = vpop.f32.mrf.mxu0
        %v4743 = vadd.f32 %v4674, %v4742
        %v4744 = vpop.f32.mrf.mxu0
        %4745 = vmatprep.mubr.f32.mxu0 0.0
        %4746 = vmatmul.mubr.f32.gmra.mxu0 %v3973
        %v4747 = vpop.f32.mrf.mxu0
        %v4748 = vadd.f32 %v4674, %v4747
        %v4749 = vpop.f32.mrf.mxu0
        %4750 = vmatprep.mubr.f32.mxu0 0.0
        %4751 = vmatmul.mubr.f32.gmra.mxu0 %v3976
        %v4752 = vpop.f32.mrf.mxu0
        %v4753 = vadd.f32 %v4674, %v4752
        %v4754 = vpop.f32.mrf.mxu0
        %4755 = vdwg.mxu0
        %s4756 = scalar_lea.vmem %s9, 160
        %v4757 = vld [vmem:[%s4756] sm:$0xff]
        %v4758 = vld [vmem:[%s4756 + $0x8] sm:$0xff]
        %v4759 = vld [vmem:[%s4756 + $0x10] sm:$0xff]
        %v4760 = vld [vmem:[%s4756 + $0x18] sm:$0xff]
        %s4761 = scalar_lea.vmem %s10, 5
        %v4762 = vld [vmem:[%s4761] sm:$0x1]
        %v4764 = vlaneseq
        %v4765 = vshrl.u32 %v4764, 7
        %v4766 = vsub.s32 0, %v4765
        %v4767 = vrot.slane %v4762, %v4766
        %4769 = vmatprep.subr.mxu0 0.0
        %4770 = vmatpush1.msra.mxu0 0.0
        %4771 = vmatprep.subr.mxu0 0.0
        %4772 = vmatpush1.msra.mxu0 0.0
        %4773 = vmatprep.subr.mxu0 0.0
        %4774 = vmatpush1.msra.mxu0 0.0
        %4775 = vmatprep.subr.mxu0 0.0
        %4776 = vmatpush1.msra.mxu0 0.0
        %4777 = vmatprep.subr.mxu0 0.0
        %4778 = vmatpush1.msra.mxu0 0.0
        %4779 = vmatprep.subr.mxu0 0.0
        %4780 = vmatpush1.msra.mxu0 0.0
        %4781 = vmatprep.subr.mxu0 0.0
        %4782 = vmatpush1.msra.mxu0 0.0
        %4783 = vmatprep.subr.mxu0 0.0
        %4784 = vmatpush1.msra.mxu0 0.0
        %4785 = vmatprep.subr.mxu0 0.0
        %4786 = vmatpush1.msra.mxu0 0.0
        %4787 = vmatprep.subr.mxu0 0.0
        %4788 = vmatpush1.msra.mxu0 0.0
        %4789 = vmatprep.subr.mxu0 0.0
        %4790 = vmatpush1.msra.mxu0 0.0
        %4791 = vmatprep.subr.mxu0 0.0
        %4792 = vmatpush1.msra.mxu0 0.0
        %4793 = vmatprep.subr.mxu0 0.0
        %4794 = vmatpush1.msra.mxu0 %v4760
        %4795 = vmatprep.subr.mxu0 0.0
        %4796 = vmatpush1.msra.mxu0 %v4759
        %4797 = vmatprep.subr.mxu0 0.0
        %4798 = vmatpush1.msra.mxu0 %v4758
        %4799 = vmatprep.subr.mxu0 0.0
        %4800 = vmatpush1.msra.mxu0 %v4757
        %4801 = vmatprep.subr.mxu0 0.0
        %4802 = vmatpush2.msra.mxu0 0.0
        %4803 = vmatprep.subr.mxu0 0.0
        %4804 = vmatpush2.msra.mxu0 0.0
        %4805 = vmatprep.subr.mxu0 0.0
        %4806 = vmatpush2.msra.mxu0 0.0
        %4807 = vmatprep.subr.mxu0 0.0
        %4808 = vmatpush2.msra.mxu0 0.0
        %4809 = vmatprep.subr.mxu0 0.0
        %4810 = vmatpush2.msra.mxu0 0.0
        %4811 = vmatprep.subr.mxu0 0.0
        %4812 = vmatpush2.msra.mxu0 0.0
        %4813 = vmatprep.subr.mxu0 0.0
        %4814 = vmatpush2.msra.mxu0 0.0
        %4815 = vmatprep.subr.mxu0 0.0
        %4816 = vmatpush2.msra.mxu0 0.0
        %4817 = vmatprep.subr.mxu0 0.0
        %4818 = vmatpush2.msra.mxu0 0.0
        %4819 = vmatprep.subr.mxu0 0.0
        %4820 = vmatpush2.msra.mxu0 0.0
        %4821 = vmatprep.subr.mxu0 0.0
        %4822 = vmatpush2.msra.mxu0 0.0
        %4823 = vmatprep.subr.mxu0 0.0
        %4824 = vmatpush2.msra.mxu0 0.0
        %4825 = vmatprep.subr.mxu0 0.0
        %4826 = vmatpush2.msra.mxu0 0.0
        %4827 = vmatprep.subr.mxu0 0.0
        %4828 = vmatpush2.msra.mxu0 0.0
        %4829 = vmatprep.subr.mxu0 0.0
        %4830 = vmatpush2.msra.mxu0 0.0
        %4831 = vmatprep.subr.mxu0 0.0
        %4832 = vmatpush2.msra.mxu0 0.0
        %4833 = vmatprep.mubr.f32.mxu0 0.0
        %4834 = vmatmul.mubr.f32.gmra.mxu0 %v3970
        %v4835 = vpop.f32.mrf.mxu0
        %v4836 = vadd.f32 %v4767, %v4835
        %v4837 = vpop.f32.mrf.mxu0
        %4838 = vmatprep.mubr.f32.mxu0 0.0
        %4839 = vmatmul.mubr.f32.gmra.mxu0 %v3973
        %v4840 = vpop.f32.mrf.mxu0
        %v4841 = vadd.f32 %v4767, %v4840
        %v4842 = vpop.f32.mrf.mxu0
        %4843 = vmatprep.mubr.f32.mxu0 0.0
        %4844 = vmatmul.mubr.f32.gmra.mxu0 %v3976
        %v4845 = vpop.f32.mrf.mxu0
        %v4846 = vadd.f32 %v4767, %v4845
        %v4847 = vpop.f32.mrf.mxu0
        %4848 = vdwg.mxu0
        %v4850 = vsel %vm1212, %v4650, 0
        %v4853 = vsel %vm1212, %v4655, 0
        %v4856 = vsel %vm1212, %v4660, 0
        %v4859 = vsel %vm1212, %v4743, 0
        %v4862 = vsel %vm1212, %v4748, 0
        %v4865 = vsel %vm1212, %v4753, 0
        %4867 = vmatprep.subr.mxu0 0.0
        %4868 = vmatpush1.xpose.msra.mxu0 0.0
        %4869 = vmatprep.subr.mxu0 0.0
        %4870 = vmatpush1.xpose.msra.mxu0 0.0
        %4871 = vmatprep.subr.mxu0 0.0
        %4872 = vmatpush1.xpose.msra.mxu0 0.0
        %4873 = vmatprep.subr.mxu0 0.0
        %4874 = vmatpush1.xpose.msra.mxu0 0.0
        %4875 = vmatprep.subr.mxu0 0.0
        %4876 = vmatpush1.xpose.msra.mxu0 0.0
        %4877 = vmatprep.subr.mxu0 0.0
        %4878 = vmatpush1.xpose.msra.mxu0 0.0
        %4879 = vmatprep.subr.mxu0 0.0
        %4880 = vmatpush1.xpose.msra.mxu0 0.0
        %4881 = vmatprep.subr.mxu0 0.0
        %4882 = vmatpush1.xpose.msra.mxu0 0.0
        %4883 = vmatprep.subr.mxu0 0.0
        %4884 = vmatpush1.xpose.msra.mxu0 0.0
        %4885 = vmatprep.subr.mxu0 0.0
        %4886 = vmatpush1.xpose.msra.mxu0 0.0
        %4887 = vmatprep.subr.mxu0 0.0
        %4888 = vmatpush1.xpose.msra.mxu0 0.0
        %4889 = vmatprep.subr.mxu0 0.0
        %4890 = vmatpush1.xpose.msra.mxu0 0.0
        %4891 = vmatprep.subr.mxu0 0.0
        %4892 = vmatpush1.xpose.msra.mxu0 0.0
        %4893 = vmatprep.subr.mxu0 0.0
        %4894 = vmatpush1.xpose.msra.mxu0 %v4865
        %4895 = vmatprep.subr.mxu0 0.0
        %4896 = vmatpush1.xpose.msra.mxu0 %v4862
        %4897 = vmatprep.subr.mxu0 0.0
        %4898 = vmatpush1.xpose.msra.mxu0 %v4859
        %4899 = vmatprep.subr.mxu0 0.0
        %4900 = vmatpush2.xpose.msra.mxu0 0.0
        %4901 = vmatprep.subr.mxu0 0.0
        %4902 = vmatpush2.xpose.msra.mxu0 0.0
        %4903 = vmatprep.subr.mxu0 0.0
        %4904 = vmatpush2.xpose.msra.mxu0 0.0
        %4905 = vmatprep.subr.mxu0 0.0
        %4906 = vmatpush2.xpose.msra.mxu0 0.0
        %4907 = vmatprep.subr.mxu0 0.0
        %4908 = vmatpush2.xpose.msra.mxu0 0.0
        %4909 = vmatprep.subr.mxu0 0.0
        %4910 = vmatpush2.xpose.msra.mxu0 0.0
        %4911 = vmatprep.subr.mxu0 0.0
        %4912 = vmatpush2.xpose.msra.mxu0 0.0
        %4913 = vmatprep.subr.mxu0 0.0
        %4914 = vmatpush2.xpose.msra.mxu0 0.0
        %4915 = vmatprep.subr.mxu0 0.0
        %4916 = vmatpush2.xpose.msra.mxu0 0.0
        %4917 = vmatprep.subr.mxu0 0.0
        %4918 = vmatpush2.xpose.msra.mxu0 0.0
        %4919 = vmatprep.subr.mxu0 0.0
        %4920 = vmatpush2.xpose.msra.mxu0 0.0
        %4921 = vmatprep.subr.mxu0 0.0
        %4922 = vmatpush2.xpose.msra.mxu0 0.0
        %4923 = vmatprep.subr.mxu0 0.0
        %4924 = vmatpush2.xpose.msra.mxu0 0.0
        %4925 = vmatprep.subr.mxu0 0.0
        %4926 = vmatpush2.xpose.msra.mxu0 0.0
        %4927 = vmatprep.subr.mxu0 0.0
        %4928 = vmatpush2.xpose.msra.mxu0 0.0
        %4929 = vmatprep.subr.mxu0 0.0
        %4930 = vmatpush2.xpose.msra.mxu0 0.0
        %4931 = vmatprep.mubr.f32.mxu0 0.0
        %4932 = vmatmul.mubr.f32.gmra.mxu0 %v4850
        %v4933 = vpop.f32.mrf.mxu0
        %v4934 = vadd.f32 0.0, %v4933
        %v4935 = vpop.f32.mrf.mxu0
        %4936 = vmatprep.mubr.f32.mxu0 0.0
        %4937 = vmatmul.mubr.f32.gmra.mxu0 %v4853
        %v4938 = vpop.f32.mrf.mxu0
        %v4939 = vadd.f32 0.0, %v4938
        %v4940 = vpop.f32.mrf.mxu0
        %4941 = vmatprep.mubr.f32.mxu0 0.0
        %4942 = vmatmul.mubr.f32.gmra.mxu0 %v4856
        %v4943 = vpop.f32.mrf.mxu0
        %v4944 = vadd.f32 0.0, %v4943
        %v4945 = vpop.f32.mrf.mxu0
        %4946 = vdwg.mxu0
        %v4947 = vmul.f32 %v4934, 0.35355338
        %v4948 = vmul.f32 %v4939, 0.35355338
        %v4949 = vmul.f32 %v4944, 0.35355338
        %v4950 = vadd.f32 %v4947, %v867
        %v4951 = vadd.f32 %v4948, %v867
        %v4952 = vadd.f32 %v4949, %v867
        %v4953 = vsel %vm1317, %v4950, -inf
        %4954 = vmax.xlane.f32.xlu0 %v4953
        %v4955 = vpop.xlane.xlu0 %4954
        %v4956 = vsel %vm1317, %v4951, -inf
        %4957 = vmax.xlane.f32.xlu0 %v4956
        %v4958 = vpop.xlane.xlu0 %4957
        %v4959 = vsel %vm1317, %v4952, -inf
        %4960 = vmax.xlane.f32.xlu0 %v4959
        %v4961 = vpop.xlane.xlu0 %4960
        %v4962 = vsub.f32 %v4950, %v4955
        %v4963 = vsub.f32 %v4951, %v4958
        %v4964 = vsub.f32 %v4952, %v4961
        %v4965 = vmul.f32 %v4962, 1.442695
        %v4966 = vpow.pop %v4965
        %v4967 = vmul.f32 %v4963, 1.442695
        %v4968 = vpow.pop %v4967
        %v4969 = vmul.f32 %v4964, 1.442695
        %v4970 = vpow.pop %v4969
        %v4971 = vsel %vm1317, %v4966, 0.0
        %4972 = vadd.xlane.f32.xlu0 %v4971
        %v4973 = vpop.xlane.xlu0 %4972
        %v4974 = vsel %vm1317, %v4968, 0.0
        %4975 = vadd.xlane.f32.xlu0 %v4974
        %v4976 = vpop.xlane.xlu0 %4975
        %v4977 = vsel %vm1317, %v4970, 0.0
        %4978 = vadd.xlane.f32.xlu0 %v4977
        %v4979 = vpop.xlane.xlu0 %4978
        %v4980 = vrcp.pop %v4973
        %v4981 = vmul.f32 %v4966, %v4980
        %v4982 = vrcp.pop %v4976
        %v4983 = vmul.f32 %v4968, %v4982
        %v4984 = vrcp.pop %v4979
        %v4985 = vmul.f32 %v4970, %v4984
        %v4987 = vsel %vm1317, %v4981, 0
        %v4990 = vsel %vm1317, %v4983, 0
        %v4993 = vsel %vm1317, %v4985, 0
        %4995 = vmatprep.subr.mxu0 0.0
        %4996 = vmatpush1.msra.mxu0 0.0
        %4997 = vmatprep.subr.mxu0 0.0
        %4998 = vmatpush1.msra.mxu0 0.0
        %4999 = vmatprep.subr.mxu0 0.0
        %5000 = vmatpush1.msra.mxu0 0.0
        %5001 = vmatprep.subr.mxu0 0.0
        %5002 = vmatpush1.msra.mxu0 0.0
        %5003 = vmatprep.subr.mxu0 0.0
        %5004 = vmatpush1.msra.mxu0 0.0
        %5005 = vmatprep.subr.mxu0 0.0
        %5006 = vmatpush1.msra.mxu0 0.0
        %5007 = vmatprep.subr.mxu0 0.0
        %5008 = vmatpush1.msra.mxu0 0.0
        %5009 = vmatprep.subr.mxu0 0.0
        %5010 = vmatpush1.msra.mxu0 0.0
        %5011 = vmatprep.subr.mxu0 0.0
        %5012 = vmatpush1.msra.mxu0 0.0
        %5013 = vmatprep.subr.mxu0 0.0
        %5014 = vmatpush1.msra.mxu0 0.0
        %5015 = vmatprep.subr.mxu0 0.0
        %5016 = vmatpush1.msra.mxu0 0.0
        %5017 = vmatprep.subr.mxu0 0.0
        %5018 = vmatpush1.msra.mxu0 0.0
        %5019 = vmatprep.subr.mxu0 0.0
        %5020 = vmatpush1.msra.mxu0 0.0
        %5021 = vmatprep.subr.mxu0 0.0
        %5022 = vmatpush1.msra.mxu0 %v4846
        %5023 = vmatprep.subr.mxu0 0.0
        %5024 = vmatpush1.msra.mxu0 %v4841
        %5025 = vmatprep.subr.mxu0 0.0
        %5026 = vmatpush1.msra.mxu0 %v4836
        %5027 = vmatprep.subr.mxu0 0.0
        %5028 = vmatpush2.msra.mxu0 0.0
        %5029 = vmatprep.subr.mxu0 0.0
        %5030 = vmatpush2.msra.mxu0 0.0
        %5031 = vmatprep.subr.mxu0 0.0
        %5032 = vmatpush2.msra.mxu0 0.0
        %5033 = vmatprep.subr.mxu0 0.0
        %5034 = vmatpush2.msra.mxu0 0.0
        %5035 = vmatprep.subr.mxu0 0.0
        %5036 = vmatpush2.msra.mxu0 0.0
        %5037 = vmatprep.subr.mxu0 0.0
        %5038 = vmatpush2.msra.mxu0 0.0
        %5039 = vmatprep.subr.mxu0 0.0
        %5040 = vmatpush2.msra.mxu0 0.0
        %5041 = vmatprep.subr.mxu0 0.0
        %5042 = vmatpush2.msra.mxu0 0.0
        %5043 = vmatprep.subr.mxu0 0.0
        %5044 = vmatpush2.msra.mxu0 0.0
        %5045 = vmatprep.subr.mxu0 0.0
        %5046 = vmatpush2.msra.mxu0 0.0
        %5047 = vmatprep.subr.mxu0 0.0
        %5048 = vmatpush2.msra.mxu0 0.0
        %5049 = vmatprep.subr.mxu0 0.0
        %5050 = vmatpush2.msra.mxu0 0.0
        %5051 = vmatprep.subr.mxu0 0.0
        %5052 = vmatpush2.msra.mxu0 0.0
        %5053 = vmatprep.subr.mxu0 0.0
        %5054 = vmatpush2.msra.mxu0 0.0
        %5055 = vmatprep.subr.mxu0 0.0
        %5056 = vmatpush2.msra.mxu0 0.0
        %5057 = vmatprep.subr.mxu0 0.0
        %5058 = vmatpush2.msra.mxu0 0.0
        %5059 = vmatprep.mubr.f32.mxu0 0.0
        %5060 = vmatmul.mubr.f32.gmra.mxu0 %v4987
        %v5061 = vpop.f32.mrf.mxu0
        %v5062 = vadd.f32 0.0, %v5061
        %v5063 = vpop.f32.mrf.mxu0
        %5064 = vmatprep.mubr.f32.mxu0 0.0
        %5065 = vmatmul.mubr.f32.gmra.mxu0 %v4990
        %v5066 = vpop.f32.mrf.mxu0
        %v5067 = vadd.f32 0.0, %v5066
        %v5068 = vpop.f32.mrf.mxu0
        %5069 = vmatprep.mubr.f32.mxu0 0.0
        %5070 = vmatmul.mubr.f32.gmra.mxu0 %v4993
        %v5071 = vpop.f32.mrf.mxu0
        %v5072 = vadd.f32 0.0, %v5071
        %v5073 = vpop.f32.mrf.mxu0
        %5074 = vdwg.mxu0
        %s5075 = scalar_lea.vmem %s11, 40
        %v5076 = vld [vmem:[%s5075] sm:$0xff]
        %v5078 = vsel %vm1212, %v5062, 0
        %v5081 = vsel %vm1212, %v5067, 0
        %v5084 = vsel %vm1212, %v5072, 0
        %5086 = vmatprep.subr.mxu0 0.0
        %5087 = vmatpush1.msra.mxu0 0.0
        %5088 = vmatprep.subr.mxu0 0.0
        %5089 = vmatpush1.msra.mxu0 0.0
        %5090 = vmatprep.subr.mxu0 0.0
        %5091 = vmatpush1.msra.mxu0 0.0
        %5092 = vmatprep.subr.mxu0 0.0
        %5093 = vmatpush1.msra.mxu0 0.0
        %5094 = vmatprep.subr.mxu0 0.0
        %5095 = vmatpush1.msra.mxu0 0.0
        %5096 = vmatprep.subr.mxu0 0.0
        %5097 = vmatpush1.msra.mxu0 0.0
        %5098 = vmatprep.subr.mxu0 0.0
        %5099 = vmatpush1.msra.mxu0 0.0
        %5100 = vmatprep.subr.mxu0 0.0
        %5101 = vmatpush1.msra.mxu0 0.0
        %5102 = vmatprep.subr.mxu0 0.0
        %5103 = vmatpush1.msra.mxu0 0.0
        %5104 = vmatprep.subr.mxu0 0.0
        %5105 = vmatpush1.msra.mxu0 0.0
        %5106 = vmatprep.subr.mxu0 0.0
        %5107 = vmatpush1.msra.mxu0 0.0
        %5108 = vmatprep.subr.mxu0 0.0
        %5109 = vmatpush1.msra.mxu0 0.0
        %5110 = vmatprep.subr.mxu0 0.0
        %5111 = vmatpush1.msra.mxu0 0.0
        %5112 = vmatprep.subr.mxu0 0.0
        %5113 = vmatpush1.msra.mxu0 0.0
        %5114 = vmatprep.subr.mxu0 0.0
        %5115 = vmatpush1.msra.mxu0 0.0
        %5116 = vmatprep.subr.mxu0 0.0
        %5117 = vmatpush1.msra.mxu0 %v5076
        %5118 = vmatprep.subr.mxu0 0.0
        %5119 = vmatpush2.msra.mxu0 0.0
        %5120 = vmatprep.subr.mxu0 0.0
        %5121 = vmatpush2.msra.mxu0 0.0
        %5122 = vmatprep.subr.mxu0 0.0
        %5123 = vmatpush2.msra.mxu0 0.0
        %5124 = vmatprep.subr.mxu0 0.0
        %5125 = vmatpush2.msra.mxu0 0.0
        %5126 = vmatprep.subr.mxu0 0.0
        %5127 = vmatpush2.msra.mxu0 0.0
        %5128 = vmatprep.subr.mxu0 0.0
        %5129 = vmatpush2.msra.mxu0 0.0
        %5130 = vmatprep.subr.mxu0 0.0
        %5131 = vmatpush2.msra.mxu0 0.0
        %5132 = vmatprep.subr.mxu0 0.0
        %5133 = vmatpush2.msra.mxu0 0.0
        %5134 = vmatprep.subr.mxu0 0.0
        %5135 = vmatpush2.msra.mxu0 0.0
        %5136 = vmatprep.subr.mxu0 0.0
        %5137 = vmatpush2.msra.mxu0 0.0
        %5138 = vmatprep.subr.mxu0 0.0
        %5139 = vmatpush2.msra.mxu0 0.0
        %5140 = vmatprep.subr.mxu0 0.0
        %5141 = vmatpush2.msra.mxu0 0.0
        %5142 = vmatprep.subr.mxu0 0.0
        %5143 = vmatpush2.msra.mxu0 0.0
        %5144 = vmatprep.subr.mxu0 0.0
        %5145 = vmatpush2.msra.mxu0 0.0
        %5146 = vmatprep.subr.mxu0 0.0
        %5147 = vmatpush2.msra.mxu0 0.0
        %5148 = vmatprep.subr.mxu0 0.0
        %5149 = vmatpush2.msra.mxu0 0.0
        %5150 = vmatprep.mubr.f32.mxu0 0.0
        %5151 = vmatmul.mubr.f32.gmra.mxu0 %v5078
        %v5152 = vpop.f32.mrf.mxu0
        %v5153 = vadd.f32 0.0, %v5152
        %v5154 = vpop.f32.mrf.mxu0
        %5155 = vmatprep.mubr.f32.mxu0 0.0
        %5156 = vmatmul.mubr.f32.gmra.mxu0 %v5081
        %v5157 = vpop.f32.mrf.mxu0
        %v5158 = vadd.f32 0.0, %v5157
        %v5159 = vpop.f32.mrf.mxu0
        %5160 = vmatprep.mubr.f32.mxu0 0.0
        %5161 = vmatmul.mubr.f32.gmra.mxu0 %v5084
        %v5162 = vpop.f32.mrf.mxu0
        %v5163 = vadd.f32 0.0, %v5162
        %v5164 = vpop.f32.mrf.mxu0
        %5165 = vdwg.mxu0
        %v5166 = vadd.f32 %v4567, %v5153
        %v5167 = vadd.f32 %v4568, %v5158
        %v5168 = vadd.f32 %v4569, %v5163
        %s5169 = scalar_lea.vmem %s5, 192
        %v5170 = vld [vmem:[%s5169] sm:$0xff]
        %v5171 = vld [vmem:[%s5169 + $0x8] sm:$0xff]
        %v5172 = vld [vmem:[%s5169 + $0x10] sm:$0xff]
        %v5173 = vld [vmem:[%s5169 + $0x18] sm:$0xff]
        %s5174 = scalar_lea.vmem %s6, 6
        %v5175 = vld [vmem:[%s5174] sm:$0x1]
        %v5177 = vlaneseq
        %v5178 = vshrl.u32 %v5177, 7
        %v5179 = vsub.s32 0, %v5178
        %v5180 = vrot.slane %v5175, %v5179
        %5182 = vmatprep.subr.mxu0 0.0
        %5183 = vmatpush1.msra.mxu0 0.0
        %5184 = vmatprep.subr.mxu0 0.0
        %5185 = vmatpush1.msra.mxu0 0.0
        %5186 = vmatprep.subr.mxu0 0.0
        %5187 = vmatpush1.msra.mxu0 0.0
        %5188 = vmatprep.subr.mxu0 0.0
        %5189 = vmatpush1.msra.mxu0 0.0
        %5190 = vmatprep.subr.mxu0 0.0
        %5191 = vmatpush1.msra.mxu0 0.0
        %5192 = vmatprep.subr.mxu0 0.0
        %5193 = vmatpush1.msra.mxu0 0.0
        %5194 = vmatprep.subr.mxu0 0.0
        %5195 = vmatpush1.msra.mxu0 0.0
        %5196 = vmatprep.subr.mxu0 0.0
        %5197 = vmatpush1.msra.mxu0 0.0
        %5198 = vmatprep.subr.mxu0 0.0
        %5199 = vmatpush1.msra.mxu0 0.0
        %5200 = vmatprep.subr.mxu0 0.0
        %5201 = vmatpush1.msra.mxu0 0.0
        %5202 = vmatprep.subr.mxu0 0.0
        %5203 = vmatpush1.msra.mxu0 0.0
        %5204 = vmatprep.subr.mxu0 0.0
        %5205 = vmatpush1.msra.mxu0 0.0
        %5206 = vmatprep.subr.mxu0 0.0
        %5207 = vmatpush1.msra.mxu0 %v5173
        %5208 = vmatprep.subr.mxu0 0.0
        %5209 = vmatpush1.msra.mxu0 %v5172
        %5210 = vmatprep.subr.mxu0 0.0
        %5211 = vmatpush1.msra.mxu0 %v5171
        %5212 = vmatprep.subr.mxu0 0.0
        %5213 = vmatpush1.msra.mxu0 %v5170
        %5214 = vmatprep.subr.mxu0 0.0
        %5215 = vmatpush2.msra.mxu0 0.0
        %5216 = vmatprep.subr.mxu0 0.0
        %5217 = vmatpush2.msra.mxu0 0.0
        %5218 = vmatprep.subr.mxu0 0.0
        %5219 = vmatpush2.msra.mxu0 0.0
        %5220 = vmatprep.subr.mxu0 0.0
        %5221 = vmatpush2.msra.mxu0 0.0
        %5222 = vmatprep.subr.mxu0 0.0
        %5223 = vmatpush2.msra.mxu0 0.0
        %5224 = vmatprep.subr.mxu0 0.0
        %5225 = vmatpush2.msra.mxu0 0.0
        %5226 = vmatprep.subr.mxu0 0.0
        %5227 = vmatpush2.msra.mxu0 0.0
        %5228 = vmatprep.subr.mxu0 0.0
        %5229 = vmatpush2.msra.mxu0 0.0
        %5230 = vmatprep.subr.mxu0 0.0
        %5231 = vmatpush2.msra.mxu0 0.0
        %5232 = vmatprep.subr.mxu0 0.0
        %5233 = vmatpush2.msra.mxu0 0.0
        %5234 = vmatprep.subr.mxu0 0.0
        %5235 = vmatpush2.msra.mxu0 0.0
        %5236 = vmatprep.subr.mxu0 0.0
        %5237 = vmatpush2.msra.mxu0 0.0
        %5238 = vmatprep.subr.mxu0 0.0
        %5239 = vmatpush2.msra.mxu0 0.0
        %5240 = vmatprep.subr.mxu0 0.0
        %5241 = vmatpush2.msra.mxu0 0.0
        %5242 = vmatprep.subr.mxu0 0.0
        %5243 = vmatpush2.msra.mxu0 0.0
        %5244 = vmatprep.subr.mxu0 0.0
        %5245 = vmatpush2.msra.mxu0 0.0
        %5246 = vmatprep.mubr.f32.mxu0 0.0
        %5247 = vmatmul.mubr.f32.gmra.mxu0 %v3970
        %v5248 = vpop.f32.mrf.mxu0
        %v5249 = vadd.f32 %v5180, %v5248
        %v5250 = vpop.f32.mrf.mxu0
        %5251 = vmatprep.mubr.f32.mxu0 0.0
        %5252 = vmatmul.mubr.f32.gmra.mxu0 %v3973
        %v5253 = vpop.f32.mrf.mxu0
        %v5254 = vadd.f32 %v5180, %v5253
        %v5255 = vpop.f32.mrf.mxu0
        %5256 = vmatprep.mubr.f32.mxu0 0.0
        %5257 = vmatmul.mubr.f32.gmra.mxu0 %v3976
        %v5258 = vpop.f32.mrf.mxu0
        %v5259 = vadd.f32 %v5180, %v5258
        %v5260 = vpop.f32.mrf.mxu0
        %5261 = vdwg.mxu0
        %s5262 = scalar_lea.vmem %s7, 192
        %v5263 = vld [vmem:[%s5262] sm:$0xff]
        %v5264 = vld [vmem:[%s5262 + $0x8] sm:$0xff]
        %v5265 = vld [vmem:[%s5262 + $0x10] sm:$0xff]
        %v5266 = vld [vmem:[%s5262 + $0x18] sm:$0xff]
        %s5267 = scalar_lea.vmem %s8, 6
        %v5268 = vld [vmem:[%s5267] sm:$0x1]
        %v5270 = vlaneseq
        %v5271 = vshrl.u32 %v5270, 7
        %v5272 = vsub.s32 0, %v5271
        %v5273 = vrot.slane %v5268, %v5272
        %5275 = vmatprep.subr.mxu0 0.0
        %5276 = vmatpush1.msra.mxu0 0.0
        %5277 = vmatprep.subr.mxu0 0.0
        %5278 = vmatpush1.msra.mxu0 0.0
        %5279 = vmatprep.subr.mxu0 0.0
        %5280 = vmatpush1.msra.mxu0 0.0
        %5281 = vmatprep.subr.mxu0 0.0
        %5282 = vmatpush1.msra.mxu0 0.0
        %5283 = vmatprep.subr.mxu0 0.0
        %5284 = vmatpush1.msra.mxu0 0.0
        %5285 = vmatprep.subr.mxu0 0.0
        %5286 = vmatpush1.msra.mxu0 0.0
        %5287 = vmatprep.subr.mxu0 0.0
        %5288 = vmatpush1.msra.mxu0 0.0
        %5289 = vmatprep.subr.mxu0 0.0
        %5290 = vmatpush1.msra.mxu0 0.0
        %5291 = vmatprep.subr.mxu0 0.0
        %5292 = vmatpush1.msra.mxu0 0.0
        %5293 = vmatprep.subr.mxu0 0.0
        %5294 = vmatpush1.msra.mxu0 0.0
        %5295 = vmatprep.subr.mxu0 0.0
        %5296 = vmatpush1.msra.mxu0 0.0
        %5297 = vmatprep.subr.mxu0 0.0
        %5298 = vmatpush1.msra.mxu0 0.0
        %5299 = vmatprep.subr.mxu0 0.0
        %5300 = vmatpush1.msra.mxu0 %v5266
        %5301 = vmatprep.subr.mxu0 0.0
        %5302 = vmatpush1.msra.mxu0 %v5265
        %5303 = vmatprep.subr.mxu0 0.0
        %5304 = vmatpush1.msra.mxu0 %v5264
        %5305 = vmatprep.subr.mxu0 0.0
        %5306 = vmatpush1.msra.mxu0 %v5263
        %5307 = vmatprep.subr.mxu0 0.0
        %5308 = vmatpush2.msra.mxu0 0.0
        %5309 = vmatprep.subr.mxu0 0.0
        %5310 = vmatpush2.msra.mxu0 0.0
        %5311 = vmatprep.subr.mxu0 0.0
        %5312 = vmatpush2.msra.mxu0 0.0
        %5313 = vmatprep.subr.mxu0 0.0
        %5314 = vmatpush2.msra.mxu0 0.0
        %5315 = vmatprep.subr.mxu0 0.0
        %5316 = vmatpush2.msra.mxu0 0.0
        %5317 = vmatprep.subr.mxu0 0.0
        %5318 = vmatpush2.msra.mxu0 0.0
        %5319 = vmatprep.subr.mxu0 0.0
        %5320 = vmatpush2.msra.mxu0 0.0
        %5321 = vmatprep.subr.mxu0 0.0
        %5322 = vmatpush2.msra.mxu0 0.0
        %5323 = vmatprep.subr.mxu0 0.0
        %5324 = vmatpush2.msra.mxu0 0.0
        %5325 = vmatprep.subr.mxu0 0.0
        %5326 = vmatpush2.msra.mxu0 0.0
        %5327 = vmatprep.subr.mxu0 0.0
        %5328 = vmatpush2.msra.mxu0 0.0
        %5329 = vmatprep.subr.mxu0 0.0
        %5330 = vmatpush2.msra.mxu0 0.0
        %5331 = vmatprep.subr.mxu0 0.0
        %5332 = vmatpush2.msra.mxu0 0.0
        %5333 = vmatprep.subr.mxu0 0.0
        %5334 = vmatpush2.msra.mxu0 0.0
        %5335 = vmatprep.subr.mxu0 0.0
        %5336 = vmatpush2.msra.mxu0 0.0
        %5337 = vmatprep.subr.mxu0 0.0
        %5338 = vmatpush2.msra.mxu0 0.0
        %5339 = vmatprep.mubr.f32.mxu0 0.0
        %5340 = vmatmul.mubr.f32.gmra.mxu0 %v3970
        %v5341 = vpop.f32.mrf.mxu0
        %v5342 = vadd.f32 %v5273, %v5341
        %v5343 = vpop.f32.mrf.mxu0
        %5344 = vmatprep.mubr.f32.mxu0 0.0
        %5345 = vmatmul.mubr.f32.gmra.mxu0 %v3973
        %v5346 = vpop.f32.mrf.mxu0
        %v5347 = vadd.f32 %v5273, %v5346
        %v5348 = vpop.f32.mrf.mxu0
        %5349 = vmatprep.mubr.f32.mxu0 0.0
        %5350 = vmatmul.mubr.f32.gmra.mxu0 %v3976
        %v5351 = vpop.f32.mrf.mxu0
        %v5352 = vadd.f32 %v5273, %v5351
        %v5353 = vpop.f32.mrf.mxu0
        %5354 = vdwg.mxu0
        %s5355 = scalar_lea.vmem %s9, 192
        %v5356 = vld [vmem:[%s5355] sm:$0xff]
        %v5357 = vld [vmem:[%s5355 + $0x8] sm:$0xff]
        %v5358 = vld [vmem:[%s5355 + $0x10] sm:$0xff]
        %v5359 = vld [vmem:[%s5355 + $0x18] sm:$0xff]
        %s5360 = scalar_lea.vmem %s10, 6
        %v5361 = vld [vmem:[%s5360] sm:$0x1]
        %v5363 = vlaneseq
        %v5364 = vshrl.u32 %v5363, 7
        %v5365 = vsub.s32 0, %v5364
        %v5366 = vrot.slane %v5361, %v5365
        %5368 = vmatprep.subr.mxu0 0.0
        %5369 = vmatpush1.msra.mxu0 0.0
        %5370 = vmatprep.subr.mxu0 0.0
        %5371 = vmatpush1.msra.mxu0 0.0
        %5372 = vmatprep.subr.mxu0 0.0
        %5373 = vmatpush1.msra.mxu0 0.0
        %5374 = vmatprep.subr.mxu0 0.0
        %5375 = vmatpush1.msra.mxu0 0.0
        %5376 = vmatprep.subr.mxu0 0.0
        %5377 = vmatpush1.msra.mxu0 0.0
        %5378 = vmatprep.subr.mxu0 0.0
        %5379 = vmatpush1.msra.mxu0 0.0
        %5380 = vmatprep.subr.mxu0 0.0
        %5381 = vmatpush1.msra.mxu0 0.0
        %5382 = vmatprep.subr.mxu0 0.0
        %5383 = vmatpush1.msra.mxu0 0.0
        %5384 = vmatprep.subr.mxu0 0.0
        %5385 = vmatpush1.msra.mxu0 0.0
        %5386 = vmatprep.subr.mxu0 0.0
        %5387 = vmatpush1.msra.mxu0 0.0
        %5388 = vmatprep.subr.mxu0 0.0
        %5389 = vmatpush1.msra.mxu0 0.0
        %5390 = vmatprep.subr.mxu0 0.0
        %5391 = vmatpush1.msra.mxu0 0.0
        %5392 = vmatprep.subr.mxu0 0.0
        %5393 = vmatpush1.msra.mxu0 %v5359
        %5394 = vmatprep.subr.mxu0 0.0
        %5395 = vmatpush1.msra.mxu0 %v5358
        %5396 = vmatprep.subr.mxu0 0.0
        %5397 = vmatpush1.msra.mxu0 %v5357
        %5398 = vmatprep.subr.mxu0 0.0
        %5399 = vmatpush1.msra.mxu0 %v5356
        %5400 = vmatprep.subr.mxu0 0.0
        %5401 = vmatpush2.msra.mxu0 0.0
        %5402 = vmatprep.subr.mxu0 0.0
        %5403 = vmatpush2.msra.mxu0 0.0
        %5404 = vmatprep.subr.mxu0 0.0
        %5405 = vmatpush2.msra.mxu0 0.0
        %5406 = vmatprep.subr.mxu0 0.0
        %5407 = vmatpush2.msra.mxu0 0.0
        %5408 = vmatprep.subr.mxu0 0.0
        %5409 = vmatpush2.msra.mxu0 0.0
        %5410 = vmatprep.subr.mxu0 0.0
        %5411 = vmatpush2.msra.mxu0 0.0
        %5412 = vmatprep.subr.mxu0 0.0
        %5413 = vmatpush2.msra.mxu0 0.0
        %5414 = vmatprep.subr.mxu0 0.0
        %5415 = vmatpush2.msra.mxu0 0.0
        %5416 = vmatprep.subr.mxu0 0.0
        %5417 = vmatpush2.msra.mxu0 0.0
        %5418 = vmatprep.subr.mxu0 0.0
        %5419 = vmatpush2.msra.mxu0 0.0
        %5420 = vmatprep.subr.mxu0 0.0
        %5421 = vmatpush2.msra.mxu0 0.0
        %5422 = vmatprep.subr.mxu0 0.0
        %5423 = vmatpush2.msra.mxu0 0.0
        %5424 = vmatprep.subr.mxu0 0.0
        %5425 = vmatpush2.msra.mxu0 0.0
        %5426 = vmatprep.subr.mxu0 0.0
        %5427 = vmatpush2.msra.mxu0 0.0
        %5428 = vmatprep.subr.mxu0 0.0
        %5429 = vmatpush2.msra.mxu0 0.0
        %5430 = vmatprep.subr.mxu0 0.0
        %5431 = vmatpush2.msra.mxu0 0.0
        %5432 = vmatprep.mubr.f32.mxu0 0.0
        %5433 = vmatmul.mubr.f32.gmra.mxu0 %v3970
        %v5434 = vpop.f32.mrf.mxu0
        %v5435 = vadd.f32 %v5366, %v5434
        %v5436 = vpop.f32.mrf.mxu0
        %5437 = vmatprep.mubr.f32.mxu0 0.0
        %5438 = vmatmul.mubr.f32.gmra.mxu0 %v3973
        %v5439 = vpop.f32.mrf.mxu0
        %v5440 = vadd.f32 %v5366, %v5439
        %v5441 = vpop.f32.mrf.mxu0
        %5442 = vmatprep.mubr.f32.mxu0 0.0
        %5443 = vmatmul.mubr.f32.gmra.mxu0 %v3976
        %v5444 = vpop.f32.mrf.mxu0
        %v5445 = vadd.f32 %v5366, %v5444
        %v5446 = vpop.f32.mrf.mxu0
        %5447 = vdwg.mxu0
        %v5449 = vsel %vm1212, %v5249, 0
        %v5452 = vsel %vm1212, %v5254, 0
        %v5455 = vsel %vm1212, %v5259, 0
        %v5458 = vsel %vm1212, %v5342, 0
        %v5461 = vsel %vm1212, %v5347, 0
        %v5464 = vsel %vm1212, %v5352, 0
        %5466 = vmatprep.subr.mxu0 0.0
        %5467 = vmatpush1.xpose.msra.mxu0 0.0
        %5468 = vmatprep.subr.mxu0 0.0
        %5469 = vmatpush1.xpose.msra.mxu0 0.0
        %5470 = vmatprep.subr.mxu0 0.0
        %5471 = vmatpush1.xpose.msra.mxu0 0.0
        %5472 = vmatprep.subr.mxu0 0.0
        %5473 = vmatpush1.xpose.msra.mxu0 0.0
        %5474 = vmatprep.subr.mxu0 0.0
        %5475 = vmatpush1.xpose.msra.mxu0 0.0
        %5476 = vmatprep.subr.mxu0 0.0
        %5477 = vmatpush1.xpose.msra.mxu0 0.0
        %5478 = vmatprep.subr.mxu0 0.0
        %5479 = vmatpush1.xpose.msra.mxu0 0.0
        %5480 = vmatprep.subr.mxu0 0.0
        %5481 = vmatpush1.xpose.msra.mxu0 0.0
        %5482 = vmatprep.subr.mxu0 0.0
        %5483 = vmatpush1.xpose.msra.mxu0 0.0
        %5484 = vmatprep.subr.mxu0 0.0
        %5485 = vmatpush1.xpose.msra.mxu0 0.0
        %5486 = vmatprep.subr.mxu0 0.0
        %5487 = vmatpush1.xpose.msra.mxu0 0.0
        %5488 = vmatprep.subr.mxu0 0.0
        %5489 = vmatpush1.xpose.msra.mxu0 0.0
        %5490 = vmatprep.subr.mxu0 0.0
        %5491 = vmatpush1.xpose.msra.mxu0 0.0
        %5492 = vmatprep.subr.mxu0 0.0
        %5493 = vmatpush1.xpose.msra.mxu0 %v5464
        %5494 = vmatprep.subr.mxu0 0.0
        %5495 = vmatpush1.xpose.msra.mxu0 %v5461
        %5496 = vmatprep.subr.mxu0 0.0
        %5497 = vmatpush1.xpose.msra.mxu0 %v5458
        %5498 = vmatprep.subr.mxu0 0.0
        %5499 = vmatpush2.xpose.msra.mxu0 0.0
        %5500 = vmatprep.subr.mxu0 0.0
        %5501 = vmatpush2.xpose.msra.mxu0 0.0
        %5502 = vmatprep.subr.mxu0 0.0
        %5503 = vmatpush2.xpose.msra.mxu0 0.0
        %5504 = vmatprep.subr.mxu0 0.0
        %5505 = vmatpush2.xpose.msra.mxu0 0.0
        %5506 = vmatprep.subr.mxu0 0.0
        %5507 = vmatpush2.xpose.msra.mxu0 0.0
        %5508 = vmatprep.subr.mxu0 0.0
        %5509 = vmatpush2.xpose.msra.mxu0 0.0
        %5510 = vmatprep.subr.mxu0 0.0
        %5511 = vmatpush2.xpose.msra.mxu0 0.0
        %5512 = vmatprep.subr.mxu0 0.0
        %5513 = vmatpush2.xpose.msra.mxu0 0.0
        %5514 = vmatprep.subr.mxu0 0.0
        %5515 = vmatpush2.xpose.msra.mxu0 0.0
        %5516 = vmatprep.subr.mxu0 0.0
        %5517 = vmatpush2.xpose.msra.mxu0 0.0
        %5518 = vmatprep.subr.mxu0 0.0
        %5519 = vmatpush2.xpose.msra.mxu0 0.0
        %5520 = vmatprep.subr.mxu0 0.0
        %5521 = vmatpush2.xpose.msra.mxu0 0.0
        %5522 = vmatprep.subr.mxu0 0.0
        %5523 = vmatpush2.xpose.msra.mxu0 0.0
        %5524 = vmatprep.subr.mxu0 0.0
        %5525 = vmatpush2.xpose.msra.mxu0 0.0
        %5526 = vmatprep.subr.mxu0 0.0
        %5527 = vmatpush2.xpose.msra.mxu0 0.0
        %5528 = vmatprep.subr.mxu0 0.0
        %5529 = vmatpush2.xpose.msra.mxu0 0.0
        %5530 = vmatprep.mubr.f32.mxu0 0.0
        %5531 = vmatmul.mubr.f32.gmra.mxu0 %v5449
        %v5532 = vpop.f32.mrf.mxu0
        %v5533 = vadd.f32 0.0, %v5532
        %v5534 = vpop.f32.mrf.mxu0
        %5535 = vmatprep.mubr.f32.mxu0 0.0
        %5536 = vmatmul.mubr.f32.gmra.mxu0 %v5452
        %v5537 = vpop.f32.mrf.mxu0
        %v5538 = vadd.f32 0.0, %v5537
        %v5539 = vpop.f32.mrf.mxu0
        %5540 = vmatprep.mubr.f32.mxu0 0.0
        %5541 = vmatmul.mubr.f32.gmra.mxu0 %v5455
        %v5542 = vpop.f32.mrf.mxu0
        %v5543 = vadd.f32 0.0, %v5542
        %v5544 = vpop.f32.mrf.mxu0
        %5545 = vdwg.mxu0
        %v5546 = vmul.f32 %v5533, 0.35355338
        %v5547 = vmul.f32 %v5538, 0.35355338
        %v5548 = vmul.f32 %v5543, 0.35355338
        %v5549 = vadd.f32 %v5546, %v867
        %v5550 = vadd.f32 %v5547, %v867
        %v5551 = vadd.f32 %v5548, %v867
        %v5552 = vsel %vm1317, %v5549, -inf
        %5553 = vmax.xlane.f32.xlu0 %v5552
        %v5554 = vpop.xlane.xlu0 %5553
        %v5555 = vsel %vm1317, %v5550, -inf
        %5556 = vmax.xlane.f32.xlu0 %v5555
        %v5557 = vpop.xlane.xlu0 %5556
        %v5558 = vsel %vm1317, %v5551, -inf
        %5559 = vmax.xlane.f32.xlu0 %v5558
        %v5560 = vpop.xlane.xlu0 %5559
        %v5561 = vsub.f32 %v5549, %v5554
        %v5562 = vsub.f32 %v5550, %v5557
        %v5563 = vsub.f32 %v5551, %v5560
        %v5564 = vmul.f32 %v5561, 1.442695
        %v5565 = vpow.pop %v5564
        %v5566 = vmul.f32 %v5562, 1.442695
        %v5567 = vpow.pop %v5566
        %v5568 = vmul.f32 %v5563, 1.442695
        %v5569 = vpow.pop %v5568
        %v5570 = vsel %vm1317, %v5565, 0.0
        %5571 = vadd.xlane.f32.xlu0 %v5570
        %v5572 = vpop.xlane.xlu0 %5571
        %v5573 = vsel %vm1317, %v5567, 0.0
        %5574 = vadd.xlane.f32.xlu0 %v5573
        %v5575 = vpop.xlane.xlu0 %5574
        %v5576 = vsel %vm1317, %v5569, 0.0
        %5577 = vadd.xlane.f32.xlu0 %v5576
        %v5578 = vpop.xlane.xlu0 %5577
        %v5579 = vrcp.pop %v5572
        %v5580 = vmul.f32 %v5565, %v5579
        %v5581 = vrcp.pop %v5575
        %v5582 = vmul.f32 %v5567, %v5581
        %v5583 = vrcp.pop %v5578
        %v5584 = vmul.f32 %v5569, %v5583
        %v5586 = vsel %vm1317, %v5580, 0
        %v5589 = vsel %vm1317, %v5582, 0
        %v5592 = vsel %vm1317, %v5584, 0
        %5594 = vmatprep.subr.mxu0 0.0
        %5595 = vmatpush1.msra.mxu0 0.0
        %5596 = vmatprep.subr.mxu0 0.0
        %5597 = vmatpush1.msra.mxu0 0.0
        %5598 = vmatprep.subr.mxu0 0.0
        %5599 = vmatpush1.msra.mxu0 0.0
        %5600 = vmatprep.subr.mxu0 0.0
        %5601 = vmatpush1.msra.mxu0 0.0
        %5602 = vmatprep.subr.mxu0 0.0
        %5603 = vmatpush1.msra.mxu0 0.0
        %5604 = vmatprep.subr.mxu0 0.0
        %5605 = vmatpush1.msra.mxu0 0.0
        %5606 = vmatprep.subr.mxu0 0.0
        %5607 = vmatpush1.msra.mxu0 0.0
        %5608 = vmatprep.subr.mxu0 0.0
        %5609 = vmatpush1.msra.mxu0 0.0
        %5610 = vmatprep.subr.mxu0 0.0
        %5611 = vmatpush1.msra.mxu0 0.0
        %5612 = vmatprep.subr.mxu0 0.0
        %5613 = vmatpush1.msra.mxu0 0.0
        %5614 = vmatprep.subr.mxu0 0.0
        %5615 = vmatpush1.msra.mxu0 0.0
        %5616 = vmatprep.subr.mxu0 0.0
        %5617 = vmatpush1.msra.mxu0 0.0
        %5618 = vmatprep.subr.mxu0 0.0
        %5619 = vmatpush1.msra.mxu0 0.0
        %5620 = vmatprep.subr.mxu0 0.0
        %5621 = vmatpush1.msra.mxu0 %v5445
        %5622 = vmatprep.subr.mxu0 0.0
        %5623 = vmatpush1.msra.mxu0 %v5440
        %5624 = vmatprep.subr.mxu0 0.0
        %5625 = vmatpush1.msra.mxu0 %v5435
        %5626 = vmatprep.subr.mxu0 0.0
        %5627 = vmatpush2.msra.mxu0 0.0
        %5628 = vmatprep.subr.mxu0 0.0
        %5629 = vmatpush2.msra.mxu0 0.0
        %5630 = vmatprep.subr.mxu0 0.0
        %5631 = vmatpush2.msra.mxu0 0.0
        %5632 = vmatprep.subr.mxu0 0.0
        %5633 = vmatpush2.msra.mxu0 0.0
        %5634 = vmatprep.subr.mxu0 0.0
        %5635 = vmatpush2.msra.mxu0 0.0
        %5636 = vmatprep.subr.mxu0 0.0
        %5637 = vmatpush2.msra.mxu0 0.0
        %5638 = vmatprep.subr.mxu0 0.0
        %5639 = vmatpush2.msra.mxu0 0.0
        %5640 = vmatprep.subr.mxu0 0.0
        %5641 = vmatpush2.msra.mxu0 0.0
        %5642 = vmatprep.subr.mxu0 0.0
        %5643 = vmatpush2.msra.mxu0 0.0
        %5644 = vmatprep.subr.mxu0 0.0
        %5645 = vmatpush2.msra.mxu0 0.0
        %5646 = vmatprep.subr.mxu0 0.0
        %5647 = vmatpush2.msra.mxu0 0.0
        %5648 = vmatprep.subr.mxu0 0.0
        %5649 = vmatpush2.msra.mxu0 0.0
        %5650 = vmatprep.subr.mxu0 0.0
        %5651 = vmatpush2.msra.mxu0 0.0
        %5652 = vmatprep.subr.mxu0 0.0
        %5653 = vmatpush2.msra.mxu0 0.0
        %5654 = vmatprep.subr.mxu0 0.0
        %5655 = vmatpush2.msra.mxu0 0.0
        %5656 = vmatprep.subr.mxu0 0.0
        %5657 = vmatpush2.msra.mxu0 0.0
        %5658 = vmatprep.mubr.f32.mxu0 0.0
        %5659 = vmatmul.mubr.f32.gmra.mxu0 %v5586
        %v5660 = vpop.f32.mrf.mxu0
        %v5661 = vadd.f32 0.0, %v5660
        %v5662 = vpop.f32.mrf.mxu0
        %5663 = vmatprep.mubr.f32.mxu0 0.0
        %5664 = vmatmul.mubr.f32.gmra.mxu0 %v5589
        %v5665 = vpop.f32.mrf.mxu0
        %v5666 = vadd.f32 0.0, %v5665
        %v5667 = vpop.f32.mrf.mxu0
        %5668 = vmatprep.mubr.f32.mxu0 0.0
        %5669 = vmatmul.mubr.f32.gmra.mxu0 %v5592
        %v5670 = vpop.f32.mrf.mxu0
        %v5671 = vadd.f32 0.0, %v5670
        %v5672 = vpop.f32.mrf.mxu0
        %5673 = vdwg.mxu0
        %s5674 = scalar_lea.vmem %s11, 48
        %v5675 = vld [vmem:[%s5674] sm:$0xff]
        %v5677 = vsel %vm1212, %v5661, 0
        %v5680 = vsel %vm1212, %v5666, 0
        %v5683 = vsel %vm1212, %v5671, 0
        %5685 = vmatprep.subr.mxu0 0.0
        %5686 = vmatpush1.msra.mxu0 0.0
        %5687 = vmatprep.subr.mxu0 0.0
        %5688 = vmatpush1.msra.mxu0 0.0
        %5689 = vmatprep.subr.mxu0 0.0
        %5690 = vmatpush1.msra.mxu0 0.0
        %5691 = vmatprep.subr.mxu0 0.0
        %5692 = vmatpush1.msra.mxu0 0.0
        %5693 = vmatprep.subr.mxu0 0.0
        %5694 = vmatpush1.msra.mxu0 0.0
        %5695 = vmatprep.subr.mxu0 0.0
        %5696 = vmatpush1.msra.mxu0 0.0
        %5697 = vmatprep.subr.mxu0 0.0
        %5698 = vmatpush1.msra.mxu0 0.0
        %5699 = vmatprep.subr.mxu0 0.0
        %5700 = vmatpush1.msra.mxu0 0.0
        %5701 = vmatprep.subr.mxu0 0.0
        %5702 = vmatpush1.msra.mxu0 0.0
        %5703 = vmatprep.subr.mxu0 0.0
        %5704 = vmatpush1.msra.mxu0 0.0
        %5705 = vmatprep.subr.mxu0 0.0
        %5706 = vmatpush1.msra.mxu0 0.0
        %5707 = vmatprep.subr.mxu0 0.0
        %5708 = vmatpush1.msra.mxu0 0.0
        %5709 = vmatprep.subr.mxu0 0.0
        %5710 = vmatpush1.msra.mxu0 0.0
        %5711 = vmatprep.subr.mxu0 0.0
        %5712 = vmatpush1.msra.mxu0 0.0
        %5713 = vmatprep.subr.mxu0 0.0
        %5714 = vmatpush1.msra.mxu0 0.0
        %5715 = vmatprep.subr.mxu0 0.0
        %5716 = vmatpush1.msra.mxu0 %v5675
        %5717 = vmatprep.subr.mxu0 0.0
        %5718 = vmatpush2.msra.mxu0 0.0
        %5719 = vmatprep.subr.mxu0 0.0
        %5720 = vmatpush2.msra.mxu0 0.0
        %5721 = vmatprep.subr.mxu0 0.0
        %5722 = vmatpush2.msra.mxu0 0.0
        %5723 = vmatprep.subr.mxu0 0.0
        %5724 = vmatpush2.msra.mxu0 0.0
        %5725 = vmatprep.subr.mxu0 0.0
        %5726 = vmatpush2.msra.mxu0 0.0
        %5727 = vmatprep.subr.mxu0 0.0
        %5728 = vmatpush2.msra.mxu0 0.0
        %5729 = vmatprep.subr.mxu0 0.0
        %5730 = vmatpush2.msra.mxu0 0.0
        %5731 = vmatprep.subr.mxu0 0.0
        %5732 = vmatpush2.msra.mxu0 0.0
        %5733 = vmatprep.subr.mxu0 0.0
        %5734 = vmatpush2.msra.mxu0 0.0
        %5735 = vmatprep.subr.mxu0 0.0
        %5736 = vmatpush2.msra.mxu0 0.0
        %5737 = vmatprep.subr.mxu0 0.0
        %5738 = vmatpush2.msra.mxu0 0.0
        %5739 = vmatprep.subr.mxu0 0.0
        %5740 = vmatpush2.msra.mxu0 0.0
        %5741 = vmatprep.subr.mxu0 0.0
        %5742 = vmatpush2.msra.mxu0 0.0
        %5743 = vmatprep.subr.mxu0 0.0
        %5744 = vmatpush2.msra.mxu0 0.0
        %5745 = vmatprep.subr.mxu0 0.0
        %5746 = vmatpush2.msra.mxu0 0.0
        %5747 = vmatprep.subr.mxu0 0.0
        %5748 = vmatpush2.msra.mxu0 0.0
        %5749 = vmatprep.mubr.f32.mxu0 0.0
        %5750 = vmatmul.mubr.f32.gmra.mxu0 %v5677
        %v5751 = vpop.f32.mrf.mxu0
        %v5752 = vadd.f32 0.0, %v5751
        %v5753 = vpop.f32.mrf.mxu0
        %5754 = vmatprep.mubr.f32.mxu0 0.0
        %5755 = vmatmul.mubr.f32.gmra.mxu0 %v5680
        %v5756 = vpop.f32.mrf.mxu0
        %v5757 = vadd.f32 0.0, %v5756
        %v5758 = vpop.f32.mrf.mxu0
        %5759 = vmatprep.mubr.f32.mxu0 0.0
        %5760 = vmatmul.mubr.f32.gmra.mxu0 %v5683
        %v5761 = vpop.f32.mrf.mxu0
        %v5762 = vadd.f32 0.0, %v5761
        %v5763 = vpop.f32.mrf.mxu0
        %5764 = vdwg.mxu0
        %v5765 = vadd.f32 %v5166, %v5752
        %v5766 = vadd.f32 %v5167, %v5757
        %v5767 = vadd.f32 %v5168, %v5762
        %s5768 = scalar_lea.vmem %s5, 224
        %v5769 = vld [vmem:[%s5768] sm:$0xff]
        %v5770 = vld [vmem:[%s5768 + $0x8] sm:$0xff]
        %v5771 = vld [vmem:[%s5768 + $0x10] sm:$0xff]
        %v5772 = vld [vmem:[%s5768 + $0x18] sm:$0xff]
        %s5773 = scalar_lea.vmem %s6, 7
        %v5774 = vld [vmem:[%s5773] sm:$0x1]
        %v5776 = vlaneseq
        %v5777 = vshrl.u32 %v5776, 7
        %v5778 = vsub.s32 0, %v5777
        %v5779 = vrot.slane %v5774, %v5778
        %5781 = vmatprep.subr.mxu0 0.0
        %5782 = vmatpush1.msra.mxu0 0.0
        %5783 = vmatprep.subr.mxu0 0.0
        %5784 = vmatpush1.msra.mxu0 0.0
        %5785 = vmatprep.subr.mxu0 0.0
        %5786 = vmatpush1.msra.mxu0 0.0
        %5787 = vmatprep.subr.mxu0 0.0
        %5788 = vmatpush1.msra.mxu0 0.0
        %5789 = vmatprep.subr.mxu0 0.0
        %5790 = vmatpush1.msra.mxu0 0.0
        %5791 = vmatprep.subr.mxu0 0.0
        %5792 = vmatpush1.msra.mxu0 0.0
        %5793 = vmatprep.subr.mxu0 0.0
        %5794 = vmatpush1.msra.mxu0 0.0
        %5795 = vmatprep.subr.mxu0 0.0
        %5796 = vmatpush1.msra.mxu0 0.0
        %5797 = vmatprep.subr.mxu0 0.0
        %5798 = vmatpush1.msra.mxu0 0.0
        %5799 = vmatprep.subr.mxu0 0.0
        %5800 = vmatpush1.msra.mxu0 0.0
        %5801 = vmatprep.subr.mxu0 0.0
        %5802 = vmatpush1.msra.mxu0 0.0
        %5803 = vmatprep.subr.mxu0 0.0
        %5804 = vmatpush1.msra.mxu0 0.0
        %5805 = vmatprep.subr.mxu0 0.0
        %5806 = vmatpush1.msra.mxu0 %v5772
        %5807 = vmatprep.subr.mxu0 0.0
        %5808 = vmatpush1.msra.mxu0 %v5771
        %5809 = vmatprep.subr.mxu0 0.0
        %5810 = vmatpush1.msra.mxu0 %v5770
        %5811 = vmatprep.subr.mxu0 0.0
        %5812 = vmatpush1.msra.mxu0 %v5769
        %5813 = vmatprep.subr.mxu0 0.0
        %5814 = vmatpush2.msra.mxu0 0.0
        %5815 = vmatprep.subr.mxu0 0.0
        %5816 = vmatpush2.msra.mxu0 0.0
        %5817 = vmatprep.subr.mxu0 0.0
        %5818 = vmatpush2.msra.mxu0 0.0
        %5819 = vmatprep.subr.mxu0 0.0
        %5820 = vmatpush2.msra.mxu0 0.0
        %5821 = vmatprep.subr.mxu0 0.0
        %5822 = vmatpush2.msra.mxu0 0.0
        %5823 = vmatprep.subr.mxu0 0.0
        %5824 = vmatpush2.msra.mxu0 0.0
        %5825 = vmatprep.subr.mxu0 0.0
        %5826 = vmatpush2.msra.mxu0 0.0
        %5827 = vmatprep.subr.mxu0 0.0
        %5828 = vmatpush2.msra.mxu0 0.0
        %5829 = vmatprep.subr.mxu0 0.0
        %5830 = vmatpush2.msra.mxu0 0.0
        %5831 = vmatprep.subr.mxu0 0.0
        %5832 = vmatpush2.msra.mxu0 0.0
        %5833 = vmatprep.subr.mxu0 0.0
        %5834 = vmatpush2.msra.mxu0 0.0
        %5835 = vmatprep.subr.mxu0 0.0
        %5836 = vmatpush2.msra.mxu0 0.0
        %5837 = vmatprep.subr.mxu0 0.0
        %5838 = vmatpush2.msra.mxu0 0.0
        %5839 = vmatprep.subr.mxu0 0.0
        %5840 = vmatpush2.msra.mxu0 0.0
        %5841 = vmatprep.subr.mxu0 0.0
        %5842 = vmatpush2.msra.mxu0 0.0
        %5843 = vmatprep.subr.mxu0 0.0
        %5844 = vmatpush2.msra.mxu0 0.0
        %5845 = vmatprep.mubr.f32.mxu0 0.0
        %5846 = vmatmul.mubr.f32.gmra.mxu0 %v3970
        %v5847 = vpop.f32.mrf.mxu0
        %v5848 = vadd.f32 %v5779, %v5847
        %v5849 = vpop.f32.mrf.mxu0
        %5850 = vmatprep.mubr.f32.mxu0 0.0
        %5851 = vmatmul.mubr.f32.gmra.mxu0 %v3973
        %v5852 = vpop.f32.mrf.mxu0
        %v5853 = vadd.f32 %v5779, %v5852
        %v5854 = vpop.f32.mrf.mxu0
        %5855 = vmatprep.mubr.f32.mxu0 0.0
        %5856 = vmatmul.mubr.f32.gmra.mxu0 %v3976
        %v5857 = vpop.f32.mrf.mxu0
        %v5858 = vadd.f32 %v5779, %v5857
        %v5859 = vpop.f32.mrf.mxu0
        %5860 = vdwg.mxu0
        %s5861 = scalar_lea.vmem %s7, 224
        %v5862 = vld [vmem:[%s5861] sm:$0xff]
        %v5863 = vld [vmem:[%s5861 + $0x8] sm:$0xff]
        %v5864 = vld [vmem:[%s5861 + $0x10] sm:$0xff]
        %v5865 = vld [vmem:[%s5861 + $0x18] sm:$0xff]
        %s5866 = scalar_lea.vmem %s8, 7
        %v5867 = vld [vmem:[%s5866] sm:$0x1]
        %v5869 = vlaneseq
        %v5870 = vshrl.u32 %v5869, 7
        %v5871 = vsub.s32 0, %v5870
        %v5872 = vrot.slane %v5867, %v5871
        %5874 = vmatprep.subr.mxu0 0.0
        %5875 = vmatpush1.msra.mxu0 0.0
        %5876 = vmatprep.subr.mxu0 0.0
        %5877 = vmatpush1.msra.mxu0 0.0
        %5878 = vmatprep.subr.mxu0 0.0
        %5879 = vmatpush1.msra.mxu0 0.0
        %5880 = vmatprep.subr.mxu0 0.0
        %5881 = vmatpush1.msra.mxu0 0.0
        %5882 = vmatprep.subr.mxu0 0.0
        %5883 = vmatpush1.msra.mxu0 0.0
        %5884 = vmatprep.subr.mxu0 0.0
        %5885 = vmatpush1.msra.mxu0 0.0
        %5886 = vmatprep.subr.mxu0 0.0
        %5887 = vmatpush1.msra.mxu0 0.0
        %5888 = vmatprep.subr.mxu0 0.0
        %5889 = vmatpush1.msra.mxu0 0.0
        %5890 = vmatprep.subr.mxu0 0.0
        %5891 = vmatpush1.msra.mxu0 0.0
        %5892 = vmatprep.subr.mxu0 0.0
        %5893 = vmatpush1.msra.mxu0 0.0
        %5894 = vmatprep.subr.mxu0 0.0
        %5895 = vmatpush1.msra.mxu0 0.0
        %5896 = vmatprep.subr.mxu0 0.0
        %5897 = vmatpush1.msra.mxu0 0.0
        %5898 = vmatprep.subr.mxu0 0.0
        %5899 = vmatpush1.msra.mxu0 %v5865
        %5900 = vmatprep.subr.mxu0 0.0
        %5901 = vmatpush1.msra.mxu0 %v5864
        %5902 = vmatprep.subr.mxu0 0.0
        %5903 = vmatpush1.msra.mxu0 %v5863
        %5904 = vmatprep.subr.mxu0 0.0
        %5905 = vmatpush1.msra.mxu0 %v5862
        %5906 = vmatprep.subr.mxu0 0.0
        %5907 = vmatpush2.msra.mxu0 0.0
        %5908 = vmatprep.subr.mxu0 0.0
        %5909 = vmatpush2.msra.mxu0 0.0
        %5910 = vmatprep.subr.mxu0 0.0
        %5911 = vmatpush2.msra.mxu0 0.0
        %5912 = vmatprep.subr.mxu0 0.0
        %5913 = vmatpush2.msra.mxu0 0.0
        %5914 = vmatprep.subr.mxu0 0.0
        %5915 = vmatpush2.msra.mxu0 0.0
        %5916 = vmatprep.subr.mxu0 0.0
        %5917 = vmatpush2.msra.mxu0 0.0
        %5918 = vmatprep.subr.mxu0 0.0
        %5919 = vmatpush2.msra.mxu0 0.0
        %5920 = vmatprep.subr.mxu0 0.0
        %5921 = vmatpush2.msra.mxu0 0.0
        %5922 = vmatprep.subr.mxu0 0.0
        %5923 = vmatpush2.msra.mxu0 0.0
        %5924 = vmatprep.subr.mxu0 0.0
        %5925 = vmatpush2.msra.mxu0 0.0
        %5926 = vmatprep.subr.mxu0 0.0
        %5927 = vmatpush2.msra.mxu0 0.0
        %5928 = vmatprep.subr.mxu0 0.0
        %5929 = vmatpush2.msra.mxu0 0.0
        %5930 = vmatprep.subr.mxu0 0.0
        %5931 = vmatpush2.msra.mxu0 0.0
        %5932 = vmatprep.subr.mxu0 0.0
        %5933 = vmatpush2.msra.mxu0 0.0
        %5934 = vmatprep.subr.mxu0 0.0
        %5935 = vmatpush2.msra.mxu0 0.0
        %5936 = vmatprep.subr.mxu0 0.0
        %5937 = vmatpush2.msra.mxu0 0.0
        %5938 = vmatprep.mubr.f32.mxu0 0.0
        %5939 = vmatmul.mubr.f32.gmra.mxu0 %v3970
        %v5940 = vpop.f32.mrf.mxu0
        %v5941 = vadd.f32 %v5872, %v5940
        %v5942 = vpop.f32.mrf.mxu0
        %5943 = vmatprep.mubr.f32.mxu0 0.0
        %5944 = vmatmul.mubr.f32.gmra.mxu0 %v3973
        %v5945 = vpop.f32.mrf.mxu0
        %v5946 = vadd.f32 %v5872, %v5945
        %v5947 = vpop.f32.mrf.mxu0
        %5948 = vmatprep.mubr.f32.mxu0 0.0
        %5949 = vmatmul.mubr.f32.gmra.mxu0 %v3976
        %v5950 = vpop.f32.mrf.mxu0
        %v5951 = vadd.f32 %v5872, %v5950
        %v5952 = vpop.f32.mrf.mxu0
        %5953 = vdwg.mxu0
        %s5954 = scalar_lea.vmem %s9, 224
        %v5955 = vld [vmem:[%s5954] sm:$0xff]
        %v5956 = vld [vmem:[%s5954 + $0x8] sm:$0xff]
        %v5957 = vld [vmem:[%s5954 + $0x10] sm:$0xff]
        %v5958 = vld [vmem:[%s5954 + $0x18] sm:$0xff]
        %s5959 = scalar_lea.vmem %s10, 7
        %v5960 = vld [vmem:[%s5959] sm:$0x1]
        %v5962 = vlaneseq
        %v5963 = vshrl.u32 %v5962, 7
        %v5964 = vsub.s32 0, %v5963
        %v5965 = vrot.slane %v5960, %v5964
        %5967 = vmatprep.subr.mxu0 0.0
        %5968 = vmatpush1.msra.mxu0 0.0
        %5969 = vmatprep.subr.mxu0 0.0
        %5970 = vmatpush1.msra.mxu0 0.0
        %5971 = vmatprep.subr.mxu0 0.0
        %5972 = vmatpush1.msra.mxu0 0.0
        %5973 = vmatprep.subr.mxu0 0.0
        %5974 = vmatpush1.msra.mxu0 0.0
        %5975 = vmatprep.subr.mxu0 0.0
        %5976 = vmatpush1.msra.mxu0 0.0
        %5977 = vmatprep.subr.mxu0 0.0
        %5978 = vmatpush1.msra.mxu0 0.0
        %5979 = vmatprep.subr.mxu0 0.0
        %5980 = vmatpush1.msra.mxu0 0.0
        %5981 = vmatprep.subr.mxu0 0.0
        %5982 = vmatpush1.msra.mxu0 0.0
        %5983 = vmatprep.subr.mxu0 0.0
        %5984 = vmatpush1.msra.mxu0 0.0
        %5985 = vmatprep.subr.mxu0 0.0
        %5986 = vmatpush1.msra.mxu0 0.0
        %5987 = vmatprep.subr.mxu0 0.0
        %5988 = vmatpush1.msra.mxu0 0.0
        %5989 = vmatprep.subr.mxu0 0.0
        %5990 = vmatpush1.msra.mxu0 0.0
        %5991 = vmatprep.subr.mxu0 0.0
        %5992 = vmatpush1.msra.mxu0 %v5958
        %5993 = vmatprep.subr.mxu0 0.0
        %5994 = vmatpush1.msra.mxu0 %v5957
        %5995 = vmatprep.subr.mxu0 0.0
        %5996 = vmatpush1.msra.mxu0 %v5956
        %5997 = vmatprep.subr.mxu0 0.0
        %5998 = vmatpush1.msra.mxu0 %v5955
        %5999 = vmatprep.subr.mxu0 0.0
        %6000 = vmatpush2.msra.mxu0 0.0
        %6001 = vmatprep.subr.mxu0 0.0
        %6002 = vmatpush2.msra.mxu0 0.0
        %6003 = vmatprep.subr.mxu0 0.0
        %6004 = vmatpush2.msra.mxu0 0.0
        %6005 = vmatprep.subr.mxu0 0.0
        %6006 = vmatpush2.msra.mxu0 0.0
        %6007 = vmatprep.subr.mxu0 0.0
        %6008 = vmatpush2.msra.mxu0 0.0
        %6009 = vmatprep.subr.mxu0 0.0
        %6010 = vmatpush2.msra.mxu0 0.0
        %6011 = vmatprep.subr.mxu0 0.0
        %6012 = vmatpush2.msra.mxu0 0.0
        %6013 = vmatprep.subr.mxu0 0.0
        %6014 = vmatpush2.msra.mxu0 0.0
        %6015 = vmatprep.subr.mxu0 0.0
        %6016 = vmatpush2.msra.mxu0 0.0
        %6017 = vmatprep.subr.mxu0 0.0
        %6018 = vmatpush2.msra.mxu0 0.0
        %6019 = vmatprep.subr.mxu0 0.0
        %6020 = vmatpush2.msra.mxu0 0.0
        %6021 = vmatprep.subr.mxu0 0.0
        %6022 = vmatpush2.msra.mxu0 0.0
        %6023 = vmatprep.subr.mxu0 0.0
        %6024 = vmatpush2.msra.mxu0 0.0
        %6025 = vmatprep.subr.mxu0 0.0
        %6026 = vmatpush2.msra.mxu0 0.0
        %6027 = vmatprep.subr.mxu0 0.0
        %6028 = vmatpush2.msra.mxu0 0.0
        %6029 = vmatprep.subr.mxu0 0.0
        %6030 = vmatpush2.msra.mxu0 0.0
        %6031 = vmatprep.mubr.f32.mxu0 0.0
        %6032 = vmatmul.mubr.f32.gmra.mxu0 %v3970
        %v6033 = vpop.f32.mrf.mxu0
        %v6034 = vadd.f32 %v5965, %v6033
        %v6035 = vpop.f32.mrf.mxu0
        %6036 = vmatprep.mubr.f32.mxu0 0.0
        %6037 = vmatmul.mubr.f32.gmra.mxu0 %v3973
        %v6038 = vpop.f32.mrf.mxu0
        %v6039 = vadd.f32 %v5965, %v6038
        %v6040 = vpop.f32.mrf.mxu0
        %6041 = vmatprep.mubr.f32.mxu0 0.0
        %6042 = vmatmul.mubr.f32.gmra.mxu0 %v3976
        %v6043 = vpop.f32.mrf.mxu0
        %v6044 = vadd.f32 %v5965, %v6043
        %v6045 = vpop.f32.mrf.mxu0
        %6046 = vdwg.mxu0
        %v6048 = vsel %vm1212, %v5848, 0
        %v6051 = vsel %vm1212, %v5853, 0
        %v6054 = vsel %vm1212, %v5858, 0
        %v6057 = vsel %vm1212, %v5941, 0
        %v6060 = vsel %vm1212, %v5946, 0
        %v6063 = vsel %vm1212, %v5951, 0
        %6065 = vmatprep.subr.mxu0 0.0
        %6066 = vmatpush1.xpose.msra.mxu0 0.0
        %6067 = vmatprep.subr.mxu0 0.0
        %6068 = vmatpush1.xpose.msra.mxu0 0.0
        %6069 = vmatprep.subr.mxu0 0.0
        %6070 = vmatpush1.xpose.msra.mxu0 0.0
        %6071 = vmatprep.subr.mxu0 0.0
        %6072 = vmatpush1.xpose.msra.mxu0 0.0
        %6073 = vmatprep.subr.mxu0 0.0
        %6074 = vmatpush1.xpose.msra.mxu0 0.0
        %6075 = vmatprep.subr.mxu0 0.0
        %6076 = vmatpush1.xpose.msra.mxu0 0.0
        %6077 = vmatprep.subr.mxu0 0.0
        %6078 = vmatpush1.xpose.msra.mxu0 0.0
        %6079 = vmatprep.subr.mxu0 0.0
        %6080 = vmatpush1.xpose.msra.mxu0 0.0
        %6081 = vmatprep.subr.mxu0 0.0
        %6082 = vmatpush1.xpose.msra.mxu0 0.0
        %6083 = vmatprep.subr.mxu0 0.0
        %6084 = vmatpush1.xpose.msra.mxu0 0.0
        %6085 = vmatprep.subr.mxu0 0.0
        %6086 = vmatpush1.xpose.msra.mxu0 0.0
        %6087 = vmatprep.subr.mxu0 0.0
        %6088 = vmatpush1.xpose.msra.mxu0 0.0
        %6089 = vmatprep.subr.mxu0 0.0
        %6090 = vmatpush1.xpose.msra.mxu0 0.0
        %6091 = vmatprep.subr.mxu0 0.0
        %6092 = vmatpush1.xpose.msra.mxu0 %v6063
        %6093 = vmatprep.subr.mxu0 0.0
        %6094 = vmatpush1.xpose.msra.mxu0 %v6060
        %6095 = vmatprep.subr.mxu0 0.0
        %6096 = vmatpush1.xpose.msra.mxu0 %v6057
        %6097 = vmatprep.subr.mxu0 0.0
        %6098 = vmatpush2.xpose.msra.mxu0 0.0
        %6099 = vmatprep.subr.mxu0 0.0
        %6100 = vmatpush2.xpose.msra.mxu0 0.0
        %6101 = vmatprep.subr.mxu0 0.0
        %6102 = vmatpush2.xpose.msra.mxu0 0.0
        %6103 = vmatprep.subr.mxu0 0.0
        %6104 = vmatpush2.xpose.msra.mxu0 0.0
        %6105 = vmatprep.subr.mxu0 0.0
        %6106 = vmatpush2.xpose.msra.mxu0 0.0
        %6107 = vmatprep.subr.mxu0 0.0
        %6108 = vmatpush2.xpose.msra.mxu0 0.0
        %6109 = vmatprep.subr.mxu0 0.0
        %6110 = vmatpush2.xpose.msra.mxu0 0.0
        %6111 = vmatprep.subr.mxu0 0.0
        %6112 = vmatpush2.xpose.msra.mxu0 0.0
        %6113 = vmatprep.subr.mxu0 0.0
        %6114 = vmatpush2.xpose.msra.mxu0 0.0
        %6115 = vmatprep.subr.mxu0 0.0
        %6116 = vmatpush2.xpose.msra.mxu0 0.0
        %6117 = vmatprep.subr.mxu0 0.0
        %6118 = vmatpush2.xpose.msra.mxu0 0.0
        %6119 = vmatprep.subr.mxu0 0.0
        %6120 = vmatpush2.xpose.msra.mxu0 0.0
        %6121 = vmatprep.subr.mxu0 0.0
        %6122 = vmatpush2.xpose.msra.mxu0 0.0
        %6123 = vmatprep.subr.mxu0 0.0
        %6124 = vmatpush2.xpose.msra.mxu0 0.0
        %6125 = vmatprep.subr.mxu0 0.0
        %6126 = vmatpush2.xpose.msra.mxu0 0.0
        %6127 = vmatprep.subr.mxu0 0.0
        %6128 = vmatpush2.xpose.msra.mxu0 0.0
        %6129 = vmatprep.mubr.f32.mxu0 0.0
        %6130 = vmatmul.mubr.f32.gmra.mxu0 %v6048
        %v6131 = vpop.f32.mrf.mxu0
        %v6132 = vadd.f32 0.0, %v6131
        %v6133 = vpop.f32.mrf.mxu0
        %6134 = vmatprep.mubr.f32.mxu0 0.0
        %6135 = vmatmul.mubr.f32.gmra.mxu0 %v6051
        %v6136 = vpop.f32.mrf.mxu0
        %v6137 = vadd.f32 0.0, %v6136
        %v6138 = vpop.f32.mrf.mxu0
        %6139 = vmatprep.mubr.f32.mxu0 0.0
        %6140 = vmatmul.mubr.f32.gmra.mxu0 %v6054
        %v6141 = vpop.f32.mrf.mxu0
        %v6142 = vadd.f32 0.0, %v6141
        %v6143 = vpop.f32.mrf.mxu0
        %6144 = vdwg.mxu0
        %v6145 = vmul.f32 %v6132, 0.35355338
        %v6146 = vmul.f32 %v6137, 0.35355338
        %v6147 = vmul.f32 %v6142, 0.35355338
        %v6148 = vadd.f32 %v6145, %v867
        %v6149 = vadd.f32 %v6146, %v867
        %v6150 = vadd.f32 %v6147, %v867
        %v6151 = vsel %vm1317, %v6148, -inf
        %6152 = vmax.xlane.f32.xlu0 %v6151
        %v6153 = vpop.xlane.xlu0 %6152
        %v6154 = vsel %vm1317, %v6149, -inf
        %6155 = vmax.xlane.f32.xlu0 %v6154
        %v6156 = vpop.xlane.xlu0 %6155
        %v6157 = vsel %vm1317, %v6150, -inf
        %6158 = vmax.xlane.f32.xlu0 %v6157
        %v6159 = vpop.xlane.xlu0 %6158
        %v6160 = vsub.f32 %v6148, %v6153
        %v6161 = vsub.f32 %v6149, %v6156
        %v6162 = vsub.f32 %v6150, %v6159
        %v6163 = vmul.f32 %v6160, 1.442695
        %v6164 = vpow.pop %v6163
        %v6165 = vmul.f32 %v6161, 1.442695
        %v6166 = vpow.pop %v6165
        %v6167 = vmul.f32 %v6162, 1.442695
        %v6168 = vpow.pop %v6167
        %v6169 = vsel %vm1317, %v6164, 0.0
        %6170 = vadd.xlane.f32.xlu0 %v6169
        %v6171 = vpop.xlane.xlu0 %6170
        %v6172 = vsel %vm1317, %v6166, 0.0
        %6173 = vadd.xlane.f32.xlu0 %v6172
        %v6174 = vpop.xlane.xlu0 %6173
        %v6175 = vsel %vm1317, %v6168, 0.0
        %6176 = vadd.xlane.f32.xlu0 %v6175
        %v6177 = vpop.xlane.xlu0 %6176
        %v6178 = vrcp.pop %v6171
        %v6179 = vmul.f32 %v6164, %v6178
        %v6180 = vrcp.pop %v6174
        %v6181 = vmul.f32 %v6166, %v6180
        %v6182 = vrcp.pop %v6177
        %v6183 = vmul.f32 %v6168, %v6182
        %v6185 = vsel %vm1317, %v6179, 0
        %v6188 = vsel %vm1317, %v6181, 0
        %v6191 = vsel %vm1317, %v6183, 0
        %6193 = vmatprep.subr.mxu0 0.0
        %6194 = vmatpush1.msra.mxu0 0.0
        %6195 = vmatprep.subr.mxu0 0.0
        %6196 = vmatpush1.msra.mxu0 0.0
        %6197 = vmatprep.subr.mxu0 0.0
        %6198 = vmatpush1.msra.mxu0 0.0
        %6199 = vmatprep.subr.mxu0 0.0
        %6200 = vmatpush1.msra.mxu0 0.0
        %6201 = vmatprep.subr.mxu0 0.0
        %6202 = vmatpush1.msra.mxu0 0.0
        %6203 = vmatprep.subr.mxu0 0.0
        %6204 = vmatpush1.msra.mxu0 0.0
        %6205 = vmatprep.subr.mxu0 0.0
        %6206 = vmatpush1.msra.mxu0 0.0
        %6207 = vmatprep.subr.mxu0 0.0
        %6208 = vmatpush1.msra.mxu0 0.0
        %6209 = vmatprep.subr.mxu0 0.0
        %6210 = vmatpush1.msra.mxu0 0.0
        %6211 = vmatprep.subr.mxu0 0.0
        %6212 = vmatpush1.msra.mxu0 0.0
        %6213 = vmatprep.subr.mxu0 0.0
        %6214 = vmatpush1.msra.mxu0 0.0
        %6215 = vmatprep.subr.mxu0 0.0
        %6216 = vmatpush1.msra.mxu0 0.0
        %6217 = vmatprep.subr.mxu0 0.0
        %6218 = vmatpush1.msra.mxu0 0.0
        %6219 = vmatprep.subr.mxu0 0.0
        %6220 = vmatpush1.msra.mxu0 %v6044
        %6221 = vmatprep.subr.mxu0 0.0
        %6222 = vmatpush1.msra.mxu0 %v6039
        %6223 = vmatprep.subr.mxu0 0.0
        %6224 = vmatpush1.msra.mxu0 %v6034
        %6225 = vmatprep.subr.mxu0 0.0
        %6226 = vmatpush2.msra.mxu0 0.0
        %6227 = vmatprep.subr.mxu0 0.0
        %6228 = vmatpush2.msra.mxu0 0.0
        %6229 = vmatprep.subr.mxu0 0.0
        %6230 = vmatpush2.msra.mxu0 0.0
        %6231 = vmatprep.subr.mxu0 0.0
        %6232 = vmatpush2.msra.mxu0 0.0
        %6233 = vmatprep.subr.mxu0 0.0
        %6234 = vmatpush2.msra.mxu0 0.0
        %6235 = vmatprep.subr.mxu0 0.0
        %6236 = vmatpush2.msra.mxu0 0.0
        %6237 = vmatprep.subr.mxu0 0.0
        %6238 = vmatpush2.msra.mxu0 0.0
        %6239 = vmatprep.subr.mxu0 0.0
        %6240 = vmatpush2.msra.mxu0 0.0
        %6241 = vmatprep.subr.mxu0 0.0
        %6242 = vmatpush2.msra.mxu0 0.0
        %6243 = vmatprep.subr.mxu0 0.0
        %6244 = vmatpush2.msra.mxu0 0.0
        %6245 = vmatprep.subr.mxu0 0.0
        %6246 = vmatpush2.msra.mxu0 0.0
        %6247 = vmatprep.subr.mxu0 0.0
        %6248 = vmatpush2.msra.mxu0 0.0
        %6249 = vmatprep.subr.mxu0 0.0
        %6250 = vmatpush2.msra.mxu0 0.0
        %6251 = vmatprep.subr.mxu0 0.0
        %6252 = vmatpush2.msra.mxu0 0.0
        %6253 = vmatprep.subr.mxu0 0.0
        %6254 = vmatpush2.msra.mxu0 0.0
        %6255 = vmatprep.subr.mxu0 0.0
        %6256 = vmatpush2.msra.mxu0 0.0
        %6257 = vmatprep.mubr.f32.mxu0 0.0
        %6258 = vmatmul.mubr.f32.gmra.mxu0 %v6185
        %v6259 = vpop.f32.mrf.mxu0
        %v6260 = vadd.f32 0.0, %v6259
        %v6261 = vpop.f32.mrf.mxu0
        %6262 = vmatprep.mubr.f32.mxu0 0.0
        %6263 = vmatmul.mubr.f32.gmra.mxu0 %v6188
        %v6264 = vpop.f32.mrf.mxu0
        %v6265 = vadd.f32 0.0, %v6264
        %v6266 = vpop.f32.mrf.mxu0
        %6267 = vmatprep.mubr.f32.mxu0 0.0
        %6268 = vmatmul.mubr.f32.gmra.mxu0 %v6191
        %v6269 = vpop.f32.mrf.mxu0
        %v6270 = vadd.f32 0.0, %v6269
        %v6271 = vpop.f32.mrf.mxu0
        %6272 = vdwg.mxu0
        %s6273 = scalar_lea.vmem %s11, 56
        %v6274 = vld [vmem:[%s6273] sm:$0xff]
        %v6276 = vsel %vm1212, %v6260, 0
        %v6279 = vsel %vm1212, %v6265, 0
        %v6282 = vsel %vm1212, %v6270, 0
        %6284 = vmatprep.subr.mxu0 0.0
        %6285 = vmatpush1.msra.mxu0 0.0
        %6286 = vmatprep.subr.mxu0 0.0
        %6287 = vmatpush1.msra.mxu0 0.0
        %6288 = vmatprep.subr.mxu0 0.0
        %6289 = vmatpush1.msra.mxu0 0.0
        %6290 = vmatprep.subr.mxu0 0.0
        %6291 = vmatpush1.msra.mxu0 0.0
        %6292 = vmatprep.subr.mxu0 0.0
        %6293 = vmatpush1.msra.mxu0 0.0
        %6294 = vmatprep.subr.mxu0 0.0
        %6295 = vmatpush1.msra.mxu0 0.0
        %6296 = vmatprep.subr.mxu0 0.0
        %6297 = vmatpush1.msra.mxu0 0.0
        %6298 = vmatprep.subr.mxu0 0.0
        %6299 = vmatpush1.msra.mxu0 0.0
        %6300 = vmatprep.subr.mxu0 0.0
        %6301 = vmatpush1.msra.mxu0 0.0
        %6302 = vmatprep.subr.mxu0 0.0
        %6303 = vmatpush1.msra.mxu0 0.0
        %6304 = vmatprep.subr.mxu0 0.0
        %6305 = vmatpush1.msra.mxu0 0.0
        %6306 = vmatprep.subr.mxu0 0.0
        %6307 = vmatpush1.msra.mxu0 0.0
        %6308 = vmatprep.subr.mxu0 0.0
        %6309 = vmatpush1.msra.mxu0 0.0
        %6310 = vmatprep.subr.mxu0 0.0
        %6311 = vmatpush1.msra.mxu0 0.0
        %6312 = vmatprep.subr.mxu0 0.0
        %6313 = vmatpush1.msra.mxu0 0.0
        %6314 = vmatprep.subr.mxu0 0.0
        %6315 = vmatpush1.msra.mxu0 %v6274
        %6316 = vmatprep.subr.mxu0 0.0
        %6317 = vmatpush2.msra.mxu0 0.0
        %6318 = vmatprep.subr.mxu0 0.0
        %6319 = vmatpush2.msra.mxu0 0.0
        %6320 = vmatprep.subr.mxu0 0.0
        %6321 = vmatpush2.msra.mxu0 0.0
        %6322 = vmatprep.subr.mxu0 0.0
        %6323 = vmatpush2.msra.mxu0 0.0
        %6324 = vmatprep.subr.mxu0 0.0
        %6325 = vmatpush2.msra.mxu0 0.0
        %6326 = vmatprep.subr.mxu0 0.0
        %6327 = vmatpush2.msra.mxu0 0.0
        %6328 = vmatprep.subr.mxu0 0.0
        %6329 = vmatpush2.msra.mxu0 0.0
        %6330 = vmatprep.subr.mxu0 0.0
        %6331 = vmatpush2.msra.mxu0 0.0
        %6332 = vmatprep.subr.mxu0 0.0
        %6333 = vmatpush2.msra.mxu0 0.0
        %6334 = vmatprep.subr.mxu0 0.0
        %6335 = vmatpush2.msra.mxu0 0.0
        %6336 = vmatprep.subr.mxu0 0.0
        %6337 = vmatpush2.msra.mxu0 0.0
        %6338 = vmatprep.subr.mxu0 0.0
        %6339 = vmatpush2.msra.mxu0 0.0
        %6340 = vmatprep.subr.mxu0 0.0
        %6341 = vmatpush2.msra.mxu0 0.0
        %6342 = vmatprep.subr.mxu0 0.0
        %6343 = vmatpush2.msra.mxu0 0.0
        %6344 = vmatprep.subr.mxu0 0.0
        %6345 = vmatpush2.msra.mxu0 0.0
        %6346 = vmatprep.subr.mxu0 0.0
        %6347 = vmatpush2.msra.mxu0 0.0
        %6348 = vmatprep.mubr.f32.mxu0 0.0
        %6349 = vmatmul.mubr.f32.gmra.mxu0 %v6276
        %v6350 = vpop.f32.mrf.mxu0
        %v6351 = vadd.f32 0.0, %v6350
        %v6352 = vpop.f32.mrf.mxu0
        %6353 = vmatprep.mubr.f32.mxu0 0.0
        %6354 = vmatmul.mubr.f32.gmra.mxu0 %v6279
        %v6355 = vpop.f32.mrf.mxu0
        %v6356 = vadd.f32 0.0, %v6355
        %v6357 = vpop.f32.mrf.mxu0
        %6358 = vmatprep.mubr.f32.mxu0 0.0
        %6359 = vmatmul.mubr.f32.gmra.mxu0 %v6282
        %v6360 = vpop.f32.mrf.mxu0
        %v6361 = vadd.f32 0.0, %v6360
        %v6362 = vpop.f32.mrf.mxu0
        %6363 = vdwg.mxu0
        %v6364 = vadd.f32 %v5765, %v6351
        %v6365 = vadd.f32 %v5766, %v6356
        %v6366 = vadd.f32 %v5767, %v6361
        %v6367 = vadd.f32 %v3890, %v6364
        %v6368 = vadd.f32 %v3891, %v6365
        %v6369 = vadd.f32 %v3892, %v6366
        %s6370 = scalar_lea.vmem %s19, 32
        %v6371 = vld [vmem:[%s6370] sm:$0xff]
        %v6372 = vld [vmem:[%s6370 + $0x8] sm:$0xff]
        %v6373 = vld [vmem:[%s6370 + $0x10] sm:$0xff]
        %v6374 = vld [vmem:[%s6370 + $0x18] sm:$0xff]
        %s6375 = scalar_lea.vmem %s20, 1
        %v6376 = vld [vmem:[%s6375] sm:$0x1]
        %v6378 = vlaneseq
        %v6379 = vshrl.u32 %v6378, 7
        %v6380 = vsub.s32 0, %v6379
        %v6381 = vrot.slane %v6376, %v6380
        %v6384 = vsel %vm870, %v6367, 0
        %v6387 = vsel %vm870, %v6368, 0
        %v6390 = vsel %vm870, %v6369, 0
        %6392 = vmatprep.subr.mxu0 0.0
        %6393 = vmatpush1.msra.mxu0 0.0
        %6394 = vmatprep.subr.mxu0 0.0
        %6395 = vmatpush1.msra.mxu0 0.0
        %6396 = vmatprep.subr.mxu0 0.0
        %6397 = vmatpush1.msra.mxu0 0.0
        %6398 = vmatprep.subr.mxu0 0.0
        %6399 = vmatpush1.msra.mxu0 0.0
        %6400 = vmatprep.subr.mxu0 0.0
        %6401 = vmatpush1.msra.mxu0 0.0
        %6402 = vmatprep.subr.mxu0 0.0
        %6403 = vmatpush1.msra.mxu0 0.0
        %6404 = vmatprep.subr.mxu0 0.0
        %6405 = vmatpush1.msra.mxu0 0.0
        %6406 = vmatprep.subr.mxu0 0.0
        %6407 = vmatpush1.msra.mxu0 0.0
        %6408 = vmatprep.subr.mxu0 0.0
        %6409 = vmatpush1.msra.mxu0 0.0
        %6410 = vmatprep.subr.mxu0 0.0
        %6411 = vmatpush1.msra.mxu0 0.0
        %6412 = vmatprep.subr.mxu0 0.0
        %6413 = vmatpush1.msra.mxu0 0.0
        %6414 = vmatprep.subr.mxu0 0.0
        %6415 = vmatpush1.msra.mxu0 0.0
        %6416 = vmatprep.subr.mxu0 0.0
        %6417 = vmatpush1.msra.mxu0 %v6374
        %6418 = vmatprep.subr.mxu0 0.0
        %6419 = vmatpush1.msra.mxu0 %v6373
        %6420 = vmatprep.subr.mxu0 0.0
        %6421 = vmatpush1.msra.mxu0 %v6372
        %6422 = vmatprep.subr.mxu0 0.0
        %6423 = vmatpush1.msra.mxu0 %v6371
        %6424 = vmatprep.subr.mxu0 0.0
        %6425 = vmatpush2.msra.mxu0 0.0
        %6426 = vmatprep.subr.mxu0 0.0
        %6427 = vmatpush2.msra.mxu0 0.0
        %6428 = vmatprep.subr.mxu0 0.0
        %6429 = vmatpush2.msra.mxu0 0.0
        %6430 = vmatprep.subr.mxu0 0.0
        %6431 = vmatpush2.msra.mxu0 0.0
        %6432 = vmatprep.subr.mxu0 0.0
        %6433 = vmatpush2.msra.mxu0 0.0
        %6434 = vmatprep.subr.mxu0 0.0
        %6435 = vmatpush2.msra.mxu0 0.0
        %6436 = vmatprep.subr.mxu0 0.0
        %6437 = vmatpush2.msra.mxu0 0.0
        %6438 = vmatprep.subr.mxu0 0.0
        %6439 = vmatpush2.msra.mxu0 0.0
        %6440 = vmatprep.subr.mxu0 0.0
        %6441 = vmatpush2.msra.mxu0 0.0
        %6442 = vmatprep.subr.mxu0 0.0
        %6443 = vmatpush2.msra.mxu0 0.0
        %6444 = vmatprep.subr.mxu0 0.0
        %6445 = vmatpush2.msra.mxu0 0.0
        %6446 = vmatprep.subr.mxu0 0.0
        %6447 = vmatpush2.msra.mxu0 0.0
        %6448 = vmatprep.subr.mxu0 0.0
        %6449 = vmatpush2.msra.mxu0 0.0
        %6450 = vmatprep.subr.mxu0 0.0
        %6451 = vmatpush2.msra.mxu0 0.0
        %6452 = vmatprep.subr.mxu0 0.0
        %6453 = vmatpush2.msra.mxu0 0.0
        %6454 = vmatprep.subr.mxu0 0.0
        %6455 = vmatpush2.msra.mxu0 0.0
        %6456 = vmatprep.mubr.f32.mxu0 0.0
        %6457 = vmatmul.mubr.f32.gmra.mxu0 %v6384
        %v6458 = vpop.f32.mrf.mxu0
        %v6459 = vadd.f32 %v6381, %v6458
        %v6460 = vpop.f32.mrf.mxu0
        %6461 = vmatprep.mubr.f32.mxu0 0.0
        %6462 = vmatmul.mubr.f32.gmra.mxu0 %v6387
        %v6463 = vpop.f32.mrf.mxu0
        %v6464 = vadd.f32 %v6381, %v6463
        %v6465 = vpop.f32.mrf.mxu0
        %6466 = vmatprep.mubr.f32.mxu0 0.0
        %6467 = vmatmul.mubr.f32.gmra.mxu0 %v6390
        %v6468 = vpop.f32.mrf.mxu0
        %v6469 = vadd.f32 %v6381, %v6468
        %v6470 = vpop.f32.mrf.mxu0
        %6471 = vdwg.mxu0
        %v6472 = vmax.f32 %v6459, 0.0
        %v6473 = vmax.f32 %v6464, 0.0
        %v6474 = vmax.f32 %v6469, 0.0
        %s6475 = scalar_lea.vmem %s21, 16
        %v6476 = vld [vmem:[%s6475] sm:$0xff]
        %v6477 = vld [vmem:[%s6475 + $0x8] sm:$0xff]
        %s6478 = scalar_lea.vmem %s22, 1
        %v6479 = vld [vmem:[%s6478] sm:$0x1]
        %v6481 = vlaneseq
        %v6482 = vshrl.u32 %v6481, 7
        %v6483 = vsub.s32 0, %v6482
        %v6484 = vrot.slane %v6479, %v6483
        %v6487 = vsel %vm3451, %v6472, 0
        %v6490 = vsel %vm3451, %v6473, 0
        %v6493 = vsel %vm3451, %v6474, 0
        %6495 = vmatprep.subr.mxu0 0.0
        %6496 = vmatpush1.msra.mxu0 0.0
        %6497 = vmatprep.subr.mxu0 0.0
        %6498 = vmatpush1.msra.mxu0 0.0
        %6499 = vmatprep.subr.mxu0 0.0
        %6500 = vmatpush1.msra.mxu0 0.0
        %6501 = vmatprep.subr.mxu0 0.0
        %6502 = vmatpush1.msra.mxu0 0.0
        %6503 = vmatprep.subr.mxu0 0.0
        %6504 = vmatpush1.msra.mxu0 0.0
        %6505 = vmatprep.subr.mxu0 0.0
        %6506 = vmatpush1.msra.mxu0 0.0
        %6507 = vmatprep.subr.mxu0 0.0
        %6508 = vmatpush1.msra.mxu0 0.0
        %6509 = vmatprep.subr.mxu0 0.0
        %6510 = vmatpush1.msra.mxu0 0.0
        %6511 = vmatprep.subr.mxu0 0.0
        %6512 = vmatpush1.msra.mxu0 0.0
        %6513 = vmatprep.subr.mxu0 0.0
        %6514 = vmatpush1.msra.mxu0 0.0
        %6515 = vmatprep.subr.mxu0 0.0
        %6516 = vmatpush1.msra.mxu0 0.0
        %6517 = vmatprep.subr.mxu0 0.0
        %6518 = vmatpush1.msra.mxu0 0.0
        %6519 = vmatprep.subr.mxu0 0.0
        %6520 = vmatpush1.msra.mxu0 0.0
        %6521 = vmatprep.subr.mxu0 0.0
        %6522 = vmatpush1.msra.mxu0 0.0
        %6523 = vmatprep.subr.mxu0 0.0
        %6524 = vmatpush1.msra.mxu0 %v6477
        %6525 = vmatprep.subr.mxu0 0.0
        %6526 = vmatpush1.msra.mxu0 %v6476
        %6527 = vmatprep.subr.mxu0 0.0
        %6528 = vmatpush2.msra.mxu0 0.0
        %6529 = vmatprep.subr.mxu0 0.0
        %6530 = vmatpush2.msra.mxu0 0.0
        %6531 = vmatprep.subr.mxu0 0.0
        %6532 = vmatpush2.msra.mxu0 0.0
        %6533 = vmatprep.subr.mxu0 0.0
        %6534 = vmatpush2.msra.mxu0 0.0
        %6535 = vmatprep.subr.mxu0 0.0
        %6536 = vmatpush2.msra.mxu0 0.0
        %6537 = vmatprep.subr.mxu0 0.0
        %6538 = vmatpush2.msra.mxu0 0.0
        %6539 = vmatprep.subr.mxu0 0.0
        %6540 = vmatpush2.msra.mxu0 0.0
        %6541 = vmatprep.subr.mxu0 0.0
        %6542 = vmatpush2.msra.mxu0 0.0
        %6543 = vmatprep.subr.mxu0 0.0
        %6544 = vmatpush2.msra.mxu0 0.0
        %6545 = vmatprep.subr.mxu0 0.0
        %6546 = vmatpush2.msra.mxu0 0.0
        %6547 = vmatprep.subr.mxu0 0.0
        %6548 = vmatpush2.msra.mxu0 0.0
        %6549 = vmatprep.subr.mxu0 0.0
        %6550 = vmatpush2.msra.mxu0 0.0
        %6551 = vmatprep.subr.mxu0 0.0
        %6552 = vmatpush2.msra.mxu0 0.0
        %6553 = vmatprep.subr.mxu0 0.0
        %6554 = vmatpush2.msra.mxu0 0.0
        %6555 = vmatprep.subr.mxu0 0.0
        %6556 = vmatpush2.msra.mxu0 0.0
        %6557 = vmatprep.subr.mxu0 0.0
        %6558 = vmatpush2.msra.mxu0 0.0
        %6559 = vmatprep.mubr.f32.mxu0 0.0
        %6560 = vmatmul.mubr.f32.gmra.mxu0 %v6487
        %v6561 = vpop.f32.mrf.mxu0
        %v6562 = vadd.f32 %v6484, %v6561
        %v6563 = vpop.f32.mrf.mxu0
        %6564 = vmatprep.mubr.f32.mxu0 0.0
        %6565 = vmatmul.mubr.f32.gmra.mxu0 %v6490
        %v6566 = vpop.f32.mrf.mxu0
        %v6567 = vpop.f32.mrf.mxu0
        %6568 = vmatprep.mubr.f32.mxu0 0.0
        %6569 = vmatmul.mubr.f32.gmra.mxu0 %v6493
        %v6570 = vpop.f32.mrf.mxu0
        %v6571 = vpop.f32.mrf.mxu0
        %6572 = vdwg.mxu0
        %v6573 = vmul.f32 %v6562, 0.1
        %s6574 = scalar_lea.vmem %s13, 1
        %v6575 = vld [vmem:[%s6574] sm:$0x1]
        %s6576 = scalar_lea.vmem %s14, 1
        %v6577 = vld [vmem:[%s6576] sm:$0x1]
        %v6578 = vsel %vm870, %v6367, 0.0
        %6579 = vadd.xlane.f32.xlu0 %v6578
        %v6580 = vpop.xlane.xlu0 %6579
        %v6581 = vsel %vm870, %v6368, 0.0
        %6582 = vadd.xlane.f32.xlu0 %v6581
        %v6583 = vpop.xlane.xlu0 %6582
        %v6584 = vsel %vm870, %v6369, 0.0
        %6585 = vadd.xlane.f32.xlu0 %v6584
        %v6586 = vpop.xlane.xlu0 %6585
        %v6587 = vmul.f32 %v6580, %v880
        %v6588 = vmul.f32 %v6583, %v880
        %v6589 = vmul.f32 %v6586, %v880
        %v6590 = vsub.f32 %v6367, %v6587
        %v6591 = vsub.f32 %v6368, %v6588
        %v6592 = vsub.f32 %v6369, %v6589
        %v6593 = vmul.f32 %v6590, %v6590
        %v6594 = vmul.f32 %v6591, %v6591
        %v6595 = vmul.f32 %v6592, %v6592
        %v6596 = vsel %vm870, %v6593, 0.0
        %6597 = vadd.xlane.f32.xlu0 %v6596
        %v6598 = vpop.xlane.xlu0 %6597
        %v6599 = vsel %vm870, %v6594, 0.0
        %6600 = vadd.xlane.f32.xlu0 %v6599
        %v6601 = vpop.xlane.xlu0 %6600
        %v6602 = vsel %vm870, %v6595, 0.0
        %6603 = vadd.xlane.f32.xlu0 %v6602
        %v6604 = vpop.xlane.xlu0 %6603
        %v6605 = vmul.f32 %v6598, %v880
        %v6606 = vmul.f32 %v6601, %v880
        %v6607 = vmul.f32 %v6604, %v880
        %v6608 = vadd.f32 %v6605, 1e-06
        %v6609 = vadd.f32 %v6606, 1e-06
        %v6610 = vadd.f32 %v6607, 1e-06
        %v6611 = vrsqrt.pop %v6608
        %v6612 = vrsqrt.pop %v6609
        %v6613 = vrsqrt.pop %v6610
        %v6614 = vmul.f32 %v6590, %v6611
        %v6615 = vmul.f32 %v6591, %v6612
        %v6616 = vmul.f32 %v6592, %v6613
        %v6618 = vlaneseq
        %v6619 = vshrl.u32 %v6618, 7
        %v6620 = vsub.s32 0, %v6619
        %v6621 = vrot.slane %v6575, %v6620
        %v6623 = vmul.f32 %v6614, %v6621
        %v6624 = vmul.f32 %v6615, %v6621
        %v6625 = vmul.f32 %v6616, %v6621
        %v6627 = vlaneseq
        %v6628 = vshrl.u32 %v6627, 7
        %v6629 = vsub.s32 0, %v6628
        %v6630 = vrot.slane %v6577, %v6629
        %v6632 = vadd.f32 %v6623, %v6630
        %v6633 = vadd.f32 %v6624, %v6630
        %v6634 = vadd.f32 %v6625, %v6630
        %s6635 = scalar_lea.vmem %s15, 32
        %v6636 = vld [vmem:[%s6635] sm:$0xff]
        %v6637 = vld [vmem:[%s6635 + $0x8] sm:$0xff]
        %v6638 = vld [vmem:[%s6635 + $0x10] sm:$0xff]
        %v6639 = vld [vmem:[%s6635 + $0x18] sm:$0xff]
        %s6640 = scalar_lea.vmem %s16, 1
        %v6641 = vld [vmem:[%s6640] sm:$0x1]
        %v6643 = vlaneseq
        %v6644 = vshrl.u32 %v6643, 7
        %v6645 = vsub.s32 0, %v6644
        %v6646 = vrot.slane %v6641, %v6645
        %v6649 = vsel %vm870, %v6632, 0
        %v6652 = vsel %vm870, %v6633, 0
        %v6655 = vsel %vm870, %v6634, 0
        %6657 = vmatprep.subr.mxu0 0.0
        %6658 = vmatpush1.msra.mxu0 0.0
        %6659 = vmatprep.subr.mxu0 0.0
        %6660 = vmatpush1.msra.mxu0 0.0
        %6661 = vmatprep.subr.mxu0 0.0
        %6662 = vmatpush1.msra.mxu0 0.0
        %6663 = vmatprep.subr.mxu0 0.0
        %6664 = vmatpush1.msra.mxu0 0.0
        %6665 = vmatprep.subr.mxu0 0.0
        %6666 = vmatpush1.msra.mxu0 0.0
        %6667 = vmatprep.subr.mxu0 0.0
        %6668 = vmatpush1.msra.mxu0 0.0
        %6669 = vmatprep.subr.mxu0 0.0
        %6670 = vmatpush1.msra.mxu0 0.0
        %6671 = vmatprep.subr.mxu0 0.0
        %6672 = vmatpush1.msra.mxu0 0.0
        %6673 = vmatprep.subr.mxu0 0.0
        %6674 = vmatpush1.msra.mxu0 0.0
        %6675 = vmatprep.subr.mxu0 0.0
        %6676 = vmatpush1.msra.mxu0 0.0
        %6677 = vmatprep.subr.mxu0 0.0
        %6678 = vmatpush1.msra.mxu0 0.0
        %6679 = vmatprep.subr.mxu0 0.0
        %6680 = vmatpush1.msra.mxu0 0.0
        %6681 = vmatprep.subr.mxu0 0.0
        %6682 = vmatpush1.msra.mxu0 %v6639
        %6683 = vmatprep.subr.mxu0 0.0
        %6684 = vmatpush1.msra.mxu0 %v6638
        %6685 = vmatprep.subr.mxu0 0.0
        %6686 = vmatpush1.msra.mxu0 %v6637
        %6687 = vmatprep.subr.mxu0 0.0
        %6688 = vmatpush1.msra.mxu0 %v6636
        %6689 = vmatprep.subr.mxu0 0.0
        %6690 = vmatpush2.msra.mxu0 0.0
        %6691 = vmatprep.subr.mxu0 0.0
        %6692 = vmatpush2.msra.mxu0 0.0
        %6693 = vmatprep.subr.mxu0 0.0
        %6694 = vmatpush2.msra.mxu0 0.0
        %6695 = vmatprep.subr.mxu0 0.0
        %6696 = vmatpush2.msra.mxu0 0.0
        %6697 = vmatprep.subr.mxu0 0.0
        %6698 = vmatpush2.msra.mxu0 0.0
        %6699 = vmatprep.subr.mxu0 0.0
        %6700 = vmatpush2.msra.mxu0 0.0
        %6701 = vmatprep.subr.mxu0 0.0
        %6702 = vmatpush2.msra.mxu0 0.0
        %6703 = vmatprep.subr.mxu0 0.0
        %6704 = vmatpush2.msra.mxu0 0.0
        %6705 = vmatprep.subr.mxu0 0.0
        %6706 = vmatpush2.msra.mxu0 0.0
        %6707 = vmatprep.subr.mxu0 0.0
        %6708 = vmatpush2.msra.mxu0 0.0
        %6709 = vmatprep.subr.mxu0 0.0
        %6710 = vmatpush2.msra.mxu0 0.0
        %6711 = vmatprep.subr.mxu0 0.0
        %6712 = vmatpush2.msra.mxu0 0.0
        %6713 = vmatprep.subr.mxu0 0.0
        %6714 = vmatpush2.msra.mxu0 0.0
        %6715 = vmatprep.subr.mxu0 0.0
        %6716 = vmatpush2.msra.mxu0 0.0
        %6717 = vmatprep.subr.mxu0 0.0
        %6718 = vmatpush2.msra.mxu0 0.0
        %6719 = vmatprep.subr.mxu0 0.0
        %6720 = vmatpush2.msra.mxu0 0.0
        %6721 = vmatprep.mubr.f32.mxu0 0.0
        %6722 = vmatmul.mubr.f32.gmra.mxu0 %v6649
        %v6723 = vpop.f32.mrf.mxu0
        %v6724 = vadd.f32 %v6646, %v6723
        %v6725 = vpop.f32.mrf.mxu0
        %6726 = vmatprep.mubr.f32.mxu0 0.0
        %6727 = vmatmul.mubr.f32.gmra.mxu0 %v6652
        %v6728 = vpop.f32.mrf.mxu0
        %v6729 = vadd.f32 %v6646, %v6728
        %v6730 = vpop.f32.mrf.mxu0
        %6731 = vmatprep.mubr.f32.mxu0 0.0
        %6732 = vmatmul.mubr.f32.gmra.mxu0 %v6655
        %v6733 = vpop.f32.mrf.mxu0
        %v6734 = vadd.f32 %v6646, %v6733
        %v6735 = vpop.f32.mrf.mxu0
        %6736 = vdwg.mxu0
        %v6737 = vmul.f32 %v6724, 0.70710677
        %v6738 = vmul.f32 %v6729, 0.70710677
        %v6739 = vmul.f32 %v6734, 0.70710677
        %v6740 = vand.u32 2147483647, %v6737
        %v6741 = vand.u32 2147483647, %v6738
        %v6742 = vand.u32 2147483647, %v6739
        %v6743 = vmul.f32 %v6740, 0.3275911
        %v6744 = vmul.f32 %v6741, 0.3275911
        %v6745 = vmul.f32 %v6742, 0.3275911
        %v6746 = vadd.f32 %v6743, 1.0
        %v6747 = vadd.f32 %v6744, 1.0
        %v6748 = vadd.f32 %v6745, 1.0
        %v6749 = vrcp.pop %v6746
        %v6750 = vmul.f32 1.0, %v6749
        %v6751 = vrcp.pop %v6747
        %v6752 = vmul.f32 1.0, %v6751
        %v6753 = vrcp.pop %v6748
        %v6754 = vmul.f32 1.0, %v6753
        %v6755 = vmul.f32 %v6750, 1.0614054
        %v6756 = vmul.f32 %v6752, 1.0614054
        %v6757 = vmul.f32 %v6754, 1.0614054
        %v6758 = vsub.f32 %v6755, 1.4531521
        %v6759 = vsub.f32 %v6756, 1.4531521
        %v6760 = vsub.f32 %v6757, 1.4531521
        %v6761 = vmul.f32 %v6758, %v6750
        %v6762 = vmul.f32 %v6759, %v6752
        %v6763 = vmul.f32 %v6760, %v6754
        %v6764 = vadd.f32 %v6761, 1.4214138
        %v6765 = vadd.f32 %v6762, 1.4214138
        %v6766 = vadd.f32 %v6763, 1.4214138
        %v6767 = vmul.f32 %v6764, %v6750
        %v6768 = vmul.f32 %v6765, %v6752
        %v6769 = vmul.f32 %v6766, %v6754
        %v6770 = vsub.f32 %v6767, 0.28449672
        %v6771 = vsub.f32 %v6768, 0.28449672
        %v6772 = vsub.f32 %v6769, 0.28449672
        %v6773 = vmul.f32 %v6770, %v6750
        %v6774 = vmul.f32 %v6771, %v6752
        %v6775 = vmul.f32 %v6772, %v6754
        %v6776 = vadd.f32 %v6773, 0.2548296
        %v6777 = vadd.f32 %v6774, 0.2548296
        %v6778 = vadd.f32 %v6775, 0.2548296
        %v6779 = vmul.f32 %v6776, %v6750
        %v6780 = vmul.f32 %v6777, %v6752
        %v6781 = vmul.f32 %v6778, %v6754
        %v6782 = vsub.f32 0.0, %v6740
        %v6783 = vsub.f32 0.0, %v6741
        %v6784 = vsub.f32 0.0, %v6742
        %v6785 = vmul.f32 %v6782, %v6740
        %v6786 = vmul.f32 %v6783, %v6741
        %v6787 = vmul.f32 %v6784, %v6742
        %v6788 = vmul.f32 %v6785, 1.442695
        %v6789 = vpow.pop %v6788
        %v6790 = vmul.f32 %v6786, 1.442695
        %v6791 = vpow.pop %v6790
        %v6792 = vmul.f32 %v6787, 1.442695
        %v6793 = vpow.pop %v6792
        %v6794 = vmul.f32 %v6779, %v6789
        %v6795 = vmul.f32 %v6780, %v6791
        %v6796 = vmul.f32 %v6781, %v6793
        %v6797 = vsub.f32 1.0, %v6794
        %v6798 = vsub.f32 1.0, %v6795
        %v6799 = vsub.f32 1.0, %v6796
        %vm6800 = vcmp.ge.f32.partialorder %v6737, 0.0
        %vm6801 = vcmp.ge.f32.partialorder %v6738, 0.0
        %vm6802 = vcmp.ge.f32.partialorder %v6739, 0.0
        %v6803 = vsub.f32 0.0, %v6797
        %v6804 = vsub.f32 0.0, %v6798
        %v6805 = vsub.f32 0.0, %v6799
        %v6806 = vsel %vm6800, %v6797, %v6803
        %v6807 = vsel %vm6801, %v6798, %v6804
        %v6808 = vsel %vm6802, %v6799, %v6805
        %v6809 = vmul.f32 %v6724, 0.5
        %v6810 = vmul.f32 %v6729, 0.5
        %v6811 = vmul.f32 %v6734, 0.5
        %v6812 = vadd.f32 %v6806, 1.0
        %v6813 = vadd.f32 %v6807, 1.0
        %v6814 = vadd.f32 %v6808, 1.0
        %v6815 = vmul.f32 %v6809, %v6812
        %v6816 = vmul.f32 %v6810, %v6813
        %v6817 = vmul.f32 %v6811, %v6814
        %s6818 = scalar_lea.vmem %s17, 128
        %v6819 = vld [vmem:[%s6818] sm:$0xff]
        %v6820 = vld [vmem:[%s6818 + $0x8] sm:$0xff]
        %v6821 = vld [vmem:[%s6818 + $0x10] sm:$0xff]
        %v6822 = vld [vmem:[%s6818 + $0x18] sm:$0xff]
        %v6823 = vld [vmem:[%s6818 + $0x20] sm:$0xff]
        %v6824 = vld [vmem:[%s6818 + $0x28] sm:$0xff]
        %v6825 = vld [vmem:[%s6818 + $0x30] sm:$0xff]
        %v6826 = vld [vmem:[%s6818 + $0x38] sm:$0xff]
        %v6827 = vld [vmem:[%s6818 + $0x40] sm:$0xff]
        %v6828 = vld [vmem:[%s6818 + $0x48] sm:$0xff]
        %v6829 = vld [vmem:[%s6818 + $0x50] sm:$0xff]
        %v6830 = vld [vmem:[%s6818 + $0x58] sm:$0xff]
        %v6831 = vld [vmem:[%s6818 + $0x60] sm:$0xff]
        %v6832 = vld [vmem:[%s6818 + $0x68] sm:$0xff]
        %v6833 = vld [vmem:[%s6818 + $0x70] sm:$0xff]
        %v6834 = vld [vmem:[%s6818 + $0x78] sm:$0xff]
        %s6835 = scalar_lea.vmem %s18, 1
        %v6836 = vld [vmem:[%s6835] sm:$0x1]
        %v6838 = vlaneseq
        %v6839 = vshrl.u32 %v6838, 7
        %v6840 = vsub.s32 0, %v6839
        %v6841 = vrot.slane %v6836, %v6840
        %6843 = vmatprep.subr.mxu0 0.0
        %6844 = vmatpush1.msra.mxu0 %v6834
        %6845 = vmatprep.subr.mxu0 0.0
        %6846 = vmatpush1.msra.mxu0 %v6833
        %6847 = vmatprep.subr.mxu0 0.0
        %6848 = vmatpush1.msra.mxu0 %v6832
        %6849 = vmatprep.subr.mxu0 0.0
        %6850 = vmatpush1.msra.mxu0 %v6831
        %6851 = vmatprep.subr.mxu0 0.0
        %6852 = vmatpush1.msra.mxu0 %v6830
        %6853 = vmatprep.subr.mxu0 0.0
        %6854 = vmatpush1.msra.mxu0 %v6829
        %6855 = vmatprep.subr.mxu0 0.0
        %6856 = vmatpush1.msra.mxu0 %v6828
        %6857 = vmatprep.subr.mxu0 0.0
        %6858 = vmatpush1.msra.mxu0 %v6827
        %6859 = vmatprep.subr.mxu0 0.0
        %6860 = vmatpush1.msra.mxu0 %v6826
        %6861 = vmatprep.subr.mxu0 0.0
        %6862 = vmatpush1.msra.mxu0 %v6825
        %6863 = vmatprep.subr.mxu0 0.0
        %6864 = vmatpush1.msra.mxu0 %v6824
        %6865 = vmatprep.subr.mxu0 0.0
        %6866 = vmatpush1.msra.mxu0 %v6823
        %6867 = vmatprep.subr.mxu0 0.0
        %6868 = vmatpush1.msra.mxu0 %v6822
        %6869 = vmatprep.subr.mxu0 0.0
        %6870 = vmatpush1.msra.mxu0 %v6821
        %6871 = vmatprep.subr.mxu0 0.0
        %6872 = vmatpush1.msra.mxu0 %v6820
        %6873 = vmatprep.subr.mxu0 0.0
        %6874 = vmatpush1.msra.mxu0 %v6819
        %6875 = vmatprep.subr.mxu0 0.0
        %6876 = vmatpush2.msra.mxu0 0.0
        %6877 = vmatprep.subr.mxu0 0.0
        %6878 = vmatpush2.msra.mxu0 0.0
        %6879 = vmatprep.subr.mxu0 0.0
        %6880 = vmatpush2.msra.mxu0 0.0
        %6881 = vmatprep.subr.mxu0 0.0
        %6882 = vmatpush2.msra.mxu0 0.0
        %6883 = vmatprep.subr.mxu0 0.0
        %6884 = vmatpush2.msra.mxu0 0.0
        %6885 = vmatprep.subr.mxu0 0.0
        %6886 = vmatpush2.msra.mxu0 0.0
        %6887 = vmatprep.subr.mxu0 0.0
        %6888 = vmatpush2.msra.mxu0 0.0
        %6889 = vmatprep.subr.mxu0 0.0
        %6890 = vmatpush2.msra.mxu0 0.0
        %6891 = vmatprep.subr.mxu0 0.0
        %6892 = vmatpush2.msra.mxu0 0.0
        %6893 = vmatprep.subr.mxu0 0.0
        %6894 = vmatpush2.msra.mxu0 0.0
        %6895 = vmatprep.subr.mxu0 0.0
        %6896 = vmatpush2.msra.mxu0 0.0
        %6897 = vmatprep.subr.mxu0 0.0
        %6898 = vmatpush2.msra.mxu0 0.0
        %6899 = vmatprep.subr.mxu0 0.0
        %6900 = vmatpush2.msra.mxu0 0.0
        %6901 = vmatprep.subr.mxu0 0.0
        %6902 = vmatpush2.msra.mxu0 0.0
        %6903 = vmatprep.subr.mxu0 0.0
        %6904 = vmatpush2.msra.mxu0 0.0
        %6905 = vmatprep.subr.mxu0 0.0
        %6906 = vmatpush2.msra.mxu0 0.0
        %6907 = vmatprep.mubr.f32.mxu0 0.0
        %6908 = vmatmul.mubr.f32.gmra.mxu0 %v6815
        %v6909 = vpop.f32.mrf.mxu0
        %v6910 = vadd.f32 %v6841, %v6909
        %v6911 = vpop.f32.mrf.mxu0
        %6912 = vmatprep.mubr.f32.mxu0 0.0
        %6913 = vmatmul.mubr.f32.gmra.mxu0 %v6816
        %v6914 = vpop.f32.mrf.mxu0
        %v6915 = vpop.f32.mrf.mxu0
        %6916 = vmatprep.mubr.f32.mxu0 0.0
        %6917 = vmatmul.mubr.f32.gmra.mxu0 %v6817
        %v6918 = vpop.f32.mrf.mxu0
        %v6919 = vpop.f32.mrf.mxu0
        %6920 = vdwg.mxu0
        %v6921 = vadd.f32 %v6367, %v6910
        %v6922 = vadd.f32 %v6921, %v6573
        %v6923 = vld [vmem:[%s23] sm:$0x1]
        %v6924 = vld [vmem:[%s24] sm:$0x1]
        %vm6925 = vcmask 253952
        %v6926 = vsel %vm6925, %v6922, 0.0
        %6927 = vadd.xlane.f32.xlu0 %v6926
        %v6928 = vpop.xlane.xlu0 %6927
        %v6929 = vmul.f32 %v6928, %v880
        %v6930 = vsub.f32 %v6922, %v6929
        %v6931 = vmul.f32 %v6930, %v6930
        %v6932 = vsel %vm6925, %v6931, 0.0
        %6933 = vadd.xlane.f32.xlu0 %v6932
        %v6934 = vpop.xlane.xlu0 %6933
        %v6935 = vmul.f32 %v6934, %v880
        %v6936 = vadd.f32 %v6935, 1e-06
        %v6937 = vrsqrt.pop %v6936
        %v6938 = vmul.f32 %v6930, %v6937
        %v6939 = vmul.f32 %v6938, %v6923
        %v6940 = vadd.f32 %v6939, %v6924
        %6941 = vst.msk [vmem:[%s756] sm:$0x1] %vm6925, %v6940
        %s6942 = sand.u32 %s577, 1
        %s6943 = scalar_lea.sflag [#allocation3], %s6942
        %s6944 = sand.u32 %s577, 1
        %s6945 = scalar_lea.vmem [#allocation2], %s6944
        // Predicated region
        $region121: #{vit_forward.1} parent=119 // pred_check
          %p6946 = pneg %p587
        $region122: #{vit_forward.1} parent=119 // pred_check_branch
          %6948 = sbr.rel (%p6946) target = $region124
        $region123: #{vit_forward.1} parent=119 // pred_region
          %s6950 = ssub.s32 16, 16
          %6951 = vsyncadd %s6943, %s6950
          %s6952 = smul.addr %s39, 16
          %s6953 = scalar_lea.hbm %s25, %s6952
          %s6955 = sshll.u32 %s6945, 4
          %s6956 = int_to_ptr.vmem [resolvable:$true] %s6955
          %6958 = dma.vmem_to_hbm [thread:$0]  %s6956, 16, %s6953, %s6943
        $region124: #{vit_forward.1} parent=119 // pred_fallthru
          _
      $region120: #{vit_forward.1} parent=5 // pred_fallthru
        _
      %p6959 = scmp.le.s32.totalorder 2, %s34
      // Predicated region
      $region125: #{vit_forward.1} parent=5 // pred_check
        %p6960 = pneg %p6959
      $region126: #{vit_forward.1} parent=5 // pred_check_branch
        %6962 = sbr.rel (%p6960) target = $region128
      $region127: #{vit_forward.1} parent=5 // pred_region
        %s6963 = ssub.s32 %s34, 2
        // Predicated region
        $region129: #{vit_forward.1} parent=127 // pred_check
          %p6964 = pneg %p593
        $region130: #{vit_forward.1} parent=127 // pred_check_branch
          %6966 = sbr.rel (%p6964) target = $region132
        $region131: #{vit_forward.1} parent=127 // pred_region
          %s6967 = sand.u32 %s578, 1
          %s6968 = scalar_lea.sflag [#allocation3], %s6967
          %s6969 = sand.u32 %s578, 1
          %s6970 = scalar_lea.vmem [#allocation2], %s6969
          %6971 = dma.done %s6968, 16
        $region132: #{vit_forward.1} parent=127 // pred_fallthru
          _
      $region128: #{vit_forward.1} parent=5 // pred_fallthru
        _
    $region6: #{vit_forward.1} parent=1 // loop_footer
      %s38 = sadd.s32 1, %s34
    $region7: #{vit_forward.1} parent=1 // loop_footer_branch
      %33 = sbr.rel target = $region3
    $region8: #{vit_forward.1} parent=1 // loop_exit
      _
    %6972 = vsyncpa [#allocation3], 1
    %s6973 = scalar_lea.sflag [#allocation3], 1
    %6974 = vsyncpa %s6973, 1

</llo_original>
